<compile_context>
chip_gen: v5e
topology: v5e:2x2
jax: 0.10.0
libtpu: 0.0.40
codegen_flags: <defaults>
</compile_context>

<pallas_src>
import functools

import jax
import jax.numpy as jnp
from jax import lax
from jax.experimental import pallas as pl
from jax.experimental.pallas import tpu as pltpu

EPS = 1e-5


def _round_up(x, m):
    return (x + m - 1) // m * m


# ---------------------------------------------------------------------------
# Kernel 1: fused dense1 -> BN -> ReLU -> dense2 -> BN -> ReLU -> dense3 -> BN -> ReLU
#
# Notes on the BN epilogue:
#   * Linear biases are dropped: BatchNorm's mean subtraction cancels them.
#   * Batch rows are zero-padded to Mp; with no bias the padded accumulator
#     rows are exactly zero, so unmasked column sums / m_valid give exact
#     batch statistics.  Intermediate activations have their padded rows
#     re-zeroed before feeding the next matmul.
#   * var = E[x^2] - mean^2 (one-pass).  At these magnitudes the f32 rounding
#     (~1e-7) is far below eps=1e-5, so var+eps cannot go non-positive.
# ---------------------------------------------------------------------------
def _dense_fused_kernel(x_ref, w1_ref, gb1_ref, w2_ref, gb2_ref,
                        w3_ref, gb3_ref, o_ref, *, m_valid, eps):
    def bn_relu(acc, gb_ref, zero_padded_rows):
        inv_cnt = 1.0 / m_valid
        s1 = jnp.sum(acc, axis=0, keepdims=True)
        s2 = jnp.sum(acc * acc, axis=0, keepdims=True)
        mean = s1 * inv_cnt
        var = s2 * inv_cnt - mean * mean
        scale = lax.rsqrt(var + eps) * gb_ref[0:1, :]
        out = jnp.maximum((acc - mean) * scale + gb_ref[1:2, :], 0.0)
        if zero_padded_rows and m_valid < acc.shape[0]:
            row = lax.broadcasted_iota(jnp.int32, acc.shape, 0)
            out = jnp.where(row < m_valid, out, 0.0)
        return out

    h = jnp.dot(x_ref[...], w1_ref[...].astype(jnp.float32),
                preferred_element_type=jnp.float32)
    h = bn_relu(h, gb1_ref, True)
    h = jnp.dot(h.astype(jnp.bfloat16), w2_ref[...],
                preferred_element_type=jnp.float32)
    h = bn_relu(h, gb2_ref, True)
    h = jnp.dot(h.astype(jnp.bfloat16), w3_ref[...],
                preferred_element_type=jnp.float32)
    h = bn_relu(h, gb3_ref, False)        # padded rows are sliced off by caller
    o_ref[...] = h.astype(o_ref.dtype)


def dense_stack(x, p, *, tn=896):
    """(B, 128) f32 -> (B, 6272) bf16, columns already in (h, w, c) NHWC order."""
    B = x.shape[0]
    Mp = _round_up(B, 16)
    if Mp != B:
        x = jnp.pad(x, ((0, Mp - B), (0, 0)))
    N3 = p["w3p"].shape[1]
    assert N3 % tn == 0
    kernel = functools.partial(_dense_fused_kernel, m_valid=B, eps=EPS)
    out = pl.pallas_call(
        kernel,
        out_shape=jax.ShapeDtypeStruct((Mp, N3), jnp.bfloat16),
        grid_spec=pltpu.PrefetchScalarGridSpec(
            num_scalar_prefetch=0,
            grid=(N3 // tn,),
            in_specs=[
                pl.BlockSpec((Mp, 128), lambda j: (0, 0)),
                pl.BlockSpec((128, 256), lambda j: (0, 0)),
                pl.BlockSpec((2, 256), lambda j: (0, 0)),
                pl.BlockSpec((256, 1024), lambda j: (0, 0)),
                pl.BlockSpec((2, 1024), lambda j: (0, 0)),
                pl.BlockSpec((1024, tn), lambda j: (0, j)),
                pl.BlockSpec((2, tn), lambda j: (0, j)),
            ],
            out_specs=pl.BlockSpec((Mp, tn), lambda j: (0, j)),
        ),
        compiler_params=pltpu.CompilerParams(
            dimension_semantics=("parallel",)),
    )(x, p["w1"], p["gb1"], p["w2"], p["gb2"], p["w3p"], p["gb3p"])
    return out[:B]


# ---------------------------------------------------------------------------
# Kernel 2: ConvTranspose2d(k=4, s=2, p=1) as a sub-pixel phase matmul with the
# following BatchNorm2d + ReLU fused into the epilogue.  BatchNorm2d statistics
# pool over all output pixels, i.e. over the batch rows AND the 4 sub-pixel
# phase column groups; pool + broadcast-back is one tiny matmul against a 0/1
# "same channel" matrix built from elementwise compares (no lane slicing).
# ---------------------------------------------------------------------------
def _deconv_bn_relu_kernel(x_ref, w_ref, gb_ref, o_ref, *, m_valid, n_phases, eps):
    acc = jnp.dot(x_ref[...], w_ref[...], preferred_element_type=jnp.float32)
    n = acc.shape[1]
    cout = n // n_phases
    s1 = jnp.sum(acc, axis=0, keepdims=True)       # padded rows are exact zeros
    s2 = jnp.sum(acc * acc, axis=0, keepdims=True)

    r = lax.broadcasted_iota(jnp.int32, (n, n), 0)
    c = lax.broadcasted_iota(jnp.int32, (n, n), 1)
    d = r - c
    same = d == 0
    for ph in range(1, n_phases):
        same = jnp.logical_or(same,
                              jnp.logical_or(d == ph * cout, d == -ph * cout))
    pool = jnp.where(same, 1.0, 0.0).astype(jnp.float32)
    s = jnp.concatenate([s1, s2], axis=0)                        # (2, n)
    sp = jnp.dot(s, pool, preferred_element_type=jnp.float32)    # pooled + bcast

    inv_cnt = 1.0 / (m_valid * n_phases)
    mean = sp[0:1, :] * inv_cnt
    var = sp[1:2, :] * inv_cnt - mean * mean
    scale = lax.rsqrt(var + eps) * gb_ref[0:1, :]
    out = jnp.maximum((acc - mean) * scale + gb_ref[1:2, :], 0.0)
    o_ref[...] = out.astype(o_ref.dtype)


# Kernel 3: final sub-pixel phase matmul + bias + sigmoid (no BN).
def _deconv_sigmoid_kernel(x_ref, w_ref, b_ref, o_ref):
    acc = jnp.dot(x_ref[...], w_ref[...], preferred_element_type=jnp.float32)
    o_ref[...] = jax.nn.sigmoid(acc + b_ref[...]).astype(o_ref.dtype)


def _im2col_3x3(x_nhwc):
    """3x3 patches of the (+1)-padded NHWC map -> (B*H*W, 9*C)."""
    B, H, W, C = x_nhwc.shape
    xpad = jnp.pad(x_nhwc, ((0, 0), (1, 1), (1, 1), (0, 0)))
    patches = jnp.stack(
        [xpad[:, py:py + H, px:px + W, :] for py in range(3) for px in range(3)],
        axis=3)                                    # (B, H, W, 9, C)
    return patches.reshape(B * H * W, 9 * C)


def _interleave_phases(y, B, H, W, cout):
    """(B*H*W, 4*cout) phase-major columns -> (B, 2H, 2W, cout)."""
    y = y.reshape(B, H, W, 2, 2, cout)
    y = jnp.transpose(y, (0, 1, 3, 2, 4, 5))
    return y.reshape(B, 2 * H, 2 * W, cout)


def deconv1_bn_relu(x_nhwc, p):
    """ConvTranspose2d(128->64, 4, stride 2, pad 1) + BatchNorm2d + ReLU."""
    B, H, W, _ = x_nhwc.shape
    w, gb = p["wu1m"], p["gb4"]
    K, N = w.shape
    m = B * H * W
    mp = _round_up(m, 16)
    patches = _im2col_3x3(x_nhwc)
    if mp != m:
        patches = jnp.pad(patches, ((0, mp - m), (0, 0)))
    kernel = functools.partial(_deconv_bn_relu_kernel,
                               m_valid=m, n_phases=4, eps=EPS)
    out = pl.pallas_call(
        kernel,
        out_shape=jax.ShapeDtypeStruct((mp, N), jnp.bfloat16),
        grid_spec=pltpu.PrefetchScalarGridSpec(
            num_scalar_prefetch=0,
            grid=(1,),
            in_specs=[
                pl.BlockSpec((mp, K), lambda i: (0, 0)),
                pl.BlockSpec((K, N), lambda i: (0, 0)),
                pl.BlockSpec((2, N), lambda i: (0, 0)),
            ],
            out_specs=pl.BlockSpec((mp, N), lambda i: (0, 0)),
        ),
    )(patches, w, gb)
    return _interleave_phases(out[:m], B, H, W, N // 4)


def deconv2_sigmoid(x_nhwc, p):
    """ConvTranspose2d(64->1, 4, stride 2, pad 1) + Sigmoid."""
    B, H, W, _ = x_nhwc.shape
    w, b = p["wu2m"], p["bu2m"]
    K, Npad = w.shape
    m = B * H * W
    mp = _round_up(m, 16)
    patches = _im2col_3x3(x_nhwc)
    if mp != m:
        patches = jnp.pad(patches, ((0, mp - m), (0, 0)))
    out = pl.pallas_call(
        _deconv_sigmoid_kernel,
        out_shape=jax.ShapeDtypeStruct((mp, Npad), jnp.float32),
        grid_spec=pltpu.PrefetchScalarGridSpec(
            num_scalar_prefetch=0,
            grid=(1,),
            in_specs=[
                pl.BlockSpec((mp, K), lambda i: (0, 0)),
                pl.BlockSpec((K, Npad), lambda i: (0, 0)),
                pl.BlockSpec((1, Npad), lambda i: (0, 0)),
            ],
            out_specs=pl.BlockSpec((mp, Npad), lambda i: (0, 0)),
        ),
    )(patches, w, b)
    return _interleave_phases(out[:m, :4], B, H, W, 1)


# ---------------------------------------------------------------------------
# Parameters and weight preprocessing.
# ---------------------------------------------------------------------------
_KY_MAP = ((3, 1), (2, 0))   # output phase r, window offset dy -> kernel tap ky


def _phase_weight(w):
    """PyTorch ConvTranspose2d weight (Cin, Cout, 4, 4) -> (9*Cin, 4*Cout)
    matmul weight over 3x3 patches of the (+1)-padded input; the 4*Cout columns
    are the (r, c) sub-pixel phases (phase-major, channel-minor)."""
    Cin, Cout = w.shape[0], w.shape[1]
    big = jnp.zeros((3, 3, Cin, 2, 2, Cout), w.dtype)
    for r in range(2):
        for c in range(2):
            for dy in range(2):
                for dx in range(2):
                    big = big.at[r + dy, c + dx, :, r, c, :].set(
                        w[:, :, _KY_MAP[r][dy], _KY_MAP[c][dx]])
    return big.reshape(9 * Cin, 4 * Cout)


def make_params(key):
    """Raw parameters in the PyTorch module's layout."""
    ks = jax.random.split(key, 10)

    def init(k, shape, scale=0.05):
        return jax.random.normal(k, shape, jnp.float32) * scale

    return {
        "w1": init(ks[0], (128, 256)), "b1": init(ks[1], (256,)),
        "w2": init(ks[2], (256, 1024)), "b2": init(ks[3], (1024,)),
        "w3": init(ks[4], (1024, 128 * 7 * 7)), "b3": init(ks[5], (128 * 7 * 7,)),
        "wu1": init(ks[6], (128, 64, 4, 4)), "bu1": init(ks[7], (64,)),
        "wu2": init(ks[8], (64, 1, 4, 4)), "bu2": init(ks[9], (1,)),
        # BatchNorm affine params (PyTorch default init: gamma=1, beta=0).
        "g1": jnp.ones((256,)), "be1": jnp.zeros((256,)),
        "g2": jnp.ones((1024,)), "be2": jnp.zeros((1024,)),
        "g3": jnp.ones((128 * 7 * 7,)), "be3": jnp.zeros((128 * 7 * 7,)),
        "g4": jnp.ones((64,)), "be4": jnp.zeros((64,)),
    }


def prepare_params(p):
    """One-time weight preprocessing (outside the jitted forward):
       bf16 weight storage, dense3 column permutation to NHWC order,
       ConvTranspose2d -> phase matmul weights, packed gamma/beta operands,
       and biases dropped wherever a BatchNorm follows (exactly cancelled)."""
    def gb(g, b):
        return jnp.stack([g, b], axis=0).astype(jnp.float32)

    # PyTorch .view(-1, 128, 7, 7) orders dense3's features as (c, h, w);
    # permute the weight columns to (h, w, c) so the output is already NHWC.
    hw = jnp.arange(49)
    c = jnp.arange(128)
    perm = (c[None, :] * 49 + hw[:, None]).reshape(-1)           # new col -> old col

    wu2m = _phase_weight(p["wu2"])                               # (576, 4)
    n2pad = 128
    wu2m = jnp.pad(wu2m, ((0, 0), (0, n2pad - wu2m.shape[1])))
    bu2m = jnp.pad(jnp.tile(p["bu2"], 4), ((0, n2pad - 4),)).reshape(1, n2pad)

    return {
        "w1": p["w1"].astype(jnp.bfloat16),
        "gb1": gb(p["g1"], p["be1"]),
        "w2": p["w2"].astype(jnp.bfloat16),
        "gb2": gb(p["g2"], p["be2"]),
        "w3p": p["w3"][:, perm].astype(jnp.bfloat16),
        "gb3p": gb(p["g3"][perm], p["be3"][perm]),
        "wu1m": _phase_weight(p["wu1"]).astype(jnp.bfloat16),    # (1152, 256)
        "gb4": gb(jnp.tile(p["g4"], 4), jnp.tile(p["be4"], 4)),  # phase-major
        "wu2m": wu2m.astype(jnp.bfloat16),
        "bu2m": bu2m.astype(jnp.float32),
    }


def generator_forward(x, p):
    B = x.shape[0]
    h = dense_stack(x, p)                    # (B, 6272) bf16, NHWC column order
    h = h.reshape(B, 7, 7, 128)              # NHWC directly -- no transpose
    h = deconv1_bn_relu(h, p)                # (B, 14, 14, 64) bf16
    h = deconv2_sigmoid(h, p)                # (B, 28, 28, 1)  f32
    return jnp.transpose(h, (0, 3, 1, 2))    # NCHW (B, 1, 28, 28)


# ---------------------------------------------------------------------------
# Pure-JAX reference (PyTorch train-mode semantics) for the correctness check.
# ---------------------------------------------------------------------------
def _ref_bn1d(y, g, b, eps=EPS):
    m = y.mean(0)
    v = ((y - m) ** 2).mean(0)
    return (y - m) * lax.rsqrt(v + eps) * g + b


def _ref_bn2d_nchw(y, g, b, eps=EPS):
    m = y.mean(axis=(0, 2, 3), keepdims=True)
    v = ((y - m) ** 2).mean(axis=(0, 2, 3), keepdims=True)
    return (y - m) * lax.rsqrt(v + eps) * g.reshape(1, -1, 1, 1) + b.reshape(1, -1, 1, 1)


def _ref_conv_transpose(x_nchw, w, b):       # kernel 4, stride 2, padding 1
    N, Cin, H, W = x_nchw.shape
    Cout = w.shape[1]
    full = jnp.zeros((N, Cout, 2 * H + 2, 2 * W + 2), jnp.float32)
    for ky in range(4):
        for kx in range(4):
            contrib = jnp.einsum("nchw,cd->ndhw", x_nchw, w[:, :, ky, kx])
            full = full.at[:, :, ky:ky + 2 * H:2, kx:kx + 2 * W:2].add(contrib)
    return full[:, :, 1:2 * H + 1, 1:2 * W + 1] + b.reshape(1, -1, 1, 1)


def _round_bf16(a):
    return a.astype(jnp.bfloat16).astype(jnp.float32)


def generator_reference(x, p):
    """Plain-JAX reference evaluated at matched precision (bf16-rounded weights
    and dense activations): with batch=2, train-mode BN is exactly a
    per-feature sign function, so any operand-precision mismatch between
    implementations can flip signs and cascade; matching the precision keeps
    the comparison meaningful while still exercising independent math
    (including the biases that the kernels drop under BN)."""
    B = x.shape[0]
    h = jnp.maximum(_ref_bn1d(x @ p["w1"] + p["b1"], p["g1"], p["be1"]), 0.0)
    h = _round_bf16(h)
    h = jnp.maximum(_ref_bn1d(h @ p["w2"] + p["b2"], p["g2"], p["be2"]), 0.0)
    h = _round_bf16(h)
    h = jnp.maximum(_ref_bn1d(h @ p["w3"] + p["b3"], p["g3"], p["be3"]), 0.0)
    h = _round_bf16(h)
    h = h.reshape(B, 128, 7, 7)
    h = _ref_conv_transpose(h, p["wu1"], p["bu1"])
    h = jnp.maximum(_ref_bn2d_nchw(h, p["g4"], p["be4"]), 0.0)
    h = _ref_conv_transpose(h, p["wu2"], p["bu2"])
    return jax.nn.sigmoid(h)


if __name__ == "__main__":
    key = jax.random.PRNGKey(0)
    pkey, xkey = jax.random.split(key)
    raw = make_params(pkey)
    params = prepare_params(raw)
    x = jax.random.normal(xkey, (2, 128), jnp.float32)

    fwd = jax.jit(lambda xx: generator_forward(xx, params))
    y = jax.block_until_ready(fwd(x))
    assert y.shape == (2, 1, 28, 28), y.shape
    assert bool(jnp.all(jnp.isfinite(y)))

    # Correctness check against the plain-JAX reference at matched weight precision.
    ref_p = dict(raw)
    for k in ("w1", "w2", "w3", "wu1", "wu2"):
        ref_p[k] = _round_bf16(raw[k])
    y_ref = generator_reference(x, ref_p)
    err = float(jnp.max(jnp.abs(y - y_ref)))
    assert err < 5e-2, f"mismatch vs reference: {err}"
    print("KERNEL_OK")
</pallas_src>

<mosaic_0001>
module attributes {stable_mosaic.version = 11 : i64} {
  func.func @_dense_fused_kernel(%arg0: i32, %arg1: memref<16x128xf32, #tpu.memory_space<vmem>>, %arg2: memref<128x256xbf16, #tpu.memory_space<vmem>>, %arg3: memref<2x256xf32, #tpu.memory_space<vmem>>, %arg4: memref<256x1024xbf16, #tpu.memory_space<vmem>>, %arg5: memref<2x1024xf32, #tpu.memory_space<vmem>>, %arg6: memref<1024x896xbf16, #tpu.memory_space<vmem>>, %arg7: memref<2x896xf32, #tpu.memory_space<vmem>>, %arg8: memref<16x896xbf16, #tpu.memory_space<vmem>>) attributes {dimension_semantics = [#tpu.dimension_semantics<parallel>], iteration_bounds = array<i64: 7>, scalar_prefetch = 0 : i64, scratch_operands = 0 : i64, tpu.core_type = #tpu.core_type<tc>, window_params = [{pipeline_mode = #tpu.pipeline_mode<synchronous>, transform_indices = @transform_0, window_bounds = array<i64: 16, 128>}, {pipeline_mode = #tpu.pipeline_mode<synchronous>, transform_indices = @transform_1, window_bounds = array<i64: 128, 256>}, {pipeline_mode = #tpu.pipeline_mode<synchronous>, transform_indices = @transform_2, window_bounds = array<i64: 2, 256>}, {pipeline_mode = #tpu.pipeline_mode<synchronous>, transform_indices = @transform_3, window_bounds = array<i64: 256, 1024>}, {pipeline_mode = #tpu.pipeline_mode<synchronous>, transform_indices = @transform_4, window_bounds = array<i64: 2, 1024>}, {transform_indices = @transform_5, window_bounds = array<i64: 1024, 896>}, {transform_indices = @transform_6, window_bounds = array<i64: 2, 896>}, {transform_indices = @transform_7, window_bounds = array<i64: 16, 896>}]} {
    %c0 = arith.constant 0 : index
    %c0_0 = arith.constant 0 : index
    %0 = vector.load %arg1[%c0, %c0_0] : memref<16x128xf32, #tpu.memory_space<vmem>>, vector<16x128xf32>
    %c0_1 = arith.constant 0 : index
    %c0_2 = arith.constant 0 : index
    %1 = vector.load %arg2[%c0_1, %c0_2] : memref<128x256xbf16, #tpu.memory_space<vmem>>, vector<128x256xbf16>
    %2 = arith.extf %1 : vector<128x256xbf16> to vector<128x256xf32>
    %cst = arith.constant dense<0.000000e+00> : vector<16x256xf32>
    %3 = tpu.matmul %0, %2, %cst {dimension_numbers = #tpu.dot_dimension_numbers<[1], [0], [0], [1], [0, 0, 1, 1], [], []>} : vector<16x128xf32>, vector<128x256xf32>, vector<16x256xf32> -> vector<16x256xf32>
    %cst_3 = arith.constant dense<0.000000e+00> : vector<256xf32>
    %4 = vector.multi_reduction <add>, %3, %cst_3 [0] : vector<16x256xf32> to vector<256xf32>
    %5 = vector.shape_cast %4 : vector<256xf32> to vector<1x256xf32>
    %6 = arith.mulf %3, %3 : vector<16x256xf32>
    %cst_4 = arith.constant dense<0.000000e+00> : vector<256xf32>
    %7 = vector.multi_reduction <add>, %6, %cst_4 [0] : vector<16x256xf32> to vector<256xf32>
    %8 = vector.shape_cast %7 : vector<256xf32> to vector<1x256xf32>
    %cst_5 = arith.constant 5.000000e-01 : f32
    %9 = vector.broadcast %cst_5 : f32 to vector<1x256xf32>
    %10 = arith.mulf %5, %9 : vector<1x256xf32>
    %cst_6 = arith.constant 5.000000e-01 : f32
    %11 = vector.broadcast %cst_6 : f32 to vector<1x256xf32>
    %12 = arith.mulf %8, %11 : vector<1x256xf32>
    %13 = arith.mulf %10, %10 : vector<1x256xf32>
    %14 = arith.subf %12, %13 : vector<1x256xf32>
    %cst_7 = arith.constant 9.99999974E-6 : f32
    %15 = vector.broadcast %cst_7 : f32 to vector<1x256xf32>
    %16 = arith.addf %14, %15 : vector<1x256xf32>
    %17 = math.rsqrt %16 : vector<1x256xf32>
    %c0_8 = arith.constant 0 : index
    %c0_9 = arith.constant 0 : index
    %18 = vector.load %arg3[%c0_8, %c0_9] : memref<2x256xf32, #tpu.memory_space<vmem>>, vector<1x256xf32>
    %19 = arith.mulf %17, %18 : vector<1x256xf32>
    %20 = vector.broadcast %10 : vector<1x256xf32> to vector<16x256xf32>
    %21 = arith.subf %3, %20 : vector<16x256xf32>
    %22 = vector.broadcast %19 : vector<1x256xf32> to vector<16x256xf32>
    %23 = arith.mulf %21, %22 : vector<16x256xf32>
    %c1 = arith.constant 1 : index
    %c0_10 = arith.constant 0 : index
    %24 = vector.load %arg3[%c1, %c0_10] : memref<2x256xf32, #tpu.memory_space<vmem>>, vector<1x256xf32>
    %25 = vector.broadcast %24 : vector<1x256xf32> to vector<16x256xf32>
    %26 = arith.addf %23, %25 : vector<16x256xf32>
    %cst_11 = arith.constant 0.000000e+00 : f32
    %27 = vector.broadcast %cst_11 : f32 to vector<16x256xf32>
    %28 = arith.maximumf %26, %27 : vector<16x256xf32>
    %29 = tpu.iota {dimensions = array<i32: 0>} : vector<16x256xi32>
    %c2_i32 = arith.constant 2 : i32
    %30 = vector.broadcast %c2_i32 : i32 to vector<16x256xi32>
    %31 = arith.cmpi slt, %29, %30 : vector<16x256xi32>
    %cst_12 = arith.constant 0.000000e+00 : f32
    %32 = vector.broadcast %cst_12 : f32 to vector<16x256xf32>
    %33 = arith.select %31, %28, %32 : vector<16x256xi1>, vector<16x256xf32>
    %34 = arith.truncf %33 : vector<16x256xf32> to vector<16x256xbf16>
    %c0_13 = arith.constant 0 : index
    %c0_14 = arith.constant 0 : index
    %35 = vector.load %arg4[%c0_13, %c0_14] : memref<256x1024xbf16, #tpu.memory_space<vmem>>, vector<256x1024xbf16>
    %cst_15 = arith.constant dense<0.000000e+00> : vector<16x1024xf32>
    %36 = tpu.matmul %34, %35, %cst_15 {dimension_numbers = #tpu.dot_dimension_numbers<[1], [0], [0], [1], [0, 0, 1, 1], [], []>} : vector<16x256xbf16>, vector<256x1024xbf16>, vector<16x1024xf32> -> vector<16x1024xf32>
    %cst_16 = arith.constant dense<0.000000e+00> : vector<1024xf32>
    %37 = vector.multi_reduction <add>, %36, %cst_16 [0] : vector<16x1024xf32> to vector<1024xf32>
    %38 = vector.shape_cast %37 : vector<1024xf32> to vector<1x1024xf32>
    %39 = arith.mulf %36, %36 : vector<16x1024xf32>
    %cst_17 = arith.constant dense<0.000000e+00> : vector<1024xf32>
    %40 = vector.multi_reduction <add>, %39, %cst_17 [0] : vector<16x1024xf32> to vector<1024xf32>
    %41 = vector.shape_cast %40 : vector<1024xf32> to vector<1x1024xf32>
    %cst_18 = arith.constant 5.000000e-01 : f32
    %42 = vector.broadcast %cst_18 : f32 to vector<1x1024xf32>
    %43 = arith.mulf %38, %42 : vector<1x1024xf32>
    %cst_19 = arith.constant 5.000000e-01 : f32
    %44 = vector.broadcast %cst_19 : f32 to vector<1x1024xf32>
    %45 = arith.mulf %41, %44 : vector<1x1024xf32>
    %46 = arith.mulf %43, %43 : vector<1x1024xf32>
    %47 = arith.subf %45, %46 : vector<1x1024xf32>
    %cst_20 = arith.constant 9.99999974E-6 : f32
    %48 = vector.broadcast %cst_20 : f32 to vector<1x1024xf32>
    %49 = arith.addf %47, %48 : vector<1x1024xf32>
    %50 = math.rsqrt %49 : vector<1x1024xf32>
    %c0_21 = arith.constant 0 : index
    %c0_22 = arith.constant 0 : index
    %51 = vector.load %arg5[%c0_21, %c0_22] : memref<2x1024xf32, #tpu.memory_space<vmem>>, vector<1x1024xf32>
    %52 = arith.mulf %50, %51 : vector<1x1024xf32>
    %53 = vector.broadcast %43 : vector<1x1024xf32> to vector<16x1024xf32>
    %54 = arith.subf %36, %53 : vector<16x1024xf32>
    %55 = vector.broadcast %52 : vector<1x1024xf32> to vector<16x1024xf32>
    %56 = arith.mulf %54, %55 : vector<16x1024xf32>
    %c1_23 = arith.constant 1 : index
    %c0_24 = arith.constant 0 : index
    %57 = vector.load %arg5[%c1_23, %c0_24] : memref<2x1024xf32, #tpu.memory_space<vmem>>, vector<1x1024xf32>
    %58 = vector.broadcast %57 : vector<1x1024xf32> to vector<16x1024xf32>
    %59 = arith.addf %56, %58 : vector<16x1024xf32>
    %cst_25 = arith.constant 0.000000e+00 : f32
    %60 = vector.broadcast %cst_25 : f32 to vector<16x1024xf32>
    %61 = arith.maximumf %59, %60 : vector<16x1024xf32>
    %62 = tpu.iota {dimensions = array<i32: 0>} : vector<16x1024xi32>
    %c2_i32_26 = arith.constant 2 : i32
    %63 = vector.broadcast %c2_i32_26 : i32 to vector<16x1024xi32>
    %64 = arith.cmpi slt, %62, %63 : vector<16x1024xi32>
    %cst_27 = arith.constant 0.000000e+00 : f32
    %65 = vector.broadcast %cst_27 : f32 to vector<16x1024xf32>
    %66 = arith.select %64, %61, %65 : vector<16x1024xi1>, vector<16x1024xf32>
    %67 = arith.truncf %66 : vector<16x1024xf32> to vector<16x1024xbf16>
    %c0_28 = arith.constant 0 : index
    %c0_29 = arith.constant 0 : index
    %68 = vector.load %arg6[%c0_28, %c0_29] : memref<1024x896xbf16, #tpu.memory_space<vmem>>, vector<1024x896xbf16>
    %cst_30 = arith.constant dense<0.000000e+00> : vector<16x896xf32>
    %69 = tpu.matmul %67, %68, %cst_30 {dimension_numbers = #tpu.dot_dimension_numbers<[1], [0], [0], [1], [0, 0, 1, 1], [], []>} : vector<16x1024xbf16>, vector<1024x896xbf16>, vector<16x896xf32> -> vector<16x896xf32>
    %cst_31 = arith.constant dense<0.000000e+00> : vector<896xf32>
    %70 = vector.multi_reduction <add>, %69, %cst_31 [0] : vector<16x896xf32> to vector<896xf32>
    %71 = vector.shape_cast %70 : vector<896xf32> to vector<1x896xf32>
    %72 = arith.mulf %69, %69 : vector<16x896xf32>
    %cst_32 = arith.constant dense<0.000000e+00> : vector<896xf32>
    %73 = vector.multi_reduction <add>, %72, %cst_32 [0] : vector<16x896xf32> to vector<896xf32>
    %74 = vector.shape_cast %73 : vector<896xf32> to vector<1x896xf32>
    %cst_33 = arith.constant 5.000000e-01 : f32
    %75 = vector.broadcast %cst_33 : f32 to vector<1x896xf32>
    %76 = arith.mulf %71, %75 : vector<1x896xf32>
    %cst_34 = arith.constant 5.000000e-01 : f32
    %77 = vector.broadcast %cst_34 : f32 to vector<1x896xf32>
    %78 = arith.mulf %74, %77 : vector<1x896xf32>
    %79 = arith.mulf %76, %76 : vector<1x896xf32>
    %80 = arith.subf %78, %79 : vector<1x896xf32>
    %cst_35 = arith.constant 9.99999974E-6 : f32
    %81 = vector.broadcast %cst_35 : f32 to vector<1x896xf32>
    %82 = arith.addf %80, %81 : vector<1x896xf32>
    %83 = math.rsqrt %82 : vector<1x896xf32>
    %c0_36 = arith.constant 0 : index
    %c0_37 = arith.constant 0 : index
    %84 = vector.load %arg7[%c0_36, %c0_37] : memref<2x896xf32, #tpu.memory_space<vmem>>, vector<1x896xf32>
    %85 = arith.mulf %83, %84 : vector<1x896xf32>
    %86 = vector.broadcast %76 : vector<1x896xf32> to vector<16x896xf32>
    %87 = arith.subf %69, %86 : vector<16x896xf32>
    %88 = vector.broadcast %85 : vector<1x896xf32> to vector<16x896xf32>
    %89 = arith.mulf %87, %88 : vector<16x896xf32>
    %c1_38 = arith.constant 1 : index
    %c0_39 = arith.constant 0 : index
    %90 = vector.load %arg7[%c1_38, %c0_39] : memref<2x896xf32, #tpu.memory_space<vmem>>, vector<1x896xf32>
    %91 = vector.broadcast %90 : vector<1x896xf32> to vector<16x896xf32>
    %92 = arith.addf %89, %91 : vector<16x896xf32>
    %cst_40 = arith.constant 0.000000e+00 : f32
    %93 = vector.broadcast %cst_40 : f32 to vector<16x896xf32>
    %94 = arith.maximumf %92, %93 : vector<16x896xf32>
    %95 = arith.truncf %94 : vector<16x896xf32> to vector<16x896xbf16>
    %c0_41 = arith.constant 0 : index
    %c0_42 = arith.constant 0 : index
    %96 = vector.load %arg8[%c0_41, %c0_42] : memref<16x896xbf16, #tpu.memory_space<vmem>>, vector<16x896xbf16>
    tpu.vector_store %arg8[%c0_41, %c0_42], %95 {strides = array<i32>} : memref<16x896xbf16, #tpu.memory_space<vmem>>, vector<16x896xbf16>,
    return
  }
  func.func @transform_0(%arg0: i32) -> (i32, i32) {
    %c0_i32 = arith.constant 0 : i32
    %c0_i32_0 = arith.constant 0 : i32
    %c0_i32_1 = arith.constant 0 : i32
    return %c0_i32, %c0_i32_0 : i32, i32
  }
  func.func @transform_1(%arg0: i32) -> (i32, i32) {
    %c0_i32 = arith.constant 0 : i32
    %c0_i32_0 = arith.constant 0 : i32
    %c0_i32_1 = arith.constant 0 : i32
    return %c0_i32, %c0_i32_0 : i32, i32
  }
  func.func @transform_2(%arg0: i32) -> (i32, i32) {
    %c0_i32 = arith.constant 0 : i32
    %c0_i32_0 = arith.constant 0 : i32
    %c0_i32_1 = arith.constant 0 : i32
    return %c0_i32, %c0_i32_0 : i32, i32
  }
  func.func @transform_3(%arg0: i32) -> (i32, i32) {
    %c0_i32 = arith.constant 0 : i32
    %c0_i32_0 = arith.constant 0 : i32
    %c0_i32_1 = arith.constant 0 : i32
    return %c0_i32, %c0_i32_0 : i32, i32
  }
  func.func @transform_4(%arg0: i32) -> (i32, i32) {
    %c0_i32 = arith.constant 0 : i32
    %c0_i32_0 = arith.constant 0 : i32
    %c0_i32_1 = arith.constant 0 : i32
    return %c0_i32, %c0_i32_0 : i32, i32
  }
  func.func @transform_5(%arg0: i32) -> (i32, i32) {
    %c0_i32 = arith.constant 0 : i32
    %c0_i32_0 = arith.constant 0 : i32
    return %c0_i32, %arg0 : i32, i32
  }
  func.func @transform_6(%arg0: i32) -> (i32, i32) {
    %c0_i32 = arith.constant 0 : i32
    %c0_i32_0 = arith.constant 0 : i32
    return %c0_i32, %arg0 : i32, i32
  }
  func.func @transform_7(%arg0: i32) -> (i32, i32) {
    %c0_i32 = arith.constant 0 : i32
    %c0_i32_0 = arith.constant 0 : i32
    return %c0_i32, %arg0 : i32, i32
  }
}

module attributes {stable_mosaic.version = 11 : i64} {
  func.func @_deconv_bn_relu_kernel(%arg0: i32, %arg1: memref<112x1152xbf16, #tpu.memory_space<vmem>>, %arg2: memref<1152x256xbf16, #tpu.memory_space<vmem>>, %arg3: memref<2x256xf32, #tpu.memory_space<vmem>>, %arg4: memref<112x256xbf16, #tpu.memory_space<vmem>>) attributes {dimension_semantics = [#tpu.dimension_semantics<arbitrary>], iteration_bounds = array<i64: 1>, scalar_prefetch = 0 : i64, scratch_operands = 0 : i64, tpu.core_type = #tpu.core_type<tc>, window_params = [{pipeline_mode = #tpu.pipeline_mode<synchronous>, transform_indices = @transform_0, window_bounds = array<i64: 112, 1152>}, {pipeline_mode = #tpu.pipeline_mode<synchronous>, transform_indices = @transform_1, window_bounds = array<i64: 1152, 256>}, {pipeline_mode = #tpu.pipeline_mode<synchronous>, transform_indices = @transform_2, window_bounds = array<i64: 2, 256>}, {pipeline_mode = #tpu.pipeline_mode<synchronous>, transform_indices = @transform_3, window_bounds = array<i64: 112, 256>}]} {
    %c0 = arith.constant 0 : index
    %c0_0 = arith.constant 0 : index
    %0 = vector.load %arg1[%c0, %c0_0] : memref<112x1152xbf16, #tpu.memory_space<vmem>>, vector<112x1152xbf16>
    %c0_1 = arith.constant 0 : index
    %c0_2 = arith.constant 0 : index
    %1 = vector.load %arg2[%c0_1, %c0_2] : memref<1152x256xbf16, #tpu.memory_space<vmem>>, vector<1152x256xbf16>
    %cst = arith.constant dense<0.000000e+00> : vector<112x256xf32>
    %2 = tpu.matmul %0, %1, %cst {dimension_numbers = #tpu.dot_dimension_numbers<[1], [0], [0], [1], [0, 0, 1, 1], [], []>} : vector<112x1152xbf16>, vector<1152x256xbf16>, vector<112x256xf32> -> vector<112x256xf32>
    %cst_3 = arith.constant dense<0.000000e+00> : vector<256xf32>
    %3 = vector.multi_reduction <add>, %2, %cst_3 [0] : vector<112x256xf32> to vector<256xf32>
    %4 = vector.shape_cast %3 : vector<256xf32> to vector<1x256xf32>
    %5 = arith.mulf %2, %2 : vector<112x256xf32>
    %cst_4 = arith.constant dense<0.000000e+00> : vector<256xf32>
    %6 = vector.multi_reduction <add>, %5, %cst_4 [0] : vector<112x256xf32> to vector<256xf32>
    %7 = vector.shape_cast %6 : vector<256xf32> to vector<1x256xf32>
    %8 = tpu.iota {dimensions = array<i32: 0>} : vector<256x256xi32>
    %9 = tpu.iota {dimensions = array<i32: 1>} : vector<256x256xi32>
    %10 = arith.subi %8, %9 : vector<256x256xi32>
    %c0_i32 = arith.constant 0 : i32
    %11 = vector.broadcast %c0_i32 : i32 to vector<256x256xi32>
    %12 = arith.cmpi eq, %10, %11 : vector<256x256xi32>
    %c64_i32 = arith.constant 64 : i32
    %13 = vector.broadcast %c64_i32 : i32 to vector<256x256xi32>
    %14 = arith.cmpi eq, %10, %13 : vector<256x256xi32>
    %c-64_i32 = arith.constant -64 : i32
    %15 = vector.broadcast %c-64_i32 : i32 to vector<256x256xi32>
    %16 = arith.cmpi eq, %10, %15 : vector<256x256xi32>
    %17 = arith.ori %14, %16 : vector<256x256xi1>
    %18 = arith.ori %12, %17 : vector<256x256xi1>
    %c128_i32 = arith.constant 128 : i32
    %19 = vector.broadcast %c128_i32 : i32 to vector<256x256xi32>
    %20 = arith.cmpi eq, %10, %19 : vector<256x256xi32>
    %c-128_i32 = arith.constant -128 : i32
    %21 = vector.broadcast %c-128_i32 : i32 to vector<256x256xi32>
    %22 = arith.cmpi eq, %10, %21 : vector<256x256xi32>
    %23 = arith.ori %20, %22 : vector<256x256xi1>
    %24 = arith.ori %18, %23 : vector<256x256xi1>
    %c192_i32 = arith.constant 192 : i32
    %25 = vector.broadcast %c192_i32 : i32 to vector<256x256xi32>
    %26 = arith.cmpi eq, %10, %25 : vector<256x256xi32>
    %c-192_i32 = arith.constant -192 : i32
    %27 = vector.broadcast %c-192_i32 : i32 to vector<256x256xi32>
    %28 = arith.cmpi eq, %10, %27 : vector<256x256xi32>
    %29 = arith.ori %26, %28 : vector<256x256xi1>
    %30 = arith.ori %24, %29 : vector<256x256xi1>
    %cst_5 = arith.constant 1.000000e+00 : f32
    %cst_6 = arith.constant 0.000000e+00 : f32
    %31 = vector.broadcast %cst_5 : f32 to vector<256x256xf32>
    %32 = vector.broadcast %cst_6 : f32 to vector<256x256xf32>
    %33 = arith.select %30, %31, %32 : vector<256x256xi1>, vector<256x256xf32>
    %34 = tpu.concatenate %4, %7 in 0 : vector<1x256xf32>, vector<1x256xf32> -> vector<2x256xf32>
    %cst_7 = arith.constant dense<0.000000e+00> : vector<2x256xf32>
    %35 = tpu.matmul %34, %33, %cst_7 {dimension_numbers = #tpu.dot_dimension_numbers<[1], [0], [0], [1], [0, 0, 1, 1], [], []>} : vector<2x256xf32>, vector<256x256xf32>, vector<2x256xf32> -> vector<2x256xf32>
    %36 = vector.extract_strided_slice %35 {offsets = [0, 0], sizes = [1, 256], strides = [1, 1]} : vector<2x256xf32> to vector<1x256xf32>
    %cst_8 = arith.constant 0.00255102036 : f32
    %37 = vector.broadcast %cst_8 : f32 to vector<1x256xf32>
    %38 = arith.mulf %36, %37 : vector<1x256xf32>
    %39 = vector.extract_strided_slice %35 {offsets = [1, 0], sizes = [1, 256], strides = [1, 1]} : vector<2x256xf32> to vector<1x256xf32>
    %cst_9 = arith.constant 0.00255102036 : f32
    %40 = vector.broadcast %cst_9 : f32 to vector<1x256xf32>
    %41 = arith.mulf %39, %40 : vector<1x256xf32>
    %42 = arith.mulf %38, %38 : vector<1x256xf32>
    %43 = arith.subf %41, %42 : vector<1x256xf32>
    %cst_10 = arith.constant 9.99999974E-6 : f32
    %44 = vector.broadcast %cst_10 : f32 to vector<1x256xf32>
    %45 = arith.addf %43, %44 : vector<1x256xf32>
    %46 = math.rsqrt %45 : vector<1x256xf32>
    %c0_11 = arith.constant 0 : index
    %c0_12 = arith.constant 0 : index
    %47 = vector.load %arg3[%c0_11, %c0_12] : memref<2x256xf32, #tpu.memory_space<vmem>>, vector<1x256xf32>
    %48 = arith.mulf %46, %47 : vector<1x256xf32>
    %49 = vector.broadcast %38 : vector<1x256xf32> to vector<112x256xf32>
    %50 = arith.subf %2, %49 : vector<112x256xf32>
    %51 = vector.broadcast %48 : vector<1x256xf32> to vector<112x256xf32>
    %52 = arith.mulf %50, %51 : vector<112x256xf32>
    %c1 = arith.constant 1 : index
    %c0_13 = arith.constant 0 : index
    %53 = vector.load %arg3[%c1, %c0_13] : memref<2x256xf32, #tpu.memory_space<vmem>>, vector<1x256xf32>
    %54 = vector.broadcast %53 : vector<1x256xf32> to vector<112x256xf32>
    %55 = arith.addf %52, %54 : vector<112x256xf32>
    %cst_14 = arith.constant 0.000000e+00 : f32
    %56 = vector.broadcast %cst_14 : f32 to vector<112x256xf32>
    %57 = arith.maximumf %55, %56 : vector<112x256xf32>
    %58 = arith.truncf %57 : vector<112x256xf32> to vector<112x256xbf16>
    %c0_15 = arith.constant 0 : index
    %c0_16 = arith.constant 0 : index
    %59 = vector.load %arg4[%c0_15, %c0_16] : memref<112x256xbf16, #tpu.memory_space<vmem>>, vector<112x256xbf16>
    tpu.vector_store %arg4[%c0_15, %c0_16], %58 {strides = array<i32>} : memref<112x256xbf16, #tpu.memory_space<vmem>>, vector<112x256xbf16>,
    return
  }
  func.func @transform_0(%arg0: i32) -> (i32, i32) {
    %c0_i32 = arith.constant 0 : i32
    %c0_i32_0 = arith.constant 0 : i32
    %c0_i32_1 = arith.constant 0 : i32
    return %c0_i32, %c0_i32_0 : i32, i32
  }
  func.func @transform_1(%arg0: i32) -> (i32, i32) {
    %c0_i32 = arith.constant 0 : i32
    %c0_i32_0 = arith.constant 0 : i32
    %c0_i32_1 = arith.constant 0 : i32
    return %c0_i32, %c0_i32_0 : i32, i32
  }
  func.func @transform_2(%arg0: i32) -> (i32, i32) {
    %c0_i32 = arith.constant 0 : i32
    %c0_i32_0 = arith.constant 0 : i32
    %c0_i32_1 = arith.constant 0 : i32
    return %c0_i32, %c0_i32_0 : i32, i32
  }
  func.func @transform_3(%arg0: i32) -> (i32, i32) {
    %c0_i32 = arith.constant 0 : i32
    %c0_i32_0 = arith.constant 0 : i32
    %c0_i32_1 = arith.constant 0 : i32
    return %c0_i32, %c0_i32_0 : i32, i32
  }
}

module attributes {stable_mosaic.version = 11 : i64} {
  func.func @_deconv_sigmoid_kernel(%arg0: i32, %arg1: memref<400x576xbf16, #tpu.memory_space<vmem>>, %arg2: memref<576x128xbf16, #tpu.memory_space<vmem>>, %arg3: memref<1x128xf32, #tpu.memory_space<vmem>>, %arg4: memref<400x128xf32, #tpu.memory_space<vmem>>) attributes {dimension_semantics = [#tpu.dimension_semantics<arbitrary>], iteration_bounds = array<i64: 1>, scalar_prefetch = 0 : i64, scratch_operands = 0 : i64, tpu.core_type = #tpu.core_type<tc>, window_params = [{pipeline_mode = #tpu.pipeline_mode<synchronous>, transform_indices = @transform_0, window_bounds = array<i64: 400, 576>}, {pipeline_mode = #tpu.pipeline_mode<synchronous>, transform_indices = @transform_1, window_bounds = array<i64: 576, 128>}, {pipeline_mode = #tpu.pipeline_mode<synchronous>, transform_indices = @transform_2, window_bounds = array<i64: 1, 128>}, {pipeline_mode = #tpu.pipeline_mode<synchronous>, transform_indices = @transform_3, window_bounds = array<i64: 400, 128>}]} {
    %c0 = arith.constant 0 : index
    %c0_0 = arith.constant 0 : index
    %0 = vector.load %arg1[%c0, %c0_0] : memref<400x576xbf16, #tpu.memory_space<vmem>>, vector<400x576xbf16>
    %c0_1 = arith.constant 0 : index
    %c0_2 = arith.constant 0 : index
    %1 = vector.load %arg2[%c0_1, %c0_2] : memref<576x128xbf16, #tpu.memory_space<vmem>>, vector<576x128xbf16>
    %cst = arith.constant dense<0.000000e+00> : vector<400x128xf32>
    %2 = tpu.matmul %0, %1, %cst {dimension_numbers = #tpu.dot_dimension_numbers<[1], [0], [0], [1], [0, 0, 1, 1], [], []>} : vector<400x576xbf16>, vector<576x128xbf16>, vector<400x128xf32> -> vector<400x128xf32>
    %c0_3 = arith.constant 0 : index
    %c0_4 = arith.constant 0 : index
    %3 = vector.load %arg3[%c0_3, %c0_4] : memref<1x128xf32, #tpu.memory_space<vmem>>, vector<1x128xf32>
    %4 = vector.broadcast %3 : vector<1x128xf32> to vector<400x128xf32>
    %5 = arith.addf %2, %4 : vector<400x128xf32>
    %6 = arith.negf %5 : vector<400x128xf32>
    %7 = math.exp %6 : vector<400x128xf32>
    %cst_5 = arith.constant 1.000000e+00 : f32
    %8 = vector.broadcast %cst_5 : f32 to vector<400x128xf32>
    %9 = arith.addf %8, %7 : vector<400x128xf32>
    %10 = arith.divf %8, %9 : vector<400x128xf32>
    %c0_6 = arith.constant 0 : index
    %c0_7 = arith.constant 0 : index
    %11 = vector.load %arg4[%c0_6, %c0_7] : memref<400x128xf32, #tpu.memory_space<vmem>>, vector<400x128xf32>
    tpu.vector_store %arg4[%c0_6, %c0_7], %10 {strides = array<i32>} : memref<400x128xf32, #tpu.memory_space<vmem>>, vector<400x128xf32>,
    return
  }
  func.func @transform_0(%arg0: i32) -> (i32, i32) {
    %c0_i32 = arith.constant 0 : i32
    %c0_i32_0 = arith.constant 0 : i32
    %c0_i32_1 = arith.constant 0 : i32
    return %c0_i32, %c0_i32_0 : i32, i32
  }
  func.func @transform_1(%arg0: i32) -> (i32, i32) {
    %c0_i32 = arith.constant 0 : i32
    %c0_i32_0 = arith.constant 0 : i32
    %c0_i32_1 = arith.constant 0 : i32
    return %c0_i32, %c0_i32_0 : i32, i32
  }
  func.func @transform_2(%arg0: i32) -> (i32, i32) {
    %c0_i32 = arith.constant 0 : i32
    %c0_i32_0 = arith.constant 0 : i32
    %c0_i32_1 = arith.constant 0 : i32
    return %c0_i32, %c0_i32_0 : i32, i32
  }
  func.func @transform_3(%arg0: i32) -> (i32, i32) {
    %c0_i32 = arith.constant 0 : i32
    %c0_i32_0 = arith.constant 0 : i32
    %c0_i32_1 = arith.constant 0 : i32
    return %c0_i32, %c0_i32_0 : i32, i32
  }
}

</mosaic_0001>

<llo_original>
// kernel: _lambda_.4
$region0: #{_lambda_.4}
  #allocation0 [shape = 'u32[]', space=smem, size = 0x4, offset = 0x4, fixed_abs, tag = 'smem constant byte address 0x4 - core index']
  #allocation1 [shape = 'u32[72,128]{1,0:T(1,128)}', space=vmem, size = 0x9000, scoped, tag = 'internal scratch']
  %s0 = inlined_call_operand.vmem [shape: bf16[112,1152], index: 0, kind: input, shape index: {}]
  %s1 = inlined_call_operand.hbm [shape: bf16[1152,256], index: 1, kind: input, shape index: {}]
  %s2 = inlined_call_operand.hbm [shape: f32[2,256], index: 2, kind: input, shape index: {}]
  %s3 = inlined_call_operand.vmem [shape: bf16[112,256], index: 3, kind: output, shape index: {}]
  %s4 = sld [smem:[#allocation0]]
  $region30: #{_lambda_.4} parent=0
    _
  %s6 = ssub.s32 1, %s4
  %s7 = scalar_select 0, %s6, %s4
  $region1: #{_lambda_.4} parent=0
    #allocation2 [shape = 'u8[589824]{0}', space=vmem, size = 0x90000, scoped, tag = 'input window, operand 1, single buffered']
    #allocation3 [shape = 's32[1]{0}', space=sflag, size = 0x4, scoped, tag = 'scoped memory for _lambda_.4']
    #allocation4 [shape = 'u8[2048]{0}', space=vmem, size = 0x800, scoped, tag = 'input window, operand 2, single buffered']
    #allocation5 [shape = 's32[1]{0}', space=sflag, size = 0x4, scoped, tag = 'scoped memory for _lambda_.4']
    %8 = vsyncpa [#allocation3], 0
    %9 = vsyncpa [#allocation5], 0
    // Predicated region
    $region2: #{_lambda_.4} parent=1 // pred_check
      _
    $region3: #{_lambda_.4} parent=1 // pred_check_branch
      %11 = sbr.rel (0) target = $region5
    $region4: #{_lambda_.4} parent=1 // pred_region
      _
    $region5: #{_lambda_.4} parent=1 // pred_fallthru
      _
    // Predicated region
    $region6: #{_lambda_.4} parent=1 // pred_check
      _
    $region7: #{_lambda_.4} parent=1 // pred_check_branch
      %13 = sbr.rel (0) target = $region9
    $region8: #{_lambda_.4} parent=1 // pred_region
      %15 = vsyncadd [#allocation3], 0
      %s16 = sshll.u32 %s1, 4
      %s17 = int_to_ptr.hbm [resolvable:$true] %s16
      %s18 = sshll.u32 [#allocation2], 4
      %s19 = int_to_ptr.vmem [resolvable:$true] %s18
      %24 = dma.hbm_to_vmem [thread:$0]  %s17, 18432, %s19, [#allocation3], 128, 128, 8
    $region9: #{_lambda_.4} parent=1 // pred_fallthru
      _
    // Predicated region
    $region10: #{_lambda_.4} parent=1 // pred_check
      _
    $region11: #{_lambda_.4} parent=1 // pred_check_branch
      %26 = sbr.rel (0) target = $region13
    $region12: #{_lambda_.4} parent=1 // pred_region
      %28 = vsyncadd [#allocation5], 0
      %s30 = sshll.u32 %s2, 4
      %s31 = int_to_ptr.hbm [resolvable:$true] %s30
      %s32 = sshll.u32 [#allocation4], 4
      %s33 = int_to_ptr.vmem [resolvable:$true] %s32
      %35 = dma.hbm_to_vmem [thread:$0]  %s31, 64, %s33, [#allocation5]
    $region13: #{_lambda_.4} parent=1 // pred_fallthru
      _
    // Predicated region
    $region14: #{_lambda_.4} parent=1 // pred_check
      _
    $region15: #{_lambda_.4} parent=1 // pred_check_branch
      %37 = sbr.rel (0) target = $region17
    $region16: #{_lambda_.4} parent=1 // pred_region
      %39 = dma.done [#allocation3], 18432
    $region17: #{_lambda_.4} parent=1 // pred_fallthru
      _
    // Predicated region
    $region18: #{_lambda_.4} parent=1 // pred_check
      _
    $region19: #{_lambda_.4} parent=1 // pred_check_branch
      %41 = sbr.rel (0) target = $region21
    $region20: #{_lambda_.4} parent=1 // pred_region
      %43 = dma.done [#allocation5], 64
    $region21: #{_lambda_.4} parent=1 // pred_fallthru
      _
    %v44 = vld [vmem:[%s0] sm:$0xff]
    %v45 = vld [vmem:[%s0 + $0x8] sm:$0xff]
    %v46 = vld [vmem:[%s0 + $0x10] sm:$0xff]
    %v47 = vld [vmem:[%s0 + $0x18] sm:$0xff]
    %v48 = vld [vmem:[%s0 + $0x20] sm:$0xf]
    %v49 = vld [vmem:[%s0 + $0x24] sm:$0xff]
    %v50 = vld [vmem:[%s0 + $0x2c] sm:$0xff]
    %v51 = vld [vmem:[%s0 + $0x34] sm:$0xff]
    %v52 = vld [vmem:[%s0 + $0x3c] sm:$0xff]
    %v53 = vld [vmem:[%s0 + $0x44] sm:$0xf]
    %v54 = vld [vmem:[%s0 + $0x48] sm:$0xff]
    %v55 = vld [vmem:[%s0 + $0x50] sm:$0xff]
    %v56 = vld [vmem:[%s0 + $0x58] sm:$0xff]
    %v57 = vld [vmem:[%s0 + $0x60] sm:$0xff]
    %v58 = vld [vmem:[%s0 + $0x68] sm:$0xf]
    %v59 = vld [vmem:[%s0 + $0x6c] sm:$0xff]
    %v60 = vld [vmem:[%s0 + $0x74] sm:$0xff]
    %v61 = vld [vmem:[%s0 + $0x7c] sm:$0xff]
    %v62 = vld [vmem:[%s0 + $0x84] sm:$0xff]
    %v63 = vld [vmem:[%s0 + $0x8c] sm:$0xf]
    %v64 = vld [vmem:[%s0 + $0x90] sm:$0xff]
    %v65 = vld [vmem:[%s0 + $0x98] sm:$0xff]
    %v66 = vld [vmem:[%s0 + $0xa0] sm:$0xff]
    %v67 = vld [vmem:[%s0 + $0xa8] sm:$0xff]
    %v68 = vld [vmem:[%s0 + $0xb0] sm:$0xf]
    %v69 = vld [vmem:[%s0 + $0xb4] sm:$0xff]
    %v70 = vld [vmem:[%s0 + $0xbc] sm:$0xff]
    %v71 = vld [vmem:[%s0 + $0xc4] sm:$0xff]
    %v72 = vld [vmem:[%s0 + $0xcc] sm:$0xff]
    %v73 = vld [vmem:[%s0 + $0xd4] sm:$0xf]
    %v74 = vld [vmem:[%s0 + $0xd8] sm:$0xff]
    %v75 = vld [vmem:[%s0 + $0xe0] sm:$0xff]
    %v76 = vld [vmem:[%s0 + $0xe8] sm:$0xff]
    %v77 = vld [vmem:[%s0 + $0xf0] sm:$0xff]
    %v78 = vld [vmem:[%s0 + $0xf8] sm:$0xf]
    %v79 = vld [vmem:[%s0 + $0xfc] sm:$0xff]
    %v80 = vld [vmem:[%s0 + $0x104] sm:$0xff]
    %v81 = vld [vmem:[%s0 + $0x10c] sm:$0xff]
    %v82 = vld [vmem:[%s0 + $0x114] sm:$0xff]
    %v83 = vld [vmem:[%s0 + $0x11c] sm:$0xf]
    %v84 = vld [vmem:[%s0 + $0x120] sm:$0xff]
    %v85 = vld [vmem:[%s0 + $0x128] sm:$0xff]
    %v86 = vld [vmem:[%s0 + $0x130] sm:$0xff]
    %v87 = vld [vmem:[%s0 + $0x138] sm:$0xff]
    %v88 = vld [vmem:[%s0 + $0x140] sm:$0xf]
    %v89 = vld [vmem:[%s0 + $0x144] sm:$0xff]
    %v90 = vld [vmem:[%s0 + $0x14c] sm:$0xff]
    %v91 = vld [vmem:[%s0 + $0x154] sm:$0xff]
    %v92 = vld [vmem:[%s0 + $0x15c] sm:$0xff]
    %v93 = vld [vmem:[%s0 + $0x164] sm:$0xf]
    %v94 = vld [vmem:[%s0 + $0x168] sm:$0xff]
    %v95 = vld [vmem:[%s0 + $0x170] sm:$0xff]
    %v96 = vld [vmem:[%s0 + $0x178] sm:$0xff]
    %v97 = vld [vmem:[%s0 + $0x180] sm:$0xff]
    %v98 = vld [vmem:[%s0 + $0x188] sm:$0xf]
    %v99 = vld [vmem:[%s0 + $0x18c] sm:$0xff]
    %v100 = vld [vmem:[%s0 + $0x194] sm:$0xff]
    %v101 = vld [vmem:[%s0 + $0x19c] sm:$0xff]
    %v102 = vld [vmem:[%s0 + $0x1a4] sm:$0xff]
    %v103 = vld [vmem:[%s0 + $0x1ac] sm:$0xf]
    %v104 = vld [vmem:[%s0 + $0x1b0] sm:$0xff]
    %v105 = vld [vmem:[%s0 + $0x1b8] sm:$0xff]
    %v106 = vld [vmem:[%s0 + $0x1c0] sm:$0xff]
    %v107 = vld [vmem:[%s0 + $0x1c8] sm:$0xff]
    %v108 = vld [vmem:[%s0 + $0x1d0] sm:$0xf]
    %v109 = vld [vmem:[%s0 + $0x1d4] sm:$0xff]
    %v110 = vld [vmem:[%s0 + $0x1dc] sm:$0xff]
    %v111 = vld [vmem:[%s0 + $0x1e4] sm:$0xff]
    %v112 = vld [vmem:[%s0 + $0x1ec] sm:$0xff]
    %v113 = vld [vmem:[%s0 + $0x1f4] sm:$0xf]
    %v114 = vld [vmem:[#allocation2] sm:$0xff]
    %v115 = vld [vmem:[#allocation2 + $0x8] sm:$0xff]
    %v116 = vld [vmem:[#allocation2 + $0x10] sm:$0xff]
    %v117 = vld [vmem:[#allocation2 + $0x18] sm:$0xff]
    %v118 = vld [vmem:[#allocation2 + $0x20] sm:$0xff]
    %v119 = vld [vmem:[#allocation2 + $0x28] sm:$0xff]
    %v120 = vld [vmem:[#allocation2 + $0x30] sm:$0xff]
    %v121 = vld [vmem:[#allocation2 + $0x38] sm:$0xff]
    %v122 = vld [vmem:[#allocation2 + $0x40] sm:$0xff]
    %v123 = vld [vmem:[#allocation2 + $0x48] sm:$0xff]
    %v124 = vld [vmem:[#allocation2 + $0x50] sm:$0xff]
    %v125 = vld [vmem:[#allocation2 + $0x58] sm:$0xff]
    %v126 = vld [vmem:[#allocation2 + $0x60] sm:$0xff]
    %v127 = vld [vmem:[#allocation2 + $0x68] sm:$0xff]
    %v128 = vld [vmem:[#allocation2 + $0x70] sm:$0xff]
    %v129 = vld [vmem:[#allocation2 + $0x78] sm:$0xff]
    %v130 = vld [vmem:[#allocation2 + $0x80] sm:$0xff]
    %v131 = vld [vmem:[#allocation2 + $0x88] sm:$0xff]
    %v132 = vld [vmem:[#allocation2 + $0x90] sm:$0xff]
    %v133 = vld [vmem:[#allocation2 + $0x98] sm:$0xff]
    %v134 = vld [vmem:[#allocation2 + $0xa0] sm:$0xff]
    %v135 = vld [vmem:[#allocation2 + $0xa8] sm:$0xff]
    %v136 = vld [vmem:[#allocation2 + $0xb0] sm:$0xff]
    %v137 = vld [vmem:[#allocation2 + $0xb8] sm:$0xff]
    %v138 = vld [vmem:[#allocation2 + $0xc0] sm:$0xff]
    %v139 = vld [vmem:[#allocation2 + $0xc8] sm:$0xff]
    %v140 = vld [vmem:[#allocation2 + $0xd0] sm:$0xff]
    %v141 = vld [vmem:[#allocation2 + $0xd8] sm:$0xff]
    %v142 = vld [vmem:[#allocation2 + $0xe0] sm:$0xff]
    %v143 = vld [vmem:[#allocation2 + $0xe8] sm:$0xff]
    %v144 = vld [vmem:[#allocation2 + $0xf0] sm:$0xff]
    %v145 = vld [vmem:[#allocation2 + $0xf8] sm:$0xff]
    %v146 = vld [vmem:[#allocation2 + $0x100] sm:$0xff]
    %v147 = vld [vmem:[#allocation2 + $0x108] sm:$0xff]
    %v148 = vld [vmem:[#allocation2 + $0x110] sm:$0xff]
    %v149 = vld [vmem:[#allocation2 + $0x118] sm:$0xff]
    %v150 = vld [vmem:[#allocation2 + $0x120] sm:$0xff]
    %v151 = vld [vmem:[#allocation2 + $0x128] sm:$0xff]
    %v152 = vld [vmem:[#allocation2 + $0x130] sm:$0xff]
    %v153 = vld [vmem:[#allocation2 + $0x138] sm:$0xff]
    %v154 = vld [vmem:[#allocation2 + $0x140] sm:$0xff]
    %v155 = vld [vmem:[#allocation2 + $0x148] sm:$0xff]
    %v156 = vld [vmem:[#allocation2 + $0x150] sm:$0xff]
    %v157 = vld [vmem:[#allocation2 + $0x158] sm:$0xff]
    %v158 = vld [vmem:[#allocation2 + $0x160] sm:$0xff]
    %v159 = vld [vmem:[#allocation2 + $0x168] sm:$0xff]
    %v160 = vld [vmem:[#allocation2 + $0x170] sm:$0xff]
    %v161 = vld [vmem:[#allocation2 + $0x178] sm:$0xff]
    %v162 = vld [vmem:[#allocation2 + $0x180] sm:$0xff]
    %v163 = vld [vmem:[#allocation2 + $0x188] sm:$0xff]
    %v164 = vld [vmem:[#allocation2 + $0x190] sm:$0xff]
    %v165 = vld [vmem:[#allocation2 + $0x198] sm:$0xff]
    %v166 = vld [vmem:[#allocation2 + $0x1a0] sm:$0xff]
    %v167 = vld [vmem:[#allocation2 + $0x1a8] sm:$0xff]
    %v168 = vld [vmem:[#allocation2 + $0x1b0] sm:$0xff]
    %v169 = vld [vmem:[#allocation2 + $0x1b8] sm:$0xff]
    %v170 = vld [vmem:[#allocation2 + $0x1c0] sm:$0xff]
    %v171 = vld [vmem:[#allocation2 + $0x1c8] sm:$0xff]
    %v172 = vld [vmem:[#allocation2 + $0x1d0] sm:$0xff]
    %v173 = vld [vmem:[#allocation2 + $0x1d8] sm:$0xff]
    %v174 = vld [vmem:[#allocation2 + $0x1e0] sm:$0xff]
    %v175 = vld [vmem:[#allocation2 + $0x1e8] sm:$0xff]
    %v176 = vld [vmem:[#allocation2 + $0x1f0] sm:$0xff]
    %v177 = vld [vmem:[#allocation2 + $0x1f8] sm:$0xff]
    %v178 = vld [vmem:[#allocation2 + $0x200] sm:$0xff]
    %v179 = vld [vmem:[#allocation2 + $0x208] sm:$0xff]
    %v180 = vld [vmem:[#allocation2 + $0x210] sm:$0xff]
    %v181 = vld [vmem:[#allocation2 + $0x218] sm:$0xff]
    %v182 = vld [vmem:[#allocation2 + $0x220] sm:$0xff]
    %v183 = vld [vmem:[#allocation2 + $0x228] sm:$0xff]
    %v184 = vld [vmem:[#allocation2 + $0x230] sm:$0xff]
    %v185 = vld [vmem:[#allocation2 + $0x238] sm:$0xff]
    %v186 = vld [vmem:[#allocation2 + $0x240] sm:$0xff]
    %v187 = vld [vmem:[#allocation2 + $0x248] sm:$0xff]
    %v188 = vld [vmem:[#allocation2 + $0x250] sm:$0xff]
    %v189 = vld [vmem:[#allocation2 + $0x258] sm:$0xff]
    %v190 = vld [vmem:[#allocation2 + $0x260] sm:$0xff]
    %v191 = vld [vmem:[#allocation2 + $0x268] sm:$0xff]
    %v192 = vld [vmem:[#allocation2 + $0x270] sm:$0xff]
    %v193 = vld [vmem:[#allocation2 + $0x278] sm:$0xff]
    %v194 = vld [vmem:[#allocation2 + $0x280] sm:$0xff]
    %v195 = vld [vmem:[#allocation2 + $0x288] sm:$0xff]
    %v196 = vld [vmem:[#allocation2 + $0x290] sm:$0xff]
    %v197 = vld [vmem:[#allocation2 + $0x298] sm:$0xff]
    %v198 = vld [vmem:[#allocation2 + $0x2a0] sm:$0xff]
    %v199 = vld [vmem:[#allocation2 + $0x2a8] sm:$0xff]
    %v200 = vld [vmem:[#allocation2 + $0x2b0] sm:$0xff]
    %v201 = vld [vmem:[#allocation2 + $0x2b8] sm:$0xff]
    %v202 = vld [vmem:[#allocation2 + $0x2c0] sm:$0xff]
    %v203 = vld [vmem:[#allocation2 + $0x2c8] sm:$0xff]
    %v204 = vld [vmem:[#allocation2 + $0x2d0] sm:$0xff]
    %v205 = vld [vmem:[#allocation2 + $0x2d8] sm:$0xff]
    %v206 = vld [vmem:[#allocation2 + $0x2e0] sm:$0xff]
    %v207 = vld [vmem:[#allocation2 + $0x2e8] sm:$0xff]
    %v208 = vld [vmem:[#allocation2 + $0x2f0] sm:$0xff]
    %v209 = vld [vmem:[#allocation2 + $0x2f8] sm:$0xff]
    %v210 = vld [vmem:[#allocation2 + $0x300] sm:$0xff]
    %v211 = vld [vmem:[#allocation2 + $0x308] sm:$0xff]
    %v212 = vld [vmem:[#allocation2 + $0x310] sm:$0xff]
    %v213 = vld [vmem:[#allocation2 + $0x318] sm:$0xff]
    %v214 = vld [vmem:[#allocation2 + $0x320] sm:$0xff]
    %v215 = vld [vmem:[#allocation2 + $0x328] sm:$0xff]
    %v216 = vld [vmem:[#allocation2 + $0x330] sm:$0xff]
    %v217 = vld [vmem:[#allocation2 + $0x338] sm:$0xff]
    %v218 = vld [vmem:[#allocation2 + $0x340] sm:$0xff]
    %v219 = vld [vmem:[#allocation2 + $0x348] sm:$0xff]
    %v220 = vld [vmem:[#allocation2 + $0x350] sm:$0xff]
    %v221 = vld [vmem:[#allocation2 + $0x358] sm:$0xff]
    %v222 = vld [vmem:[#allocation2 + $0x360] sm:$0xff]
    %v223 = vld [vmem:[#allocation2 + $0x368] sm:$0xff]
    %v224 = vld [vmem:[#allocation2 + $0x370] sm:$0xff]
    %v225 = vld [vmem:[#allocation2 + $0x378] sm:$0xff]
    %v226 = vld [vmem:[#allocation2 + $0x380] sm:$0xff]
    %v227 = vld [vmem:[#allocation2 + $0x388] sm:$0xff]
    %v228 = vld [vmem:[#allocation2 + $0x390] sm:$0xff]
    %v229 = vld [vmem:[#allocation2 + $0x398] sm:$0xff]
    %v230 = vld [vmem:[#allocation2 + $0x3a0] sm:$0xff]
    %v231 = vld [vmem:[#allocation2 + $0x3a8] sm:$0xff]
    %v232 = vld [vmem:[#allocation2 + $0x3b0] sm:$0xff]
    %v233 = vld [vmem:[#allocation2 + $0x3b8] sm:$0xff]
    %v234 = vld [vmem:[#allocation2 + $0x3c0] sm:$0xff]
    %v235 = vld [vmem:[#allocation2 + $0x3c8] sm:$0xff]
    %v236 = vld [vmem:[#allocation2 + $0x3d0] sm:$0xff]
    %v237 = vld [vmem:[#allocation2 + $0x3d8] sm:$0xff]
    %v238 = vld [vmem:[#allocation2 + $0x3e0] sm:$0xff]
    %v239 = vld [vmem:[#allocation2 + $0x3e8] sm:$0xff]
    %v240 = vld [vmem:[#allocation2 + $0x3f0] sm:$0xff]
    %v241 = vld [vmem:[#allocation2 + $0x3f8] sm:$0xff]
    %v242 = vld [vmem:[#allocation2 + $0x400] sm:$0xff]
    %v243 = vld [vmem:[#allocation2 + $0x408] sm:$0xff]
    %v244 = vld [vmem:[#allocation2 + $0x410] sm:$0xff]
    %v245 = vld [vmem:[#allocation2 + $0x418] sm:$0xff]
    %v246 = vld [vmem:[#allocation2 + $0x420] sm:$0xff]
    %v247 = vld [vmem:[#allocation2 + $0x428] sm:$0xff]
    %v248 = vld [vmem:[#allocation2 + $0x430] sm:$0xff]
    %v249 = vld [vmem:[#allocation2 + $0x438] sm:$0xff]
    %v250 = vld [vmem:[#allocation2 + $0x440] sm:$0xff]
    %v251 = vld [vmem:[#allocation2 + $0x448] sm:$0xff]
    %v252 = vld [vmem:[#allocation2 + $0x450] sm:$0xff]
    %v253 = vld [vmem:[#allocation2 + $0x458] sm:$0xff]
    %v254 = vld [vmem:[#allocation2 + $0x460] sm:$0xff]
    %v255 = vld [vmem:[#allocation2 + $0x468] sm:$0xff]
    %v256 = vld [vmem:[#allocation2 + $0x470] sm:$0xff]
    %v257 = vld [vmem:[#allocation2 + $0x478] sm:$0xff]
    %v328 = vunpack.c.l.b16 %v44
    %v329 = vunpack.c.h.b16 %v44
    %v330 = vunpack.c.l.b16 %v45
    %v331 = vunpack.c.h.b16 %v45
    %v332 = vunpack.c.l.b16 %v46
    %v333 = vunpack.c.h.b16 %v46
    %v334 = vunpack.c.l.b16 %v47
    %v335 = vunpack.c.h.b16 %v47
    %v336 = vunpack.c.l.b16 %v48
    %v337 = vunpack.c.l.b16 %v49
    %v338 = vunpack.c.h.b16 %v49
    %v339 = vunpack.c.l.b16 %v50
    %v340 = vunpack.c.h.b16 %v50
    %v341 = vunpack.c.l.b16 %v51
    %v342 = vunpack.c.h.b16 %v51
    %v343 = vunpack.c.l.b16 %v52
    %v344 = vunpack.c.h.b16 %v52
    %v345 = vunpack.c.l.b16 %v53
    %v346 = vunpack.c.l.b16 %v54
    %v347 = vunpack.c.h.b16 %v54
    %v348 = vunpack.c.l.b16 %v55
    %v349 = vunpack.c.h.b16 %v55
    %v350 = vunpack.c.l.b16 %v56
    %v351 = vunpack.c.h.b16 %v56
    %v352 = vunpack.c.l.b16 %v57
    %v353 = vunpack.c.h.b16 %v57
    %v354 = vunpack.c.l.b16 %v58
    %v355 = vunpack.c.l.b16 %v59
    %v356 = vunpack.c.h.b16 %v59
    %v357 = vunpack.c.l.b16 %v60
    %v358 = vunpack.c.h.b16 %v60
    %v359 = vunpack.c.l.b16 %v61
    %v360 = vunpack.c.h.b16 %v61
    %v361 = vunpack.c.l.b16 %v62
    %v362 = vunpack.c.h.b16 %v62
    %v363 = vunpack.c.l.b16 %v63
    %v364 = vunpack.c.l.b16 %v64
    %v365 = vunpack.c.h.b16 %v64
    %v366 = vunpack.c.l.b16 %v65
    %v367 = vunpack.c.h.b16 %v65
    %v368 = vunpack.c.l.b16 %v66
    %v369 = vunpack.c.h.b16 %v66
    %v370 = vunpack.c.l.b16 %v67
    %v371 = vunpack.c.h.b16 %v67
    %v372 = vunpack.c.l.b16 %v68
    %v373 = vunpack.c.l.b16 %v69
    %v374 = vunpack.c.h.b16 %v69
    %v375 = vunpack.c.l.b16 %v70
    %v376 = vunpack.c.h.b16 %v70
    %v377 = vunpack.c.l.b16 %v71
    %v378 = vunpack.c.h.b16 %v71
    %v379 = vunpack.c.l.b16 %v72
    %v380 = vunpack.c.h.b16 %v72
    %v381 = vunpack.c.l.b16 %v73
    %v382 = vunpack.c.l.b16 %v74
    %v383 = vunpack.c.h.b16 %v74
    %v384 = vunpack.c.l.b16 %v75
    %v385 = vunpack.c.h.b16 %v75
    %v386 = vunpack.c.l.b16 %v76
    %v387 = vunpack.c.h.b16 %v76
    %v388 = vunpack.c.l.b16 %v77
    %v389 = vunpack.c.h.b16 %v77
    %v390 = vunpack.c.l.b16 %v78
    %v391 = vunpack.c.l.b16 %v79
    %v392 = vunpack.c.h.b16 %v79
    %v393 = vunpack.c.l.b16 %v80
    %v394 = vunpack.c.h.b16 %v80
    %v395 = vunpack.c.l.b16 %v81
    %v396 = vunpack.c.h.b16 %v81
    %v397 = vunpack.c.l.b16 %v82
    %v398 = vunpack.c.h.b16 %v82
    %v399 = vunpack.c.l.b16 %v83
    %v400 = vunpack.c.l.b16 %v84
    %v401 = vunpack.c.h.b16 %v84
    %v402 = vunpack.c.l.b16 %v85
    %v403 = vunpack.c.h.b16 %v85
    %v404 = vunpack.c.l.b16 %v86
    %v405 = vunpack.c.h.b16 %v86
    %v406 = vunpack.c.l.b16 %v87
    %v407 = vunpack.c.h.b16 %v87
    %v408 = vunpack.c.l.b16 %v88
    %v409 = vunpack.c.l.b16 %v89
    %v410 = vunpack.c.h.b16 %v89
    %v411 = vunpack.c.l.b16 %v90
    %v412 = vunpack.c.h.b16 %v90
    %v413 = vunpack.c.l.b16 %v91
    %v414 = vunpack.c.h.b16 %v91
    %v415 = vunpack.c.l.b16 %v92
    %v416 = vunpack.c.h.b16 %v92
    %v417 = vunpack.c.l.b16 %v93
    %v418 = vunpack.c.l.b16 %v94
    %v419 = vunpack.c.h.b16 %v94
    %v420 = vunpack.c.l.b16 %v95
    %v421 = vunpack.c.h.b16 %v95
    %v422 = vunpack.c.l.b16 %v96
    %v423 = vunpack.c.h.b16 %v96
    %v424 = vunpack.c.l.b16 %v97
    %v425 = vunpack.c.h.b16 %v97
    %v426 = vunpack.c.l.b16 %v98
    %v427 = vunpack.c.l.b16 %v99
    %v428 = vunpack.c.h.b16 %v99
    %v429 = vunpack.c.l.b16 %v100
    %v430 = vunpack.c.h.b16 %v100
    %v431 = vunpack.c.l.b16 %v101
    %v432 = vunpack.c.h.b16 %v101
    %v433 = vunpack.c.l.b16 %v102
    %v434 = vunpack.c.h.b16 %v102
    %v435 = vunpack.c.l.b16 %v103
    %v436 = vunpack.c.l.b16 %v104
    %v437 = vunpack.c.h.b16 %v104
    %v438 = vunpack.c.l.b16 %v105
    %v439 = vunpack.c.h.b16 %v105
    %v440 = vunpack.c.l.b16 %v106
    %v441 = vunpack.c.h.b16 %v106
    %v442 = vunpack.c.l.b16 %v107
    %v443 = vunpack.c.h.b16 %v107
    %v444 = vunpack.c.l.b16 %v108
    %v445 = vunpack.c.l.b16 %v109
    %v446 = vunpack.c.h.b16 %v109
    %v447 = vunpack.c.l.b16 %v110
    %v448 = vunpack.c.h.b16 %v110
    %v449 = vunpack.c.l.b16 %v111
    %v450 = vunpack.c.h.b16 %v111
    %v451 = vunpack.c.l.b16 %v112
    %v452 = vunpack.c.h.b16 %v112
    %v453 = vunpack.c.l.b16 %v113
    %v454 = vpack.c.b16 %v337, %v328
    %v455 = vpack.c.b16 %v338, %v329
    %v456 = vpack.c.b16 %v339, %v330
    %v457 = vpack.c.b16 %v340, %v331
    %v458 = vpack.c.b16 %v341, %v332
    %v459 = vpack.c.b16 %v342, %v333
    %v460 = vpack.c.b16 %v343, %v334
    %v461 = vpack.c.b16 %v344, %v335
    %v462 = vpack.c.b16 %v345, %v336
    %v463 = vpack.c.b16 %v355, %v346
    %v464 = vpack.c.b16 %v356, %v347
    %v465 = vpack.c.b16 %v357, %v348
    %v466 = vpack.c.b16 %v358, %v349
    %v467 = vpack.c.b16 %v359, %v350
    %v468 = vpack.c.b16 %v360, %v351
    %v469 = vpack.c.b16 %v361, %v352
    %v470 = vpack.c.b16 %v362, %v353
    %v471 = vpack.c.b16 %v363, %v354
    %v472 = vpack.c.b16 %v373, %v364
    %v473 = vpack.c.b16 %v374, %v365
    %v474 = vpack.c.b16 %v375, %v366
    %v475 = vpack.c.b16 %v376, %v367
    %v476 = vpack.c.b16 %v377, %v368
    %v477 = vpack.c.b16 %v378, %v369
    %v478 = vpack.c.b16 %v379, %v370
    %v479 = vpack.c.b16 %v380, %v371
    %v480 = vpack.c.b16 %v381, %v372
    %v481 = vpack.c.b16 %v391, %v382
    %v482 = vpack.c.b16 %v392, %v383
    %v483 = vpack.c.b16 %v393, %v384
    %v484 = vpack.c.b16 %v394, %v385
    %v485 = vpack.c.b16 %v395, %v386
    %v486 = vpack.c.b16 %v396, %v387
    %v487 = vpack.c.b16 %v397, %v388
    %v488 = vpack.c.b16 %v398, %v389
    %v489 = vpack.c.b16 %v399, %v390
    %v490 = vpack.c.b16 %v409, %v400
    %v491 = vpack.c.b16 %v410, %v401
    %v492 = vpack.c.b16 %v411, %v402
    %v493 = vpack.c.b16 %v412, %v403
    %v494 = vpack.c.b16 %v413, %v404
    %v495 = vpack.c.b16 %v414, %v405
    %v496 = vpack.c.b16 %v415, %v406
    %v497 = vpack.c.b16 %v416, %v407
    %v498 = vpack.c.b16 %v417, %v408
    %v499 = vpack.c.b16 %v427, %v418
    %v500 = vpack.c.b16 %v428, %v419
    %v501 = vpack.c.b16 %v429, %v420
    %v502 = vpack.c.b16 %v430, %v421
    %v503 = vpack.c.b16 %v431, %v422
    %v504 = vpack.c.b16 %v432, %v423
    %v505 = vpack.c.b16 %v433, %v424
    %v506 = vpack.c.b16 %v434, %v425
    %v507 = vpack.c.b16 %v435, %v426
    %v508 = vpack.c.b16 %v445, %v436
    %v509 = vpack.c.b16 %v446, %v437
    %v510 = vpack.c.b16 %v447, %v438
    %v511 = vpack.c.b16 %v448, %v439
    %v512 = vpack.c.b16 %v449, %v440
    %v513 = vpack.c.b16 %v450, %v441
    %v514 = vpack.c.b16 %v451, %v442
    %v515 = vpack.c.b16 %v452, %v443
    %v516 = vpack.c.b16 %v453, %v444
    %v724 = vunpack.c.l.b16 %v114
    %v725 = vunpack.c.h.b16 %v114
    %v726 = vunpack.c.l.b16 %v115
    %v727 = vunpack.c.h.b16 %v115
    %v728 = vunpack.c.l.b16 %v116
    %v729 = vunpack.c.h.b16 %v116
    %v730 = vunpack.c.l.b16 %v117
    %v731 = vunpack.c.h.b16 %v117
    %v732 = vunpack.c.l.b16 %v118
    %v733 = vunpack.c.h.b16 %v118
    %v734 = vunpack.c.l.b16 %v119
    %v735 = vunpack.c.h.b16 %v119
    %v736 = vunpack.c.l.b16 %v120
    %v737 = vunpack.c.h.b16 %v120
    %v738 = vunpack.c.l.b16 %v121
    %v739 = vunpack.c.h.b16 %v121
    %v740 = vunpack.c.l.b16 %v122
    %v741 = vunpack.c.h.b16 %v122
    %v742 = vunpack.c.l.b16 %v123
    %v743 = vunpack.c.h.b16 %v123
    %v744 = vunpack.c.l.b16 %v124
    %v745 = vunpack.c.h.b16 %v124
    %v746 = vunpack.c.l.b16 %v125
    %v747 = vunpack.c.h.b16 %v125
    %v748 = vunpack.c.l.b16 %v126
    %v749 = vunpack.c.h.b16 %v126
    %v750 = vunpack.c.l.b16 %v127
    %v751 = vunpack.c.h.b16 %v127
    %v752 = vunpack.c.l.b16 %v128
    %v753 = vunpack.c.h.b16 %v128
    %v754 = vunpack.c.l.b16 %v129
    %v755 = vunpack.c.h.b16 %v129
    %v756 = vunpack.c.l.b16 %v130
    %v757 = vunpack.c.h.b16 %v130
    %v758 = vunpack.c.l.b16 %v131
    %v759 = vunpack.c.h.b16 %v131
    %v760 = vunpack.c.l.b16 %v132
    %v761 = vunpack.c.h.b16 %v132
    %v762 = vunpack.c.l.b16 %v133
    %v763 = vunpack.c.h.b16 %v133
    %v764 = vunpack.c.l.b16 %v134
    %v765 = vunpack.c.h.b16 %v134
    %v766 = vunpack.c.l.b16 %v135
    %v767 = vunpack.c.h.b16 %v135
    %v768 = vunpack.c.l.b16 %v136
    %v769 = vunpack.c.h.b16 %v136
    %v770 = vunpack.c.l.b16 %v137
    %v771 = vunpack.c.h.b16 %v137
    %v772 = vunpack.c.l.b16 %v138
    %v773 = vunpack.c.h.b16 %v138
    %v774 = vunpack.c.l.b16 %v139
    %v775 = vunpack.c.h.b16 %v139
    %v776 = vunpack.c.l.b16 %v140
    %v777 = vunpack.c.h.b16 %v140
    %v778 = vunpack.c.l.b16 %v141
    %v779 = vunpack.c.h.b16 %v141
    %v780 = vunpack.c.l.b16 %v142
    %v781 = vunpack.c.h.b16 %v142
    %v782 = vunpack.c.l.b16 %v143
    %v783 = vunpack.c.h.b16 %v143
    %v784 = vunpack.c.l.b16 %v144
    %v785 = vunpack.c.h.b16 %v144
    %v786 = vunpack.c.l.b16 %v145
    %v787 = vunpack.c.h.b16 %v145
    %v788 = vunpack.c.l.b16 %v146
    %v789 = vunpack.c.h.b16 %v146
    %v790 = vunpack.c.l.b16 %v147
    %v791 = vunpack.c.h.b16 %v147
    %v792 = vunpack.c.l.b16 %v148
    %v793 = vunpack.c.h.b16 %v148
    %v794 = vunpack.c.l.b16 %v149
    %v795 = vunpack.c.h.b16 %v149
    %v796 = vunpack.c.l.b16 %v150
    %v797 = vunpack.c.h.b16 %v150
    %v798 = vunpack.c.l.b16 %v151
    %v799 = vunpack.c.h.b16 %v151
    %v800 = vunpack.c.l.b16 %v152
    %v801 = vunpack.c.h.b16 %v152
    %v802 = vunpack.c.l.b16 %v153
    %v803 = vunpack.c.h.b16 %v153
    %v804 = vunpack.c.l.b16 %v154
    %v805 = vunpack.c.h.b16 %v154
    %v806 = vunpack.c.l.b16 %v155
    %v807 = vunpack.c.h.b16 %v155
    %v808 = vunpack.c.l.b16 %v156
    %v809 = vunpack.c.h.b16 %v156
    %v810 = vunpack.c.l.b16 %v157
    %v811 = vunpack.c.h.b16 %v157
    %v812 = vunpack.c.l.b16 %v158
    %v813 = vunpack.c.h.b16 %v158
    %v814 = vunpack.c.l.b16 %v159
    %v815 = vunpack.c.h.b16 %v159
    %v816 = vunpack.c.l.b16 %v160
    %v817 = vunpack.c.h.b16 %v160
    %v818 = vunpack.c.l.b16 %v161
    %v819 = vunpack.c.h.b16 %v161
    %v820 = vunpack.c.l.b16 %v162
    %v821 = vunpack.c.h.b16 %v162
    %v822 = vunpack.c.l.b16 %v163
    %v823 = vunpack.c.h.b16 %v163
    %v824 = vunpack.c.l.b16 %v164
    %v825 = vunpack.c.h.b16 %v164
    %v826 = vunpack.c.l.b16 %v165
    %v827 = vunpack.c.h.b16 %v165
    %v828 = vunpack.c.l.b16 %v166
    %v829 = vunpack.c.h.b16 %v166
    %v830 = vunpack.c.l.b16 %v167
    %v831 = vunpack.c.h.b16 %v167
    %v832 = vunpack.c.l.b16 %v168
    %v833 = vunpack.c.h.b16 %v168
    %v834 = vunpack.c.l.b16 %v169
    %v835 = vunpack.c.h.b16 %v169
    %v836 = vunpack.c.l.b16 %v170
    %v837 = vunpack.c.h.b16 %v170
    %v838 = vunpack.c.l.b16 %v171
    %v839 = vunpack.c.h.b16 %v171
    %v840 = vunpack.c.l.b16 %v172
    %v841 = vunpack.c.h.b16 %v172
    %v842 = vunpack.c.l.b16 %v173
    %v843 = vunpack.c.h.b16 %v173
    %v844 = vunpack.c.l.b16 %v174
    %v845 = vunpack.c.h.b16 %v174
    %v846 = vunpack.c.l.b16 %v175
    %v847 = vunpack.c.h.b16 %v175
    %v848 = vunpack.c.l.b16 %v176
    %v849 = vunpack.c.h.b16 %v176
    %v850 = vunpack.c.l.b16 %v177
    %v851 = vunpack.c.h.b16 %v177
    %v852 = vunpack.c.l.b16 %v178
    %v853 = vunpack.c.h.b16 %v178
    %v854 = vunpack.c.l.b16 %v179
    %v855 = vunpack.c.h.b16 %v179
    %v856 = vunpack.c.l.b16 %v180
    %v857 = vunpack.c.h.b16 %v180
    %v858 = vunpack.c.l.b16 %v181
    %v859 = vunpack.c.h.b16 %v181
    %v860 = vunpack.c.l.b16 %v182
    %v861 = vunpack.c.h.b16 %v182
    %v862 = vunpack.c.l.b16 %v183
    %v863 = vunpack.c.h.b16 %v183
    %v864 = vunpack.c.l.b16 %v184
    %v865 = vunpack.c.h.b16 %v184
    %v866 = vunpack.c.l.b16 %v185
    %v867 = vunpack.c.h.b16 %v185
    %v868 = vunpack.c.l.b16 %v186
    %v869 = vunpack.c.h.b16 %v186
    %v870 = vunpack.c.l.b16 %v187
    %v871 = vunpack.c.h.b16 %v187
    %v872 = vunpack.c.l.b16 %v188
    %v873 = vunpack.c.h.b16 %v188
    %v874 = vunpack.c.l.b16 %v189
    %v875 = vunpack.c.h.b16 %v189
    %v876 = vunpack.c.l.b16 %v190
    %v877 = vunpack.c.h.b16 %v190
    %v878 = vunpack.c.l.b16 %v191
    %v879 = vunpack.c.h.b16 %v191
    %v880 = vunpack.c.l.b16 %v192
    %v881 = vunpack.c.h.b16 %v192
    %v882 = vunpack.c.l.b16 %v193
    %v883 = vunpack.c.h.b16 %v193
    %v884 = vunpack.c.l.b16 %v194
    %v885 = vunpack.c.h.b16 %v194
    %v886 = vunpack.c.l.b16 %v195
    %v887 = vunpack.c.h.b16 %v195
    %v888 = vunpack.c.l.b16 %v196
    %v889 = vunpack.c.h.b16 %v196
    %v890 = vunpack.c.l.b16 %v197
    %v891 = vunpack.c.h.b16 %v197
    %v892 = vunpack.c.l.b16 %v198
    %v893 = vunpack.c.h.b16 %v198
    %v894 = vunpack.c.l.b16 %v199
    %v895 = vunpack.c.h.b16 %v199
    %v896 = vunpack.c.l.b16 %v200
    %v897 = vunpack.c.h.b16 %v200
    %v898 = vunpack.c.l.b16 %v201
    %v899 = vunpack.c.h.b16 %v201
    %v900 = vunpack.c.l.b16 %v202
    %v901 = vunpack.c.h.b16 %v202
    %v902 = vunpack.c.l.b16 %v203
    %v903 = vunpack.c.h.b16 %v203
    %v904 = vunpack.c.l.b16 %v204
    %v905 = vunpack.c.h.b16 %v204
    %v906 = vunpack.c.l.b16 %v205
    %v907 = vunpack.c.h.b16 %v205
    %v908 = vunpack.c.l.b16 %v206
    %v909 = vunpack.c.h.b16 %v206
    %v910 = vunpack.c.l.b16 %v207
    %v911 = vunpack.c.h.b16 %v207
    %v912 = vunpack.c.l.b16 %v208
    %v913 = vunpack.c.h.b16 %v208
    %v914 = vunpack.c.l.b16 %v209
    %v915 = vunpack.c.h.b16 %v209
    %v916 = vunpack.c.l.b16 %v210
    %v917 = vunpack.c.h.b16 %v210
    %v918 = vunpack.c.l.b16 %v211
    %v919 = vunpack.c.h.b16 %v211
    %v920 = vunpack.c.l.b16 %v212
    %v921 = vunpack.c.h.b16 %v212
    %v922 = vunpack.c.l.b16 %v213
    %v923 = vunpack.c.h.b16 %v213
    %v924 = vunpack.c.l.b16 %v214
    %v925 = vunpack.c.h.b16 %v214
    %v926 = vunpack.c.l.b16 %v215
    %v927 = vunpack.c.h.b16 %v215
    %v928 = vunpack.c.l.b16 %v216
    %v929 = vunpack.c.h.b16 %v216
    %v930 = vunpack.c.l.b16 %v217
    %v931 = vunpack.c.h.b16 %v217
    %v932 = vunpack.c.l.b16 %v218
    %v933 = vunpack.c.h.b16 %v218
    %v934 = vunpack.c.l.b16 %v219
    %v935 = vunpack.c.h.b16 %v219
    %v936 = vunpack.c.l.b16 %v220
    %v937 = vunpack.c.h.b16 %v220
    %v938 = vunpack.c.l.b16 %v221
    %v939 = vunpack.c.h.b16 %v221
    %v940 = vunpack.c.l.b16 %v222
    %v941 = vunpack.c.h.b16 %v222
    %v942 = vunpack.c.l.b16 %v223
    %v943 = vunpack.c.h.b16 %v223
    %v944 = vunpack.c.l.b16 %v224
    %v945 = vunpack.c.h.b16 %v224
    %v946 = vunpack.c.l.b16 %v225
    %v947 = vunpack.c.h.b16 %v225
    %v948 = vunpack.c.l.b16 %v226
    %v949 = vunpack.c.h.b16 %v226
    %v950 = vunpack.c.l.b16 %v227
    %v951 = vunpack.c.h.b16 %v227
    %v952 = vunpack.c.l.b16 %v228
    %v953 = vunpack.c.h.b16 %v228
    %v954 = vunpack.c.l.b16 %v229
    %v955 = vunpack.c.h.b16 %v229
    %v956 = vunpack.c.l.b16 %v230
    %v957 = vunpack.c.h.b16 %v230
    %v958 = vunpack.c.l.b16 %v231
    %v959 = vunpack.c.h.b16 %v231
    %v960 = vunpack.c.l.b16 %v232
    %v961 = vunpack.c.h.b16 %v232
    %v962 = vunpack.c.l.b16 %v233
    %v963 = vunpack.c.h.b16 %v233
    %v964 = vunpack.c.l.b16 %v234
    %v965 = vunpack.c.h.b16 %v234
    %v966 = vunpack.c.l.b16 %v235
    %v967 = vunpack.c.h.b16 %v235
    %v968 = vunpack.c.l.b16 %v236
    %v969 = vunpack.c.h.b16 %v236
    %v970 = vunpack.c.l.b16 %v237
    %v971 = vunpack.c.h.b16 %v237
    %v972 = vunpack.c.l.b16 %v238
    %v973 = vunpack.c.h.b16 %v238
    %v974 = vunpack.c.l.b16 %v239
    %v975 = vunpack.c.h.b16 %v239
    %v976 = vunpack.c.l.b16 %v240
    %v977 = vunpack.c.h.b16 %v240
    %v978 = vunpack.c.l.b16 %v241
    %v979 = vunpack.c.h.b16 %v241
    %v980 = vunpack.c.l.b16 %v242
    %v981 = vunpack.c.h.b16 %v242
    %v982 = vunpack.c.l.b16 %v243
    %v983 = vunpack.c.h.b16 %v243
    %v984 = vunpack.c.l.b16 %v244
    %v985 = vunpack.c.h.b16 %v244
    %v986 = vunpack.c.l.b16 %v245
    %v987 = vunpack.c.h.b16 %v245
    %v988 = vunpack.c.l.b16 %v246
    %v989 = vunpack.c.h.b16 %v246
    %v990 = vunpack.c.l.b16 %v247
    %v991 = vunpack.c.h.b16 %v247
    %v992 = vunpack.c.l.b16 %v248
    %v993 = vunpack.c.h.b16 %v248
    %v994 = vunpack.c.l.b16 %v249
    %v995 = vunpack.c.h.b16 %v249
    %v996 = vunpack.c.l.b16 %v250
    %v997 = vunpack.c.h.b16 %v250
    %v998 = vunpack.c.l.b16 %v251
    %v999 = vunpack.c.h.b16 %v251
    %v1000 = vunpack.c.l.b16 %v252
    %v1001 = vunpack.c.h.b16 %v252
    %v1002 = vunpack.c.l.b16 %v253
    %v1003 = vunpack.c.h.b16 %v253
    %v1004 = vunpack.c.l.b16 %v254
    %v1005 = vunpack.c.h.b16 %v254
    %v1006 = vunpack.c.l.b16 %v255
    %v1007 = vunpack.c.h.b16 %v255
    %v1008 = vunpack.c.l.b16 %v256
    %v1009 = vunpack.c.h.b16 %v256
    %v1010 = vunpack.c.l.b16 %v257
    %v1011 = vunpack.c.h.b16 %v257
    %v1012 = vpack.c.b16 %v726, %v724
    %v1013 = vpack.c.b16 %v727, %v725
    %v1014 = vpack.c.b16 %v730, %v728
    %v1015 = vpack.c.b16 %v731, %v729
    %v1016 = vpack.c.b16 %v734, %v732
    %v1017 = vpack.c.b16 %v735, %v733
    %v1018 = vpack.c.b16 %v738, %v736
    %v1019 = vpack.c.b16 %v739, %v737
    %v1020 = vpack.c.b16 %v742, %v740
    %v1021 = vpack.c.b16 %v743, %v741
    %v1022 = vpack.c.b16 %v746, %v744
    %v1023 = vpack.c.b16 %v747, %v745
    %v1024 = vpack.c.b16 %v750, %v748
    %v1025 = vpack.c.b16 %v751, %v749
    %v1026 = vpack.c.b16 %v754, %v752
    %v1027 = vpack.c.b16 %v755, %v753
    %v1028 = vpack.c.b16 %v758, %v756
    %v1029 = vpack.c.b16 %v759, %v757
    %v1030 = vpack.c.b16 %v762, %v760
    %v1031 = vpack.c.b16 %v763, %v761
    %v1032 = vpack.c.b16 %v766, %v764
    %v1033 = vpack.c.b16 %v767, %v765
    %v1034 = vpack.c.b16 %v770, %v768
    %v1035 = vpack.c.b16 %v771, %v769
    %v1036 = vpack.c.b16 %v774, %v772
    %v1037 = vpack.c.b16 %v775, %v773
    %v1038 = vpack.c.b16 %v778, %v776
    %v1039 = vpack.c.b16 %v779, %v777
    %v1040 = vpack.c.b16 %v782, %v780
    %v1041 = vpack.c.b16 %v783, %v781
    %v1042 = vpack.c.b16 %v786, %v784
    %v1043 = vpack.c.b16 %v787, %v785
    %v1044 = vpack.c.b16 %v790, %v788
    %v1045 = vpack.c.b16 %v791, %v789
    %v1046 = vpack.c.b16 %v794, %v792
    %v1047 = vpack.c.b16 %v795, %v793
    %v1048 = vpack.c.b16 %v798, %v796
    %v1049 = vpack.c.b16 %v799, %v797
    %v1050 = vpack.c.b16 %v802, %v800
    %v1051 = vpack.c.b16 %v803, %v801
    %v1052 = vpack.c.b16 %v806, %v804
    %v1053 = vpack.c.b16 %v807, %v805
    %v1054 = vpack.c.b16 %v810, %v808
    %v1055 = vpack.c.b16 %v811, %v809
    %v1056 = vpack.c.b16 %v814, %v812
    %v1057 = vpack.c.b16 %v815, %v813
    %v1058 = vpack.c.b16 %v818, %v816
    %v1059 = vpack.c.b16 %v819, %v817
    %v1060 = vpack.c.b16 %v822, %v820
    %v1061 = vpack.c.b16 %v823, %v821
    %v1062 = vpack.c.b16 %v826, %v824
    %v1063 = vpack.c.b16 %v827, %v825
    %v1064 = vpack.c.b16 %v830, %v828
    %v1065 = vpack.c.b16 %v831, %v829
    %v1066 = vpack.c.b16 %v834, %v832
    %v1067 = vpack.c.b16 %v835, %v833
    %v1068 = vpack.c.b16 %v838, %v836
    %v1069 = vpack.c.b16 %v839, %v837
    %v1070 = vpack.c.b16 %v842, %v840
    %v1071 = vpack.c.b16 %v843, %v841
    %v1072 = vpack.c.b16 %v846, %v844
    %v1073 = vpack.c.b16 %v847, %v845
    %v1074 = vpack.c.b16 %v850, %v848
    %v1075 = vpack.c.b16 %v851, %v849
    %v1076 = vpack.c.b16 %v854, %v852
    %v1077 = vpack.c.b16 %v855, %v853
    %v1078 = vpack.c.b16 %v858, %v856
    %v1079 = vpack.c.b16 %v859, %v857
    %v1080 = vpack.c.b16 %v862, %v860
    %v1081 = vpack.c.b16 %v863, %v861
    %v1082 = vpack.c.b16 %v866, %v864
    %v1083 = vpack.c.b16 %v867, %v865
    %v1084 = vpack.c.b16 %v870, %v868
    %v1085 = vpack.c.b16 %v871, %v869
    %v1086 = vpack.c.b16 %v874, %v872
    %v1087 = vpack.c.b16 %v875, %v873
    %v1088 = vpack.c.b16 %v878, %v876
    %v1089 = vpack.c.b16 %v879, %v877
    %v1090 = vpack.c.b16 %v882, %v880
    %v1091 = vpack.c.b16 %v883, %v881
    %v1092 = vpack.c.b16 %v886, %v884
    %v1093 = vpack.c.b16 %v887, %v885
    %v1094 = vpack.c.b16 %v890, %v888
    %v1095 = vpack.c.b16 %v891, %v889
    %v1096 = vpack.c.b16 %v894, %v892
    %v1097 = vpack.c.b16 %v895, %v893
    %v1098 = vpack.c.b16 %v898, %v896
    %v1099 = vpack.c.b16 %v899, %v897
    %v1100 = vpack.c.b16 %v902, %v900
    %v1101 = vpack.c.b16 %v903, %v901
    %v1102 = vpack.c.b16 %v906, %v904
    %v1103 = vpack.c.b16 %v907, %v905
    %v1104 = vpack.c.b16 %v910, %v908
    %v1105 = vpack.c.b16 %v911, %v909
    %v1106 = vpack.c.b16 %v914, %v912
    %v1107 = vpack.c.b16 %v915, %v913
    %v1108 = vpack.c.b16 %v918, %v916
    %v1109 = vpack.c.b16 %v919, %v917
    %v1110 = vpack.c.b16 %v922, %v920
    %v1111 = vpack.c.b16 %v923, %v921
    %v1112 = vpack.c.b16 %v926, %v924
    %v1113 = vpack.c.b16 %v927, %v925
    %v1114 = vpack.c.b16 %v930, %v928
    %v1115 = vpack.c.b16 %v931, %v929
    %v1116 = vpack.c.b16 %v934, %v932
    %v1117 = vpack.c.b16 %v935, %v933
    %v1118 = vpack.c.b16 %v938, %v936
    %v1119 = vpack.c.b16 %v939, %v937
    %v1120 = vpack.c.b16 %v942, %v940
    %v1121 = vpack.c.b16 %v943, %v941
    %v1122 = vpack.c.b16 %v946, %v944
    %v1123 = vpack.c.b16 %v947, %v945
    %v1124 = vpack.c.b16 %v950, %v948
    %v1125 = vpack.c.b16 %v951, %v949
    %v1126 = vpack.c.b16 %v954, %v952
    %v1127 = vpack.c.b16 %v955, %v953
    %v1128 = vpack.c.b16 %v958, %v956
    %v1129 = vpack.c.b16 %v959, %v957
    %v1130 = vpack.c.b16 %v962, %v960
    %v1131 = vpack.c.b16 %v963, %v961
    %v1132 = vpack.c.b16 %v966, %v964
    %v1133 = vpack.c.b16 %v967, %v965
    %v1134 = vpack.c.b16 %v970, %v968
    %v1135 = vpack.c.b16 %v971, %v969
    %v1136 = vpack.c.b16 %v974, %v972
    %v1137 = vpack.c.b16 %v975, %v973
    %v1138 = vpack.c.b16 %v978, %v976
    %v1139 = vpack.c.b16 %v979, %v977
    %v1140 = vpack.c.b16 %v982, %v980
    %v1141 = vpack.c.b16 %v983, %v981
    %v1142 = vpack.c.b16 %v986, %v984
    %v1143 = vpack.c.b16 %v987, %v985
    %v1144 = vpack.c.b16 %v990, %v988
    %v1145 = vpack.c.b16 %v991, %v989
    %v1146 = vpack.c.b16 %v994, %v992
    %v1147 = vpack.c.b16 %v995, %v993
    %v1148 = vpack.c.b16 %v998, %v996
    %v1149 = vpack.c.b16 %v999, %v997
    %v1150 = vpack.c.b16 %v1002, %v1000
    %v1151 = vpack.c.b16 %v1003, %v1001
    %v1152 = vpack.c.b16 %v1006, %v1004
    %v1153 = vpack.c.b16 %v1007, %v1005
    %v1154 = vpack.c.b16 %v1010, %v1008
    %v1155 = vpack.c.b16 %v1011, %v1009
    %1300 = vmatpush.bf16.msra.mxu0 %v1026
    %1301 = vmatpush.bf16.msra.mxu0 %v1024
    %1302 = vmatpush.bf16.msra.mxu0 %v1022
    %1303 = vmatpush.bf16.msra.mxu0 %v1020
    %1304 = vmatpush.bf16.msra.mxu0 %v1018
    %1305 = vmatpush.bf16.msra.mxu0 %v1016
    %1306 = vmatpush.bf16.msra.mxu0 %v1014
    %1307 = vmatpush.bf16.msra.mxu0 %v1012
    %1308 = vmatmul.bf16.gmra.mxu0 %v454
    %v1309 = vpop.f32.mrf.mxu0
    %v1310 = vadd.f32 0.0, %v1309
    %v1311 = vpop.f32.mrf.mxu0
    %v1312 = vadd.f32 0.0, %v1311
    %1313 = vmatmul.bf16.gmra.mxu0 %v463
    %v1314 = vpop.f32.mrf.mxu0
    %v1315 = vadd.f32 0.0, %v1314
    %v1316 = vpop.f32.mrf.mxu0
    %v1317 = vadd.f32 0.0, %v1316
    %1318 = vmatmul.bf16.gmra.mxu0 %v472
    %v1319 = vpop.f32.mrf.mxu0
    %v1320 = vadd.f32 0.0, %v1319
    %v1321 = vpop.f32.mrf.mxu0
    %v1322 = vadd.f32 0.0, %v1321
    %1323 = vmatmul.bf16.gmra.mxu0 %v481
    %v1324 = vpop.f32.mrf.mxu0
    %v1325 = vadd.f32 0.0, %v1324
    %v1326 = vpop.f32.mrf.mxu0
    %v1327 = vadd.f32 0.0, %v1326
    %1328 = vmatmul.bf16.gmra.mxu0 %v490
    %v1329 = vpop.f32.mrf.mxu0
    %v1330 = vadd.f32 0.0, %v1329
    %v1331 = vpop.f32.mrf.mxu0
    %v1332 = vadd.f32 0.0, %v1331
    %1333 = vmatmul.bf16.gmra.mxu0 %v499
    %v1334 = vpop.f32.mrf.mxu0
    %v1335 = vadd.f32 0.0, %v1334
    %v1336 = vpop.f32.mrf.mxu0
    %v1337 = vadd.f32 0.0, %v1336
    %1338 = vmatmul.bf16.gmra.mxu0 %v508
    %v1339 = vpop.f32.mrf.mxu0
    %v1340 = vadd.f32 0.0, %v1339
    %v1341 = vpop.f32.mrf.mxu0
    %v1342 = vadd.f32 0.0, %v1341
    %1343 = vdwg.mxu0
    %1344 = vmatpush.bf16.msra.mxu0 %v1042
    %1345 = vmatpush.bf16.msra.mxu0 %v1040
    %1346 = vmatpush.bf16.msra.mxu0 %v1038
    %1347 = vmatpush.bf16.msra.mxu0 %v1036
    %1348 = vmatpush.bf16.msra.mxu0 %v1034
    %1349 = vmatpush.bf16.msra.mxu0 %v1032
    %1350 = vmatpush.bf16.msra.mxu0 %v1030
    %1351 = vmatpush.bf16.msra.mxu0 %v1028
    %1352 = vmatmul.bf16.gmra.mxu0 %v455
    %v1353 = vpop.f32.mrf.mxu0
    %v1354 = vadd.f32 %v1310, %v1353
    %v1355 = vpop.f32.mrf.mxu0
    %v1356 = vadd.f32 %v1312, %v1355
    %1357 = vmatmul.bf16.gmra.mxu0 %v464
    %v1358 = vpop.f32.mrf.mxu0
    %v1359 = vadd.f32 %v1315, %v1358
    %v1360 = vpop.f32.mrf.mxu0
    %v1361 = vadd.f32 %v1317, %v1360
    %1362 = vmatmul.bf16.gmra.mxu0 %v473
    %v1363 = vpop.f32.mrf.mxu0
    %v1364 = vadd.f32 %v1320, %v1363
    %v1365 = vpop.f32.mrf.mxu0
    %v1366 = vadd.f32 %v1322, %v1365
    %1367 = vmatmul.bf16.gmra.mxu0 %v482
    %v1368 = vpop.f32.mrf.mxu0
    %v1369 = vadd.f32 %v1325, %v1368
    %v1370 = vpop.f32.mrf.mxu0
    %v1371 = vadd.f32 %v1327, %v1370
    %1372 = vmatmul.bf16.gmra.mxu0 %v491
    %v1373 = vpop.f32.mrf.mxu0
    %v1374 = vadd.f32 %v1330, %v1373
    %v1375 = vpop.f32.mrf.mxu0
    %v1376 = vadd.f32 %v1332, %v1375
    %1377 = vmatmul.bf16.gmra.mxu0 %v500
    %v1378 = vpop.f32.mrf.mxu0
    %v1379 = vadd.f32 %v1335, %v1378
    %v1380 = vpop.f32.mrf.mxu0
    %v1381 = vadd.f32 %v1337, %v1380
    %1382 = vmatmul.bf16.gmra.mxu0 %v509
    %v1383 = vpop.f32.mrf.mxu0
    %v1384 = vadd.f32 %v1340, %v1383
    %v1385 = vpop.f32.mrf.mxu0
    %v1386 = vadd.f32 %v1342, %v1385
    %1387 = vdwg.mxu0
    %1388 = vmatpush.bf16.msra.mxu0 %v1058
    %1389 = vmatpush.bf16.msra.mxu0 %v1056
    %1390 = vmatpush.bf16.msra.mxu0 %v1054
    %1391 = vmatpush.bf16.msra.mxu0 %v1052
    %1392 = vmatpush.bf16.msra.mxu0 %v1050
    %1393 = vmatpush.bf16.msra.mxu0 %v1048
    %1394 = vmatpush.bf16.msra.mxu0 %v1046
    %1395 = vmatpush.bf16.msra.mxu0 %v1044
    %1396 = vmatmul.bf16.gmra.mxu0 %v456
    %v1397 = vpop.f32.mrf.mxu0
    %v1398 = vadd.f32 %v1354, %v1397
    %v1399 = vpop.f32.mrf.mxu0
    %v1400 = vadd.f32 %v1356, %v1399
    %1401 = vmatmul.bf16.gmra.mxu0 %v465
    %v1402 = vpop.f32.mrf.mxu0
    %v1403 = vadd.f32 %v1359, %v1402
    %v1404 = vpop.f32.mrf.mxu0
    %v1405 = vadd.f32 %v1361, %v1404
    %1406 = vmatmul.bf16.gmra.mxu0 %v474
    %v1407 = vpop.f32.mrf.mxu0
    %v1408 = vadd.f32 %v1364, %v1407
    %v1409 = vpop.f32.mrf.mxu0
    %v1410 = vadd.f32 %v1366, %v1409
    %1411 = vmatmul.bf16.gmra.mxu0 %v483
    %v1412 = vpop.f32.mrf.mxu0
    %v1413 = vadd.f32 %v1369, %v1412
    %v1414 = vpop.f32.mrf.mxu0
    %v1415 = vadd.f32 %v1371, %v1414
    %1416 = vmatmul.bf16.gmra.mxu0 %v492
    %v1417 = vpop.f32.mrf.mxu0
    %v1418 = vadd.f32 %v1374, %v1417
    %v1419 = vpop.f32.mrf.mxu0
    %v1420 = vadd.f32 %v1376, %v1419
    %1421 = vmatmul.bf16.gmra.mxu0 %v501
    %v1422 = vpop.f32.mrf.mxu0
    %v1423 = vadd.f32 %v1379, %v1422
    %v1424 = vpop.f32.mrf.mxu0
    %v1425 = vadd.f32 %v1381, %v1424
    %1426 = vmatmul.bf16.gmra.mxu0 %v510
    %v1427 = vpop.f32.mrf.mxu0
    %v1428 = vadd.f32 %v1384, %v1427
    %v1429 = vpop.f32.mrf.mxu0
    %v1430 = vadd.f32 %v1386, %v1429
    %1431 = vdwg.mxu0
    %1432 = vmatpush.bf16.msra.mxu0 %v1074
    %1433 = vmatpush.bf16.msra.mxu0 %v1072
    %1434 = vmatpush.bf16.msra.mxu0 %v1070
    %1435 = vmatpush.bf16.msra.mxu0 %v1068
    %1436 = vmatpush.bf16.msra.mxu0 %v1066
    %1437 = vmatpush.bf16.msra.mxu0 %v1064
    %1438 = vmatpush.bf16.msra.mxu0 %v1062
    %1439 = vmatpush.bf16.msra.mxu0 %v1060
    %1440 = vmatmul.bf16.gmra.mxu0 %v457
    %v1441 = vpop.f32.mrf.mxu0
    %v1442 = vadd.f32 %v1398, %v1441
    %v1443 = vpop.f32.mrf.mxu0
    %v1444 = vadd.f32 %v1400, %v1443
    %1445 = vmatmul.bf16.gmra.mxu0 %v466
    %v1446 = vpop.f32.mrf.mxu0
    %v1447 = vadd.f32 %v1403, %v1446
    %v1448 = vpop.f32.mrf.mxu0
    %v1449 = vadd.f32 %v1405, %v1448
    %1450 = vmatmul.bf16.gmra.mxu0 %v475
    %v1451 = vpop.f32.mrf.mxu0
    %v1452 = vadd.f32 %v1408, %v1451
    %v1453 = vpop.f32.mrf.mxu0
    %v1454 = vadd.f32 %v1410, %v1453
    %1455 = vmatmul.bf16.gmra.mxu0 %v484
    %v1456 = vpop.f32.mrf.mxu0
    %v1457 = vadd.f32 %v1413, %v1456
    %v1458 = vpop.f32.mrf.mxu0
    %v1459 = vadd.f32 %v1415, %v1458
    %1460 = vmatmul.bf16.gmra.mxu0 %v493
    %v1461 = vpop.f32.mrf.mxu0
    %v1462 = vadd.f32 %v1418, %v1461
    %v1463 = vpop.f32.mrf.mxu0
    %v1464 = vadd.f32 %v1420, %v1463
    %1465 = vmatmul.bf16.gmra.mxu0 %v502
    %v1466 = vpop.f32.mrf.mxu0
    %v1467 = vadd.f32 %v1423, %v1466
    %v1468 = vpop.f32.mrf.mxu0
    %v1469 = vadd.f32 %v1425, %v1468
    %1470 = vmatmul.bf16.gmra.mxu0 %v511
    %v1471 = vpop.f32.mrf.mxu0
    %v1472 = vadd.f32 %v1428, %v1471
    %v1473 = vpop.f32.mrf.mxu0
    %v1474 = vadd.f32 %v1430, %v1473
    %1475 = vdwg.mxu0
    %1476 = vmatpush.bf16.msra.mxu0 %v1090
    %1477 = vmatpush.bf16.msra.mxu0 %v1088
    %1478 = vmatpush.bf16.msra.mxu0 %v1086
    %1479 = vmatpush.bf16.msra.mxu0 %v1084
    %1480 = vmatpush.bf16.msra.mxu0 %v1082
    %1481 = vmatpush.bf16.msra.mxu0 %v1080
    %1482 = vmatpush.bf16.msra.mxu0 %v1078
    %1483 = vmatpush.bf16.msra.mxu0 %v1076
    %1484 = vmatmul.bf16.gmra.mxu0 %v458
    %v1485 = vpop.f32.mrf.mxu0
    %v1486 = vadd.f32 %v1442, %v1485
    %v1487 = vpop.f32.mrf.mxu0
    %v1488 = vadd.f32 %v1444, %v1487
    %1489 = vmatmul.bf16.gmra.mxu0 %v467
    %v1490 = vpop.f32.mrf.mxu0
    %v1491 = vadd.f32 %v1447, %v1490
    %v1492 = vpop.f32.mrf.mxu0
    %v1493 = vadd.f32 %v1449, %v1492
    %1494 = vmatmul.bf16.gmra.mxu0 %v476
    %v1495 = vpop.f32.mrf.mxu0
    %v1496 = vadd.f32 %v1452, %v1495
    %v1497 = vpop.f32.mrf.mxu0
    %v1498 = vadd.f32 %v1454, %v1497
    %1499 = vmatmul.bf16.gmra.mxu0 %v485
    %v1500 = vpop.f32.mrf.mxu0
    %v1501 = vadd.f32 %v1457, %v1500
    %v1502 = vpop.f32.mrf.mxu0
    %v1503 = vadd.f32 %v1459, %v1502
    %1504 = vmatmul.bf16.gmra.mxu0 %v494
    %v1505 = vpop.f32.mrf.mxu0
    %v1506 = vadd.f32 %v1462, %v1505
    %v1507 = vpop.f32.mrf.mxu0
    %v1508 = vadd.f32 %v1464, %v1507
    %1509 = vmatmul.bf16.gmra.mxu0 %v503
    %v1510 = vpop.f32.mrf.mxu0
    %v1511 = vadd.f32 %v1467, %v1510
    %v1512 = vpop.f32.mrf.mxu0
    %v1513 = vadd.f32 %v1469, %v1512
    %1514 = vmatmul.bf16.gmra.mxu0 %v512
    %v1515 = vpop.f32.mrf.mxu0
    %v1516 = vadd.f32 %v1472, %v1515
    %v1517 = vpop.f32.mrf.mxu0
    %v1518 = vadd.f32 %v1474, %v1517
    %1519 = vdwg.mxu0
    %1520 = vmatpush.bf16.msra.mxu0 %v1106
    %1521 = vmatpush.bf16.msra.mxu0 %v1104
    %1522 = vmatpush.bf16.msra.mxu0 %v1102
    %1523 = vmatpush.bf16.msra.mxu0 %v1100
    %1524 = vmatpush.bf16.msra.mxu0 %v1098
    %1525 = vmatpush.bf16.msra.mxu0 %v1096
    %1526 = vmatpush.bf16.msra.mxu0 %v1094
    %1527 = vmatpush.bf16.msra.mxu0 %v1092
    %1528 = vmatmul.bf16.gmra.mxu0 %v459
    %v1529 = vpop.f32.mrf.mxu0
    %v1530 = vadd.f32 %v1486, %v1529
    %v1531 = vpop.f32.mrf.mxu0
    %v1532 = vadd.f32 %v1488, %v1531
    %1533 = vmatmul.bf16.gmra.mxu0 %v468
    %v1534 = vpop.f32.mrf.mxu0
    %v1535 = vadd.f32 %v1491, %v1534
    %v1536 = vpop.f32.mrf.mxu0
    %v1537 = vadd.f32 %v1493, %v1536
    %1538 = vmatmul.bf16.gmra.mxu0 %v477
    %v1539 = vpop.f32.mrf.mxu0
    %v1540 = vadd.f32 %v1496, %v1539
    %v1541 = vpop.f32.mrf.mxu0
    %v1542 = vadd.f32 %v1498, %v1541
    %1543 = vmatmul.bf16.gmra.mxu0 %v486
    %v1544 = vpop.f32.mrf.mxu0
    %v1545 = vadd.f32 %v1501, %v1544
    %v1546 = vpop.f32.mrf.mxu0
    %v1547 = vadd.f32 %v1503, %v1546
    %1548 = vmatmul.bf16.gmra.mxu0 %v495
    %v1549 = vpop.f32.mrf.mxu0
    %v1550 = vadd.f32 %v1506, %v1549
    %v1551 = vpop.f32.mrf.mxu0
    %v1552 = vadd.f32 %v1508, %v1551
    %1553 = vmatmul.bf16.gmra.mxu0 %v504
    %v1554 = vpop.f32.mrf.mxu0
    %v1555 = vadd.f32 %v1511, %v1554
    %v1556 = vpop.f32.mrf.mxu0
    %v1557 = vadd.f32 %v1513, %v1556
    %1558 = vmatmul.bf16.gmra.mxu0 %v513
    %v1559 = vpop.f32.mrf.mxu0
    %v1560 = vadd.f32 %v1516, %v1559
    %v1561 = vpop.f32.mrf.mxu0
    %v1562 = vadd.f32 %v1518, %v1561
    %1563 = vdwg.mxu0
    %1564 = vmatpush.bf16.msra.mxu0 %v1122
    %1565 = vmatpush.bf16.msra.mxu0 %v1120
    %1566 = vmatpush.bf16.msra.mxu0 %v1118
    %1567 = vmatpush.bf16.msra.mxu0 %v1116
    %1568 = vmatpush.bf16.msra.mxu0 %v1114
    %1569 = vmatpush.bf16.msra.mxu0 %v1112
    %1570 = vmatpush.bf16.msra.mxu0 %v1110
    %1571 = vmatpush.bf16.msra.mxu0 %v1108
    %1572 = vmatmul.bf16.gmra.mxu0 %v460
    %v1573 = vpop.f32.mrf.mxu0
    %v1574 = vadd.f32 %v1530, %v1573
    %v1575 = vpop.f32.mrf.mxu0
    %v1576 = vadd.f32 %v1532, %v1575
    %1577 = vmatmul.bf16.gmra.mxu0 %v469
    %v1578 = vpop.f32.mrf.mxu0
    %v1579 = vadd.f32 %v1535, %v1578
    %v1580 = vpop.f32.mrf.mxu0
    %v1581 = vadd.f32 %v1537, %v1580
    %1582 = vmatmul.bf16.gmra.mxu0 %v478
    %v1583 = vpop.f32.mrf.mxu0
    %v1584 = vadd.f32 %v1540, %v1583
    %v1585 = vpop.f32.mrf.mxu0
    %v1586 = vadd.f32 %v1542, %v1585
    %1587 = vmatmul.bf16.gmra.mxu0 %v487
    %v1588 = vpop.f32.mrf.mxu0
    %v1589 = vadd.f32 %v1545, %v1588
    %v1590 = vpop.f32.mrf.mxu0
    %v1591 = vadd.f32 %v1547, %v1590
    %1592 = vmatmul.bf16.gmra.mxu0 %v496
    %v1593 = vpop.f32.mrf.mxu0
    %v1594 = vadd.f32 %v1550, %v1593
    %v1595 = vpop.f32.mrf.mxu0
    %v1596 = vadd.f32 %v1552, %v1595
    %1597 = vmatmul.bf16.gmra.mxu0 %v505
    %v1598 = vpop.f32.mrf.mxu0
    %v1599 = vadd.f32 %v1555, %v1598
    %v1600 = vpop.f32.mrf.mxu0
    %v1601 = vadd.f32 %v1557, %v1600
    %1602 = vmatmul.bf16.gmra.mxu0 %v514
    %v1603 = vpop.f32.mrf.mxu0
    %v1604 = vadd.f32 %v1560, %v1603
    %v1605 = vpop.f32.mrf.mxu0
    %v1606 = vadd.f32 %v1562, %v1605
    %1607 = vdwg.mxu0
    %1608 = vmatpush.bf16.msra.mxu0 %v1138
    %1609 = vmatpush.bf16.msra.mxu0 %v1136
    %1610 = vmatpush.bf16.msra.mxu0 %v1134
    %1611 = vmatpush.bf16.msra.mxu0 %v1132
    %1612 = vmatpush.bf16.msra.mxu0 %v1130
    %1613 = vmatpush.bf16.msra.mxu0 %v1128
    %1614 = vmatpush.bf16.msra.mxu0 %v1126
    %1615 = vmatpush.bf16.msra.mxu0 %v1124
    %1616 = vmatmul.bf16.gmra.mxu0 %v461
    %v1617 = vpop.f32.mrf.mxu0
    %v1618 = vadd.f32 %v1574, %v1617
    %v1619 = vpop.f32.mrf.mxu0
    %v1620 = vadd.f32 %v1576, %v1619
    %1621 = vmatmul.bf16.gmra.mxu0 %v470
    %v1622 = vpop.f32.mrf.mxu0
    %v1623 = vadd.f32 %v1579, %v1622
    %v1624 = vpop.f32.mrf.mxu0
    %v1625 = vadd.f32 %v1581, %v1624
    %1626 = vmatmul.bf16.gmra.mxu0 %v479
    %v1627 = vpop.f32.mrf.mxu0
    %v1628 = vadd.f32 %v1584, %v1627
    %v1629 = vpop.f32.mrf.mxu0
    %v1630 = vadd.f32 %v1586, %v1629
    %1631 = vmatmul.bf16.gmra.mxu0 %v488
    %v1632 = vpop.f32.mrf.mxu0
    %v1633 = vadd.f32 %v1589, %v1632
    %v1634 = vpop.f32.mrf.mxu0
    %v1635 = vadd.f32 %v1591, %v1634
    %1636 = vmatmul.bf16.gmra.mxu0 %v497
    %v1637 = vpop.f32.mrf.mxu0
    %v1638 = vadd.f32 %v1594, %v1637
    %v1639 = vpop.f32.mrf.mxu0
    %v1640 = vadd.f32 %v1596, %v1639
    %1641 = vmatmul.bf16.gmra.mxu0 %v506
    %v1642 = vpop.f32.mrf.mxu0
    %v1643 = vadd.f32 %v1599, %v1642
    %v1644 = vpop.f32.mrf.mxu0
    %v1645 = vadd.f32 %v1601, %v1644
    %1646 = vmatmul.bf16.gmra.mxu0 %v515
    %v1647 = vpop.f32.mrf.mxu0
    %v1648 = vadd.f32 %v1604, %v1647
    %v1649 = vpop.f32.mrf.mxu0
    %v1650 = vadd.f32 %v1606, %v1649
    %1651 = vdwg.mxu0
    %1652 = vmatpush.bf16.msra.mxu0 %v1154
    %1653 = vmatpush.bf16.msra.mxu0 %v1152
    %1654 = vmatpush.bf16.msra.mxu0 %v1150
    %1655 = vmatpush.bf16.msra.mxu0 %v1148
    %1656 = vmatpush.bf16.msra.mxu0 %v1146
    %1657 = vmatpush.bf16.msra.mxu0 %v1144
    %1658 = vmatpush.bf16.msra.mxu0 %v1142
    %1659 = vmatpush.bf16.msra.mxu0 %v1140
    %1660 = vmatmul.bf16.gmra.mxu0 %v462
    %v1661 = vpop.f32.mrf.mxu0
    %v1662 = vadd.f32 %v1618, %v1661
    %v1663 = vpop.f32.mrf.mxu0
    %v1664 = vadd.f32 %v1620, %v1663
    %1665 = vmatmul.bf16.gmra.mxu0 %v471
    %v1666 = vpop.f32.mrf.mxu0
    %v1667 = vadd.f32 %v1623, %v1666
    %v1668 = vpop.f32.mrf.mxu0
    %v1669 = vadd.f32 %v1625, %v1668
    %1670 = vmatmul.bf16.gmra.mxu0 %v480
    %v1671 = vpop.f32.mrf.mxu0
    %v1672 = vadd.f32 %v1628, %v1671
    %v1673 = vpop.f32.mrf.mxu0
    %v1674 = vadd.f32 %v1630, %v1673
    %1675 = vmatmul.bf16.gmra.mxu0 %v489
    %v1676 = vpop.f32.mrf.mxu0
    %v1677 = vadd.f32 %v1633, %v1676
    %v1678 = vpop.f32.mrf.mxu0
    %v1679 = vadd.f32 %v1635, %v1678
    %1680 = vmatmul.bf16.gmra.mxu0 %v498
    %v1681 = vpop.f32.mrf.mxu0
    %v1682 = vadd.f32 %v1638, %v1681
    %v1683 = vpop.f32.mrf.mxu0
    %v1684 = vadd.f32 %v1640, %v1683
    %1685 = vmatmul.bf16.gmra.mxu0 %v507
    %v1686 = vpop.f32.mrf.mxu0
    %v1687 = vadd.f32 %v1643, %v1686
    %v1688 = vpop.f32.mrf.mxu0
    %v1689 = vadd.f32 %v1645, %v1688
    %1690 = vmatmul.bf16.gmra.mxu0 %v516
    %v1691 = vpop.f32.mrf.mxu0
    %v1692 = vadd.f32 %v1648, %v1691
    %v1693 = vpop.f32.mrf.mxu0
    %v1694 = vadd.f32 %v1650, %v1693
    %1695 = vdwg.mxu0
    %1696 = vmatpush.bf16.msra.mxu0 %v1027
    %1697 = vmatpush.bf16.msra.mxu0 %v1025
    %1698 = vmatpush.bf16.msra.mxu0 %v1023
    %1699 = vmatpush.bf16.msra.mxu0 %v1021
    %1700 = vmatpush.bf16.msra.mxu0 %v1019
    %1701 = vmatpush.bf16.msra.mxu0 %v1017
    %1702 = vmatpush.bf16.msra.mxu0 %v1015
    %1703 = vmatpush.bf16.msra.mxu0 %v1013
    %1704 = vmatmul.bf16.gmra.mxu0 %v454
    %v1705 = vpop.f32.mrf.mxu0
    %v1706 = vadd.f32 0.0, %v1705
    %v1707 = vpop.f32.mrf.mxu0
    %v1708 = vadd.f32 0.0, %v1707
    %1709 = vmatmul.bf16.gmra.mxu0 %v463
    %v1710 = vpop.f32.mrf.mxu0
    %v1711 = vadd.f32 0.0, %v1710
    %v1712 = vpop.f32.mrf.mxu0
    %v1713 = vadd.f32 0.0, %v1712
    %1714 = vmatmul.bf16.gmra.mxu0 %v472
    %v1715 = vpop.f32.mrf.mxu0
    %v1716 = vadd.f32 0.0, %v1715
    %v1717 = vpop.f32.mrf.mxu0
    %v1718 = vadd.f32 0.0, %v1717
    %1719 = vmatmul.bf16.gmra.mxu0 %v481
    %v1720 = vpop.f32.mrf.mxu0
    %v1721 = vadd.f32 0.0, %v1720
    %v1722 = vpop.f32.mrf.mxu0
    %v1723 = vadd.f32 0.0, %v1722
    %1724 = vmatmul.bf16.gmra.mxu0 %v490
    %v1725 = vpop.f32.mrf.mxu0
    %v1726 = vadd.f32 0.0, %v1725
    %v1727 = vpop.f32.mrf.mxu0
    %v1728 = vadd.f32 0.0, %v1727
    %1729 = vmatmul.bf16.gmra.mxu0 %v499
    %v1730 = vpop.f32.mrf.mxu0
    %v1731 = vadd.f32 0.0, %v1730
    %v1732 = vpop.f32.mrf.mxu0
    %v1733 = vadd.f32 0.0, %v1732
    %1734 = vmatmul.bf16.gmra.mxu0 %v508
    %v1735 = vpop.f32.mrf.mxu0
    %v1736 = vadd.f32 0.0, %v1735
    %v1737 = vpop.f32.mrf.mxu0
    %v1738 = vadd.f32 0.0, %v1737
    %1739 = vdwg.mxu0
    %1740 = vmatpush.bf16.msra.mxu0 %v1043
    %1741 = vmatpush.bf16.msra.mxu0 %v1041
    %1742 = vmatpush.bf16.msra.mxu0 %v1039
    %1743 = vmatpush.bf16.msra.mxu0 %v1037
    %1744 = vmatpush.bf16.msra.mxu0 %v1035
    %1745 = vmatpush.bf16.msra.mxu0 %v1033
    %1746 = vmatpush.bf16.msra.mxu0 %v1031
    %1747 = vmatpush.bf16.msra.mxu0 %v1029
    %1748 = vmatmul.bf16.gmra.mxu0 %v455
    %v1749 = vpop.f32.mrf.mxu0
    %v1750 = vadd.f32 %v1706, %v1749
    %v1751 = vpop.f32.mrf.mxu0
    %v1752 = vadd.f32 %v1708, %v1751
    %1753 = vmatmul.bf16.gmra.mxu0 %v464
    %v1754 = vpop.f32.mrf.mxu0
    %v1755 = vadd.f32 %v1711, %v1754
    %v1756 = vpop.f32.mrf.mxu0
    %v1757 = vadd.f32 %v1713, %v1756
    %1758 = vmatmul.bf16.gmra.mxu0 %v473
    %v1759 = vpop.f32.mrf.mxu0
    %v1760 = vadd.f32 %v1716, %v1759
    %v1761 = vpop.f32.mrf.mxu0
    %v1762 = vadd.f32 %v1718, %v1761
    %1763 = vmatmul.bf16.gmra.mxu0 %v482
    %v1764 = vpop.f32.mrf.mxu0
    %v1765 = vadd.f32 %v1721, %v1764
    %v1766 = vpop.f32.mrf.mxu0
    %v1767 = vadd.f32 %v1723, %v1766
    %1768 = vmatmul.bf16.gmra.mxu0 %v491
    %v1769 = vpop.f32.mrf.mxu0
    %v1770 = vadd.f32 %v1726, %v1769
    %v1771 = vpop.f32.mrf.mxu0
    %v1772 = vadd.f32 %v1728, %v1771
    %1773 = vmatmul.bf16.gmra.mxu0 %v500
    %v1774 = vpop.f32.mrf.mxu0
    %v1775 = vadd.f32 %v1731, %v1774
    %v1776 = vpop.f32.mrf.mxu0
    %v1777 = vadd.f32 %v1733, %v1776
    %1778 = vmatmul.bf16.gmra.mxu0 %v509
    %v1779 = vpop.f32.mrf.mxu0
    %v1780 = vadd.f32 %v1736, %v1779
    %v1781 = vpop.f32.mrf.mxu0
    %v1782 = vadd.f32 %v1738, %v1781
    %1783 = vdwg.mxu0
    %1784 = vmatpush.bf16.msra.mxu0 %v1059
    %1785 = vmatpush.bf16.msra.mxu0 %v1057
    %1786 = vmatpush.bf16.msra.mxu0 %v1055
    %1787 = vmatpush.bf16.msra.mxu0 %v1053
    %1788 = vmatpush.bf16.msra.mxu0 %v1051
    %1789 = vmatpush.bf16.msra.mxu0 %v1049
    %1790 = vmatpush.bf16.msra.mxu0 %v1047
    %1791 = vmatpush.bf16.msra.mxu0 %v1045
    %1792 = vmatmul.bf16.gmra.mxu0 %v456
    %v1793 = vpop.f32.mrf.mxu0
    %v1794 = vadd.f32 %v1750, %v1793
    %v1795 = vpop.f32.mrf.mxu0
    %v1796 = vadd.f32 %v1752, %v1795
    %1797 = vmatmul.bf16.gmra.mxu0 %v465
    %v1798 = vpop.f32.mrf.mxu0
    %v1799 = vadd.f32 %v1755, %v1798
    %v1800 = vpop.f32.mrf.mxu0
    %v1801 = vadd.f32 %v1757, %v1800
    %1802 = vmatmul.bf16.gmra.mxu0 %v474
    %v1803 = vpop.f32.mrf.mxu0
    %v1804 = vadd.f32 %v1760, %v1803
    %v1805 = vpop.f32.mrf.mxu0
    %v1806 = vadd.f32 %v1762, %v1805
    %1807 = vmatmul.bf16.gmra.mxu0 %v483
    %v1808 = vpop.f32.mrf.mxu0
    %v1809 = vadd.f32 %v1765, %v1808
    %v1810 = vpop.f32.mrf.mxu0
    %v1811 = vadd.f32 %v1767, %v1810
    %1812 = vmatmul.bf16.gmra.mxu0 %v492
    %v1813 = vpop.f32.mrf.mxu0
    %v1814 = vadd.f32 %v1770, %v1813
    %v1815 = vpop.f32.mrf.mxu0
    %v1816 = vadd.f32 %v1772, %v1815
    %1817 = vmatmul.bf16.gmra.mxu0 %v501
    %v1818 = vpop.f32.mrf.mxu0
    %v1819 = vadd.f32 %v1775, %v1818
    %v1820 = vpop.f32.mrf.mxu0
    %v1821 = vadd.f32 %v1777, %v1820
    %1822 = vmatmul.bf16.gmra.mxu0 %v510
    %v1823 = vpop.f32.mrf.mxu0
    %v1824 = vadd.f32 %v1780, %v1823
    %v1825 = vpop.f32.mrf.mxu0
    %v1826 = vadd.f32 %v1782, %v1825
    %1827 = vdwg.mxu0
    %1828 = vmatpush.bf16.msra.mxu0 %v1075
    %1829 = vmatpush.bf16.msra.mxu0 %v1073
    %1830 = vmatpush.bf16.msra.mxu0 %v1071
    %1831 = vmatpush.bf16.msra.mxu0 %v1069
    %1832 = vmatpush.bf16.msra.mxu0 %v1067
    %1833 = vmatpush.bf16.msra.mxu0 %v1065
    %1834 = vmatpush.bf16.msra.mxu0 %v1063
    %1835 = vmatpush.bf16.msra.mxu0 %v1061
    %1836 = vmatmul.bf16.gmra.mxu0 %v457
    %v1837 = vpop.f32.mrf.mxu0
    %v1838 = vadd.f32 %v1794, %v1837
    %v1839 = vpop.f32.mrf.mxu0
    %v1840 = vadd.f32 %v1796, %v1839
    %1841 = vmatmul.bf16.gmra.mxu0 %v466
    %v1842 = vpop.f32.mrf.mxu0
    %v1843 = vadd.f32 %v1799, %v1842
    %v1844 = vpop.f32.mrf.mxu0
    %v1845 = vadd.f32 %v1801, %v1844
    %1846 = vmatmul.bf16.gmra.mxu0 %v475
    %v1847 = vpop.f32.mrf.mxu0
    %v1848 = vadd.f32 %v1804, %v1847
    %v1849 = vpop.f32.mrf.mxu0
    %v1850 = vadd.f32 %v1806, %v1849
    %1851 = vmatmul.bf16.gmra.mxu0 %v484
    %v1852 = vpop.f32.mrf.mxu0
    %v1853 = vadd.f32 %v1809, %v1852
    %v1854 = vpop.f32.mrf.mxu0
    %v1855 = vadd.f32 %v1811, %v1854
    %1856 = vmatmul.bf16.gmra.mxu0 %v493
    %v1857 = vpop.f32.mrf.mxu0
    %v1858 = vadd.f32 %v1814, %v1857
    %v1859 = vpop.f32.mrf.mxu0
    %v1860 = vadd.f32 %v1816, %v1859
    %1861 = vmatmul.bf16.gmra.mxu0 %v502
    %v1862 = vpop.f32.mrf.mxu0
    %v1863 = vadd.f32 %v1819, %v1862
    %v1864 = vpop.f32.mrf.mxu0
    %v1865 = vadd.f32 %v1821, %v1864
    %1866 = vmatmul.bf16.gmra.mxu0 %v511
    %v1867 = vpop.f32.mrf.mxu0
    %v1868 = vadd.f32 %v1824, %v1867
    %v1869 = vpop.f32.mrf.mxu0
    %v1870 = vadd.f32 %v1826, %v1869
    %1871 = vdwg.mxu0
    %1872 = vmatpush.bf16.msra.mxu0 %v1091
    %1873 = vmatpush.bf16.msra.mxu0 %v1089
    %1874 = vmatpush.bf16.msra.mxu0 %v1087
    %1875 = vmatpush.bf16.msra.mxu0 %v1085
    %1876 = vmatpush.bf16.msra.mxu0 %v1083
    %1877 = vmatpush.bf16.msra.mxu0 %v1081
    %1878 = vmatpush.bf16.msra.mxu0 %v1079
    %1879 = vmatpush.bf16.msra.mxu0 %v1077
    %1880 = vmatmul.bf16.gmra.mxu0 %v458
    %v1881 = vpop.f32.mrf.mxu0
    %v1882 = vadd.f32 %v1838, %v1881
    %v1883 = vpop.f32.mrf.mxu0
    %v1884 = vadd.f32 %v1840, %v1883
    %1885 = vmatmul.bf16.gmra.mxu0 %v467
    %v1886 = vpop.f32.mrf.mxu0
    %v1887 = vadd.f32 %v1843, %v1886
    %v1888 = vpop.f32.mrf.mxu0
    %v1889 = vadd.f32 %v1845, %v1888
    %1890 = vmatmul.bf16.gmra.mxu0 %v476
    %v1891 = vpop.f32.mrf.mxu0
    %v1892 = vadd.f32 %v1848, %v1891
    %v1893 = vpop.f32.mrf.mxu0
    %v1894 = vadd.f32 %v1850, %v1893
    %1895 = vmatmul.bf16.gmra.mxu0 %v485
    %v1896 = vpop.f32.mrf.mxu0
    %v1897 = vadd.f32 %v1853, %v1896
    %v1898 = vpop.f32.mrf.mxu0
    %v1899 = vadd.f32 %v1855, %v1898
    %1900 = vmatmul.bf16.gmra.mxu0 %v494
    %v1901 = vpop.f32.mrf.mxu0
    %v1902 = vadd.f32 %v1858, %v1901
    %v1903 = vpop.f32.mrf.mxu0
    %v1904 = vadd.f32 %v1860, %v1903
    %1905 = vmatmul.bf16.gmra.mxu0 %v503
    %v1906 = vpop.f32.mrf.mxu0
    %v1907 = vadd.f32 %v1863, %v1906
    %v1908 = vpop.f32.mrf.mxu0
    %v1909 = vadd.f32 %v1865, %v1908
    %1910 = vmatmul.bf16.gmra.mxu0 %v512
    %v1911 = vpop.f32.mrf.mxu0
    %v1912 = vadd.f32 %v1868, %v1911
    %v1913 = vpop.f32.mrf.mxu0
    %v1914 = vadd.f32 %v1870, %v1913
    %1915 = vdwg.mxu0
    %1916 = vmatpush.bf16.msra.mxu0 %v1107
    %1917 = vmatpush.bf16.msra.mxu0 %v1105
    %1918 = vmatpush.bf16.msra.mxu0 %v1103
    %1919 = vmatpush.bf16.msra.mxu0 %v1101
    %1920 = vmatpush.bf16.msra.mxu0 %v1099
    %1921 = vmatpush.bf16.msra.mxu0 %v1097
    %1922 = vmatpush.bf16.msra.mxu0 %v1095
    %1923 = vmatpush.bf16.msra.mxu0 %v1093
    %1924 = vmatmul.bf16.gmra.mxu0 %v459
    %v1925 = vpop.f32.mrf.mxu0
    %v1926 = vadd.f32 %v1882, %v1925
    %v1927 = vpop.f32.mrf.mxu0
    %v1928 = vadd.f32 %v1884, %v1927
    %1929 = vmatmul.bf16.gmra.mxu0 %v468
    %v1930 = vpop.f32.mrf.mxu0
    %v1931 = vadd.f32 %v1887, %v1930
    %v1932 = vpop.f32.mrf.mxu0
    %v1933 = vadd.f32 %v1889, %v1932
    %1934 = vmatmul.bf16.gmra.mxu0 %v477
    %v1935 = vpop.f32.mrf.mxu0
    %v1936 = vadd.f32 %v1892, %v1935
    %v1937 = vpop.f32.mrf.mxu0
    %v1938 = vadd.f32 %v1894, %v1937
    %1939 = vmatmul.bf16.gmra.mxu0 %v486
    %v1940 = vpop.f32.mrf.mxu0
    %v1941 = vadd.f32 %v1897, %v1940
    %v1942 = vpop.f32.mrf.mxu0
    %v1943 = vadd.f32 %v1899, %v1942
    %1944 = vmatmul.bf16.gmra.mxu0 %v495
    %v1945 = vpop.f32.mrf.mxu0
    %v1946 = vadd.f32 %v1902, %v1945
    %v1947 = vpop.f32.mrf.mxu0
    %v1948 = vadd.f32 %v1904, %v1947
    %1949 = vmatmul.bf16.gmra.mxu0 %v504
    %v1950 = vpop.f32.mrf.mxu0
    %v1951 = vadd.f32 %v1907, %v1950
    %v1952 = vpop.f32.mrf.mxu0
    %v1953 = vadd.f32 %v1909, %v1952
    %1954 = vmatmul.bf16.gmra.mxu0 %v513
    %v1955 = vpop.f32.mrf.mxu0
    %v1956 = vadd.f32 %v1912, %v1955
    %v1957 = vpop.f32.mrf.mxu0
    %v1958 = vadd.f32 %v1914, %v1957
    %1959 = vdwg.mxu0
    %1960 = vmatpush.bf16.msra.mxu0 %v1123
    %1961 = vmatpush.bf16.msra.mxu0 %v1121
    %1962 = vmatpush.bf16.msra.mxu0 %v1119
    %1963 = vmatpush.bf16.msra.mxu0 %v1117
    %1964 = vmatpush.bf16.msra.mxu0 %v1115
    %1965 = vmatpush.bf16.msra.mxu0 %v1113
    %1966 = vmatpush.bf16.msra.mxu0 %v1111
    %1967 = vmatpush.bf16.msra.mxu0 %v1109
    %1968 = vmatmul.bf16.gmra.mxu0 %v460
    %v1969 = vpop.f32.mrf.mxu0
    %v1970 = vadd.f32 %v1926, %v1969
    %v1971 = vpop.f32.mrf.mxu0
    %v1972 = vadd.f32 %v1928, %v1971
    %1973 = vmatmul.bf16.gmra.mxu0 %v469
    %v1974 = vpop.f32.mrf.mxu0
    %v1975 = vadd.f32 %v1931, %v1974
    %v1976 = vpop.f32.mrf.mxu0
    %v1977 = vadd.f32 %v1933, %v1976
    %1978 = vmatmul.bf16.gmra.mxu0 %v478
    %v1979 = vpop.f32.mrf.mxu0
    %v1980 = vadd.f32 %v1936, %v1979
    %v1981 = vpop.f32.mrf.mxu0
    %v1982 = vadd.f32 %v1938, %v1981
    %1983 = vmatmul.bf16.gmra.mxu0 %v487
    %v1984 = vpop.f32.mrf.mxu0
    %v1985 = vadd.f32 %v1941, %v1984
    %v1986 = vpop.f32.mrf.mxu0
    %v1987 = vadd.f32 %v1943, %v1986
    %1988 = vmatmul.bf16.gmra.mxu0 %v496
    %v1989 = vpop.f32.mrf.mxu0
    %v1990 = vadd.f32 %v1946, %v1989
    %v1991 = vpop.f32.mrf.mxu0
    %v1992 = vadd.f32 %v1948, %v1991
    %1993 = vmatmul.bf16.gmra.mxu0 %v505
    %v1994 = vpop.f32.mrf.mxu0
    %v1995 = vadd.f32 %v1951, %v1994
    %v1996 = vpop.f32.mrf.mxu0
    %v1997 = vadd.f32 %v1953, %v1996
    %1998 = vmatmul.bf16.gmra.mxu0 %v514
    %v1999 = vpop.f32.mrf.mxu0
    %v2000 = vadd.f32 %v1956, %v1999
    %v2001 = vpop.f32.mrf.mxu0
    %v2002 = vadd.f32 %v1958, %v2001
    %2003 = vdwg.mxu0
    %2004 = vmatpush.bf16.msra.mxu0 %v1139
    %2005 = vmatpush.bf16.msra.mxu0 %v1137
    %2006 = vmatpush.bf16.msra.mxu0 %v1135
    %2007 = vmatpush.bf16.msra.mxu0 %v1133
    %2008 = vmatpush.bf16.msra.mxu0 %v1131
    %2009 = vmatpush.bf16.msra.mxu0 %v1129
    %2010 = vmatpush.bf16.msra.mxu0 %v1127
    %2011 = vmatpush.bf16.msra.mxu0 %v1125
    %2012 = vmatmul.bf16.gmra.mxu0 %v461
    %v2013 = vpop.f32.mrf.mxu0
    %v2014 = vadd.f32 %v1970, %v2013
    %v2015 = vpop.f32.mrf.mxu0
    %v2016 = vadd.f32 %v1972, %v2015
    %2017 = vmatmul.bf16.gmra.mxu0 %v470
    %v2018 = vpop.f32.mrf.mxu0
    %v2019 = vadd.f32 %v1975, %v2018
    %v2020 = vpop.f32.mrf.mxu0
    %v2021 = vadd.f32 %v1977, %v2020
    %2022 = vmatmul.bf16.gmra.mxu0 %v479
    %v2023 = vpop.f32.mrf.mxu0
    %v2024 = vadd.f32 %v1980, %v2023
    %v2025 = vpop.f32.mrf.mxu0
    %v2026 = vadd.f32 %v1982, %v2025
    %2027 = vmatmul.bf16.gmra.mxu0 %v488
    %v2028 = vpop.f32.mrf.mxu0
    %v2029 = vadd.f32 %v1985, %v2028
    %v2030 = vpop.f32.mrf.mxu0
    %v2031 = vadd.f32 %v1987, %v2030
    %2032 = vmatmul.bf16.gmra.mxu0 %v497
    %v2033 = vpop.f32.mrf.mxu0
    %v2034 = vadd.f32 %v1990, %v2033
    %v2035 = vpop.f32.mrf.mxu0
    %v2036 = vadd.f32 %v1992, %v2035
    %2037 = vmatmul.bf16.gmra.mxu0 %v506
    %v2038 = vpop.f32.mrf.mxu0
    %v2039 = vadd.f32 %v1995, %v2038
    %v2040 = vpop.f32.mrf.mxu0
    %v2041 = vadd.f32 %v1997, %v2040
    %2042 = vmatmul.bf16.gmra.mxu0 %v515
    %v2043 = vpop.f32.mrf.mxu0
    %v2044 = vadd.f32 %v2000, %v2043
    %v2045 = vpop.f32.mrf.mxu0
    %v2046 = vadd.f32 %v2002, %v2045
    %2047 = vdwg.mxu0
    %2048 = vmatpush.bf16.msra.mxu0 %v1155
    %2049 = vmatpush.bf16.msra.mxu0 %v1153
    %2050 = vmatpush.bf16.msra.mxu0 %v1151
    %2051 = vmatpush.bf16.msra.mxu0 %v1149
    %2052 = vmatpush.bf16.msra.mxu0 %v1147
    %2053 = vmatpush.bf16.msra.mxu0 %v1145
    %2054 = vmatpush.bf16.msra.mxu0 %v1143
    %2055 = vmatpush.bf16.msra.mxu0 %v1141
    %2056 = vmatmul.bf16.gmra.mxu0 %v462
    %v2057 = vpop.f32.mrf.mxu0
    %v2058 = vadd.f32 %v2014, %v2057
    %v2059 = vpop.f32.mrf.mxu0
    %v2060 = vadd.f32 %v2016, %v2059
    %2061 = vmatmul.bf16.gmra.mxu0 %v471
    %v2062 = vpop.f32.mrf.mxu0
    %v2063 = vadd.f32 %v2019, %v2062
    %v2064 = vpop.f32.mrf.mxu0
    %v2065 = vadd.f32 %v2021, %v2064
    %2066 = vmatmul.bf16.gmra.mxu0 %v480
    %v2067 = vpop.f32.mrf.mxu0
    %v2068 = vadd.f32 %v2024, %v2067
    %v2069 = vpop.f32.mrf.mxu0
    %v2070 = vadd.f32 %v2026, %v2069
    %2071 = vmatmul.bf16.gmra.mxu0 %v489
    %v2072 = vpop.f32.mrf.mxu0
    %v2073 = vadd.f32 %v2029, %v2072
    %v2074 = vpop.f32.mrf.mxu0
    %v2075 = vadd.f32 %v2031, %v2074
    %2076 = vmatmul.bf16.gmra.mxu0 %v498
    %v2077 = vpop.f32.mrf.mxu0
    %v2078 = vadd.f32 %v2034, %v2077
    %v2079 = vpop.f32.mrf.mxu0
    %v2080 = vadd.f32 %v2036, %v2079
    %2081 = vmatmul.bf16.gmra.mxu0 %v507
    %v2082 = vpop.f32.mrf.mxu0
    %v2083 = vadd.f32 %v2039, %v2082
    %v2084 = vpop.f32.mrf.mxu0
    %v2085 = vadd.f32 %v2041, %v2084
    %2086 = vmatmul.bf16.gmra.mxu0 %v516
    %v2087 = vpop.f32.mrf.mxu0
    %v2088 = vadd.f32 %v2044, %v2087
    %v2089 = vpop.f32.mrf.mxu0
    %v2090 = vadd.f32 %v2046, %v2089
    %2091 = vdwg.mxu0
    %v2092 = vadd.f32 %v1662, %v1664
    %v2093 = vadd.f32 %v2092, %v1667
    %v2094 = vadd.f32 %v2093, %v1669
    %v2095 = vadd.f32 %v2094, %v1672
    %v2096 = vadd.f32 %v2095, %v1674
    %v2097 = vadd.f32 %v2096, %v1677
    %v2098 = vadd.f32 %v2097, %v1679
    %v2099 = vadd.f32 %v2098, %v1682
    %v2100 = vadd.f32 %v2099, %v1684
    %v2101 = vadd.f32 %v2100, %v1687
    %v2102 = vadd.f32 %v2101, %v1689
    %v2103 = vadd.f32 %v2102, %v1692
    %v2104 = vadd.f32 %v2103, %v1694
    %v2105 = vrot.slane %v2104, 4
    %v2106 = vadd.f32 %v2104, %v2105
    %v2107 = vrot.slane %v2106, 2
    %v2108 = vadd.f32 %v2106, %v2107
    %v2109 = vrot.slane %v2108, 1
    %v2110 = vadd.f32 %v2108, %v2109
    %v2111 = vadd.f32 %v2058, %v2060
    %v2112 = vadd.f32 %v2111, %v2063
    %v2113 = vadd.f32 %v2112, %v2065
    %v2114 = vadd.f32 %v2113, %v2068
    %v2115 = vadd.f32 %v2114, %v2070
    %v2116 = vadd.f32 %v2115, %v2073
    %v2117 = vadd.f32 %v2116, %v2075
    %v2118 = vadd.f32 %v2117, %v2078
    %v2119 = vadd.f32 %v2118, %v2080
    %v2120 = vadd.f32 %v2119, %v2083
    %v2121 = vadd.f32 %v2120, %v2085
    %v2122 = vadd.f32 %v2121, %v2088
    %v2123 = vadd.f32 %v2122, %v2090
    %v2124 = vrot.slane %v2123, 4
    %v2125 = vadd.f32 %v2123, %v2124
    %v2126 = vrot.slane %v2125, 2
    %v2127 = vadd.f32 %v2125, %v2126
    %v2128 = vrot.slane %v2127, 1
    %v2129 = vadd.f32 %v2127, %v2128
    %v2130 = vmul.f32 %v1662, %v1662
    %v2131 = vmul.f32 %v2058, %v2058
    %v2132 = vmul.f32 %v1664, %v1664
    %v2133 = vmul.f32 %v2060, %v2060
    %v2134 = vmul.f32 %v1667, %v1667
    %v2135 = vmul.f32 %v2063, %v2063
    %v2136 = vmul.f32 %v1669, %v1669
    %v2137 = vmul.f32 %v2065, %v2065
    %v2138 = vmul.f32 %v1672, %v1672
    %v2139 = vmul.f32 %v2068, %v2068
    %v2140 = vmul.f32 %v1674, %v1674
    %v2141 = vmul.f32 %v2070, %v2070
    %v2142 = vmul.f32 %v1677, %v1677
    %v2143 = vmul.f32 %v2073, %v2073
    %v2144 = vmul.f32 %v1679, %v1679
    %v2145 = vmul.f32 %v2075, %v2075
    %v2146 = vmul.f32 %v1682, %v1682
    %v2147 = vmul.f32 %v2078, %v2078
    %v2148 = vmul.f32 %v1684, %v1684
    %v2149 = vmul.f32 %v2080, %v2080
    %v2150 = vmul.f32 %v1687, %v1687
    %v2151 = vmul.f32 %v2083, %v2083
    %v2152 = vmul.f32 %v1689, %v1689
    %v2153 = vmul.f32 %v2085, %v2085
    %v2154 = vmul.f32 %v1692, %v1692
    %v2155 = vmul.f32 %v2088, %v2088
    %v2156 = vmul.f32 %v1694, %v1694
    %v2157 = vmul.f32 %v2090, %v2090
    %v2158 = vadd.f32 %v2130, %v2132
    %v2159 = vadd.f32 %v2158, %v2134
    %v2160 = vadd.f32 %v2159, %v2136
    %v2161 = vadd.f32 %v2160, %v2138
    %v2162 = vadd.f32 %v2161, %v2140
    %v2163 = vadd.f32 %v2162, %v2142
    %v2164 = vadd.f32 %v2163, %v2144
    %v2165 = vadd.f32 %v2164, %v2146
    %v2166 = vadd.f32 %v2165, %v2148
    %v2167 = vadd.f32 %v2166, %v2150
    %v2168 = vadd.f32 %v2167, %v2152
    %v2169 = vadd.f32 %v2168, %v2154
    %v2170 = vadd.f32 %v2169, %v2156
    %v2171 = vrot.slane %v2170, 4
    %v2172 = vadd.f32 %v2170, %v2171
    %v2173 = vrot.slane %v2172, 2
    %v2174 = vadd.f32 %v2172, %v2173
    %v2175 = vrot.slane %v2174, 1
    %v2176 = vadd.f32 %v2174, %v2175
    %v2177 = vadd.f32 %v2131, %v2133
    %v2178 = vadd.f32 %v2177, %v2135
    %v2179 = vadd.f32 %v2178, %v2137
    %v2180 = vadd.f32 %v2179, %v2139
    %v2181 = vadd.f32 %v2180, %v2141
    %v2182 = vadd.f32 %v2181, %v2143
    %v2183 = vadd.f32 %v2182, %v2145
    %v2184 = vadd.f32 %v2183, %v2147
    %v2185 = vadd.f32 %v2184, %v2149
    %v2186 = vadd.f32 %v2185, %v2151
    %v2187 = vadd.f32 %v2186, %v2153
    %v2188 = vadd.f32 %v2187, %v2155
    %v2189 = vadd.f32 %v2188, %v2157
    %v2190 = vrot.slane %v2189, 4
    %v2191 = vadd.f32 %v2189, %v2190
    %v2192 = vrot.slane %v2191, 2
    %v2193 = vadd.f32 %v2191, %v2192
    %v2194 = vrot.slane %v2193, 1
    %v2195 = vadd.f32 %v2193, %v2194
    %v2196 = vlaneseq
    %v2197 = vshrl.u32 %v2196, 7
    %v2198 = vadd.s32 %v2197, 8
    %v2199 = vadd.s32 %v2197, 16
    %v2200 = vadd.s32 %v2197, 24
    %v2201 = vadd.s32 %v2197, 32
    %v2202 = vadd.s32 %v2197, 40
    %v2203 = vadd.s32 %v2197, 48
    %v2204 = vadd.s32 %v2197, 56
    %v2205 = vadd.s32 %v2197, 64
    %v2206 = vadd.s32 %v2197, 72
    %v2207 = vadd.s32 %v2197, 80
    %v2208 = vadd.s32 %v2197, 88
    %v2209 = vadd.s32 %v2197, 96
    %v2210 = vadd.s32 %v2197, 104
    %v2211 = vadd.s32 %v2197, 112
    %v2212 = vadd.s32 %v2197, 120
    %v2213 = vadd.s32 %v2197, 128
    %v2214 = vadd.s32 %v2197, 136
    %v2215 = vadd.s32 %v2197, 144
    %v2216 = vadd.s32 %v2197, 152
    %v2217 = vadd.s32 %v2197, 160
    %v2218 = vadd.s32 %v2197, 168
    %v2219 = vadd.s32 %v2197, 176
    %v2220 = vadd.s32 %v2197, 184
    %v2221 = vadd.s32 %v2197, 192
    %v2222 = vadd.s32 %v2197, 200
    %v2223 = vadd.s32 %v2197, 208
    %v2224 = vadd.s32 %v2197, 216
    %v2225 = vadd.s32 %v2197, 224
    %v2226 = vadd.s32 %v2197, 232
    %v2227 = vadd.s32 %v2197, 240
    %v2228 = vadd.s32 %v2197, 248
    %v2229 = vlaneseq
    %v2230 = vand.u32 %v2229, 127
    %v2231 = vadd.s32 %v2230, 128
    %v2232 = vsub.s32 %v2197, %v2230
    %v2233 = vsub.s32 %v2197, %v2231
    %v2234 = vsub.s32 %v2198, %v2230
    %v2235 = vsub.s32 %v2198, %v2231
    %v2236 = vsub.s32 %v2199, %v2230
    %v2237 = vsub.s32 %v2199, %v2231
    %v2238 = vsub.s32 %v2200, %v2230
    %v2239 = vsub.s32 %v2200, %v2231
    %v2240 = vsub.s32 %v2201, %v2230
    %v2241 = vsub.s32 %v2201, %v2231
    %v2242 = vsub.s32 %v2202, %v2230
    %v2243 = vsub.s32 %v2202, %v2231
    %v2244 = vsub.s32 %v2203, %v2230
    %v2245 = vsub.s32 %v2203, %v2231
    %v2246 = vsub.s32 %v2204, %v2230
    %v2247 = vsub.s32 %v2204, %v2231
    %v2248 = vsub.s32 %v2205, %v2230
    %v2249 = vsub.s32 %v2205, %v2231
    %v2250 = vsub.s32 %v2206, %v2230
    %v2251 = vsub.s32 %v2206, %v2231
    %v2252 = vsub.s32 %v2207, %v2230
    %v2253 = vsub.s32 %v2207, %v2231
    %v2254 = vsub.s32 %v2208, %v2230
    %v2255 = vsub.s32 %v2208, %v2231
    %v2256 = vsub.s32 %v2209, %v2230
    %v2257 = vsub.s32 %v2209, %v2231
    %v2258 = vsub.s32 %v2210, %v2230
    %v2259 = vsub.s32 %v2210, %v2231
    %v2260 = vsub.s32 %v2211, %v2230
    %v2261 = vsub.s32 %v2211, %v2231
    %v2262 = vsub.s32 %v2212, %v2230
    %v2263 = vsub.s32 %v2212, %v2231
    %v2264 = vsub.s32 %v2213, %v2230
    %v2265 = vsub.s32 %v2213, %v2231
    %v2266 = vsub.s32 %v2214, %v2230
    %v2267 = vsub.s32 %v2214, %v2231
    %v2268 = vsub.s32 %v2215, %v2230
    %v2269 = vsub.s32 %v2215, %v2231
    %v2270 = vsub.s32 %v2216, %v2230
    %v2271 = vsub.s32 %v2216, %v2231
    %v2272 = vsub.s32 %v2217, %v2230
    %v2273 = vsub.s32 %v2217, %v2231
    %v2274 = vsub.s32 %v2218, %v2230
    %v2275 = vsub.s32 %v2218, %v2231
    %v2276 = vsub.s32 %v2219, %v2230
    %v2277 = vsub.s32 %v2219, %v2231
    %v2278 = vsub.s32 %v2220, %v2230
    %v2279 = vsub.s32 %v2220, %v2231
    %v2280 = vsub.s32 %v2221, %v2230
    %v2281 = vsub.s32 %v2221, %v2231
    %v2282 = vsub.s32 %v2222, %v2230
    %v2283 = vsub.s32 %v2222, %v2231
    %v2284 = vsub.s32 %v2223, %v2230
    %v2285 = vsub.s32 %v2223, %v2231
    %v2286 = vsub.s32 %v2224, %v2230
    %v2287 = vsub.s32 %v2224, %v2231
    %v2288 = vsub.s32 %v2225, %v2230
    %v2289 = vsub.s32 %v2225, %v2231
    %v2290 = vsub.s32 %v2226, %v2230
    %v2291 = vsub.s32 %v2226, %v2231
    %v2292 = vsub.s32 %v2227, %v2230
    %v2293 = vsub.s32 %v2227, %v2231
    %v2294 = vsub.s32 %v2228, %v2230
    %v2295 = vsub.s32 %v2228, %v2231
    %vm2296 = vcmp.eq.s32.totalorder %v2232, 0
    %vm2297 = vcmp.eq.s32.totalorder %v2233, 0
    %vm2298 = vcmp.eq.s32.totalorder %v2234, 0
    %vm2299 = vcmp.eq.s32.totalorder %v2235, 0
    %vm2300 = vcmp.eq.s32.totalorder %v2236, 0
    %vm2301 = vcmp.eq.s32.totalorder %v2237, 0
    %vm2302 = vcmp.eq.s32.totalorder %v2238, 0
    %vm2303 = vcmp.eq.s32.totalorder %v2239, 0
    %vm2304 = vcmp.eq.s32.totalorder %v2240, 0
    %vm2305 = vcmp.eq.s32.totalorder %v2241, 0
    %vm2306 = vcmp.eq.s32.totalorder %v2242, 0
    %vm2307 = vcmp.eq.s32.totalorder %v2243, 0
    %vm2308 = vcmp.eq.s32.totalorder %v2244, 0
    %vm2309 = vcmp.eq.s32.totalorder %v2245, 0
    %vm2310 = vcmp.eq.s32.totalorder %v2246, 0
    %vm2311 = vcmp.eq.s32.totalorder %v2247, 0
    %vm2312 = vcmp.eq.s32.totalorder %v2248, 0
    %vm2313 = vcmp.eq.s32.totalorder %v2249, 0
    %vm2314 = vcmp.eq.s32.totalorder %v2250, 0
    %vm2315 = vcmp.eq.s32.totalorder %v2251, 0
    %vm2316 = vcmp.eq.s32.totalorder %v2252, 0
    %vm2317 = vcmp.eq.s32.totalorder %v2253, 0
    %vm2318 = vcmp.eq.s32.totalorder %v2254, 0
    %vm2319 = vcmp.eq.s32.totalorder %v2255, 0
    %vm2320 = vcmp.eq.s32.totalorder %v2256, 0
    %vm2321 = vcmp.eq.s32.totalorder %v2257, 0
    %vm2322 = vcmp.eq.s32.totalorder %v2258, 0
    %vm2323 = vcmp.eq.s32.totalorder %v2259, 0
    %vm2324 = vcmp.eq.s32.totalorder %v2260, 0
    %vm2325 = vcmp.eq.s32.totalorder %v2261, 0
    %vm2326 = vcmp.eq.s32.totalorder %v2262, 0
    %vm2327 = vcmp.eq.s32.totalorder %v2263, 0
    %vm2328 = vcmp.eq.s32.totalorder %v2264, 0
    %vm2329 = vcmp.eq.s32.totalorder %v2265, 0
    %vm2330 = vcmp.eq.s32.totalorder %v2266, 0
    %vm2331 = vcmp.eq.s32.totalorder %v2267, 0
    %vm2332 = vcmp.eq.s32.totalorder %v2268, 0
    %vm2333 = vcmp.eq.s32.totalorder %v2269, 0
    %vm2334 = vcmp.eq.s32.totalorder %v2270, 0
    %vm2335 = vcmp.eq.s32.totalorder %v2271, 0
    %vm2336 = vcmp.eq.s32.totalorder %v2272, 0
    %vm2337 = vcmp.eq.s32.totalorder %v2273, 0
    %vm2338 = vcmp.eq.s32.totalorder %v2274, 0
    %vm2339 = vcmp.eq.s32.totalorder %v2275, 0
    %vm2340 = vcmp.eq.s32.totalorder %v2276, 0
    %vm2341 = vcmp.eq.s32.totalorder %v2277, 0
    %vm2342 = vcmp.eq.s32.totalorder %v2278, 0
    %vm2343 = vcmp.eq.s32.totalorder %v2279, 0
    %vm2344 = vcmp.eq.s32.totalorder %v2280, 0
    %vm2345 = vcmp.eq.s32.totalorder %v2281, 0
    %vm2346 = vcmp.eq.s32.totalorder %v2282, 0
    %vm2347 = vcmp.eq.s32.totalorder %v2283, 0
    %vm2348 = vcmp.eq.s32.totalorder %v2284, 0
    %vm2349 = vcmp.eq.s32.totalorder %v2285, 0
    %vm2350 = vcmp.eq.s32.totalorder %v2286, 0
    %vm2351 = vcmp.eq.s32.totalorder %v2287, 0
    %vm2352 = vcmp.eq.s32.totalorder %v2288, 0
    %vm2353 = vcmp.eq.s32.totalorder %v2289, 0
    %vm2354 = vcmp.eq.s32.totalorder %v2290, 0
    %vm2355 = vcmp.eq.s32.totalorder %v2291, 0
    %vm2356 = vcmp.eq.s32.totalorder %v2292, 0
    %vm2357 = vcmp.eq.s32.totalorder %v2293, 0
    %vm2358 = vcmp.eq.s32.totalorder %v2294, 0
    %vm2359 = vcmp.eq.s32.totalorder %v2295, 0
    %vm2360 = vcmp.eq.s32.totalorder %v2232, 64
    %vm2361 = vcmp.eq.s32.totalorder %v2233, 64
    %vm2362 = vcmp.eq.s32.totalorder %v2234, 64
    %vm2363 = vcmp.eq.s32.totalorder %v2235, 64
    %vm2364 = vcmp.eq.s32.totalorder %v2236, 64
    %vm2365 = vcmp.eq.s32.totalorder %v2237, 64
    %vm2366 = vcmp.eq.s32.totalorder %v2238, 64
    %vm2367 = vcmp.eq.s32.totalorder %v2239, 64
    %vm2368 = vcmp.eq.s32.totalorder %v2240, 64
    %vm2369 = vcmp.eq.s32.totalorder %v2241, 64
    %vm2370 = vcmp.eq.s32.totalorder %v2242, 64
    %vm2371 = vcmp.eq.s32.totalorder %v2243, 64
    %vm2372 = vcmp.eq.s32.totalorder %v2244, 64
    %vm2373 = vcmp.eq.s32.totalorder %v2245, 64
    %vm2374 = vcmp.eq.s32.totalorder %v2246, 64
    %vm2375 = vcmp.eq.s32.totalorder %v2247, 64
    %vm2376 = vcmp.eq.s32.totalorder %v2248, 64
    %vm2377 = vcmp.eq.s32.totalorder %v2249, 64
    %vm2378 = vcmp.eq.s32.totalorder %v2250, 64
    %vm2379 = vcmp.eq.s32.totalorder %v2251, 64
    %vm2380 = vcmp.eq.s32.totalorder %v2252, 64
    %vm2381 = vcmp.eq.s32.totalorder %v2253, 64
    %vm2382 = vcmp.eq.s32.totalorder %v2254, 64
    %vm2383 = vcmp.eq.s32.totalorder %v2255, 64
    %vm2384 = vcmp.eq.s32.totalorder %v2256, 64
    %vm2385 = vcmp.eq.s32.totalorder %v2257, 64
    %vm2386 = vcmp.eq.s32.totalorder %v2258, 64
    %vm2387 = vcmp.eq.s32.totalorder %v2259, 64
    %vm2388 = vcmp.eq.s32.totalorder %v2260, 64
    %vm2389 = vcmp.eq.s32.totalorder %v2261, 64
    %vm2390 = vcmp.eq.s32.totalorder %v2262, 64
    %vm2391 = vcmp.eq.s32.totalorder %v2263, 64
    %vm2392 = vcmp.eq.s32.totalorder %v2264, 64
    %vm2393 = vcmp.eq.s32.totalorder %v2265, 64
    %vm2394 = vcmp.eq.s32.totalorder %v2266, 64
    %vm2395 = vcmp.eq.s32.totalorder %v2267, 64
    %vm2396 = vcmp.eq.s32.totalorder %v2268, 64
    %vm2397 = vcmp.eq.s32.totalorder %v2269, 64
    %vm2398 = vcmp.eq.s32.totalorder %v2270, 64
    %vm2399 = vcmp.eq.s32.totalorder %v2271, 64
    %vm2400 = vcmp.eq.s32.totalorder %v2272, 64
    %vm2401 = vcmp.eq.s32.totalorder %v2273, 64
    %vm2402 = vcmp.eq.s32.totalorder %v2274, 64
    %vm2403 = vcmp.eq.s32.totalorder %v2275, 64
    %vm2404 = vcmp.eq.s32.totalorder %v2276, 64
    %vm2405 = vcmp.eq.s32.totalorder %v2277, 64
    %vm2406 = vcmp.eq.s32.totalorder %v2278, 64
    %vm2407 = vcmp.eq.s32.totalorder %v2279, 64
    %vm2408 = vcmp.eq.s32.totalorder %v2280, 64
    %vm2409 = vcmp.eq.s32.totalorder %v2281, 64
    %vm2410 = vcmp.eq.s32.totalorder %v2282, 64
    %vm2411 = vcmp.eq.s32.totalorder %v2283, 64
    %vm2412 = vcmp.eq.s32.totalorder %v2284, 64
    %vm2413 = vcmp.eq.s32.totalorder %v2285, 64
    %vm2414 = vcmp.eq.s32.totalorder %v2286, 64
    %vm2415 = vcmp.eq.s32.totalorder %v2287, 64
    %vm2416 = vcmp.eq.s32.totalorder %v2288, 64
    %vm2417 = vcmp.eq.s32.totalorder %v2289, 64
    %vm2418 = vcmp.eq.s32.totalorder %v2290, 64
    %vm2419 = vcmp.eq.s32.totalorder %v2291, 64
    %vm2420 = vcmp.eq.s32.totalorder %v2292, 64
    %vm2421 = vcmp.eq.s32.totalorder %v2293, 64
    %vm2422 = vcmp.eq.s32.totalorder %v2294, 64
    %vm2423 = vcmp.eq.s32.totalorder %v2295, 64
    %vm2424 = vcmp.eq.s32.totalorder %v2232, 4294967232
    %vm2425 = vcmp.eq.s32.totalorder %v2233, 4294967232
    %vm2426 = vcmp.eq.s32.totalorder %v2234, 4294967232
    %vm2427 = vcmp.eq.s32.totalorder %v2235, 4294967232
    %vm2428 = vcmp.eq.s32.totalorder %v2236, 4294967232
    %vm2429 = vcmp.eq.s32.totalorder %v2237, 4294967232
    %vm2430 = vcmp.eq.s32.totalorder %v2238, 4294967232
    %vm2431 = vcmp.eq.s32.totalorder %v2239, 4294967232
    %vm2432 = vcmp.eq.s32.totalorder %v2240, 4294967232
    %vm2433 = vcmp.eq.s32.totalorder %v2241, 4294967232
    %vm2434 = vcmp.eq.s32.totalorder %v2242, 4294967232
    %vm2435 = vcmp.eq.s32.totalorder %v2243, 4294967232
    %vm2436 = vcmp.eq.s32.totalorder %v2244, 4294967232
    %vm2437 = vcmp.eq.s32.totalorder %v2245, 4294967232
    %vm2438 = vcmp.eq.s32.totalorder %v2246, 4294967232
    %vm2439 = vcmp.eq.s32.totalorder %v2247, 4294967232
    %vm2440 = vcmp.eq.s32.totalorder %v2248, 4294967232
    %vm2441 = vcmp.eq.s32.totalorder %v2249, 4294967232
    %vm2442 = vcmp.eq.s32.totalorder %v2250, 4294967232
    %vm2443 = vcmp.eq.s32.totalorder %v2251, 4294967232
    %vm2444 = vcmp.eq.s32.totalorder %v2252, 4294967232
    %vm2445 = vcmp.eq.s32.totalorder %v2253, 4294967232
    %vm2446 = vcmp.eq.s32.totalorder %v2254, 4294967232
    %vm2447 = vcmp.eq.s32.totalorder %v2255, 4294967232
    %vm2448 = vcmp.eq.s32.totalorder %v2256, 4294967232
    %vm2449 = vcmp.eq.s32.totalorder %v2257, 4294967232
    %vm2450 = vcmp.eq.s32.totalorder %v2258, 4294967232
    %vm2451 = vcmp.eq.s32.totalorder %v2259, 4294967232
    %vm2452 = vcmp.eq.s32.totalorder %v2260, 4294967232
    %vm2453 = vcmp.eq.s32.totalorder %v2261, 4294967232
    %vm2454 = vcmp.eq.s32.totalorder %v2262, 4294967232
    %vm2455 = vcmp.eq.s32.totalorder %v2263, 4294967232
    %vm2456 = vcmp.eq.s32.totalorder %v2264, 4294967232
    %vm2457 = vcmp.eq.s32.totalorder %v2265, 4294967232
    %vm2458 = vcmp.eq.s32.totalorder %v2266, 4294967232
    %vm2459 = vcmp.eq.s32.totalorder %v2267, 4294967232
    %vm2460 = vcmp.eq.s32.totalorder %v2268, 4294967232
    %vm2461 = vcmp.eq.s32.totalorder %v2269, 4294967232
    %vm2462 = vcmp.eq.s32.totalorder %v2270, 4294967232
    %vm2463 = vcmp.eq.s32.totalorder %v2271, 4294967232
    %vm2464 = vcmp.eq.s32.totalorder %v2272, 4294967232
    %vm2465 = vcmp.eq.s32.totalorder %v2273, 4294967232
    %vm2466 = vcmp.eq.s32.totalorder %v2274, 4294967232
    %vm2467 = vcmp.eq.s32.totalorder %v2275, 4294967232
    %vm2468 = vcmp.eq.s32.totalorder %v2276, 4294967232
    %vm2469 = vcmp.eq.s32.totalorder %v2277, 4294967232
    %vm2470 = vcmp.eq.s32.totalorder %v2278, 4294967232
    %vm2471 = vcmp.eq.s32.totalorder %v2279, 4294967232
    %vm2472 = vcmp.eq.s32.totalorder %v2280, 4294967232
    %vm2473 = vcmp.eq.s32.totalorder %v2281, 4294967232
    %vm2474 = vcmp.eq.s32.totalorder %v2282, 4294967232
    %vm2475 = vcmp.eq.s32.totalorder %v2283, 4294967232
    %vm2476 = vcmp.eq.s32.totalorder %v2284, 4294967232
    %vm2477 = vcmp.eq.s32.totalorder %v2285, 4294967232
    %vm2478 = vcmp.eq.s32.totalorder %v2286, 4294967232
    %vm2479 = vcmp.eq.s32.totalorder %v2287, 4294967232
    %vm2480 = vcmp.eq.s32.totalorder %v2288, 4294967232
    %vm2481 = vcmp.eq.s32.totalorder %v2289, 4294967232
    %vm2482 = vcmp.eq.s32.totalorder %v2290, 4294967232
    %vm2483 = vcmp.eq.s32.totalorder %v2291, 4294967232
    %vm2484 = vcmp.eq.s32.totalorder %v2292, 4294967232
    %vm2485 = vcmp.eq.s32.totalorder %v2293, 4294967232
    %vm2486 = vcmp.eq.s32.totalorder %v2294, 4294967232
    %vm2487 = vcmp.eq.s32.totalorder %v2295, 4294967232
    %vm2488 = vmor %vm2360, %vm2424
    %vm2489 = vmor %vm2361, %vm2425
    %vm2490 = vmor %vm2362, %vm2426
    %vm2491 = vmor %vm2363, %vm2427
    %vm2492 = vmor %vm2364, %vm2428
    %vm2493 = vmor %vm2365, %vm2429
    %vm2494 = vmor %vm2366, %vm2430
    %vm2495 = vmor %vm2367, %vm2431
    %vm2496 = vmor %vm2368, %vm2432
    %vm2497 = vmor %vm2369, %vm2433
    %vm2498 = vmor %vm2370, %vm2434
    %vm2499 = vmor %vm2371, %vm2435
    %vm2500 = vmor %vm2372, %vm2436
    %vm2501 = vmor %vm2373, %vm2437
    %vm2502 = vmor %vm2374, %vm2438
    %vm2503 = vmor %vm2375, %vm2439
    %vm2504 = vmor %vm2376, %vm2440
    %vm2505 = vmor %vm2377, %vm2441
    %vm2506 = vmor %vm2378, %vm2442
    %vm2507 = vmor %vm2379, %vm2443
    %vm2508 = vmor %vm2380, %vm2444
    %vm2509 = vmor %vm2381, %vm2445
    %vm2510 = vmor %vm2382, %vm2446
    %vm2511 = vmor %vm2383, %vm2447
    %vm2512 = vmor %vm2384, %vm2448
    %vm2513 = vmor %vm2385, %vm2449
    %vm2514 = vmor %vm2386, %vm2450
    %vm2515 = vmor %vm2387, %vm2451
    %vm2516 = vmor %vm2388, %vm2452
    %vm2517 = vmor %vm2389, %vm2453
    %vm2518 = vmor %vm2390, %vm2454
    %vm2519 = vmor %vm2391, %vm2455
    %vm2520 = vmor %vm2392, %vm2456
    %vm2521 = vmor %vm2393, %vm2457
    %vm2522 = vmor %vm2394, %vm2458
    %vm2523 = vmor %vm2395, %vm2459
    %vm2524 = vmor %vm2396, %vm2460
    %vm2525 = vmor %vm2397, %vm2461
    %vm2526 = vmor %vm2398, %vm2462
    %vm2527 = vmor %vm2399, %vm2463
    %vm2528 = vmor %vm2400, %vm2464
    %vm2529 = vmor %vm2401, %vm2465
    %vm2530 = vmor %vm2402, %vm2466
    %vm2531 = vmor %vm2403, %vm2467
    %vm2532 = vmor %vm2404, %vm2468
    %vm2533 = vmor %vm2405, %vm2469
    %vm2534 = vmor %vm2406, %vm2470
    %vm2535 = vmor %vm2407, %vm2471
    %vm2536 = vmor %vm2408, %vm2472
    %vm2537 = vmor %vm2409, %vm2473
    %vm2538 = vmor %vm2410, %vm2474
    %vm2539 = vmor %vm2411, %vm2475
    %vm2540 = vmor %vm2412, %vm2476
    %vm2541 = vmor %vm2413, %vm2477
    %vm2542 = vmor %vm2414, %vm2478
    %vm2543 = vmor %vm2415, %vm2479
    %vm2544 = vmor %vm2416, %vm2480
    %vm2545 = vmor %vm2417, %vm2481
    %vm2546 = vmor %vm2418, %vm2482
    %vm2547 = vmor %vm2419, %vm2483
    %vm2548 = vmor %vm2420, %vm2484
    %vm2549 = vmor %vm2421, %vm2485
    %vm2550 = vmor %vm2422, %vm2486
    %vm2551 = vmor %vm2423, %vm2487
    %vm2552 = vmor %vm2296, %vm2488
    %vm2553 = vmor %vm2297, %vm2489
    %vm2554 = vmor %vm2298, %vm2490
    %vm2555 = vmor %vm2299, %vm2491
    %vm2556 = vmor %vm2300, %vm2492
    %vm2557 = vmor %vm2301, %vm2493
    %vm2558 = vmor %vm2302, %vm2494
    %vm2559 = vmor %vm2303, %vm2495
    %vm2560 = vmor %vm2304, %vm2496
    %vm2561 = vmor %vm2305, %vm2497
    %vm2562 = vmor %vm2306, %vm2498
    %vm2563 = vmor %vm2307, %vm2499
    %vm2564 = vmor %vm2308, %vm2500
    %vm2565 = vmor %vm2309, %vm2501
    %vm2566 = vmor %vm2310, %vm2502
    %vm2567 = vmor %vm2311, %vm2503
    %vm2568 = vmor %vm2312, %vm2504
    %vm2569 = vmor %vm2313, %vm2505
    %vm2570 = vmor %vm2314, %vm2506
    %vm2571 = vmor %vm2315, %vm2507
    %vm2572 = vmor %vm2316, %vm2508
    %vm2573 = vmor %vm2317, %vm2509
    %vm2574 = vmor %vm2318, %vm2510
    %vm2575 = vmor %vm2319, %vm2511
    %vm2576 = vmor %vm2320, %vm2512
    %vm2577 = vmor %vm2321, %vm2513
    %vm2578 = vmor %vm2322, %vm2514
    %vm2579 = vmor %vm2323, %vm2515
    %vm2580 = vmor %vm2324, %vm2516
    %vm2581 = vmor %vm2325, %vm2517
    %vm2582 = vmor %vm2326, %vm2518
    %vm2583 = vmor %vm2327, %vm2519
    %vm2584 = vmor %vm2328, %vm2520
    %vm2585 = vmor %vm2329, %vm2521
    %vm2586 = vmor %vm2330, %vm2522
    %vm2587 = vmor %vm2331, %vm2523
    %vm2588 = vmor %vm2332, %vm2524
    %vm2589 = vmor %vm2333, %vm2525
    %vm2590 = vmor %vm2334, %vm2526
    %vm2591 = vmor %vm2335, %vm2527
    %vm2592 = vmor %vm2336, %vm2528
    %vm2593 = vmor %vm2337, %vm2529
    %vm2594 = vmor %vm2338, %vm2530
    %vm2595 = vmor %vm2339, %vm2531
    %vm2596 = vmor %vm2340, %vm2532
    %vm2597 = vmor %vm2341, %vm2533
    %vm2598 = vmor %vm2342, %vm2534
    %vm2599 = vmor %vm2343, %vm2535
    %vm2600 = vmor %vm2344, %vm2536
    %vm2601 = vmor %vm2345, %vm2537
    %vm2602 = vmor %vm2346, %vm2538
    %vm2603 = vmor %vm2347, %vm2539
    %vm2604 = vmor %vm2348, %vm2540
    %vm2605 = vmor %vm2349, %vm2541
    %vm2606 = vmor %vm2350, %vm2542
    %vm2607 = vmor %vm2351, %vm2543
    %vm2608 = vmor %vm2352, %vm2544
    %vm2609 = vmor %vm2353, %vm2545
    %vm2610 = vmor %vm2354, %vm2546
    %vm2611 = vmor %vm2355, %vm2547
    %vm2612 = vmor %vm2356, %vm2548
    %vm2613 = vmor %vm2357, %vm2549
    %vm2614 = vmor %vm2358, %vm2550
    %vm2615 = vmor %vm2359, %vm2551
    %vm2616 = vcmp.eq.s32.totalorder %v2232, 128
    %vm2617 = vcmp.eq.s32.totalorder %v2233, 128
    %vm2618 = vcmp.eq.s32.totalorder %v2234, 128
    %vm2619 = vcmp.eq.s32.totalorder %v2235, 128
    %vm2620 = vcmp.eq.s32.totalorder %v2236, 128
    %vm2621 = vcmp.eq.s32.totalorder %v2237, 128
    %vm2622 = vcmp.eq.s32.totalorder %v2238, 128
    %vm2623 = vcmp.eq.s32.totalorder %v2239, 128
    %vm2624 = vcmp.eq.s32.totalorder %v2240, 128
    %vm2625 = vcmp.eq.s32.totalorder %v2241, 128
    %vm2626 = vcmp.eq.s32.totalorder %v2242, 128
    %vm2627 = vcmp.eq.s32.totalorder %v2243, 128
    %vm2628 = vcmp.eq.s32.totalorder %v2244, 128
    %vm2629 = vcmp.eq.s32.totalorder %v2245, 128
    %vm2630 = vcmp.eq.s32.totalorder %v2246, 128
    %vm2631 = vcmp.eq.s32.totalorder %v2247, 128
    %vm2632 = vcmp.eq.s32.totalorder %v2248, 128
    %vm2633 = vcmp.eq.s32.totalorder %v2249, 128
    %vm2634 = vcmp.eq.s32.totalorder %v2250, 128
    %vm2635 = vcmp.eq.s32.totalorder %v2251, 128
    %vm2636 = vcmp.eq.s32.totalorder %v2252, 128
    %vm2637 = vcmp.eq.s32.totalorder %v2253, 128
    %vm2638 = vcmp.eq.s32.totalorder %v2254, 128
    %vm2639 = vcmp.eq.s32.totalorder %v2255, 128
    %vm2640 = vcmp.eq.s32.totalorder %v2256, 128
    %vm2641 = vcmp.eq.s32.totalorder %v2257, 128
    %vm2642 = vcmp.eq.s32.totalorder %v2258, 128
    %vm2643 = vcmp.eq.s32.totalorder %v2259, 128
    %vm2644 = vcmp.eq.s32.totalorder %v2260, 128
    %vm2645 = vcmp.eq.s32.totalorder %v2261, 128
    %vm2646 = vcmp.eq.s32.totalorder %v2262, 128
    %vm2647 = vcmp.eq.s32.totalorder %v2263, 128
    %vm2648 = vcmp.eq.s32.totalorder %v2264, 128
    %vm2649 = vcmp.eq.s32.totalorder %v2265, 128
    %vm2650 = vcmp.eq.s32.totalorder %v2266, 128
    %vm2651 = vcmp.eq.s32.totalorder %v2267, 128
    %vm2652 = vcmp.eq.s32.totalorder %v2268, 128
    %vm2653 = vcmp.eq.s32.totalorder %v2269, 128
    %vm2654 = vcmp.eq.s32.totalorder %v2270, 128
    %vm2655 = vcmp.eq.s32.totalorder %v2271, 128
    %vm2656 = vcmp.eq.s32.totalorder %v2272, 128
    %vm2657 = vcmp.eq.s32.totalorder %v2273, 128
    %vm2658 = vcmp.eq.s32.totalorder %v2274, 128
    %vm2659 = vcmp.eq.s32.totalorder %v2275, 128
    %vm2660 = vcmp.eq.s32.totalorder %v2276, 128
    %vm2661 = vcmp.eq.s32.totalorder %v2277, 128
    %vm2662 = vcmp.eq.s32.totalorder %v2278, 128
    %vm2663 = vcmp.eq.s32.totalorder %v2279, 128
    %vm2664 = vcmp.eq.s32.totalorder %v2280, 128
    %vm2665 = vcmp.eq.s32.totalorder %v2281, 128
    %vm2666 = vcmp.eq.s32.totalorder %v2282, 128
    %vm2667 = vcmp.eq.s32.totalorder %v2283, 128
    %vm2668 = vcmp.eq.s32.totalorder %v2284, 128
    %vm2669 = vcmp.eq.s32.totalorder %v2285, 128
    %vm2670 = vcmp.eq.s32.totalorder %v2286, 128
    %vm2671 = vcmp.eq.s32.totalorder %v2287, 128
    %vm2672 = vcmp.eq.s32.totalorder %v2288, 128
    %vm2673 = vcmp.eq.s32.totalorder %v2289, 128
    %vm2674 = vcmp.eq.s32.totalorder %v2290, 128
    %vm2675 = vcmp.eq.s32.totalorder %v2291, 128
    %vm2676 = vcmp.eq.s32.totalorder %v2292, 128
    %vm2677 = vcmp.eq.s32.totalorder %v2293, 128
    %vm2678 = vcmp.eq.s32.totalorder %v2294, 128
    %vm2679 = vcmp.eq.s32.totalorder %v2295, 128
    %vm2680 = vcmp.eq.s32.totalorder %v2232, 4294967168
    %vm2681 = vcmp.eq.s32.totalorder %v2233, 4294967168
    %vm2682 = vcmp.eq.s32.totalorder %v2234, 4294967168
    %vm2683 = vcmp.eq.s32.totalorder %v2235, 4294967168
    %vm2684 = vcmp.eq.s32.totalorder %v2236, 4294967168
    %vm2685 = vcmp.eq.s32.totalorder %v2237, 4294967168
    %vm2686 = vcmp.eq.s32.totalorder %v2238, 4294967168
    %vm2687 = vcmp.eq.s32.totalorder %v2239, 4294967168
    %vm2688 = vcmp.eq.s32.totalorder %v2240, 4294967168
    %vm2689 = vcmp.eq.s32.totalorder %v2241, 4294967168
    %vm2690 = vcmp.eq.s32.totalorder %v2242, 4294967168
    %vm2691 = vcmp.eq.s32.totalorder %v2243, 4294967168
    %vm2692 = vcmp.eq.s32.totalorder %v2244, 4294967168
    %vm2693 = vcmp.eq.s32.totalorder %v2245, 4294967168
    %vm2694 = vcmp.eq.s32.totalorder %v2246, 4294967168
    %vm2695 = vcmp.eq.s32.totalorder %v2247, 4294967168
    %vm2696 = vcmp.eq.s32.totalorder %v2248, 4294967168
    %vm2697 = vcmp.eq.s32.totalorder %v2249, 4294967168
    %vm2698 = vcmp.eq.s32.totalorder %v2250, 4294967168
    %vm2699 = vcmp.eq.s32.totalorder %v2251, 4294967168
    %vm2700 = vcmp.eq.s32.totalorder %v2252, 4294967168
    %vm2701 = vcmp.eq.s32.totalorder %v2253, 4294967168
    %vm2702 = vcmp.eq.s32.totalorder %v2254, 4294967168
    %vm2703 = vcmp.eq.s32.totalorder %v2255, 4294967168
    %vm2704 = vcmp.eq.s32.totalorder %v2256, 4294967168
    %vm2705 = vcmp.eq.s32.totalorder %v2257, 4294967168
    %vm2706 = vcmp.eq.s32.totalorder %v2258, 4294967168
    %vm2707 = vcmp.eq.s32.totalorder %v2259, 4294967168
    %vm2708 = vcmp.eq.s32.totalorder %v2260, 4294967168
    %vm2709 = vcmp.eq.s32.totalorder %v2261, 4294967168
    %vm2710 = vcmp.eq.s32.totalorder %v2262, 4294967168
    %vm2711 = vcmp.eq.s32.totalorder %v2263, 4294967168
    %vm2712 = vcmp.eq.s32.totalorder %v2264, 4294967168
    %vm2713 = vcmp.eq.s32.totalorder %v2265, 4294967168
    %vm2714 = vcmp.eq.s32.totalorder %v2266, 4294967168
    %vm2715 = vcmp.eq.s32.totalorder %v2267, 4294967168
    %vm2716 = vcmp.eq.s32.totalorder %v2268, 4294967168
    %vm2717 = vcmp.eq.s32.totalorder %v2269, 4294967168
    %vm2718 = vcmp.eq.s32.totalorder %v2270, 4294967168
    %vm2719 = vcmp.eq.s32.totalorder %v2271, 4294967168
    %vm2720 = vcmp.eq.s32.totalorder %v2272, 4294967168
    %vm2721 = vcmp.eq.s32.totalorder %v2273, 4294967168
    %vm2722 = vcmp.eq.s32.totalorder %v2274, 4294967168
    %vm2723 = vcmp.eq.s32.totalorder %v2275, 4294967168
    %vm2724 = vcmp.eq.s32.totalorder %v2276, 4294967168
    %vm2725 = vcmp.eq.s32.totalorder %v2277, 4294967168
    %vm2726 = vcmp.eq.s32.totalorder %v2278, 4294967168
    %vm2727 = vcmp.eq.s32.totalorder %v2279, 4294967168
    %vm2728 = vcmp.eq.s32.totalorder %v2280, 4294967168
    %vm2729 = vcmp.eq.s32.totalorder %v2281, 4294967168
    %vm2730 = vcmp.eq.s32.totalorder %v2282, 4294967168
    %vm2731 = vcmp.eq.s32.totalorder %v2283, 4294967168
    %vm2732 = vcmp.eq.s32.totalorder %v2284, 4294967168
    %vm2733 = vcmp.eq.s32.totalorder %v2285, 4294967168
    %vm2734 = vcmp.eq.s32.totalorder %v2286, 4294967168
    %vm2735 = vcmp.eq.s32.totalorder %v2287, 4294967168
    %vm2736 = vcmp.eq.s32.totalorder %v2288, 4294967168
    %vm2737 = vcmp.eq.s32.totalorder %v2289, 4294967168
    %vm2738 = vcmp.eq.s32.totalorder %v2290, 4294967168
    %vm2739 = vcmp.eq.s32.totalorder %v2291, 4294967168
    %vm2740 = vcmp.eq.s32.totalorder %v2292, 4294967168
    %vm2741 = vcmp.eq.s32.totalorder %v2293, 4294967168
    %vm2742 = vcmp.eq.s32.totalorder %v2294, 4294967168
    %vm2743 = vcmp.eq.s32.totalorder %v2295, 4294967168
    %vm2744 = vmor %vm2616, %vm2680
    %vm2745 = vmor %vm2617, %vm2681
    %vm2746 = vmor %vm2618, %vm2682
    %vm2747 = vmor %vm2619, %vm2683
    %vm2748 = vmor %vm2620, %vm2684
    %vm2749 = vmor %vm2621, %vm2685
    %vm2750 = vmor %vm2622, %vm2686
    %vm2751 = vmor %vm2623, %vm2687
    %vm2752 = vmor %vm2624, %vm2688
    %vm2753 = vmor %vm2625, %vm2689
    %vm2754 = vmor %vm2626, %vm2690
    %vm2755 = vmor %vm2627, %vm2691
    %vm2756 = vmor %vm2628, %vm2692
    %vm2757 = vmor %vm2629, %vm2693
    %vm2758 = vmor %vm2630, %vm2694
    %vm2759 = vmor %vm2631, %vm2695
    %vm2760 = vmor %vm2632, %vm2696
    %vm2761 = vmor %vm2633, %vm2697
    %vm2762 = vmor %vm2634, %vm2698
    %vm2763 = vmor %vm2635, %vm2699
    %vm2764 = vmor %vm2636, %vm2700
    %vm2765 = vmor %vm2637, %vm2701
    %vm2766 = vmor %vm2638, %vm2702
    %vm2767 = vmor %vm2639, %vm2703
    %vm2768 = vmor %vm2640, %vm2704
    %vm2769 = vmor %vm2641, %vm2705
    %vm2770 = vmor %vm2642, %vm2706
    %vm2771 = vmor %vm2643, %vm2707
    %vm2772 = vmor %vm2644, %vm2708
    %vm2773 = vmor %vm2645, %vm2709
    %vm2774 = vmor %vm2646, %vm2710
    %vm2775 = vmor %vm2647, %vm2711
    %vm2776 = vmor %vm2648, %vm2712
    %vm2777 = vmor %vm2649, %vm2713
    %vm2778 = vmor %vm2650, %vm2714
    %vm2779 = vmor %vm2651, %vm2715
    %vm2780 = vmor %vm2652, %vm2716
    %vm2781 = vmor %vm2653, %vm2717
    %vm2782 = vmor %vm2654, %vm2718
    %vm2783 = vmor %vm2655, %vm2719
    %vm2784 = vmor %vm2656, %vm2720
    %vm2785 = vmor %vm2657, %vm2721
    %vm2786 = vmor %vm2658, %vm2722
    %vm2787 = vmor %vm2659, %vm2723
    %vm2788 = vmor %vm2660, %vm2724
    %vm2789 = vmor %vm2661, %vm2725
    %vm2790 = vmor %vm2662, %vm2726
    %vm2791 = vmor %vm2663, %vm2727
    %vm2792 = vmor %vm2664, %vm2728
    %vm2793 = vmor %vm2665, %vm2729
    %vm2794 = vmor %vm2666, %vm2730
    %vm2795 = vmor %vm2667, %vm2731
    %vm2796 = vmor %vm2668, %vm2732
    %vm2797 = vmor %vm2669, %vm2733
    %vm2798 = vmor %vm2670, %vm2734
    %vm2799 = vmor %vm2671, %vm2735
    %vm2800 = vmor %vm2672, %vm2736
    %vm2801 = vmor %vm2673, %vm2737
    %vm2802 = vmor %vm2674, %vm2738
    %vm2803 = vmor %vm2675, %vm2739
    %vm2804 = vmor %vm2676, %vm2740
    %vm2805 = vmor %vm2677, %vm2741
    %vm2806 = vmor %vm2678, %vm2742
    %vm2807 = vmor %vm2679, %vm2743
    %vm2808 = vmor %vm2552, %vm2744
    %vm2809 = vmor %vm2553, %vm2745
    %vm2810 = vmor %vm2554, %vm2746
    %vm2811 = vmor %vm2555, %vm2747
    %vm2812 = vmor %vm2556, %vm2748
    %vm2813 = vmor %vm2557, %vm2749
    %vm2814 = vmor %vm2558, %vm2750
    %vm2815 = vmor %vm2559, %vm2751
    %vm2816 = vmor %vm2560, %vm2752
    %vm2817 = vmor %vm2561, %vm2753
    %vm2818 = vmor %vm2562, %vm2754
    %vm2819 = vmor %vm2563, %vm2755
    %vm2820 = vmor %vm2564, %vm2756
    %vm2821 = vmor %vm2565, %vm2757
    %vm2822 = vmor %vm2566, %vm2758
    %vm2823 = vmor %vm2567, %vm2759
    %vm2824 = vmor %vm2568, %vm2760
    %vm2825 = vmor %vm2569, %vm2761
    %vm2826 = vmor %vm2570, %vm2762
    %vm2827 = vmor %vm2571, %vm2763
    %vm2828 = vmor %vm2572, %vm2764
    %vm2829 = vmor %vm2573, %vm2765
    %vm2830 = vmor %vm2574, %vm2766
    %vm2831 = vmor %vm2575, %vm2767
    %vm2832 = vmor %vm2576, %vm2768
    %vm2833 = vmor %vm2577, %vm2769
    %vm2834 = vmor %vm2578, %vm2770
    %vm2835 = vmor %vm2579, %vm2771
    %vm2836 = vmor %vm2580, %vm2772
    %vm2837 = vmor %vm2581, %vm2773
    %vm2838 = vmor %vm2582, %vm2774
    %vm2839 = vmor %vm2583, %vm2775
    %vm2840 = vmor %vm2584, %vm2776
    %vm2841 = vmor %vm2585, %vm2777
    %vm2842 = vmor %vm2586, %vm2778
    %vm2843 = vmor %vm2587, %vm2779
    %vm2844 = vmor %vm2588, %vm2780
    %vm2845 = vmor %vm2589, %vm2781
    %vm2846 = vmor %vm2590, %vm2782
    %vm2847 = vmor %vm2591, %vm2783
    %vm2848 = vmor %vm2592, %vm2784
    %vm2849 = vmor %vm2593, %vm2785
    %vm2850 = vmor %vm2594, %vm2786
    %vm2851 = vmor %vm2595, %vm2787
    %vm2852 = vmor %vm2596, %vm2788
    %vm2853 = vmor %vm2597, %vm2789
    %vm2854 = vmor %vm2598, %vm2790
    %vm2855 = vmor %vm2599, %vm2791
    %vm2856 = vmor %vm2600, %vm2792
    %vm2857 = vmor %vm2601, %vm2793
    %vm2858 = vmor %vm2602, %vm2794
    %vm2859 = vmor %vm2603, %vm2795
    %vm2860 = vmor %vm2604, %vm2796
    %vm2861 = vmor %vm2605, %vm2797
    %vm2862 = vmor %vm2606, %vm2798
    %vm2863 = vmor %vm2607, %vm2799
    %vm2864 = vmor %vm2608, %vm2800
    %vm2865 = vmor %vm2609, %vm2801
    %vm2866 = vmor %vm2610, %vm2802
    %vm2867 = vmor %vm2611, %vm2803
    %vm2868 = vmor %vm2612, %vm2804
    %vm2869 = vmor %vm2613, %vm2805
    %vm2870 = vmor %vm2614, %vm2806
    %vm2871 = vmor %vm2615, %vm2807
    %vm2872 = vcmp.eq.s32.totalorder %v2232, 192
    %vm2873 = vcmp.eq.s32.totalorder %v2233, 192
    %vm2874 = vcmp.eq.s32.totalorder %v2234, 192
    %vm2875 = vcmp.eq.s32.totalorder %v2235, 192
    %vm2876 = vcmp.eq.s32.totalorder %v2236, 192
    %vm2877 = vcmp.eq.s32.totalorder %v2237, 192
    %vm2878 = vcmp.eq.s32.totalorder %v2238, 192
    %vm2879 = vcmp.eq.s32.totalorder %v2239, 192
    %vm2880 = vcmp.eq.s32.totalorder %v2240, 192
    %vm2881 = vcmp.eq.s32.totalorder %v2241, 192
    %vm2882 = vcmp.eq.s32.totalorder %v2242, 192
    %vm2883 = vcmp.eq.s32.totalorder %v2243, 192
    %vm2884 = vcmp.eq.s32.totalorder %v2244, 192
    %vm2885 = vcmp.eq.s32.totalorder %v2245, 192
    %vm2886 = vcmp.eq.s32.totalorder %v2246, 192
    %vm2887 = vcmp.eq.s32.totalorder %v2247, 192
    %vm2888 = vcmp.eq.s32.totalorder %v2248, 192
    %vm2889 = vcmp.eq.s32.totalorder %v2249, 192
    %vm2890 = vcmp.eq.s32.totalorder %v2250, 192
    %vm2891 = vcmp.eq.s32.totalorder %v2251, 192
    %vm2892 = vcmp.eq.s32.totalorder %v2252, 192
    %vm2893 = vcmp.eq.s32.totalorder %v2253, 192
    %vm2894 = vcmp.eq.s32.totalorder %v2254, 192
    %vm2895 = vcmp.eq.s32.totalorder %v2255, 192
    %vm2896 = vcmp.eq.s32.totalorder %v2256, 192
    %vm2897 = vcmp.eq.s32.totalorder %v2257, 192
    %vm2898 = vcmp.eq.s32.totalorder %v2258, 192
    %vm2899 = vcmp.eq.s32.totalorder %v2259, 192
    %vm2900 = vcmp.eq.s32.totalorder %v2260, 192
    %vm2901 = vcmp.eq.s32.totalorder %v2261, 192
    %vm2902 = vcmp.eq.s32.totalorder %v2262, 192
    %vm2903 = vcmp.eq.s32.totalorder %v2263, 192
    %vm2904 = vcmp.eq.s32.totalorder %v2264, 192
    %vm2905 = vcmp.eq.s32.totalorder %v2265, 192
    %vm2906 = vcmp.eq.s32.totalorder %v2266, 192
    %vm2907 = vcmp.eq.s32.totalorder %v2267, 192
    %vm2908 = vcmp.eq.s32.totalorder %v2268, 192
    %vm2909 = vcmp.eq.s32.totalorder %v2269, 192
    %vm2910 = vcmp.eq.s32.totalorder %v2270, 192
    %vm2911 = vcmp.eq.s32.totalorder %v2271, 192
    %vm2912 = vcmp.eq.s32.totalorder %v2272, 192
    %vm2913 = vcmp.eq.s32.totalorder %v2273, 192
    %vm2914 = vcmp.eq.s32.totalorder %v2274, 192
    %vm2915 = vcmp.eq.s32.totalorder %v2275, 192
    %vm2916 = vcmp.eq.s32.totalorder %v2276, 192
    %vm2917 = vcmp.eq.s32.totalorder %v2277, 192
    %vm2918 = vcmp.eq.s32.totalorder %v2278, 192
    %vm2919 = vcmp.eq.s32.totalorder %v2279, 192
    %vm2920 = vcmp.eq.s32.totalorder %v2280, 192
    %vm2921 = vcmp.eq.s32.totalorder %v2281, 192
    %vm2922 = vcmp.eq.s32.totalorder %v2282, 192
    %vm2923 = vcmp.eq.s32.totalorder %v2283, 192
    %vm2924 = vcmp.eq.s32.totalorder %v2284, 192
    %vm2925 = vcmp.eq.s32.totalorder %v2285, 192
    %vm2926 = vcmp.eq.s32.totalorder %v2286, 192
    %vm2927 = vcmp.eq.s32.totalorder %v2287, 192
    %vm2928 = vcmp.eq.s32.totalorder %v2288, 192
    %vm2929 = vcmp.eq.s32.totalorder %v2289, 192
    %vm2930 = vcmp.eq.s32.totalorder %v2290, 192
    %vm2931 = vcmp.eq.s32.totalorder %v2291, 192
    %vm2932 = vcmp.eq.s32.totalorder %v2292, 192
    %vm2933 = vcmp.eq.s32.totalorder %v2293, 192
    %vm2934 = vcmp.eq.s32.totalorder %v2294, 192
    %vm2935 = vcmp.eq.s32.totalorder %v2295, 192
    %vm2936 = vcmp.eq.s32.totalorder %v2232, 4294967104
    %vm2937 = vcmp.eq.s32.totalorder %v2233, 4294967104
    %vm2938 = vcmp.eq.s32.totalorder %v2234, 4294967104
    %vm2939 = vcmp.eq.s32.totalorder %v2235, 4294967104
    %vm2940 = vcmp.eq.s32.totalorder %v2236, 4294967104
    %vm2941 = vcmp.eq.s32.totalorder %v2237, 4294967104
    %vm2942 = vcmp.eq.s32.totalorder %v2238, 4294967104
    %vm2943 = vcmp.eq.s32.totalorder %v2239, 4294967104
    %vm2944 = vcmp.eq.s32.totalorder %v2240, 4294967104
    %vm2945 = vcmp.eq.s32.totalorder %v2241, 4294967104
    %vm2946 = vcmp.eq.s32.totalorder %v2242, 4294967104
    %vm2947 = vcmp.eq.s32.totalorder %v2243, 4294967104
    %vm2948 = vcmp.eq.s32.totalorder %v2244, 4294967104
    %vm2949 = vcmp.eq.s32.totalorder %v2245, 4294967104
    %vm2950 = vcmp.eq.s32.totalorder %v2246, 4294967104
    %vm2951 = vcmp.eq.s32.totalorder %v2247, 4294967104
    %vm2952 = vcmp.eq.s32.totalorder %v2248, 4294967104
    %vm2953 = vcmp.eq.s32.totalorder %v2249, 4294967104
    %vm2954 = vcmp.eq.s32.totalorder %v2250, 4294967104
    %vm2955 = vcmp.eq.s32.totalorder %v2251, 4294967104
    %vm2956 = vcmp.eq.s32.totalorder %v2252, 4294967104
    %vm2957 = vcmp.eq.s32.totalorder %v2253, 4294967104
    %vm2958 = vcmp.eq.s32.totalorder %v2254, 4294967104
    %vm2959 = vcmp.eq.s32.totalorder %v2255, 4294967104
    %vm2960 = vcmp.eq.s32.totalorder %v2256, 4294967104
    %vm2961 = vcmp.eq.s32.totalorder %v2257, 4294967104
    %vm2962 = vcmp.eq.s32.totalorder %v2258, 4294967104
    %vm2963 = vcmp.eq.s32.totalorder %v2259, 4294967104
    %vm2964 = vcmp.eq.s32.totalorder %v2260, 4294967104
    %vm2965 = vcmp.eq.s32.totalorder %v2261, 4294967104
    %vm2966 = vcmp.eq.s32.totalorder %v2262, 4294967104
    %vm2967 = vcmp.eq.s32.totalorder %v2263, 4294967104
    %vm2968 = vcmp.eq.s32.totalorder %v2264, 4294967104
    %vm2969 = vcmp.eq.s32.totalorder %v2265, 4294967104
    %vm2970 = vcmp.eq.s32.totalorder %v2266, 4294967104
    %vm2971 = vcmp.eq.s32.totalorder %v2267, 4294967104
    %vm2972 = vcmp.eq.s32.totalorder %v2268, 4294967104
    %vm2973 = vcmp.eq.s32.totalorder %v2269, 4294967104
    %vm2974 = vcmp.eq.s32.totalorder %v2270, 4294967104
    %vm2975 = vcmp.eq.s32.totalorder %v2271, 4294967104
    %vm2976 = vcmp.eq.s32.totalorder %v2272, 4294967104
    %vm2977 = vcmp.eq.s32.totalorder %v2273, 4294967104
    %vm2978 = vcmp.eq.s32.totalorder %v2274, 4294967104
    %vm2979 = vcmp.eq.s32.totalorder %v2275, 4294967104
    %vm2980 = vcmp.eq.s32.totalorder %v2276, 4294967104
    %vm2981 = vcmp.eq.s32.totalorder %v2277, 4294967104
    %vm2982 = vcmp.eq.s32.totalorder %v2278, 4294967104
    %vm2983 = vcmp.eq.s32.totalorder %v2279, 4294967104
    %vm2984 = vcmp.eq.s32.totalorder %v2280, 4294967104
    %vm2985 = vcmp.eq.s32.totalorder %v2281, 4294967104
    %vm2986 = vcmp.eq.s32.totalorder %v2282, 4294967104
    %vm2987 = vcmp.eq.s32.totalorder %v2283, 4294967104
    %vm2988 = vcmp.eq.s32.totalorder %v2284, 4294967104
    %vm2989 = vcmp.eq.s32.totalorder %v2285, 4294967104
    %vm2990 = vcmp.eq.s32.totalorder %v2286, 4294967104
    %vm2991 = vcmp.eq.s32.totalorder %v2287, 4294967104
    %vm2992 = vcmp.eq.s32.totalorder %v2288, 4294967104
    %vm2993 = vcmp.eq.s32.totalorder %v2289, 4294967104
    %vm2994 = vcmp.eq.s32.totalorder %v2290, 4294967104
    %vm2995 = vcmp.eq.s32.totalorder %v2291, 4294967104
    %vm2996 = vcmp.eq.s32.totalorder %v2292, 4294967104
    %vm2997 = vcmp.eq.s32.totalorder %v2293, 4294967104
    %vm2998 = vcmp.eq.s32.totalorder %v2294, 4294967104
    %vm2999 = vcmp.eq.s32.totalorder %v2295, 4294967104
    %vm3000 = vmor %vm2872, %vm2936
    %vm3001 = vmor %vm2873, %vm2937
    %vm3002 = vmor %vm2874, %vm2938
    %vm3003 = vmor %vm2875, %vm2939
    %vm3004 = vmor %vm2876, %vm2940
    %vm3005 = vmor %vm2877, %vm2941
    %vm3006 = vmor %vm2878, %vm2942
    %vm3007 = vmor %vm2879, %vm2943
    %vm3008 = vmor %vm2880, %vm2944
    %vm3009 = vmor %vm2881, %vm2945
    %vm3010 = vmor %vm2882, %vm2946
    %vm3011 = vmor %vm2883, %vm2947
    %vm3012 = vmor %vm2884, %vm2948
    %vm3013 = vmor %vm2885, %vm2949
    %vm3014 = vmor %vm2886, %vm2950
    %vm3015 = vmor %vm2887, %vm2951
    %vm3016 = vmor %vm2888, %vm2952
    %vm3017 = vmor %vm2889, %vm2953
    %vm3018 = vmor %vm2890, %vm2954
    %vm3019 = vmor %vm2891, %vm2955
    %vm3020 = vmor %vm2892, %vm2956
    %vm3021 = vmor %vm2893, %vm2957
    %vm3022 = vmor %vm2894, %vm2958
    %vm3023 = vmor %vm2895, %vm2959
    %vm3024 = vmor %vm2896, %vm2960
    %vm3025 = vmor %vm2897, %vm2961
    %vm3026 = vmor %vm2898, %vm2962
    %vm3027 = vmor %vm2899, %vm2963
    %vm3028 = vmor %vm2900, %vm2964
    %vm3029 = vmor %vm2901, %vm2965
    %vm3030 = vmor %vm2902, %vm2966
    %vm3031 = vmor %vm2903, %vm2967
    %vm3032 = vmor %vm2904, %vm2968
    %vm3033 = vmor %vm2905, %vm2969
    %vm3034 = vmor %vm2906, %vm2970
    %vm3035 = vmor %vm2907, %vm2971
    %vm3036 = vmor %vm2908, %vm2972
    %vm3037 = vmor %vm2909, %vm2973
    %vm3038 = vmor %vm2910, %vm2974
    %vm3039 = vmor %vm2911, %vm2975
    %vm3040 = vmor %vm2912, %vm2976
    %vm3041 = vmor %vm2913, %vm2977
    %vm3042 = vmor %vm2914, %vm2978
    %vm3043 = vmor %vm2915, %vm2979
    %vm3044 = vmor %vm2916, %vm2980
    %vm3045 = vmor %vm2917, %vm2981
    %vm3046 = vmor %vm2918, %vm2982
    %vm3047 = vmor %vm2919, %vm2983
    %vm3048 = vmor %vm2920, %vm2984
    %vm3049 = vmor %vm2921, %vm2985
    %vm3050 = vmor %vm2922, %vm2986
    %vm3051 = vmor %vm2923, %vm2987
    %vm3052 = vmor %vm2924, %vm2988
    %vm3053 = vmor %vm2925, %vm2989
    %vm3054 = vmor %vm2926, %vm2990
    %vm3055 = vmor %vm2927, %vm2991
    %vm3056 = vmor %vm2928, %vm2992
    %vm3057 = vmor %vm2929, %vm2993
    %vm3058 = vmor %vm2930, %vm2994
    %vm3059 = vmor %vm2931, %vm2995
    %vm3060 = vmor %vm2932, %vm2996
    %vm3061 = vmor %vm2933, %vm2997
    %vm3062 = vmor %vm2934, %vm2998
    %vm3063 = vmor %vm2935, %vm2999
    %vm3064 = vmor %vm2808, %vm3000
    %vm3065 = vmor %vm2809, %vm3001
    %vm3066 = vmor %vm2810, %vm3002
    %vm3067 = vmor %vm2811, %vm3003
    %vm3068 = vmor %vm2812, %vm3004
    %vm3069 = vmor %vm2813, %vm3005
    %vm3070 = vmor %vm2814, %vm3006
    %vm3071 = vmor %vm2815, %vm3007
    %vm3072 = vmor %vm2816, %vm3008
    %vm3073 = vmor %vm2817, %vm3009
    %vm3074 = vmor %vm2818, %vm3010
    %vm3075 = vmor %vm2819, %vm3011
    %vm3076 = vmor %vm2820, %vm3012
    %vm3077 = vmor %vm2821, %vm3013
    %vm3078 = vmor %vm2822, %vm3014
    %vm3079 = vmor %vm2823, %vm3015
    %vm3080 = vmor %vm2824, %vm3016
    %vm3081 = vmor %vm2825, %vm3017
    %vm3082 = vmor %vm2826, %vm3018
    %vm3083 = vmor %vm2827, %vm3019
    %vm3084 = vmor %vm2828, %vm3020
    %vm3085 = vmor %vm2829, %vm3021
    %vm3086 = vmor %vm2830, %vm3022
    %vm3087 = vmor %vm2831, %vm3023
    %vm3088 = vmor %vm2832, %vm3024
    %vm3089 = vmor %vm2833, %vm3025
    %vm3090 = vmor %vm2834, %vm3026
    %vm3091 = vmor %vm2835, %vm3027
    %vm3092 = vmor %vm2836, %vm3028
    %vm3093 = vmor %vm2837, %vm3029
    %vm3094 = vmor %vm2838, %vm3030
    %vm3095 = vmor %vm2839, %vm3031
    %vm3096 = vmor %vm2840, %vm3032
    %vm3097 = vmor %vm2841, %vm3033
    %vm3098 = vmor %vm2842, %vm3034
    %vm3099 = vmor %vm2843, %vm3035
    %vm3100 = vmor %vm2844, %vm3036
    %vm3101 = vmor %vm2845, %vm3037
    %vm3102 = vmor %vm2846, %vm3038
    %vm3103 = vmor %vm2847, %vm3039
    %vm3104 = vmor %vm2848, %vm3040
    %vm3105 = vmor %vm2849, %vm3041
    %vm3106 = vmor %vm2850, %vm3042
    %vm3107 = vmor %vm2851, %vm3043
    %vm3108 = vmor %vm2852, %vm3044
    %vm3109 = vmor %vm2853, %vm3045
    %vm3110 = vmor %vm2854, %vm3046
    %vm3111 = vmor %vm2855, %vm3047
    %vm3112 = vmor %vm2856, %vm3048
    %vm3113 = vmor %vm2857, %vm3049
    %vm3114 = vmor %vm2858, %vm3050
    %vm3115 = vmor %vm2859, %vm3051
    %vm3116 = vmor %vm2860, %vm3052
    %vm3117 = vmor %vm2861, %vm3053
    %vm3118 = vmor %vm2862, %vm3054
    %vm3119 = vmor %vm2863, %vm3055
    %vm3120 = vmor %vm2864, %vm3056
    %vm3121 = vmor %vm2865, %vm3057
    %vm3122 = vmor %vm2866, %vm3058
    %vm3123 = vmor %vm2867, %vm3059
    %vm3124 = vmor %vm2868, %vm3060
    %vm3125 = vmor %vm2869, %vm3061
    %vm3126 = vmor %vm2870, %vm3062
    %vm3127 = vmor %vm2871, %vm3063
    %v3128 = vsel %vm3064, 1.0, 0.0
    %v3129 = vsel %vm3065, 1.0, 0.0
    %v3130 = vsel %vm3066, 1.0, 0.0
    %v3131 = vsel %vm3067, 1.0, 0.0
    %v3132 = vsel %vm3068, 1.0, 0.0
    %v3133 = vsel %vm3069, 1.0, 0.0
    %v3134 = vsel %vm3070, 1.0, 0.0
    %v3135 = vsel %vm3071, 1.0, 0.0
    %v3136 = vsel %vm3072, 1.0, 0.0
    %v3137 = vsel %vm3073, 1.0, 0.0
    %v3138 = vsel %vm3074, 1.0, 0.0
    %v3139 = vsel %vm3075, 1.0, 0.0
    %v3140 = vsel %vm3076, 1.0, 0.0
    %v3141 = vsel %vm3077, 1.0, 0.0
    %v3142 = vsel %vm3078, 1.0, 0.0
    %v3143 = vsel %vm3079, 1.0, 0.0
    %v3144 = vsel %vm3080, 1.0, 0.0
    %v3145 = vsel %vm3081, 1.0, 0.0
    %v3146 = vsel %vm3082, 1.0, 0.0
    %v3147 = vsel %vm3083, 1.0, 0.0
    %v3148 = vsel %vm3084, 1.0, 0.0
    %v3149 = vsel %vm3085, 1.0, 0.0
    %v3150 = vsel %vm3086, 1.0, 0.0
    %v3151 = vsel %vm3087, 1.0, 0.0
    %v3152 = vsel %vm3088, 1.0, 0.0
    %v3153 = vsel %vm3089, 1.0, 0.0
    %v3154 = vsel %vm3090, 1.0, 0.0
    %v3155 = vsel %vm3091, 1.0, 0.0
    %v3156 = vsel %vm3092, 1.0, 0.0
    %v3157 = vsel %vm3093, 1.0, 0.0
    %v3158 = vsel %vm3094, 1.0, 0.0
    %v3159 = vsel %vm3095, 1.0, 0.0
    %v3160 = vsel %vm3096, 1.0, 0.0
    %v3161 = vsel %vm3097, 1.0, 0.0
    %v3162 = vsel %vm3098, 1.0, 0.0
    %v3163 = vsel %vm3099, 1.0, 0.0
    %v3164 = vsel %vm3100, 1.0, 0.0
    %v3165 = vsel %vm3101, 1.0, 0.0
    %v3166 = vsel %vm3102, 1.0, 0.0
    %v3167 = vsel %vm3103, 1.0, 0.0
    %v3168 = vsel %vm3104, 1.0, 0.0
    %v3169 = vsel %vm3105, 1.0, 0.0
    %v3170 = vsel %vm3106, 1.0, 0.0
    %v3171 = vsel %vm3107, 1.0, 0.0
    %v3172 = vsel %vm3108, 1.0, 0.0
    %v3173 = vsel %vm3109, 1.0, 0.0
    %v3174 = vsel %vm3110, 1.0, 0.0
    %v3175 = vsel %vm3111, 1.0, 0.0
    %v3176 = vsel %vm3112, 1.0, 0.0
    %v3177 = vsel %vm3113, 1.0, 0.0
    %v3178 = vsel %vm3114, 1.0, 0.0
    %v3179 = vsel %vm3115, 1.0, 0.0
    %v3180 = vsel %vm3116, 1.0, 0.0
    %v3181 = vsel %vm3117, 1.0, 0.0
    %v3182 = vsel %vm3118, 1.0, 0.0
    %v3183 = vsel %vm3119, 1.0, 0.0
    %v3184 = vsel %vm3120, 1.0, 0.0
    %v3185 = vsel %vm3121, 1.0, 0.0
    %v3186 = vsel %vm3122, 1.0, 0.0
    %v3187 = vsel %vm3123, 1.0, 0.0
    %v3188 = vsel %vm3124, 1.0, 0.0
    %v3189 = vsel %vm3125, 1.0, 0.0
    %v3190 = vsel %vm3126, 1.0, 0.0
    %v3191 = vsel %vm3127, 1.0, 0.0
    %vm3192 = vcmask 1040384
    %v3193 = vsel %vm3192, %v2110, %v2176
    %v3194 = vsel %vm3192, %v2129, %v2195
    %3195 = vmatpush.msra.mxu0 %v3158
    %3196 = vmatpush.msra.mxu0 %v3156
    %3197 = vmatpush.msra.mxu0 %v3154
    %3198 = vmatpush.msra.mxu0 %v3152
    %3199 = vmatpush.msra.mxu0 %v3150
    %3200 = vmatpush.msra.mxu0 %v3148
    %3201 = vmatpush.msra.mxu0 %v3146
    %3202 = vmatpush.msra.mxu0 %v3144
    %3203 = vmatpush.msra.mxu0 %v3142
    %3204 = vmatpush.msra.mxu0 %v3140
    %3205 = vmatpush.msra.mxu0 %v3138
    %3206 = vmatpush.msra.mxu0 %v3136
    %3207 = vmatpush.msra.mxu0 %v3134
    %3208 = vmatpush.msra.mxu0 %v3132
    %3209 = vmatpush.msra.mxu0 %v3130
    %3210 = vmatpush.msra.mxu0 %v3128
    %3211 = vmatmul.f32.gmra.mxu0 %v3193
    %v3212 = vpop.f32.mrf.mxu0
    %v3213 = vadd.f32 0.0, %v3212
    %3214 = vdwg.mxu0
    %3215 = vmatpush.msra.mxu0 %v3190
    %3216 = vmatpush.msra.mxu0 %v3188
    %3217 = vmatpush.msra.mxu0 %v3186
    %3218 = vmatpush.msra.mxu0 %v3184
    %3219 = vmatpush.msra.mxu0 %v3182
    %3220 = vmatpush.msra.mxu0 %v3180
    %3221 = vmatpush.msra.mxu0 %v3178
    %3222 = vmatpush.msra.mxu0 %v3176
    %3223 = vmatpush.msra.mxu0 %v3174
    %3224 = vmatpush.msra.mxu0 %v3172
    %3225 = vmatpush.msra.mxu0 %v3170
    %3226 = vmatpush.msra.mxu0 %v3168
    %3227 = vmatpush.msra.mxu0 %v3166
    %3228 = vmatpush.msra.mxu0 %v3164
    %3229 = vmatpush.msra.mxu0 %v3162
    %3230 = vmatpush.msra.mxu0 %v3160
    %3231 = vmatmul.f32.gmra.mxu0 %v3194
    %v3232 = vpop.f32.mrf.mxu0
    %v3233 = vadd.f32 %v3213, %v3232
    %3234 = vdwg.mxu0
    %3235 = vmatpush.msra.mxu0 %v3159
    %3236 = vmatpush.msra.mxu0 %v3157
    %3237 = vmatpush.msra.mxu0 %v3155
    %3238 = vmatpush.msra.mxu0 %v3153
    %3239 = vmatpush.msra.mxu0 %v3151
    %3240 = vmatpush.msra.mxu0 %v3149
    %3241 = vmatpush.msra.mxu0 %v3147
    %3242 = vmatpush.msra.mxu0 %v3145
    %3243 = vmatpush.msra.mxu0 %v3143
    %3244 = vmatpush.msra.mxu0 %v3141
    %3245 = vmatpush.msra.mxu0 %v3139
    %3246 = vmatpush.msra.mxu0 %v3137
    %3247 = vmatpush.msra.mxu0 %v3135
    %3248 = vmatpush.msra.mxu0 %v3133
    %3249 = vmatpush.msra.mxu0 %v3131
    %3250 = vmatpush.msra.mxu0 %v3129
    %3251 = vmatmul.f32.gmra.mxu0 %v3193
    %v3252 = vpop.f32.mrf.mxu0
    %v3253 = vadd.f32 0.0, %v3252
    %3254 = vdwg.mxu0
    %3255 = vmatpush.msra.mxu0 %v3191
    %3256 = vmatpush.msra.mxu0 %v3189
    %3257 = vmatpush.msra.mxu0 %v3187
    %3258 = vmatpush.msra.mxu0 %v3185
    %3259 = vmatpush.msra.mxu0 %v3183
    %3260 = vmatpush.msra.mxu0 %v3181
    %3261 = vmatpush.msra.mxu0 %v3179
    %3262 = vmatpush.msra.mxu0 %v3177
    %3263 = vmatpush.msra.mxu0 %v3175
    %3264 = vmatpush.msra.mxu0 %v3173
    %3265 = vmatpush.msra.mxu0 %v3171
    %3266 = vmatpush.msra.mxu0 %v3169
    %3267 = vmatpush.msra.mxu0 %v3167
    %3268 = vmatpush.msra.mxu0 %v3165
    %3269 = vmatpush.msra.mxu0 %v3163
    %3270 = vmatpush.msra.mxu0 %v3161
    %3271 = vmatmul.f32.gmra.mxu0 %v3194
    %v3272 = vpop.f32.mrf.mxu0
    %v3273 = vadd.f32 %v3253, %v3272
    %3274 = vdwg.mxu0
    %v3275 = vmul.f32 %v3233, 0.0025510204
    %v3276 = vmul.f32 %v3273, 0.0025510204
    %v3277 = vmul.f32 %v3275, %v3275
    %v3278 = vmul.f32 %v3276, %v3276
    %v3281 = vrot.slane %v3277, 7
    %v3282 = vrot.slane %v3278, 7
    %v3285 = vsub.f32 %v3275, %v3281
    %v3286 = vsub.f32 %v3276, %v3282
    %v3287 = vadd.f32 %v3285, 1e-05
    %v3288 = vadd.f32 %v3286, 1e-05
    %v3289 = vrsqrt.pop %v3287
    %v3290 = vmul.f32 %v3289, %v3287
    %v3291 = vmul.f32 %v3290, %v3289
    %v3292 = vmul.f32 0.5, %v3291
    %v3293 = vsub.f32 1.5, %v3292
    %v3294 = vmul.f32 %v3289, %v3293
    %vm3295 = vweird.f32 %v3287
    %vm3296 = vweird.f32 %v3289
    %vm3297 = vmor %vm3295, %vm3296
    %v3298 = vsel %vm3297, %v3289, %v3294
    %v3299 = vrsqrt.pop %v3288
    %v3300 = vmul.f32 %v3299, %v3288
    %v3301 = vmul.f32 %v3300, %v3299
    %v3302 = vmul.f32 0.5, %v3301
    %v3303 = vsub.f32 1.5, %v3302
    %v3304 = vmul.f32 %v3299, %v3303
    %vm3305 = vweird.f32 %v3288
    %vm3306 = vweird.f32 %v3299
    %vm3307 = vmor %vm3305, %vm3306
    %v3308 = vsel %vm3307, %v3299, %v3304
    %v3309 = vld [vmem:[#allocation4] ss:$2 sm:$0x3]
    %v3311 = vperm.slane %v3309, 0
    %v3312 = vperm.slane %v3309, 1
    %v3315 = vmul.f32 %v3298, %v3311
    %v3316 = vmul.f32 %v3308, %v3312
    %v3317 = vperm.slane %v3275, 0
    %v3318 = vperm.slane %v3276, 0
    %v3319 = vsub.f32 %v1662, %v3317
    %v3320 = vsub.f32 %v2058, %v3318
    %v3321 = vsub.f32 %v1664, %v3317
    %v3322 = vsub.f32 %v2060, %v3318
    %v3323 = vsub.f32 %v1667, %v3317
    %v3324 = vsub.f32 %v2063, %v3318
    %v3325 = vsub.f32 %v1669, %v3317
    %v3326 = vsub.f32 %v2065, %v3318
    %v3327 = vsub.f32 %v1672, %v3317
    %v3328 = vsub.f32 %v2068, %v3318
    %v3329 = vsub.f32 %v1674, %v3317
    %v3330 = vsub.f32 %v2070, %v3318
    %v3331 = vsub.f32 %v1677, %v3317
    %v3332 = vsub.f32 %v2073, %v3318
    %v3333 = vsub.f32 %v1679, %v3317
    %v3334 = vsub.f32 %v2075, %v3318
    %v3335 = vsub.f32 %v1682, %v3317
    %v3336 = vsub.f32 %v2078, %v3318
    %v3337 = vsub.f32 %v1684, %v3317
    %v3338 = vsub.f32 %v2080, %v3318
    %v3339 = vsub.f32 %v1687, %v3317
    %v3340 = vsub.f32 %v2083, %v3318
    %v3341 = vsub.f32 %v1689, %v3317
    %v3342 = vsub.f32 %v2085, %v3318
    %v3343 = vsub.f32 %v1692, %v3317
    %v3344 = vsub.f32 %v2088, %v3318
    %v3345 = vsub.f32 %v1694, %v3317
    %v3346 = vsub.f32 %v2090, %v3318
    %v3347 = vperm.slane %v3315, 1
    %v3348 = vperm.slane %v3316, 1
    %v3349 = vmul.f32 %v3319, %v3347
    %v3350 = vmul.f32 %v3320, %v3348
    %v3351 = vmul.f32 %v3321, %v3347
    %v3352 = vmul.f32 %v3322, %v3348
    %v3353 = vmul.f32 %v3323, %v3347
    %v3354 = vmul.f32 %v3324, %v3348
    %v3355 = vmul.f32 %v3325, %v3347
    %v3356 = vmul.f32 %v3326, %v3348
    %v3357 = vmul.f32 %v3327, %v3347
    %v3358 = vmul.f32 %v3328, %v3348
    %v3359 = vmul.f32 %v3329, %v3347
    %v3360 = vmul.f32 %v3330, %v3348
    %v3361 = vmul.f32 %v3331, %v3347
    %v3362 = vmul.f32 %v3332, %v3348
    %v3363 = vmul.f32 %v3333, %v3347
    %v3364 = vmul.f32 %v3334, %v3348
    %v3365 = vmul.f32 %v3335, %v3347
    %v3366 = vmul.f32 %v3336, %v3348
    %v3367 = vmul.f32 %v3337, %v3347
    %v3368 = vmul.f32 %v3338, %v3348
    %v3369 = vmul.f32 %v3339, %v3347
    %v3370 = vmul.f32 %v3340, %v3348
    %v3371 = vmul.f32 %v3341, %v3347
    %v3372 = vmul.f32 %v3342, %v3348
    %v3373 = vmul.f32 %v3343, %v3347
    %v3374 = vmul.f32 %v3344, %v3348
    %v3375 = vmul.f32 %v3345, %v3347
    %v3376 = vmul.f32 %v3346, %v3348
    %s3377 = scalar_lea.vmem [#allocation4], 1
    %v3378 = vld [vmem:[%s3377] ss:$2 sm:$0x3]
    %v3380 = vperm.slane %v3378, 0
    %v3381 = vperm.slane %v3378, 1
    %v3384 = vadd.f32 %v3349, %v3380
    %v3385 = vadd.f32 %v3350, %v3381
    %v3386 = vadd.f32 %v3351, %v3380
    %v3387 = vadd.f32 %v3352, %v3381
    %v3388 = vadd.f32 %v3353, %v3380
    %v3389 = vadd.f32 %v3354, %v3381
    %v3390 = vadd.f32 %v3355, %v3380
    %v3391 = vadd.f32 %v3356, %v3381
    %v3392 = vadd.f32 %v3357, %v3380
    %v3393 = vadd.f32 %v3358, %v3381
    %v3394 = vadd.f32 %v3359, %v3380
    %v3395 = vadd.f32 %v3360, %v3381
    %v3396 = vadd.f32 %v3361, %v3380
    %v3397 = vadd.f32 %v3362, %v3381
    %v3398 = vadd.f32 %v3363, %v3380
    %v3399 = vadd.f32 %v3364, %v3381
    %v3400 = vadd.f32 %v3365, %v3380
    %v3401 = vadd.f32 %v3366, %v3381
    %v3402 = vadd.f32 %v3367, %v3380
    %v3403 = vadd.f32 %v3368, %v3381
    %v3404 = vadd.f32 %v3369, %v3380
    %v3405 = vadd.f32 %v3370, %v3381
    %v3406 = vadd.f32 %v3371, %v3380
    %v3407 = vadd.f32 %v3372, %v3381
    %v3408 = vadd.f32 %v3373, %v3380
    %v3409 = vadd.f32 %v3374, %v3381
    %v3410 = vadd.f32 %v3375, %v3380
    %v3411 = vadd.f32 %v3376, %v3381
    %v3412 = vmax.f32 %v3384, 0.0
    %v3413 = vmax.f32 %v3385, 0.0
    %v3414 = vmax.f32 %v3386, 0.0
    %v3415 = vmax.f32 %v3387, 0.0
    %v3416 = vmax.f32 %v3388, 0.0
    %v3417 = vmax.f32 %v3389, 0.0
    %v3418 = vmax.f32 %v3390, 0.0
    %v3419 = vmax.f32 %v3391, 0.0
    %v3420 = vmax.f32 %v3392, 0.0
    %v3421 = vmax.f32 %v3393, 0.0
    %v3422 = vmax.f32 %v3394, 0.0
    %v3423 = vmax.f32 %v3395, 0.0
    %v3424 = vmax.f32 %v3396, 0.0
    %v3425 = vmax.f32 %v3397, 0.0
    %v3426 = vmax.f32 %v3398, 0.0
    %v3427 = vmax.f32 %v3399, 0.0
    %v3428 = vmax.f32 %v3400, 0.0
    %v3429 = vmax.f32 %v3401, 0.0
    %v3430 = vmax.f32 %v3402, 0.0
    %v3431 = vmax.f32 %v3403, 0.0
    %v3432 = vmax.f32 %v3404, 0.0
    %v3433 = vmax.f32 %v3405, 0.0
    %v3434 = vmax.f32 %v3406, 0.0
    %v3435 = vmax.f32 %v3407, 0.0
    %v3436 = vmax.f32 %v3408, 0.0
    %v3437 = vmax.f32 %v3409, 0.0
    %v3438 = vmax.f32 %v3410, 0.0
    %v3439 = vmax.f32 %v3411, 0.0
    %v3440 = vpack.c.bf16 %v3413, %v3412
    %v3441 = vpack.c.bf16 %v3415, %v3414
    %v3442 = vpack.c.bf16 %v3417, %v3416
    %v3443 = vpack.c.bf16 %v3419, %v3418
    %v3444 = vpack.c.bf16 %v3421, %v3420
    %v3445 = vpack.c.bf16 %v3423, %v3422
    %v3446 = vpack.c.bf16 %v3425, %v3424
    %v3447 = vpack.c.bf16 %v3427, %v3426
    %v3448 = vpack.c.bf16 %v3429, %v3428
    %v3449 = vpack.c.bf16 %v3431, %v3430
    %v3450 = vpack.c.bf16 %v3433, %v3432
    %v3451 = vpack.c.bf16 %v3435, %v3434
    %v3452 = vpack.c.bf16 %v3437, %v3436
    %v3453 = vpack.c.bf16 %v3439, %v3438
    %3454 = vst [vmem:[%s3] sm:$0xff] %v3440
    %3455 = vst [vmem:[%s3 + $0x8] sm:$0xff] %v3441
    %3456 = vst [vmem:[%s3 + $0x10] sm:$0xff] %v3442
    %3457 = vst [vmem:[%s3 + $0x18] sm:$0xff] %v3443
    %3458 = vst [vmem:[%s3 + $0x20] sm:$0xff] %v3444
    %3459 = vst [vmem:[%s3 + $0x28] sm:$0xff] %v3445
    %3460 = vst [vmem:[%s3 + $0x30] sm:$0xff] %v3446
    %3461 = vst [vmem:[%s3 + $0x38] sm:$0xff] %v3447
    %3462 = vst [vmem:[%s3 + $0x40] sm:$0xff] %v3448
    %3463 = vst [vmem:[%s3 + $0x48] sm:$0xff] %v3449
    %3464 = vst [vmem:[%s3 + $0x50] sm:$0xff] %v3450
    %3465 = vst [vmem:[%s3 + $0x58] sm:$0xff] %v3451
    %3466 = vst [vmem:[%s3 + $0x60] sm:$0xff] %v3452
    %3467 = vst [vmem:[%s3 + $0x68] sm:$0xff] %v3453
    // Predicated region
    $region22: #{_lambda_.4} parent=1 // pred_check
      _
    $region23: #{_lambda_.4} parent=1 // pred_check_branch
      %3469 = sbr.rel (0) target = $region25
    $region24: #{_lambda_.4} parent=1 // pred_region
      _
    $region25: #{_lambda_.4} parent=1 // pred_fallthru
      _
    // Predicated region
    $region26: #{_lambda_.4} parent=1 // pred_check
      _
    $region27: #{_lambda_.4} parent=1 // pred_check_branch
      %3471 = sbr.rel (0) target = $region29
    $region28: #{_lambda_.4} parent=1 // pred_region
      _
    $region29: #{_lambda_.4} parent=1 // pred_fallthru
      _
    %3472 = vsyncpa [#allocation3], 1
    %3473 = vsyncpa [#allocation5], 1

// kernel: _lambda_.3
$region0: #{_lambda_.3}
  #allocation0 [shape = 'u32[]', space=smem, size = 0x4, offset = 0x4, fixed_abs, tag = 'smem constant byte address 0x4 - core index']
  #allocation1 [shape = 'u32[72,128]{1,0:T(1,128)}', space=vmem, size = 0x9000, scoped, tag = 'internal scratch']
  %s0 = inlined_call_operand.vmem [shape: f32[16,128], index: 0, kind: input, shape index: {}]
  %s1 = inlined_call_operand.hbm [shape: bf16[128,256], index: 1, kind: input, shape index: {}]
  %s2 = inlined_call_operand.hbm [shape: f32[2,256], index: 2, kind: input, shape index: {}]
  %s3 = inlined_call_operand.hbm [shape: bf16[256,1024], index: 3, kind: input, shape index: {}]
  %s4 = inlined_call_operand.hbm [shape: f32[2,1024], index: 4, kind: input, shape index: {}]
  %s5 = inlined_call_operand.hbm [shape: bf16[1024,6272], index: 5, kind: input, shape index: {}]
  %s6 = inlined_call_operand.hbm [shape: f32[2,6272], index: 6, kind: input, shape index: {}]
  %s7 = inlined_call_operand.vmem [shape: bf16[16,6272], index: 7, kind: output, shape index: {}]
  %s8 = sld [smem:[#allocation0]]
  $region107: #{_lambda_.3} parent=0
    _
  %s10 = ssub.s32 1, %s8
  %s11 = scalar_select 0, %s10, %s8
  $region1: #{_lambda_.3} parent=0
    #allocation2 [shape = 'u8[65536]{0}', space=vmem, size = 0x10000, scoped, tag = 'input window, operand 1, single buffered']
    #allocation3 [shape = 's32[2]{0}', space=sflag, size = 0x8, scoped, tag = 'scoped memory for _lambda_.3']
    #allocation4 [shape = 'u8[2048]{0}', space=vmem, size = 0x800, scoped, tag = 'input window, operand 2, single buffered']
    #allocation5 [shape = 's32[1]{0}', space=sflag, size = 0x4, scoped, tag = 'scoped memory for _lambda_.3']
    #allocation6 [shape = 'u8[524288]{0}', space=vmem, size = 0x80000, scoped, tag = 'input window, operand 3, single buffered']
    #allocation7 [shape = 'u8[8192]{0}', space=vmem, size = 0x2000, scoped, tag = 'input window, operand 4, single buffered']
    #allocation8 [shape = 's32[1]{0}', space=sflag, size = 0x4, scoped, tag = 'scoped memory for _lambda_.3']
    #allocation9 [shape = 'u8[3670016]{0}', space=vmem, size = 0x380000, scoped, tag = 'input window, operand 5']
    #allocation10 [shape = 'u8[14336]{0}', space=vmem, size = 0x3800, scoped, tag = 'input window, operand 6']
    #allocation11 [shape = 'u8[57344]{0}', space=vmem, size = 0xe000, scoped, tag = 'output window, operand 0']
    %12 = vsyncpa [#allocation3], 0
    %13 = vsyncpa [#allocation5], 0
    %14 = vsyncpa [#allocation8], 0
    loop: start=0, step=1, limit=9
    $region2: #{_lambda_.3} parent=1 // loop_pre_header
      _
    $region3: #{_lambda_.3} parent=1 // loop_header
      %s16 = sphi 0, %s20
      %p17 = scmp.ge.s32.totalorder %s16, 9
      %s24 = sphi 0, %s24
      %s26 = sphi 0, %s24
      %s27 = sphi 0, %s26
      %s41 = sphi 0, %s27
      %s45 = sphi 0, %s45
      %s47 = sphi 0, %s45
      %s48 = sphi 0, %s47
      %s62 = sphi 0, %s48
      %s66 = sphi 0, %s66
      %s68 = sphi 0, %s66
      %s69 = sphi 0, %s68
      %s83 = sphi 0, %s69
      %s87 = sphi 0, %s87
      %s89 = sphi 0, %s87
      %s90 = sphi 0, %s89
      %s104 = sphi 0, %s90
      %s108 = sphi 0, %s108
      %s110 = sphi 0, %s108
      %s111 = sphi 0, %s110
      %s125 = sphi 0, %s111
      %s131 = sphi 0, %s133
      %s134 = sphi 0, %s131
      %s135 = sphi 0, %s134
      %s151 = sphi 0, %s135
      %s157 = sphi 0, %s159
      %s160 = sphi 0, %s157
      %s161 = sphi 0, %s160
      %s177 = sphi 0, %s161
      %s183 = sphi 0, %s185
      %s186 = sphi 0, %s183
      %s187 = sphi 0, %s186
      %s203 = sphi 0, %s187
    $region4: #{_lambda_.3} parent=1 // loop_header_branch
      %19 = sbr.rel (%p17) target = $region8
    $region5: #{_lambda_.3} parent=1 // loop_body
      %s21 = ssub.s32 %s16, 1
      %s22 = ssub.s32 %s16, 2
      %s23 = sadd.s32 %s16, 1
      %s25 = sadd.s32 %s24, 1
      %p28 = scmp.eq.s32.totalorder %s16, 6
      %p29 = scmp.ne.s32.totalorder %s24, %s26
      %p30 = scmp.eq.s32.totalorder %s16, 0
      %p31 = por %p29, %p30
      %p32 = scmp.ne.s32.totalorder %s24, %s26
      %p33 = scmp.eq.s32.totalorder %s21, 6
      %p34 = por %p32, %p33
      %p35 = scmp.ne.s32.totalorder %s26, %s27
      %p36 = scmp.eq.s32.totalorder %s21, 0
      %p37 = por %p35, %p36
      %p38 = scmp.ne.s32.totalorder %s26, %s27
      %p39 = scmp.eq.s32.totalorder %s22, 6
      %p40 = por %p38, %p39
      %p42 = scmp.ne.s32.totalorder %s27, %s41
      %p43 = scmp.eq.s32.totalorder %s22, 0
      %p44 = por %p42, %p43
      %s46 = sadd.s32 %s45, 1
      %p49 = scmp.eq.s32.totalorder %s16, 6
      %p50 = scmp.ne.s32.totalorder %s45, %s47
      %p51 = scmp.eq.s32.totalorder %s16, 0
      %p52 = por %p50, %p51
      %p53 = scmp.ne.s32.totalorder %s45, %s47
      %p54 = scmp.eq.s32.totalorder %s21, 6
      %p55 = por %p53, %p54
      %p56 = scmp.ne.s32.totalorder %s47, %s48
      %p57 = scmp.eq.s32.totalorder %s21, 0
      %p58 = por %p56, %p57
      %p59 = scmp.ne.s32.totalorder %s47, %s48
      %p60 = scmp.eq.s32.totalorder %s22, 6
      %p61 = por %p59, %p60
      %p63 = scmp.ne.s32.totalorder %s48, %s62
      %p64 = scmp.eq.s32.totalorder %s22, 0
      %p65 = por %p63, %p64
      %s67 = sadd.s32 %s66, 1
      %p70 = scmp.eq.s32.totalorder %s16, 6
      %p71 = scmp.ne.s32.totalorder %s66, %s68
      %p72 = scmp.eq.s32.totalorder %s16, 0
      %p73 = por %p71, %p72
      %p74 = scmp.ne.s32.totalorder %s66, %s68
      %p75 = scmp.eq.s32.totalorder %s21, 6
      %p76 = por %p74, %p75
      %p77 = scmp.ne.s32.totalorder %s68, %s69
      %p78 = scmp.eq.s32.totalorder %s21, 0
      %p79 = por %p77, %p78
      %p80 = scmp.ne.s32.totalorder %s68, %s69
      %p81 = scmp.eq.s32.totalorder %s22, 6
      %p82 = por %p80, %p81
      %p84 = scmp.ne.s32.totalorder %s69, %s83
      %p85 = scmp.eq.s32.totalorder %s22, 0
      %p86 = por %p84, %p85
      %s88 = sadd.s32 %s87, 1
      %p91 = scmp.eq.s32.totalorder %s16, 6
      %p92 = scmp.ne.s32.totalorder %s87, %s89
      %p93 = scmp.eq.s32.totalorder %s16, 0
      %p94 = por %p92, %p93
      %p95 = scmp.ne.s32.totalorder %s87, %s89
      %p96 = scmp.eq.s32.totalorder %s21, 6
      %p97 = por %p95, %p96
      %p98 = scmp.ne.s32.totalorder %s89, %s90
      %p99 = scmp.eq.s32.totalorder %s21, 0
      %p100 = por %p98, %p99
      %p101 = scmp.ne.s32.totalorder %s89, %s90
      %p102 = scmp.eq.s32.totalorder %s22, 6
      %p103 = por %p101, %p102
      %p105 = scmp.ne.s32.totalorder %s90, %s104
      %p106 = scmp.eq.s32.totalorder %s22, 0
      %p107 = por %p105, %p106
      %s109 = sadd.s32 %s108, 1
      %p112 = scmp.eq.s32.totalorder %s16, 6
      %p113 = scmp.ne.s32.totalorder %s108, %s110
      %p114 = scmp.eq.s32.totalorder %s16, 0
      %p115 = por %p113, %p114
      %p116 = scmp.ne.s32.totalorder %s108, %s110
      %p117 = scmp.eq.s32.totalorder %s21, 6
      %p118 = por %p116, %p117
      %p119 = scmp.ne.s32.totalorder %s110, %s111
      %p120 = scmp.eq.s32.totalorder %s21, 0
      %p121 = por %p119, %p120
      %p122 = scmp.ne.s32.totalorder %s110, %s111
      %p123 = scmp.eq.s32.totalorder %s22, 6
      %p124 = por %p122, %p123
      %p126 = scmp.ne.s32.totalorder %s111, %s125
      %p127 = scmp.eq.s32.totalorder %s22, 0
      %p128 = por %p126, %p127
      %s129 = ssub.s32 %s16, %s23
      %p130 = scmp.eq.s32.totalorder %s129, 0
      %s132 = sadd.s32 %s131, 1
      %s133 = scalar_select %p130, %s131, %s132
      %p136 = pneg %p130
      %p137 = scmp.eq.s32.totalorder %s16, 6
      %p138 = por %p136, %p137
      %p139 = scmp.ne.s32.totalorder %s131, %s134
      %p140 = scmp.eq.s32.totalorder %s16, 0
      %p141 = por %p139, %p140
      %p142 = scmp.ne.s32.totalorder %s131, %s134
      %p143 = scmp.eq.s32.totalorder %s21, 6
      %p144 = por %p142, %p143
      %p145 = scmp.ne.s32.totalorder %s134, %s135
      %p146 = scmp.eq.s32.totalorder %s21, 0
      %p147 = por %p145, %p146
      %p148 = scmp.ne.s32.totalorder %s134, %s135
      %p149 = scmp.eq.s32.totalorder %s22, 6
      %p150 = por %p148, %p149
      %p152 = scmp.ne.s32.totalorder %s135, %s151
      %p153 = scmp.eq.s32.totalorder %s22, 0
      %p154 = por %p152, %p153
      %s155 = ssub.s32 %s16, %s23
      %p156 = scmp.eq.s32.totalorder %s155, 0
      %s158 = sadd.s32 %s157, 1
      %s159 = scalar_select %p156, %s157, %s158
      %p162 = pneg %p156
      %p163 = scmp.eq.s32.totalorder %s16, 6
      %p164 = por %p162, %p163
      %p165 = scmp.ne.s32.totalorder %s157, %s160
      %p166 = scmp.eq.s32.totalorder %s16, 0
      %p167 = por %p165, %p166
      %p168 = scmp.ne.s32.totalorder %s157, %s160
      %p169 = scmp.eq.s32.totalorder %s21, 6
      %p170 = por %p168, %p169
      %p171 = scmp.ne.s32.totalorder %s160, %s161
      %p172 = scmp.eq.s32.totalorder %s21, 0
      %p173 = por %p171, %p172
      %p174 = scmp.ne.s32.totalorder %s160, %s161
      %p175 = scmp.eq.s32.totalorder %s22, 6
      %p176 = por %p174, %p175
      %p178 = scmp.ne.s32.totalorder %s161, %s177
      %p179 = scmp.eq.s32.totalorder %s22, 0
      %p180 = por %p178, %p179
      %s181 = ssub.s32 %s16, %s23
      %p182 = scmp.eq.s32.totalorder %s181, 0
      %s184 = sadd.s32 %s183, 1
      %s185 = scalar_select %p182, %s183, %s184
      %p188 = pneg %p182
      %p189 = scmp.eq.s32.totalorder %s16, 6
      %p190 = por %p188, %p189
      %p191 = scmp.ne.s32.totalorder %s183, %s186
      %p192 = scmp.eq.s32.totalorder %s16, 0
      %p193 = por %p191, %p192
      %p194 = scmp.ne.s32.totalorder %s183, %s186
      %p195 = scmp.eq.s32.totalorder %s21, 6
      %p196 = por %p194, %p195
      %p197 = scmp.ne.s32.totalorder %s186, %s187
      %p198 = scmp.eq.s32.totalorder %s21, 0
      %p199 = por %p197, %p198
      %p200 = scmp.ne.s32.totalorder %s186, %s187
      %p201 = scmp.eq.s32.totalorder %s22, 6
      %p202 = por %p200, %p201
      %p204 = scmp.ne.s32.totalorder %s187, %s203
      %p205 = scmp.eq.s32.totalorder %s22, 0
      %p206 = por %p204, %p205
      %p207 = scmp.le.s32.totalorder 1, %s16
      %p208 = scmp.lt.s32.totalorder %s16, 8
      %p209 = pnand %p207, %p208
      %p210 = pneg %p209
      // Predicated region
      $region9: #{_lambda_.3} parent=5 // pred_check
        _
      $region10: #{_lambda_.3} parent=5 // pred_check_branch
        %212 = sbr.rel (%p209) target = $region12
      $region11: #{_lambda_.3} parent=5 // pred_region
        %s213 = ssub.s32 %s16, 1
        // Predicated region
        $region13: #{_lambda_.3} parent=11 // pred_check
          %p214 = pneg %p37
        $region14: #{_lambda_.3} parent=11 // pred_check_branch
          %216 = sbr.rel (%p214) target = $region16
        $region15: #{_lambda_.3} parent=11 // pred_region
          _
        $region16: #{_lambda_.3} parent=11 // pred_fallthru
          _
        // Predicated region
        $region17: #{_lambda_.3} parent=11 // pred_check
          %p217 = pneg %p58
        $region18: #{_lambda_.3} parent=11 // pred_check_branch
          %219 = sbr.rel (%p217) target = $region20
        $region19: #{_lambda_.3} parent=11 // pred_region
          %221 = vsyncadd [#allocation3], 0
          %s222 = sshll.u32 %s1, 4
          %s223 = int_to_ptr.hbm [resolvable:$true] %s222
          %s224 = sshll.u32 [#allocation2], 4
          %s225 = int_to_ptr.vmem [resolvable:$true] %s224
          %230 = dma.hbm_to_vmem [thread:$0]  %s223, 2048, %s225, [#allocation3], 128, 128, 8
        $region20: #{_lambda_.3} parent=11 // pred_fallthru
          _
        // Predicated region
        $region21: #{_lambda_.3} parent=11 // pred_check
          %p231 = pneg %p79
        $region22: #{_lambda_.3} parent=11 // pred_check_branch
          %233 = sbr.rel (%p231) target = $region24
        $region23: #{_lambda_.3} parent=11 // pred_region
          %235 = vsyncadd [#allocation5], 0
          %s237 = sshll.u32 %s2, 4
          %s238 = int_to_ptr.hbm [resolvable:$true] %s237
          %s239 = sshll.u32 [#allocation4], 4
          %s240 = int_to_ptr.vmem [resolvable:$true] %s239
          %242 = dma.hbm_to_vmem [thread:$0]  %s238, 64, %s240, [#allocation5]
        $region24: #{_lambda_.3} parent=11 // pred_fallthru
          _
        // Predicated region
        $region25: #{_lambda_.3} parent=11 // pred_check
          %p243 = pneg %p100
        $region26: #{_lambda_.3} parent=11 // pred_check_branch
          %245 = sbr.rel (%p243) target = $region28
        $region27: #{_lambda_.3} parent=11 // pred_region
          %247 = vsyncadd [#allocation5], 0
          %s248 = sshll.u32 %s3, 4
          %s249 = int_to_ptr.hbm [resolvable:$true] %s248
          %s250 = sshll.u32 [#allocation6], 4
          %s251 = int_to_ptr.vmem [resolvable:$true] %s250
          %256 = dma.hbm_to_vmem [thread:$0]  %s249, 16384, %s251, [#allocation5], 512, 512, 32
        $region28: #{_lambda_.3} parent=11 // pred_fallthru
          _
        // Predicated region
        $region29: #{_lambda_.3} parent=11 // pred_check
          %p257 = pneg %p121
        $region30: #{_lambda_.3} parent=11 // pred_check_branch
          %259 = sbr.rel (%p257) target = $region32
        $region31: #{_lambda_.3} parent=11 // pred_region
          %261 = vsyncadd [#allocation8], 0
          %s263 = sshll.u32 %s4, 4
          %s264 = int_to_ptr.hbm [resolvable:$true] %s263
          %s265 = sshll.u32 [#allocation7], 4
          %s266 = int_to_ptr.vmem [resolvable:$true] %s265
          %268 = dma.hbm_to_vmem [thread:$0]  %s264, 256, %s266, [#allocation8]
        $region32: #{_lambda_.3} parent=11 // pred_fallthru
          _
      $region12: #{_lambda_.3} parent=5 // pred_fallthru
        _
      %p269 = scmp.lt.s32.totalorder %s16, 7
      // Predicated region
      $region33: #{_lambda_.3} parent=5 // pred_check
        %p270 = pneg %p269
      $region34: #{_lambda_.3} parent=5 // pred_check_branch
        %272 = sbr.rel (%p270) target = $region36
      $region35: #{_lambda_.3} parent=5 // pred_region
        // Predicated region
        $region37: #{_lambda_.3} parent=35 // pred_check
          %p273 = pneg %p141
        $region38: #{_lambda_.3} parent=35 // pred_check_branch
          %275 = sbr.rel (%p273) target = $region40
        $region39: #{_lambda_.3} parent=35 // pred_region
          %s276 = sand.u32 %s16, 1
          %s277 = scalar_lea.sflag [#allocation3], %s276
          %s278 = sand.u32 %s131, 1
          %s279 = smul.addr %s278, 3584
          %s280 = scalar_lea.vmem [#allocation9], %s279
          %s281 = smul.u32 7, %s16
          %283 = vsyncadd %s277, 0
          %s284 = smul.addr %s281, 4
          %s285 = scalar_lea.hbm %s5, %s284
          %s286 = sshll.u32 %s285, 4
          %s287 = int_to_ptr.hbm [resolvable:$true] %s286
          %s288 = sshll.u32 %s280, 4
          %s289 = int_to_ptr.vmem [resolvable:$true] %s288
          %294 = dma.hbm_to_vmem [thread:$0]  %s287, 57344, %s289, %s277, 3136, 448, 28
        $region40: #{_lambda_.3} parent=35 // pred_fallthru
          _
        // Predicated region
        $region41: #{_lambda_.3} parent=35 // pred_check
          %p295 = pneg %p167
        $region42: #{_lambda_.3} parent=35 // pred_check_branch
          %297 = sbr.rel (%p295) target = $region44
        $region43: #{_lambda_.3} parent=35 // pred_region
          %s298 = sand.u32 %s16, 1
          %s299 = scalar_lea.sflag [#allocation3], %s298
          %s300 = sand.u32 %s157, 1
          %s301 = smul.addr %s300, 14
          %s302 = scalar_lea.vmem [#allocation10], %s301
          %s303 = smul.u32 7, %s16
          %305 = vsyncadd %s299, 0
          %s306 = smul.addr %s303, 2
          %s307 = scalar_lea.hbm %s6, %s306
          %s309 = sshll.u32 %s307, 4
          %s310 = int_to_ptr.hbm [resolvable:$true] %s309
          %s311 = sshll.u32 %s302, 4
          %s312 = int_to_ptr.vmem [resolvable:$true] %s311
          %314 = dma.hbm_to_vmem [thread:$0]  %s310, 224, %s312, %s299
        $region44: #{_lambda_.3} parent=35 // pred_fallthru
          _
      $region36: #{_lambda_.3} parent=5 // pred_fallthru
        _
      %p315 = scmp.le.s32.totalorder 1, %s16
      %p316 = scmp.lt.s32.totalorder %s16, 8
      %p317 = pnand %p315, %p316
      %p318 = pneg %p317
      // Predicated region
      $region45: #{_lambda_.3} parent=5 // pred_check
        _
      $region46: #{_lambda_.3} parent=5 // pred_check_branch
        %320 = sbr.rel (%p317) target = $region48
      $region47: #{_lambda_.3} parent=5 // pred_region
        %s321 = ssub.s32 %s16, 1
        // Predicated region
        $region49: #{_lambda_.3} parent=47 // pred_check
          %p322 = pneg %p58
        $region50: #{_lambda_.3} parent=47 // pred_check_branch
          %324 = sbr.rel (%p322) target = $region52
        $region51: #{_lambda_.3} parent=47 // pred_region
          %326 = dma.done [#allocation3], 2048
        $region52: #{_lambda_.3} parent=47 // pred_fallthru
          _
        // Predicated region
        $region53: #{_lambda_.3} parent=47 // pred_check
          %p327 = pneg %p79
        $region54: #{_lambda_.3} parent=47 // pred_check_branch
          %329 = sbr.rel (%p327) target = $region56
        $region55: #{_lambda_.3} parent=47 // pred_region
          %331 = dma.done [#allocation5], 64
        $region56: #{_lambda_.3} parent=47 // pred_fallthru
          _
        // Predicated region
        $region57: #{_lambda_.3} parent=47 // pred_check
          %p332 = pneg %p100
        $region58: #{_lambda_.3} parent=47 // pred_check_branch
          %334 = sbr.rel (%p332) target = $region60
        $region59: #{_lambda_.3} parent=47 // pred_region
          %336 = dma.done [#allocation5], 16384
        $region60: #{_lambda_.3} parent=47 // pred_fallthru
          _
        // Predicated region
        $region61: #{_lambda_.3} parent=47 // pred_check
          %p337 = pneg %p121
        $region62: #{_lambda_.3} parent=47 // pred_check_branch
          %339 = sbr.rel (%p337) target = $region64
        $region63: #{_lambda_.3} parent=47 // pred_region
          %341 = dma.done [#allocation8], 256
        $region64: #{_lambda_.3} parent=47 // pred_fallthru
          _
        %s342 = sand.u32 %s21, 1
        %s343 = scalar_lea.sflag [#allocation3], %s342
        %s344 = sand.u32 %s134, 1
        %s345 = smul.addr %s344, 3584
        %s346 = scalar_lea.vmem [#allocation9], %s345
        // Predicated region
        $region65: #{_lambda_.3} parent=47 // pred_check
          %p347 = pneg %p147
        $region66: #{_lambda_.3} parent=47 // pred_check_branch
          %349 = sbr.rel (%p347) target = $region68
        $region67: #{_lambda_.3} parent=47 // pred_region
          %351 = dma.done %s343, 57344
        $region68: #{_lambda_.3} parent=47 // pred_fallthru
          _
        %s352 = sand.u32 %s21, 1
        %s353 = scalar_lea.sflag [#allocation3], %s352
        %s354 = sand.u32 %s160, 1
        %s355 = smul.addr %s354, 14
        %s356 = scalar_lea.vmem [#allocation10], %s355
        // Predicated region
        $region69: #{_lambda_.3} parent=47 // pred_check
          %p357 = pneg %p173
        $region70: #{_lambda_.3} parent=47 // pred_check_branch
          %359 = sbr.rel (%p357) target = $region72
        $region71: #{_lambda_.3} parent=47 // pred_region
          %361 = dma.done %s353, 224
        $region72: #{_lambda_.3} parent=47 // pred_fallthru
          _
        %p362 = pneg %p37
        %p363 = pneg %p34
        %p364 = pneg %p58
        %p365 = pneg %p55
        %p366 = pneg %p79
        %p367 = pneg %p76
        %p368 = pneg %p100
        %p369 = pneg %p97
        %p370 = pneg %p121
        %p371 = pneg %p118
        %s372 = sand.u32 %s21, 1
        %s373 = scalar_lea.sflag [#allocation3], %s372
        %s374 = sand.u32 %s134, 1
        %s375 = smul.addr %s374, 3584
        %s376 = scalar_lea.vmem [#allocation9], %s375
        %p377 = pneg %p147
        %p378 = pneg %p144
        %s379 = sand.u32 %s21, 1
        %s380 = scalar_lea.sflag [#allocation3], %s379
        %s381 = sand.u32 %s160, 1
        %s382 = smul.addr %s381, 14
        %s383 = scalar_lea.vmem [#allocation10], %s382
        %p384 = pneg %p173
        %p385 = pneg %p170
        %p386 = pneg %p199
        %p387 = pneg %p196
        %s388 = sand.u32 %s186, 1
        %s389 = sand.u32 %s186, 1
        %s390 = smul.addr %s389, 56
        %s391 = scalar_lea.vmem [#allocation11], %s390
        %s392 = smul.u32 7, %s21
        %s393 = smul.u32 7, %s21
        %s394 = smul.u32 7, %s21
        %v395 = vld [vmem:[%s0] sm:$0xff]
        %v396 = vld [vmem:[%s0 + $0x8] sm:$0xff]
        %v397 = vld [vmem:[#allocation2] sm:$0xff]
        %v398 = vld [vmem:[#allocation2 + $0x8] sm:$0xff]
        %v399 = vld [vmem:[#allocation2 + $0x10] sm:$0xff]
        %v400 = vld [vmem:[#allocation2 + $0x18] sm:$0xff]
        %v401 = vld [vmem:[#allocation2 + $0x20] sm:$0xff]
        %v402 = vld [vmem:[#allocation2 + $0x28] sm:$0xff]
        %v403 = vld [vmem:[#allocation2 + $0x30] sm:$0xff]
        %v404 = vld [vmem:[#allocation2 + $0x38] sm:$0xff]
        %v405 = vld [vmem:[#allocation2 + $0x40] sm:$0xff]
        %v406 = vld [vmem:[#allocation2 + $0x48] sm:$0xff]
        %v407 = vld [vmem:[#allocation2 + $0x50] sm:$0xff]
        %v408 = vld [vmem:[#allocation2 + $0x58] sm:$0xff]
        %v409 = vld [vmem:[#allocation2 + $0x60] sm:$0xff]
        %v410 = vld [vmem:[#allocation2 + $0x68] sm:$0xff]
        %v411 = vld [vmem:[#allocation2 + $0x70] sm:$0xff]
        %v412 = vld [vmem:[#allocation2 + $0x78] sm:$0xff]
        %v413 = vunpack.c.l.bf16 %v397
        %v414 = vunpack.c.h.bf16 %v397
        %v415 = vunpack.c.l.bf16 %v398
        %v416 = vunpack.c.h.bf16 %v398
        %v417 = vunpack.c.l.bf16 %v399
        %v418 = vunpack.c.h.bf16 %v399
        %v419 = vunpack.c.l.bf16 %v400
        %v420 = vunpack.c.h.bf16 %v400
        %v421 = vunpack.c.l.bf16 %v401
        %v422 = vunpack.c.h.bf16 %v401
        %v423 = vunpack.c.l.bf16 %v402
        %v424 = vunpack.c.h.bf16 %v402
        %v425 = vunpack.c.l.bf16 %v403
        %v426 = vunpack.c.h.bf16 %v403
        %v427 = vunpack.c.l.bf16 %v404
        %v428 = vunpack.c.h.bf16 %v404
        %v429 = vunpack.c.l.bf16 %v405
        %v430 = vunpack.c.h.bf16 %v405
        %v431 = vunpack.c.l.bf16 %v406
        %v432 = vunpack.c.h.bf16 %v406
        %v433 = vunpack.c.l.bf16 %v407
        %v434 = vunpack.c.h.bf16 %v407
        %v435 = vunpack.c.l.bf16 %v408
        %v436 = vunpack.c.h.bf16 %v408
        %v437 = vunpack.c.l.bf16 %v409
        %v438 = vunpack.c.h.bf16 %v409
        %v439 = vunpack.c.l.bf16 %v410
        %v440 = vunpack.c.h.bf16 %v410
        %v441 = vunpack.c.l.bf16 %v411
        %v442 = vunpack.c.h.bf16 %v411
        %v443 = vunpack.c.l.bf16 %v412
        %v444 = vunpack.c.h.bf16 %v412
        %445 = vmatpush.msra.mxu0 %v443
        %446 = vmatpush.msra.mxu0 %v441
        %447 = vmatpush.msra.mxu0 %v439
        %448 = vmatpush.msra.mxu0 %v437
        %449 = vmatpush.msra.mxu0 %v435
        %450 = vmatpush.msra.mxu0 %v433
        %451 = vmatpush.msra.mxu0 %v431
        %452 = vmatpush.msra.mxu0 %v429
        %453 = vmatpush.msra.mxu0 %v427
        %454 = vmatpush.msra.mxu0 %v425
        %455 = vmatpush.msra.mxu0 %v423
        %456 = vmatpush.msra.mxu0 %v421
        %457 = vmatpush.msra.mxu0 %v419
        %458 = vmatpush.msra.mxu0 %v417
        %459 = vmatpush.msra.mxu0 %v415
        %460 = vmatpush.msra.mxu0 %v413
        %461 = vmatmul.f32.gmra.mxu0 %v395
        %v462 = vpop.f32.mrf.mxu0
        %v463 = vadd.f32 0.0, %v462
        %464 = vmatmul.f32.gmra.mxu0 %v396
        %v465 = vpop.f32.mrf.mxu0
        %v466 = vadd.f32 0.0, %v465
        %467 = vdwg.mxu0
        %468 = vmatpush.msra.mxu0 %v444
        %469 = vmatpush.msra.mxu0 %v442
        %470 = vmatpush.msra.mxu0 %v440
        %471 = vmatpush.msra.mxu0 %v438
        %472 = vmatpush.msra.mxu0 %v436
        %473 = vmatpush.msra.mxu0 %v434
        %474 = vmatpush.msra.mxu0 %v432
        %475 = vmatpush.msra.mxu0 %v430
        %476 = vmatpush.msra.mxu0 %v428
        %477 = vmatpush.msra.mxu0 %v426
        %478 = vmatpush.msra.mxu0 %v424
        %479 = vmatpush.msra.mxu0 %v422
        %480 = vmatpush.msra.mxu0 %v420
        %481 = vmatpush.msra.mxu0 %v418
        %482 = vmatpush.msra.mxu0 %v416
        %483 = vmatpush.msra.mxu0 %v414
        %484 = vmatmul.f32.gmra.mxu0 %v395
        %v485 = vpop.f32.mrf.mxu0
        %v486 = vadd.f32 0.0, %v485
        %487 = vmatmul.f32.gmra.mxu0 %v396
        %v488 = vpop.f32.mrf.mxu0
        %v489 = vadd.f32 0.0, %v488
        %490 = vdwg.mxu0
        %v491 = vadd.f32 %v463, %v466
        %v492 = vrot.slane %v491, 4
        %v493 = vadd.f32 %v491, %v492
        %v494 = vrot.slane %v493, 2
        %v495 = vadd.f32 %v493, %v494
        %v496 = vrot.slane %v495, 1
        %v497 = vadd.f32 %v495, %v496
        %v498 = vadd.f32 %v486, %v489
        %v499 = vrot.slane %v498, 4
        %v500 = vadd.f32 %v498, %v499
        %v501 = vrot.slane %v500, 2
        %v502 = vadd.f32 %v500, %v501
        %v503 = vrot.slane %v502, 1
        %v504 = vadd.f32 %v502, %v503
        %v505 = vmul.f32 %v463, %v463
        %v506 = vmul.f32 %v486, %v486
        %v507 = vmul.f32 %v466, %v466
        %v508 = vmul.f32 %v489, %v489
        %v509 = vadd.f32 %v505, %v507
        %v510 = vrot.slane %v509, 4
        %v511 = vadd.f32 %v509, %v510
        %v512 = vrot.slane %v511, 2
        %v513 = vadd.f32 %v511, %v512
        %v514 = vrot.slane %v513, 1
        %v515 = vadd.f32 %v513, %v514
        %v516 = vadd.f32 %v506, %v508
        %v517 = vrot.slane %v516, 4
        %v518 = vadd.f32 %v516, %v517
        %v519 = vrot.slane %v518, 2
        %v520 = vadd.f32 %v518, %v519
        %v521 = vrot.slane %v520, 1
        %v522 = vadd.f32 %v520, %v521
        %v523 = vmul.f32 %v497, 0.5
        %v524 = vmul.f32 %v504, 0.5
        %v525 = vmul.f32 %v515, 0.5
        %v526 = vmul.f32 %v522, 0.5
        %v527 = vmul.f32 %v523, %v523
        %v528 = vmul.f32 %v524, %v524
        %v529 = vsub.f32 %v525, %v527
        %v530 = vsub.f32 %v526, %v528
        %v531 = vadd.f32 %v529, 1e-05
        %v532 = vadd.f32 %v530, 1e-05
        %v533 = vrsqrt.pop %v531
        %v534 = vmul.f32 %v533, %v531
        %v535 = vmul.f32 %v534, %v533
        %v536 = vmul.f32 0.5, %v535
        %v537 = vsub.f32 1.5, %v536
        %v538 = vmul.f32 %v533, %v537
        %vm539 = vweird.f32 %v531
        %vm540 = vweird.f32 %v533
        %vm541 = vmor %vm539, %vm540
        %v542 = vsel %vm541, %v533, %v538
        %v543 = vrsqrt.pop %v532
        %v544 = vmul.f32 %v543, %v532
        %v545 = vmul.f32 %v544, %v543
        %v546 = vmul.f32 0.5, %v545
        %v547 = vsub.f32 1.5, %v546
        %v548 = vmul.f32 %v543, %v547
        %vm549 = vweird.f32 %v532
        %vm550 = vweird.f32 %v543
        %vm551 = vmor %vm549, %vm550
        %v552 = vsel %vm551, %v543, %v548
        %v553 = vld [vmem:[#allocation4] ss:$2 sm:$0x3]
        %v555 = vperm.slane %v553, 0
        %v556 = vperm.slane %v553, 1
        %v559 = vmul.f32 %v542, %v555
        %v560 = vmul.f32 %v552, %v556
        %v561 = vsub.f32 %v463, %v523
        %v562 = vsub.f32 %v486, %v524
        %v563 = vsub.f32 %v466, %v523
        %v564 = vsub.f32 %v489, %v524
        %v565 = vperm.slane %v559, 0
        %v566 = vperm.slane %v560, 0
        %v567 = vmul.f32 %v561, %v565
        %v568 = vmul.f32 %v562, %v566
        %v569 = vmul.f32 %v563, %v565
        %v570 = vmul.f32 %v564, %v566
        %s571 = scalar_lea.vmem [#allocation4], 1
        %v572 = vld [vmem:[%s571] ss:$2 sm:$0x3]
        %v574 = vperm.slane %v572, 0
        %v575 = vperm.slane %v572, 1
        %v578 = vadd.f32 %v567, %v574
        %v579 = vadd.f32 %v568, %v575
        %v580 = vadd.f32 %v569, %v574
        %v581 = vadd.f32 %v570, %v575
        %v582 = vmax.f32 %v578, 0.0
        %v583 = vmax.f32 %v579, 0.0
        %v584 = vmax.f32 %v580, 0.0
        %v585 = vmax.f32 %v581, 0.0
        %v586 = vlaneseq
        %v587 = vshrl.u32 %v586, 7
        %v588 = vadd.s32 %v587, 8
        %vm589 = vcmp.lt.s32.totalorder %v587, 2
        %vm590 = vcmp.lt.s32.totalorder %v588, 2
        %v591 = vsel %vm589, %v582, 0.0
        %v592 = vsel %vm589, %v583, 0.0
        %v593 = vsel %vm590, %v584, 0.0
        %v594 = vsel %vm590, %v585, 0.0
        %v595 = vpack.c.bf16 %v593, %v591
        %v596 = vpack.c.bf16 %v594, %v592
        %v597 = vld [vmem:[#allocation6] sm:$0xff]
        %v598 = vld [vmem:[#allocation6 + $0x8] sm:$0xff]
        %v599 = vld [vmem:[#allocation6 + $0x10] sm:$0xff]
        %v600 = vld [vmem:[#allocation6 + $0x18] sm:$0xff]
        %v601 = vld [vmem:[#allocation6 + $0x20] sm:$0xff]
        %v602 = vld [vmem:[#allocation6 + $0x28] sm:$0xff]
        %v603 = vld [vmem:[#allocation6 + $0x30] sm:$0xff]
        %v604 = vld [vmem:[#allocation6 + $0x38] sm:$0xff]
        %v605 = vld [vmem:[#allocation6 + $0x40] sm:$0xff]
        %v606 = vld [vmem:[#allocation6 + $0x48] sm:$0xff]
        %v607 = vld [vmem:[#allocation6 + $0x50] sm:$0xff]
        %v608 = vld [vmem:[#allocation6 + $0x58] sm:$0xff]
        %v609 = vld [vmem:[#allocation6 + $0x60] sm:$0xff]
        %v610 = vld [vmem:[#allocation6 + $0x68] sm:$0xff]
        %v611 = vld [vmem:[#allocation6 + $0x70] sm:$0xff]
        %v612 = vld [vmem:[#allocation6 + $0x78] sm:$0xff]
        %v613 = vld [vmem:[#allocation6 + $0x80] sm:$0xff]
        %v614 = vld [vmem:[#allocation6 + $0x88] sm:$0xff]
        %v615 = vld [vmem:[#allocation6 + $0x90] sm:$0xff]
        %v616 = vld [vmem:[#allocation6 + $0x98] sm:$0xff]
        %v617 = vld [vmem:[#allocation6 + $0xa0] sm:$0xff]
        %v618 = vld [vmem:[#allocation6 + $0xa8] sm:$0xff]
        %v619 = vld [vmem:[#allocation6 + $0xb0] sm:$0xff]
        %v620 = vld [vmem:[#allocation6 + $0xb8] sm:$0xff]
        %v621 = vld [vmem:[#allocation6 + $0xc0] sm:$0xff]
        %v622 = vld [vmem:[#allocation6 + $0xc8] sm:$0xff]
        %v623 = vld [vmem:[#allocation6 + $0xd0] sm:$0xff]
        %v624 = vld [vmem:[#allocation6 + $0xd8] sm:$0xff]
        %v625 = vld [vmem:[#allocation6 + $0xe0] sm:$0xff]
        %v626 = vld [vmem:[#allocation6 + $0xe8] sm:$0xff]
        %v627 = vld [vmem:[#allocation6 + $0xf0] sm:$0xff]
        %v628 = vld [vmem:[#allocation6 + $0xf8] sm:$0xff]
        %v629 = vld [vmem:[#allocation6 + $0x100] sm:$0xff]
        %v630 = vld [vmem:[#allocation6 + $0x108] sm:$0xff]
        %v631 = vld [vmem:[#allocation6 + $0x110] sm:$0xff]
        %v632 = vld [vmem:[#allocation6 + $0x118] sm:$0xff]
        %v633 = vld [vmem:[#allocation6 + $0x120] sm:$0xff]
        %v634 = vld [vmem:[#allocation6 + $0x128] sm:$0xff]
        %v635 = vld [vmem:[#allocation6 + $0x130] sm:$0xff]
        %v636 = vld [vmem:[#allocation6 + $0x138] sm:$0xff]
        %v637 = vld [vmem:[#allocation6 + $0x140] sm:$0xff]
        %v638 = vld [vmem:[#allocation6 + $0x148] sm:$0xff]
        %v639 = vld [vmem:[#allocation6 + $0x150] sm:$0xff]
        %v640 = vld [vmem:[#allocation6 + $0x158] sm:$0xff]
        %v641 = vld [vmem:[#allocation6 + $0x160] sm:$0xff]
        %v642 = vld [vmem:[#allocation6 + $0x168] sm:$0xff]
        %v643 = vld [vmem:[#allocation6 + $0x170] sm:$0xff]
        %v644 = vld [vmem:[#allocation6 + $0x178] sm:$0xff]
        %v645 = vld [vmem:[#allocation6 + $0x180] sm:$0xff]
        %v646 = vld [vmem:[#allocation6 + $0x188] sm:$0xff]
        %v647 = vld [vmem:[#allocation6 + $0x190] sm:$0xff]
        %v648 = vld [vmem:[#allocation6 + $0x198] sm:$0xff]
        %v649 = vld [vmem:[#allocation6 + $0x1a0] sm:$0xff]
        %v650 = vld [vmem:[#allocation6 + $0x1a8] sm:$0xff]
        %v651 = vld [vmem:[#allocation6 + $0x1b0] sm:$0xff]
        %v652 = vld [vmem:[#allocation6 + $0x1b8] sm:$0xff]
        %v653 = vld [vmem:[#allocation6 + $0x1c0] sm:$0xff]
        %v654 = vld [vmem:[#allocation6 + $0x1c8] sm:$0xff]
        %v655 = vld [vmem:[#allocation6 + $0x1d0] sm:$0xff]
        %v656 = vld [vmem:[#allocation6 + $0x1d8] sm:$0xff]
        %v657 = vld [vmem:[#allocation6 + $0x1e0] sm:$0xff]
        %v658 = vld [vmem:[#allocation6 + $0x1e8] sm:$0xff]
        %v659 = vld [vmem:[#allocation6 + $0x1f0] sm:$0xff]
        %v660 = vld [vmem:[#allocation6 + $0x1f8] sm:$0xff]
        %v661 = vld [vmem:[#allocation6 + $0x200] sm:$0xff]
        %v662 = vld [vmem:[#allocation6 + $0x208] sm:$0xff]
        %v663 = vld [vmem:[#allocation6 + $0x210] sm:$0xff]
        %v664 = vld [vmem:[#allocation6 + $0x218] sm:$0xff]
        %v665 = vld [vmem:[#allocation6 + $0x220] sm:$0xff]
        %v666 = vld [vmem:[#allocation6 + $0x228] sm:$0xff]
        %v667 = vld [vmem:[#allocation6 + $0x230] sm:$0xff]
        %v668 = vld [vmem:[#allocation6 + $0x238] sm:$0xff]
        %v669 = vld [vmem:[#allocation6 + $0x240] sm:$0xff]
        %v670 = vld [vmem:[#allocation6 + $0x248] sm:$0xff]
        %v671 = vld [vmem:[#allocation6 + $0x250] sm:$0xff]
        %v672 = vld [vmem:[#allocation6 + $0x258] sm:$0xff]
        %v673 = vld [vmem:[#allocation6 + $0x260] sm:$0xff]
        %v674 = vld [vmem:[#allocation6 + $0x268] sm:$0xff]
        %v675 = vld [vmem:[#allocation6 + $0x270] sm:$0xff]
        %v676 = vld [vmem:[#allocation6 + $0x278] sm:$0xff]
        %v677 = vld [vmem:[#allocation6 + $0x280] sm:$0xff]
        %v678 = vld [vmem:[#allocation6 + $0x288] sm:$0xff]
        %v679 = vld [vmem:[#allocation6 + $0x290] sm:$0xff]
        %v680 = vld [vmem:[#allocation6 + $0x298] sm:$0xff]
        %v681 = vld [vmem:[#allocation6 + $0x2a0] sm:$0xff]
        %v682 = vld [vmem:[#allocation6 + $0x2a8] sm:$0xff]
        %v683 = vld [vmem:[#allocation6 + $0x2b0] sm:$0xff]
        %v684 = vld [vmem:[#allocation6 + $0x2b8] sm:$0xff]
        %v685 = vld [vmem:[#allocation6 + $0x2c0] sm:$0xff]
        %v686 = vld [vmem:[#allocation6 + $0x2c8] sm:$0xff]
        %v687 = vld [vmem:[#allocation6 + $0x2d0] sm:$0xff]
        %v688 = vld [vmem:[#allocation6 + $0x2d8] sm:$0xff]
        %v689 = vld [vmem:[#allocation6 + $0x2e0] sm:$0xff]
        %v690 = vld [vmem:[#allocation6 + $0x2e8] sm:$0xff]
        %v691 = vld [vmem:[#allocation6 + $0x2f0] sm:$0xff]
        %v692 = vld [vmem:[#allocation6 + $0x2f8] sm:$0xff]
        %v693 = vld [vmem:[#allocation6 + $0x300] sm:$0xff]
        %v694 = vld [vmem:[#allocation6 + $0x308] sm:$0xff]
        %v695 = vld [vmem:[#allocation6 + $0x310] sm:$0xff]
        %v696 = vld [vmem:[#allocation6 + $0x318] sm:$0xff]
        %v697 = vld [vmem:[#allocation6 + $0x320] sm:$0xff]
        %v698 = vld [vmem:[#allocation6 + $0x328] sm:$0xff]
        %v699 = vld [vmem:[#allocation6 + $0x330] sm:$0xff]
        %v700 = vld [vmem:[#allocation6 + $0x338] sm:$0xff]
        %v701 = vld [vmem:[#allocation6 + $0x340] sm:$0xff]
        %v702 = vld [vmem:[#allocation6 + $0x348] sm:$0xff]
        %v703 = vld [vmem:[#allocation6 + $0x350] sm:$0xff]
        %v704 = vld [vmem:[#allocation6 + $0x358] sm:$0xff]
        %v705 = vld [vmem:[#allocation6 + $0x360] sm:$0xff]
        %v706 = vld [vmem:[#allocation6 + $0x368] sm:$0xff]
        %v707 = vld [vmem:[#allocation6 + $0x370] sm:$0xff]
        %v708 = vld [vmem:[#allocation6 + $0x378] sm:$0xff]
        %v709 = vld [vmem:[#allocation6 + $0x380] sm:$0xff]
        %v710 = vld [vmem:[#allocation6 + $0x388] sm:$0xff]
        %v711 = vld [vmem:[#allocation6 + $0x390] sm:$0xff]
        %v712 = vld [vmem:[#allocation6 + $0x398] sm:$0xff]
        %v713 = vld [vmem:[#allocation6 + $0x3a0] sm:$0xff]
        %v714 = vld [vmem:[#allocation6 + $0x3a8] sm:$0xff]
        %v715 = vld [vmem:[#allocation6 + $0x3b0] sm:$0xff]
        %v716 = vld [vmem:[#allocation6 + $0x3b8] sm:$0xff]
        %v717 = vld [vmem:[#allocation6 + $0x3c0] sm:$0xff]
        %v718 = vld [vmem:[#allocation6 + $0x3c8] sm:$0xff]
        %v719 = vld [vmem:[#allocation6 + $0x3d0] sm:$0xff]
        %v720 = vld [vmem:[#allocation6 + $0x3d8] sm:$0xff]
        %v721 = vld [vmem:[#allocation6 + $0x3e0] sm:$0xff]
        %v722 = vld [vmem:[#allocation6 + $0x3e8] sm:$0xff]
        %v723 = vld [vmem:[#allocation6 + $0x3f0] sm:$0xff]
        %v724 = vld [vmem:[#allocation6 + $0x3f8] sm:$0xff]
        %v853 = vunpack.c.l.b16 %v597
        %v854 = vunpack.c.h.b16 %v597
        %v855 = vunpack.c.l.b16 %v598
        %v856 = vunpack.c.h.b16 %v598
        %v857 = vunpack.c.l.b16 %v599
        %v858 = vunpack.c.h.b16 %v599
        %v859 = vunpack.c.l.b16 %v600
        %v860 = vunpack.c.h.b16 %v600
        %v861 = vunpack.c.l.b16 %v601
        %v862 = vunpack.c.h.b16 %v601
        %v863 = vunpack.c.l.b16 %v602
        %v864 = vunpack.c.h.b16 %v602
        %v865 = vunpack.c.l.b16 %v603
        %v866 = vunpack.c.h.b16 %v603
        %v867 = vunpack.c.l.b16 %v604
        %v868 = vunpack.c.h.b16 %v604
        %v869 = vunpack.c.l.b16 %v605
        %v870 = vunpack.c.h.b16 %v605
        %v871 = vunpack.c.l.b16 %v606
        %v872 = vunpack.c.h.b16 %v606
        %v873 = vunpack.c.l.b16 %v607
        %v874 = vunpack.c.h.b16 %v607
        %v875 = vunpack.c.l.b16 %v608
        %v876 = vunpack.c.h.b16 %v608
        %v877 = vunpack.c.l.b16 %v609
        %v878 = vunpack.c.h.b16 %v609
        %v879 = vunpack.c.l.b16 %v610
        %v880 = vunpack.c.h.b16 %v610
        %v881 = vunpack.c.l.b16 %v611
        %v882 = vunpack.c.h.b16 %v611
        %v883 = vunpack.c.l.b16 %v612
        %v884 = vunpack.c.h.b16 %v612
        %v885 = vunpack.c.l.b16 %v613
        %v886 = vunpack.c.h.b16 %v613
        %v887 = vunpack.c.l.b16 %v614
        %v888 = vunpack.c.h.b16 %v614
        %v889 = vunpack.c.l.b16 %v615
        %v890 = vunpack.c.h.b16 %v615
        %v891 = vunpack.c.l.b16 %v616
        %v892 = vunpack.c.h.b16 %v616
        %v893 = vunpack.c.l.b16 %v617
        %v894 = vunpack.c.h.b16 %v617
        %v895 = vunpack.c.l.b16 %v618
        %v896 = vunpack.c.h.b16 %v618
        %v897 = vunpack.c.l.b16 %v619
        %v898 = vunpack.c.h.b16 %v619
        %v899 = vunpack.c.l.b16 %v620
        %v900 = vunpack.c.h.b16 %v620
        %v901 = vunpack.c.l.b16 %v621
        %v902 = vunpack.c.h.b16 %v621
        %v903 = vunpack.c.l.b16 %v622
        %v904 = vunpack.c.h.b16 %v622
        %v905 = vunpack.c.l.b16 %v623
        %v906 = vunpack.c.h.b16 %v623
        %v907 = vunpack.c.l.b16 %v624
        %v908 = vunpack.c.h.b16 %v624
        %v909 = vunpack.c.l.b16 %v625
        %v910 = vunpack.c.h.b16 %v625
        %v911 = vunpack.c.l.b16 %v626
        %v912 = vunpack.c.h.b16 %v626
        %v913 = vunpack.c.l.b16 %v627
        %v914 = vunpack.c.h.b16 %v627
        %v915 = vunpack.c.l.b16 %v628
        %v916 = vunpack.c.h.b16 %v628
        %v917 = vunpack.c.l.b16 %v629
        %v918 = vunpack.c.h.b16 %v629
        %v919 = vunpack.c.l.b16 %v630
        %v920 = vunpack.c.h.b16 %v630
        %v921 = vunpack.c.l.b16 %v631
        %v922 = vunpack.c.h.b16 %v631
        %v923 = vunpack.c.l.b16 %v632
        %v924 = vunpack.c.h.b16 %v632
        %v925 = vunpack.c.l.b16 %v633
        %v926 = vunpack.c.h.b16 %v633
        %v927 = vunpack.c.l.b16 %v634
        %v928 = vunpack.c.h.b16 %v634
        %v929 = vunpack.c.l.b16 %v635
        %v930 = vunpack.c.h.b16 %v635
        %v931 = vunpack.c.l.b16 %v636
        %v932 = vunpack.c.h.b16 %v636
        %v933 = vunpack.c.l.b16 %v637
        %v934 = vunpack.c.h.b16 %v637
        %v935 = vunpack.c.l.b16 %v638
        %v936 = vunpack.c.h.b16 %v638
        %v937 = vunpack.c.l.b16 %v639
        %v938 = vunpack.c.h.b16 %v639
        %v939 = vunpack.c.l.b16 %v640
        %v940 = vunpack.c.h.b16 %v640
        %v941 = vunpack.c.l.b16 %v641
        %v942 = vunpack.c.h.b16 %v641
        %v943 = vunpack.c.l.b16 %v642
        %v944 = vunpack.c.h.b16 %v642
        %v945 = vunpack.c.l.b16 %v643
        %v946 = vunpack.c.h.b16 %v643
        %v947 = vunpack.c.l.b16 %v644
        %v948 = vunpack.c.h.b16 %v644
        %v949 = vunpack.c.l.b16 %v645
        %v950 = vunpack.c.h.b16 %v645
        %v951 = vunpack.c.l.b16 %v646
        %v952 = vunpack.c.h.b16 %v646
        %v953 = vunpack.c.l.b16 %v647
        %v954 = vunpack.c.h.b16 %v647
        %v955 = vunpack.c.l.b16 %v648
        %v956 = vunpack.c.h.b16 %v648
        %v957 = vunpack.c.l.b16 %v649
        %v958 = vunpack.c.h.b16 %v649
        %v959 = vunpack.c.l.b16 %v650
        %v960 = vunpack.c.h.b16 %v650
        %v961 = vunpack.c.l.b16 %v651
        %v962 = vunpack.c.h.b16 %v651
        %v963 = vunpack.c.l.b16 %v652
        %v964 = vunpack.c.h.b16 %v652
        %v965 = vunpack.c.l.b16 %v653
        %v966 = vunpack.c.h.b16 %v653
        %v967 = vunpack.c.l.b16 %v654
        %v968 = vunpack.c.h.b16 %v654
        %v969 = vunpack.c.l.b16 %v655
        %v970 = vunpack.c.h.b16 %v655
        %v971 = vunpack.c.l.b16 %v656
        %v972 = vunpack.c.h.b16 %v656
        %v973 = vunpack.c.l.b16 %v657
        %v974 = vunpack.c.h.b16 %v657
        %v975 = vunpack.c.l.b16 %v658
        %v976 = vunpack.c.h.b16 %v658
        %v977 = vunpack.c.l.b16 %v659
        %v978 = vunpack.c.h.b16 %v659
        %v979 = vunpack.c.l.b16 %v660
        %v980 = vunpack.c.h.b16 %v660
        %v981 = vunpack.c.l.b16 %v661
        %v982 = vunpack.c.h.b16 %v661
        %v983 = vunpack.c.l.b16 %v662
        %v984 = vunpack.c.h.b16 %v662
        %v985 = vunpack.c.l.b16 %v663
        %v986 = vunpack.c.h.b16 %v663
        %v987 = vunpack.c.l.b16 %v664
        %v988 = vunpack.c.h.b16 %v664
        %v989 = vunpack.c.l.b16 %v665
        %v990 = vunpack.c.h.b16 %v665
        %v991 = vunpack.c.l.b16 %v666
        %v992 = vunpack.c.h.b16 %v666
        %v993 = vunpack.c.l.b16 %v667
        %v994 = vunpack.c.h.b16 %v667
        %v995 = vunpack.c.l.b16 %v668
        %v996 = vunpack.c.h.b16 %v668
        %v997 = vunpack.c.l.b16 %v669
        %v998 = vunpack.c.h.b16 %v669
        %v999 = vunpack.c.l.b16 %v670
        %v1000 = vunpack.c.h.b16 %v670
        %v1001 = vunpack.c.l.b16 %v671
        %v1002 = vunpack.c.h.b16 %v671
        %v1003 = vunpack.c.l.b16 %v672
        %v1004 = vunpack.c.h.b16 %v672
        %v1005 = vunpack.c.l.b16 %v673
        %v1006 = vunpack.c.h.b16 %v673
        %v1007 = vunpack.c.l.b16 %v674
        %v1008 = vunpack.c.h.b16 %v674
        %v1009 = vunpack.c.l.b16 %v675
        %v1010 = vunpack.c.h.b16 %v675
        %v1011 = vunpack.c.l.b16 %v676
        %v1012 = vunpack.c.h.b16 %v676
        %v1013 = vunpack.c.l.b16 %v677
        %v1014 = vunpack.c.h.b16 %v677
        %v1015 = vunpack.c.l.b16 %v678
        %v1016 = vunpack.c.h.b16 %v678
        %v1017 = vunpack.c.l.b16 %v679
        %v1018 = vunpack.c.h.b16 %v679
        %v1019 = vunpack.c.l.b16 %v680
        %v1020 = vunpack.c.h.b16 %v680
        %v1021 = vunpack.c.l.b16 %v681
        %v1022 = vunpack.c.h.b16 %v681
        %v1023 = vunpack.c.l.b16 %v682
        %v1024 = vunpack.c.h.b16 %v682
        %v1025 = vunpack.c.l.b16 %v683
        %v1026 = vunpack.c.h.b16 %v683
        %v1027 = vunpack.c.l.b16 %v684
        %v1028 = vunpack.c.h.b16 %v684
        %v1029 = vunpack.c.l.b16 %v685
        %v1030 = vunpack.c.h.b16 %v685
        %v1031 = vunpack.c.l.b16 %v686
        %v1032 = vunpack.c.h.b16 %v686
        %v1033 = vunpack.c.l.b16 %v687
        %v1034 = vunpack.c.h.b16 %v687
        %v1035 = vunpack.c.l.b16 %v688
        %v1036 = vunpack.c.h.b16 %v688
        %v1037 = vunpack.c.l.b16 %v689
        %v1038 = vunpack.c.h.b16 %v689
        %v1039 = vunpack.c.l.b16 %v690
        %v1040 = vunpack.c.h.b16 %v690
        %v1041 = vunpack.c.l.b16 %v691
        %v1042 = vunpack.c.h.b16 %v691
        %v1043 = vunpack.c.l.b16 %v692
        %v1044 = vunpack.c.h.b16 %v692
        %v1045 = vunpack.c.l.b16 %v693
        %v1046 = vunpack.c.h.b16 %v693
        %v1047 = vunpack.c.l.b16 %v694
        %v1048 = vunpack.c.h.b16 %v694
        %v1049 = vunpack.c.l.b16 %v695
        %v1050 = vunpack.c.h.b16 %v695
        %v1051 = vunpack.c.l.b16 %v696
        %v1052 = vunpack.c.h.b16 %v696
        %v1053 = vunpack.c.l.b16 %v697
        %v1054 = vunpack.c.h.b16 %v697
        %v1055 = vunpack.c.l.b16 %v698
        %v1056 = vunpack.c.h.b16 %v698
        %v1057 = vunpack.c.l.b16 %v699
        %v1058 = vunpack.c.h.b16 %v699
        %v1059 = vunpack.c.l.b16 %v700
        %v1060 = vunpack.c.h.b16 %v700
        %v1061 = vunpack.c.l.b16 %v701
        %v1062 = vunpack.c.h.b16 %v701
        %v1063 = vunpack.c.l.b16 %v702
        %v1064 = vunpack.c.h.b16 %v702
        %v1065 = vunpack.c.l.b16 %v703
        %v1066 = vunpack.c.h.b16 %v703
        %v1067 = vunpack.c.l.b16 %v704
        %v1068 = vunpack.c.h.b16 %v704
        %v1069 = vunpack.c.l.b16 %v705
        %v1070 = vunpack.c.h.b16 %v705
        %v1071 = vunpack.c.l.b16 %v706
        %v1072 = vunpack.c.h.b16 %v706
        %v1073 = vunpack.c.l.b16 %v707
        %v1074 = vunpack.c.h.b16 %v707
        %v1075 = vunpack.c.l.b16 %v708
        %v1076 = vunpack.c.h.b16 %v708
        %v1077 = vunpack.c.l.b16 %v709
        %v1078 = vunpack.c.h.b16 %v709
        %v1079 = vunpack.c.l.b16 %v710
        %v1080 = vunpack.c.h.b16 %v710
        %v1081 = vunpack.c.l.b16 %v711
        %v1082 = vunpack.c.h.b16 %v711
        %v1083 = vunpack.c.l.b16 %v712
        %v1084 = vunpack.c.h.b16 %v712
        %v1085 = vunpack.c.l.b16 %v713
        %v1086 = vunpack.c.h.b16 %v713
        %v1087 = vunpack.c.l.b16 %v714
        %v1088 = vunpack.c.h.b16 %v714
        %v1089 = vunpack.c.l.b16 %v715
        %v1090 = vunpack.c.h.b16 %v715
        %v1091 = vunpack.c.l.b16 %v716
        %v1092 = vunpack.c.h.b16 %v716
        %v1093 = vunpack.c.l.b16 %v717
        %v1094 = vunpack.c.h.b16 %v717
        %v1095 = vunpack.c.l.b16 %v718
        %v1096 = vunpack.c.h.b16 %v718
        %v1097 = vunpack.c.l.b16 %v719
        %v1098 = vunpack.c.h.b16 %v719
        %v1099 = vunpack.c.l.b16 %v720
        %v1100 = vunpack.c.h.b16 %v720
        %v1101 = vunpack.c.l.b16 %v721
        %v1102 = vunpack.c.h.b16 %v721
        %v1103 = vunpack.c.l.b16 %v722
        %v1104 = vunpack.c.h.b16 %v722
        %v1105 = vunpack.c.l.b16 %v723
        %v1106 = vunpack.c.h.b16 %v723
        %v1107 = vunpack.c.l.b16 %v724
        %v1108 = vunpack.c.h.b16 %v724
        %v1109 = vpack.c.b16 %v861, %v853
        %v1110 = vpack.c.b16 %v862, %v854
        %v1111 = vpack.c.b16 %v863, %v855
        %v1112 = vpack.c.b16 %v864, %v856
        %v1113 = vpack.c.b16 %v865, %v857
        %v1114 = vpack.c.b16 %v866, %v858
        %v1115 = vpack.c.b16 %v867, %v859
        %v1116 = vpack.c.b16 %v868, %v860
        %v1117 = vpack.c.b16 %v877, %v869
        %v1118 = vpack.c.b16 %v878, %v870
        %v1119 = vpack.c.b16 %v879, %v871
        %v1120 = vpack.c.b16 %v880, %v872
        %v1121 = vpack.c.b16 %v881, %v873
        %v1122 = vpack.c.b16 %v882, %v874
        %v1123 = vpack.c.b16 %v883, %v875
        %v1124 = vpack.c.b16 %v884, %v876
        %v1125 = vpack.c.b16 %v893, %v885
        %v1126 = vpack.c.b16 %v894, %v886
        %v1127 = vpack.c.b16 %v895, %v887
        %v1128 = vpack.c.b16 %v896, %v888
        %v1129 = vpack.c.b16 %v897, %v889
        %v1130 = vpack.c.b16 %v898, %v890
        %v1131 = vpack.c.b16 %v899, %v891
        %v1132 = vpack.c.b16 %v900, %v892
        %v1133 = vpack.c.b16 %v909, %v901
        %v1134 = vpack.c.b16 %v910, %v902
        %v1135 = vpack.c.b16 %v911, %v903
        %v1136 = vpack.c.b16 %v912, %v904
        %v1137 = vpack.c.b16 %v913, %v905
        %v1138 = vpack.c.b16 %v914, %v906
        %v1139 = vpack.c.b16 %v915, %v907
        %v1140 = vpack.c.b16 %v916, %v908
        %v1141 = vpack.c.b16 %v925, %v917
        %v1142 = vpack.c.b16 %v926, %v918
        %v1143 = vpack.c.b16 %v927, %v919
        %v1144 = vpack.c.b16 %v928, %v920
        %v1145 = vpack.c.b16 %v929, %v921
        %v1146 = vpack.c.b16 %v930, %v922
        %v1147 = vpack.c.b16 %v931, %v923
        %v1148 = vpack.c.b16 %v932, %v924
        %v1149 = vpack.c.b16 %v941, %v933
        %v1150 = vpack.c.b16 %v942, %v934
        %v1151 = vpack.c.b16 %v943, %v935
        %v1152 = vpack.c.b16 %v944, %v936
        %v1153 = vpack.c.b16 %v945, %v937
        %v1154 = vpack.c.b16 %v946, %v938
        %v1155 = vpack.c.b16 %v947, %v939
        %v1156 = vpack.c.b16 %v948, %v940
        %v1157 = vpack.c.b16 %v957, %v949
        %v1158 = vpack.c.b16 %v958, %v950
        %v1159 = vpack.c.b16 %v959, %v951
        %v1160 = vpack.c.b16 %v960, %v952
        %v1161 = vpack.c.b16 %v961, %v953
        %v1162 = vpack.c.b16 %v962, %v954
        %v1163 = vpack.c.b16 %v963, %v955
        %v1164 = vpack.c.b16 %v964, %v956
        %v1165 = vpack.c.b16 %v973, %v965
        %v1166 = vpack.c.b16 %v974, %v966
        %v1167 = vpack.c.b16 %v975, %v967
        %v1168 = vpack.c.b16 %v976, %v968
        %v1169 = vpack.c.b16 %v977, %v969
        %v1170 = vpack.c.b16 %v978, %v970
        %v1171 = vpack.c.b16 %v979, %v971
        %v1172 = vpack.c.b16 %v980, %v972
        %v1173 = vpack.c.b16 %v989, %v981
        %v1174 = vpack.c.b16 %v990, %v982
        %v1175 = vpack.c.b16 %v991, %v983
        %v1176 = vpack.c.b16 %v992, %v984
        %v1177 = vpack.c.b16 %v993, %v985
        %v1178 = vpack.c.b16 %v994, %v986
        %v1179 = vpack.c.b16 %v995, %v987
        %v1180 = vpack.c.b16 %v996, %v988
        %v1181 = vpack.c.b16 %v1005, %v997
        %v1182 = vpack.c.b16 %v1006, %v998
        %v1183 = vpack.c.b16 %v1007, %v999
        %v1184 = vpack.c.b16 %v1008, %v1000
        %v1185 = vpack.c.b16 %v1009, %v1001
        %v1186 = vpack.c.b16 %v1010, %v1002
        %v1187 = vpack.c.b16 %v1011, %v1003
        %v1188 = vpack.c.b16 %v1012, %v1004
        %v1189 = vpack.c.b16 %v1021, %v1013
        %v1190 = vpack.c.b16 %v1022, %v1014
        %v1191 = vpack.c.b16 %v1023, %v1015
        %v1192 = vpack.c.b16 %v1024, %v1016
        %v1193 = vpack.c.b16 %v1025, %v1017
        %v1194 = vpack.c.b16 %v1026, %v1018
        %v1195 = vpack.c.b16 %v1027, %v1019
        %v1196 = vpack.c.b16 %v1028, %v1020
        %v1197 = vpack.c.b16 %v1037, %v1029
        %v1198 = vpack.c.b16 %v1038, %v1030
        %v1199 = vpack.c.b16 %v1039, %v1031
        %v1200 = vpack.c.b16 %v1040, %v1032
        %v1201 = vpack.c.b16 %v1041, %v1033
        %v1202 = vpack.c.b16 %v1042, %v1034
        %v1203 = vpack.c.b16 %v1043, %v1035
        %v1204 = vpack.c.b16 %v1044, %v1036
        %v1205 = vpack.c.b16 %v1053, %v1045
        %v1206 = vpack.c.b16 %v1054, %v1046
        %v1207 = vpack.c.b16 %v1055, %v1047
        %v1208 = vpack.c.b16 %v1056, %v1048
        %v1209 = vpack.c.b16 %v1057, %v1049
        %v1210 = vpack.c.b16 %v1058, %v1050
        %v1211 = vpack.c.b16 %v1059, %v1051
        %v1212 = vpack.c.b16 %v1060, %v1052
        %v1213 = vpack.c.b16 %v1069, %v1061
        %v1214 = vpack.c.b16 %v1070, %v1062
        %v1215 = vpack.c.b16 %v1071, %v1063
        %v1216 = vpack.c.b16 %v1072, %v1064
        %v1217 = vpack.c.b16 %v1073, %v1065
        %v1218 = vpack.c.b16 %v1074, %v1066
        %v1219 = vpack.c.b16 %v1075, %v1067
        %v1220 = vpack.c.b16 %v1076, %v1068
        %v1221 = vpack.c.b16 %v1085, %v1077
        %v1222 = vpack.c.b16 %v1086, %v1078
        %v1223 = vpack.c.b16 %v1087, %v1079
        %v1224 = vpack.c.b16 %v1088, %v1080
        %v1225 = vpack.c.b16 %v1089, %v1081
        %v1226 = vpack.c.b16 %v1090, %v1082
        %v1227 = vpack.c.b16 %v1091, %v1083
        %v1228 = vpack.c.b16 %v1092, %v1084
        %v1229 = vpack.c.b16 %v1101, %v1093
        %v1230 = vpack.c.b16 %v1102, %v1094
        %v1231 = vpack.c.b16 %v1103, %v1095
        %v1232 = vpack.c.b16 %v1104, %v1096
        %v1233 = vpack.c.b16 %v1105, %v1097
        %v1234 = vpack.c.b16 %v1106, %v1098
        %v1235 = vpack.c.b16 %v1107, %v1099
        %v1236 = vpack.c.b16 %v1108, %v1100
        %1365 = vmatpush.bf16.msra.mxu0 %v1165
        %1366 = vmatpush.bf16.msra.mxu0 %v1157
        %1367 = vmatpush.bf16.msra.mxu0 %v1149
        %1368 = vmatpush.bf16.msra.mxu0 %v1141
        %1369 = vmatpush.bf16.msra.mxu0 %v1133
        %1370 = vmatpush.bf16.msra.mxu0 %v1125
        %1371 = vmatpush.bf16.msra.mxu0 %v1117
        %1372 = vmatpush.bf16.msra.mxu0 %v1109
        %1373 = vmatmul.bf16.gmra.mxu0 %v595
        %v1374 = vpop.f32.mrf.mxu0
        %v1375 = vadd.f32 0.0, %v1374
        %v1376 = vpop.f32.mrf.mxu0
        %v1377 = vadd.f32 0.0, %v1376
        %1378 = vdwg.mxu0
        %1379 = vmatpush.bf16.msra.mxu0 %v1229
        %1380 = vmatpush.bf16.msra.mxu0 %v1221
        %1381 = vmatpush.bf16.msra.mxu0 %v1213
        %1382 = vmatpush.bf16.msra.mxu0 %v1205
        %1383 = vmatpush.bf16.msra.mxu0 %v1197
        %1384 = vmatpush.bf16.msra.mxu0 %v1189
        %1385 = vmatpush.bf16.msra.mxu0 %v1181
        %1386 = vmatpush.bf16.msra.mxu0 %v1173
        %1387 = vmatmul.bf16.gmra.mxu0 %v596
        %v1388 = vpop.f32.mrf.mxu0
        %v1389 = vadd.f32 %v1375, %v1388
        %v1390 = vpop.f32.mrf.mxu0
        %v1391 = vadd.f32 %v1377, %v1390
        %1392 = vdwg.mxu0
        %1393 = vmatpush.bf16.msra.mxu0 %v1166
        %1394 = vmatpush.bf16.msra.mxu0 %v1158
        %1395 = vmatpush.bf16.msra.mxu0 %v1150
        %1396 = vmatpush.bf16.msra.mxu0 %v1142
        %1397 = vmatpush.bf16.msra.mxu0 %v1134
        %1398 = vmatpush.bf16.msra.mxu0 %v1126
        %1399 = vmatpush.bf16.msra.mxu0 %v1118
        %1400 = vmatpush.bf16.msra.mxu0 %v1110
        %1401 = vmatmul.bf16.gmra.mxu0 %v595
        %v1402 = vpop.f32.mrf.mxu0
        %v1403 = vadd.f32 0.0, %v1402
        %v1404 = vpop.f32.mrf.mxu0
        %v1405 = vadd.f32 0.0, %v1404
        %1406 = vdwg.mxu0
        %1407 = vmatpush.bf16.msra.mxu0 %v1230
        %1408 = vmatpush.bf16.msra.mxu0 %v1222
        %1409 = vmatpush.bf16.msra.mxu0 %v1214
        %1410 = vmatpush.bf16.msra.mxu0 %v1206
        %1411 = vmatpush.bf16.msra.mxu0 %v1198
        %1412 = vmatpush.bf16.msra.mxu0 %v1190
        %1413 = vmatpush.bf16.msra.mxu0 %v1182
        %1414 = vmatpush.bf16.msra.mxu0 %v1174
        %1415 = vmatmul.bf16.gmra.mxu0 %v596
        %v1416 = vpop.f32.mrf.mxu0
        %v1417 = vadd.f32 %v1403, %v1416
        %v1418 = vpop.f32.mrf.mxu0
        %v1419 = vadd.f32 %v1405, %v1418
        %1420 = vdwg.mxu0
        %1421 = vmatpush.bf16.msra.mxu0 %v1167
        %1422 = vmatpush.bf16.msra.mxu0 %v1159
        %1423 = vmatpush.bf16.msra.mxu0 %v1151
        %1424 = vmatpush.bf16.msra.mxu0 %v1143
        %1425 = vmatpush.bf16.msra.mxu0 %v1135
        %1426 = vmatpush.bf16.msra.mxu0 %v1127
        %1427 = vmatpush.bf16.msra.mxu0 %v1119
        %1428 = vmatpush.bf16.msra.mxu0 %v1111
        %1429 = vmatmul.bf16.gmra.mxu0 %v595
        %v1430 = vpop.f32.mrf.mxu0
        %v1431 = vadd.f32 0.0, %v1430
        %v1432 = vpop.f32.mrf.mxu0
        %v1433 = vadd.f32 0.0, %v1432
        %1434 = vdwg.mxu0
        %1435 = vmatpush.bf16.msra.mxu0 %v1231
        %1436 = vmatpush.bf16.msra.mxu0 %v1223
        %1437 = vmatpush.bf16.msra.mxu0 %v1215
        %1438 = vmatpush.bf16.msra.mxu0 %v1207
        %1439 = vmatpush.bf16.msra.mxu0 %v1199
        %1440 = vmatpush.bf16.msra.mxu0 %v1191
        %1441 = vmatpush.bf16.msra.mxu0 %v1183
        %1442 = vmatpush.bf16.msra.mxu0 %v1175
        %1443 = vmatmul.bf16.gmra.mxu0 %v596
        %v1444 = vpop.f32.mrf.mxu0
        %v1445 = vadd.f32 %v1431, %v1444
        %v1446 = vpop.f32.mrf.mxu0
        %v1447 = vadd.f32 %v1433, %v1446
        %1448 = vdwg.mxu0
        %1449 = vmatpush.bf16.msra.mxu0 %v1168
        %1450 = vmatpush.bf16.msra.mxu0 %v1160
        %1451 = vmatpush.bf16.msra.mxu0 %v1152
        %1452 = vmatpush.bf16.msra.mxu0 %v1144
        %1453 = vmatpush.bf16.msra.mxu0 %v1136
        %1454 = vmatpush.bf16.msra.mxu0 %v1128
        %1455 = vmatpush.bf16.msra.mxu0 %v1120
        %1456 = vmatpush.bf16.msra.mxu0 %v1112
        %1457 = vmatmul.bf16.gmra.mxu0 %v595
        %v1458 = vpop.f32.mrf.mxu0
        %v1459 = vadd.f32 0.0, %v1458
        %v1460 = vpop.f32.mrf.mxu0
        %v1461 = vadd.f32 0.0, %v1460
        %1462 = vdwg.mxu0
        %1463 = vmatpush.bf16.msra.mxu0 %v1232
        %1464 = vmatpush.bf16.msra.mxu0 %v1224
        %1465 = vmatpush.bf16.msra.mxu0 %v1216
        %1466 = vmatpush.bf16.msra.mxu0 %v1208
        %1467 = vmatpush.bf16.msra.mxu0 %v1200
        %1468 = vmatpush.bf16.msra.mxu0 %v1192
        %1469 = vmatpush.bf16.msra.mxu0 %v1184
        %1470 = vmatpush.bf16.msra.mxu0 %v1176
        %1471 = vmatmul.bf16.gmra.mxu0 %v596
        %v1472 = vpop.f32.mrf.mxu0
        %v1473 = vadd.f32 %v1459, %v1472
        %v1474 = vpop.f32.mrf.mxu0
        %v1475 = vadd.f32 %v1461, %v1474
        %1476 = vdwg.mxu0
        %1477 = vmatpush.bf16.msra.mxu0 %v1169
        %1478 = vmatpush.bf16.msra.mxu0 %v1161
        %1479 = vmatpush.bf16.msra.mxu0 %v1153
        %1480 = vmatpush.bf16.msra.mxu0 %v1145
        %1481 = vmatpush.bf16.msra.mxu0 %v1137
        %1482 = vmatpush.bf16.msra.mxu0 %v1129
        %1483 = vmatpush.bf16.msra.mxu0 %v1121
        %1484 = vmatpush.bf16.msra.mxu0 %v1113
        %1485 = vmatmul.bf16.gmra.mxu0 %v595
        %v1486 = vpop.f32.mrf.mxu0
        %v1487 = vadd.f32 0.0, %v1486
        %v1488 = vpop.f32.mrf.mxu0
        %v1489 = vadd.f32 0.0, %v1488
        %1490 = vdwg.mxu0
        %1491 = vmatpush.bf16.msra.mxu0 %v1233
        %1492 = vmatpush.bf16.msra.mxu0 %v1225
        %1493 = vmatpush.bf16.msra.mxu0 %v1217
        %1494 = vmatpush.bf16.msra.mxu0 %v1209
        %1495 = vmatpush.bf16.msra.mxu0 %v1201
        %1496 = vmatpush.bf16.msra.mxu0 %v1193
        %1497 = vmatpush.bf16.msra.mxu0 %v1185
        %1498 = vmatpush.bf16.msra.mxu0 %v1177
        %1499 = vmatmul.bf16.gmra.mxu0 %v596
        %v1500 = vpop.f32.mrf.mxu0
        %v1501 = vadd.f32 %v1487, %v1500
        %v1502 = vpop.f32.mrf.mxu0
        %v1503 = vadd.f32 %v1489, %v1502
        %1504 = vdwg.mxu0
        %1505 = vmatpush.bf16.msra.mxu0 %v1170
        %1506 = vmatpush.bf16.msra.mxu0 %v1162
        %1507 = vmatpush.bf16.msra.mxu0 %v1154
        %1508 = vmatpush.bf16.msra.mxu0 %v1146
        %1509 = vmatpush.bf16.msra.mxu0 %v1138
        %1510 = vmatpush.bf16.msra.mxu0 %v1130
        %1511 = vmatpush.bf16.msra.mxu0 %v1122
        %1512 = vmatpush.bf16.msra.mxu0 %v1114
        %1513 = vmatmul.bf16.gmra.mxu0 %v595
        %v1514 = vpop.f32.mrf.mxu0
        %v1515 = vadd.f32 0.0, %v1514
        %v1516 = vpop.f32.mrf.mxu0
        %v1517 = vadd.f32 0.0, %v1516
        %1518 = vdwg.mxu0
        %1519 = vmatpush.bf16.msra.mxu0 %v1234
        %1520 = vmatpush.bf16.msra.mxu0 %v1226
        %1521 = vmatpush.bf16.msra.mxu0 %v1218
        %1522 = vmatpush.bf16.msra.mxu0 %v1210
        %1523 = vmatpush.bf16.msra.mxu0 %v1202
        %1524 = vmatpush.bf16.msra.mxu0 %v1194
        %1525 = vmatpush.bf16.msra.mxu0 %v1186
        %1526 = vmatpush.bf16.msra.mxu0 %v1178
        %1527 = vmatmul.bf16.gmra.mxu0 %v596
        %v1528 = vpop.f32.mrf.mxu0
        %v1529 = vadd.f32 %v1515, %v1528
        %v1530 = vpop.f32.mrf.mxu0
        %v1531 = vadd.f32 %v1517, %v1530
        %1532 = vdwg.mxu0
        %1533 = vmatpush.bf16.msra.mxu0 %v1171
        %1534 = vmatpush.bf16.msra.mxu0 %v1163
        %1535 = vmatpush.bf16.msra.mxu0 %v1155
        %1536 = vmatpush.bf16.msra.mxu0 %v1147
        %1537 = vmatpush.bf16.msra.mxu0 %v1139
        %1538 = vmatpush.bf16.msra.mxu0 %v1131
        %1539 = vmatpush.bf16.msra.mxu0 %v1123
        %1540 = vmatpush.bf16.msra.mxu0 %v1115
        %1541 = vmatmul.bf16.gmra.mxu0 %v595
        %v1542 = vpop.f32.mrf.mxu0
        %v1543 = vadd.f32 0.0, %v1542
        %v1544 = vpop.f32.mrf.mxu0
        %v1545 = vadd.f32 0.0, %v1544
        %1546 = vdwg.mxu0
        %1547 = vmatpush.bf16.msra.mxu0 %v1235
        %1548 = vmatpush.bf16.msra.mxu0 %v1227
        %1549 = vmatpush.bf16.msra.mxu0 %v1219
        %1550 = vmatpush.bf16.msra.mxu0 %v1211
        %1551 = vmatpush.bf16.msra.mxu0 %v1203
        %1552 = vmatpush.bf16.msra.mxu0 %v1195
        %1553 = vmatpush.bf16.msra.mxu0 %v1187
        %1554 = vmatpush.bf16.msra.mxu0 %v1179
        %1555 = vmatmul.bf16.gmra.mxu0 %v596
        %v1556 = vpop.f32.mrf.mxu0
        %v1557 = vadd.f32 %v1543, %v1556
        %v1558 = vpop.f32.mrf.mxu0
        %v1559 = vadd.f32 %v1545, %v1558
        %1560 = vdwg.mxu0
        %1561 = vmatpush.bf16.msra.mxu0 %v1172
        %1562 = vmatpush.bf16.msra.mxu0 %v1164
        %1563 = vmatpush.bf16.msra.mxu0 %v1156
        %1564 = vmatpush.bf16.msra.mxu0 %v1148
        %1565 = vmatpush.bf16.msra.mxu0 %v1140
        %1566 = vmatpush.bf16.msra.mxu0 %v1132
        %1567 = vmatpush.bf16.msra.mxu0 %v1124
        %1568 = vmatpush.bf16.msra.mxu0 %v1116
        %1569 = vmatmul.bf16.gmra.mxu0 %v595
        %v1570 = vpop.f32.mrf.mxu0
        %v1571 = vadd.f32 0.0, %v1570
        %v1572 = vpop.f32.mrf.mxu0
        %v1573 = vadd.f32 0.0, %v1572
        %1574 = vdwg.mxu0
        %1575 = vmatpush.bf16.msra.mxu0 %v1236
        %1576 = vmatpush.bf16.msra.mxu0 %v1228
        %1577 = vmatpush.bf16.msra.mxu0 %v1220
        %1578 = vmatpush.bf16.msra.mxu0 %v1212
        %1579 = vmatpush.bf16.msra.mxu0 %v1204
        %1580 = vmatpush.bf16.msra.mxu0 %v1196
        %1581 = vmatpush.bf16.msra.mxu0 %v1188
        %1582 = vmatpush.bf16.msra.mxu0 %v1180
        %1583 = vmatmul.bf16.gmra.mxu0 %v596
        %v1584 = vpop.f32.mrf.mxu0
        %v1585 = vadd.f32 %v1571, %v1584
        %v1586 = vpop.f32.mrf.mxu0
        %v1587 = vadd.f32 %v1573, %v1586
        %1588 = vdwg.mxu0
        %v1589 = vadd.f32 %v1389, %v1391
        %v1590 = vrot.slane %v1589, 4
        %v1591 = vadd.f32 %v1589, %v1590
        %v1592 = vrot.slane %v1591, 2
        %v1593 = vadd.f32 %v1591, %v1592
        %v1594 = vrot.slane %v1593, 1
        %v1595 = vadd.f32 %v1593, %v1594
        %v1596 = vadd.f32 %v1417, %v1419
        %v1597 = vrot.slane %v1596, 4
        %v1598 = vadd.f32 %v1596, %v1597
        %v1599 = vrot.slane %v1598, 2
        %v1600 = vadd.f32 %v1598, %v1599
        %v1601 = vrot.slane %v1600, 1
        %v1602 = vadd.f32 %v1600, %v1601
        %v1603 = vadd.f32 %v1445, %v1447
        %v1604 = vrot.slane %v1603, 4
        %v1605 = vadd.f32 %v1603, %v1604
        %v1606 = vrot.slane %v1605, 2
        %v1607 = vadd.f32 %v1605, %v1606
        %v1608 = vrot.slane %v1607, 1
        %v1609 = vadd.f32 %v1607, %v1608
        %v1610 = vadd.f32 %v1473, %v1475
        %v1611 = vrot.slane %v1610, 4
        %v1612 = vadd.f32 %v1610, %v1611
        %v1613 = vrot.slane %v1612, 2
        %v1614 = vadd.f32 %v1612, %v1613
        %v1615 = vrot.slane %v1614, 1
        %v1616 = vadd.f32 %v1614, %v1615
        %v1617 = vadd.f32 %v1501, %v1503
        %v1618 = vrot.slane %v1617, 4
        %v1619 = vadd.f32 %v1617, %v1618
        %v1620 = vrot.slane %v1619, 2
        %v1621 = vadd.f32 %v1619, %v1620
        %v1622 = vrot.slane %v1621, 1
        %v1623 = vadd.f32 %v1621, %v1622
        %v1624 = vadd.f32 %v1529, %v1531
        %v1625 = vrot.slane %v1624, 4
        %v1626 = vadd.f32 %v1624, %v1625
        %v1627 = vrot.slane %v1626, 2
        %v1628 = vadd.f32 %v1626, %v1627
        %v1629 = vrot.slane %v1628, 1
        %v1630 = vadd.f32 %v1628, %v1629
        %v1631 = vadd.f32 %v1557, %v1559
        %v1632 = vrot.slane %v1631, 4
        %v1633 = vadd.f32 %v1631, %v1632
        %v1634 = vrot.slane %v1633, 2
        %v1635 = vadd.f32 %v1633, %v1634
        %v1636 = vrot.slane %v1635, 1
        %v1637 = vadd.f32 %v1635, %v1636
        %v1638 = vadd.f32 %v1585, %v1587
        %v1639 = vrot.slane %v1638, 4
        %v1640 = vadd.f32 %v1638, %v1639
        %v1641 = vrot.slane %v1640, 2
        %v1642 = vadd.f32 %v1640, %v1641
        %v1643 = vrot.slane %v1642, 1
        %v1644 = vadd.f32 %v1642, %v1643
        %v1645 = vmul.f32 %v1389, %v1389
        %v1646 = vmul.f32 %v1417, %v1417
        %v1647 = vmul.f32 %v1445, %v1445
        %v1648 = vmul.f32 %v1473, %v1473
        %v1649 = vmul.f32 %v1501, %v1501
        %v1650 = vmul.f32 %v1529, %v1529
        %v1651 = vmul.f32 %v1557, %v1557
        %v1652 = vmul.f32 %v1585, %v1585
        %v1653 = vmul.f32 %v1391, %v1391
        %v1654 = vmul.f32 %v1419, %v1419
        %v1655 = vmul.f32 %v1447, %v1447
        %v1656 = vmul.f32 %v1475, %v1475
        %v1657 = vmul.f32 %v1503, %v1503
        %v1658 = vmul.f32 %v1531, %v1531
        %v1659 = vmul.f32 %v1559, %v1559
        %v1660 = vmul.f32 %v1587, %v1587
        %v1661 = vadd.f32 %v1645, %v1653
        %v1662 = vrot.slane %v1661, 4
        %v1663 = vadd.f32 %v1661, %v1662
        %v1664 = vrot.slane %v1663, 2
        %v1665 = vadd.f32 %v1663, %v1664
        %v1666 = vrot.slane %v1665, 1
        %v1667 = vadd.f32 %v1665, %v1666
        %v1668 = vadd.f32 %v1646, %v1654
        %v1669 = vrot.slane %v1668, 4
        %v1670 = vadd.f32 %v1668, %v1669
        %v1671 = vrot.slane %v1670, 2
        %v1672 = vadd.f32 %v1670, %v1671
        %v1673 = vrot.slane %v1672, 1
        %v1674 = vadd.f32 %v1672, %v1673
        %v1675 = vadd.f32 %v1647, %v1655
        %v1676 = vrot.slane %v1675, 4
        %v1677 = vadd.f32 %v1675, %v1676
        %v1678 = vrot.slane %v1677, 2
        %v1679 = vadd.f32 %v1677, %v1678
        %v1680 = vrot.slane %v1679, 1
        %v1681 = vadd.f32 %v1679, %v1680
        %v1682 = vadd.f32 %v1648, %v1656
        %v1683 = vrot.slane %v1682, 4
        %v1684 = vadd.f32 %v1682, %v1683
        %v1685 = vrot.slane %v1684, 2
        %v1686 = vadd.f32 %v1684, %v1685
        %v1687 = vrot.slane %v1686, 1
        %v1688 = vadd.f32 %v1686, %v1687
        %v1689 = vadd.f32 %v1649, %v1657
        %v1690 = vrot.slane %v1689, 4
        %v1691 = vadd.f32 %v1689, %v1690
        %v1692 = vrot.slane %v1691, 2
        %v1693 = vadd.f32 %v1691, %v1692
        %v1694 = vrot.slane %v1693, 1
        %v1695 = vadd.f32 %v1693, %v1694
        %v1696 = vadd.f32 %v1650, %v1658
        %v1697 = vrot.slane %v1696, 4
        %v1698 = vadd.f32 %v1696, %v1697
        %v1699 = vrot.slane %v1698, 2
        %v1700 = vadd.f32 %v1698, %v1699
        %v1701 = vrot.slane %v1700, 1
        %v1702 = vadd.f32 %v1700, %v1701
        %v1703 = vadd.f32 %v1651, %v1659
        %v1704 = vrot.slane %v1703, 4
        %v1705 = vadd.f32 %v1703, %v1704
        %v1706 = vrot.slane %v1705, 2
        %v1707 = vadd.f32 %v1705, %v1706
        %v1708 = vrot.slane %v1707, 1
        %v1709 = vadd.f32 %v1707, %v1708
        %v1710 = vadd.f32 %v1652, %v1660
        %v1711 = vrot.slane %v1710, 4
        %v1712 = vadd.f32 %v1710, %v1711
        %v1713 = vrot.slane %v1712, 2
        %v1714 = vadd.f32 %v1712, %v1713
        %v1715 = vrot.slane %v1714, 1
        %v1716 = vadd.f32 %v1714, %v1715
        %v1717 = vmul.f32 %v1595, 0.5
        %v1718 = vmul.f32 %v1602, 0.5
        %v1719 = vmul.f32 %v1609, 0.5
        %v1720 = vmul.f32 %v1616, 0.5
        %v1721 = vmul.f32 %v1623, 0.5
        %v1722 = vmul.f32 %v1630, 0.5
        %v1723 = vmul.f32 %v1637, 0.5
        %v1724 = vmul.f32 %v1644, 0.5
        %v1725 = vmul.f32 %v1667, 0.5
        %v1726 = vmul.f32 %v1674, 0.5
        %v1727 = vmul.f32 %v1681, 0.5
        %v1728 = vmul.f32 %v1688, 0.5
        %v1729 = vmul.f32 %v1695, 0.5
        %v1730 = vmul.f32 %v1702, 0.5
        %v1731 = vmul.f32 %v1709, 0.5
        %v1732 = vmul.f32 %v1716, 0.5
        %v1733 = vmul.f32 %v1717, %v1717
        %v1734 = vmul.f32 %v1718, %v1718
        %v1735 = vmul.f32 %v1719, %v1719
        %v1736 = vmul.f32 %v1720, %v1720
        %v1737 = vmul.f32 %v1721, %v1721
        %v1738 = vmul.f32 %v1722, %v1722
        %v1739 = vmul.f32 %v1723, %v1723
        %v1740 = vmul.f32 %v1724, %v1724
        %v1741 = vsub.f32 %v1725, %v1733
        %v1742 = vsub.f32 %v1726, %v1734
        %v1743 = vsub.f32 %v1727, %v1735
        %v1744 = vsub.f32 %v1728, %v1736
        %v1745 = vsub.f32 %v1729, %v1737
        %v1746 = vsub.f32 %v1730, %v1738
        %v1747 = vsub.f32 %v1731, %v1739
        %v1748 = vsub.f32 %v1732, %v1740
        %v1749 = vadd.f32 %v1741, 1e-05
        %v1750 = vadd.f32 %v1742, 1e-05
        %v1751 = vadd.f32 %v1743, 1e-05
        %v1752 = vadd.f32 %v1744, 1e-05
        %v1753 = vadd.f32 %v1745, 1e-05
        %v1754 = vadd.f32 %v1746, 1e-05
        %v1755 = vadd.f32 %v1747, 1e-05
        %v1756 = vadd.f32 %v1748, 1e-05
        %v1757 = vrsqrt.pop %v1749
        %v1758 = vmul.f32 %v1757, %v1749
        %v1759 = vmul.f32 %v1758, %v1757
        %v1760 = vmul.f32 0.5, %v1759
        %v1761 = vsub.f32 1.5, %v1760
        %v1762 = vmul.f32 %v1757, %v1761
        %vm1763 = vweird.f32 %v1749
        %vm1764 = vweird.f32 %v1757
        %vm1765 = vmor %vm1763, %vm1764
        %v1766 = vsel %vm1765, %v1757, %v1762
        %v1767 = vrsqrt.pop %v1750
        %v1768 = vmul.f32 %v1767, %v1750
        %v1769 = vmul.f32 %v1768, %v1767
        %v1770 = vmul.f32 0.5, %v1769
        %v1771 = vsub.f32 1.5, %v1770
        %v1772 = vmul.f32 %v1767, %v1771
        %vm1773 = vweird.f32 %v1750
        %vm1774 = vweird.f32 %v1767
        %vm1775 = vmor %vm1773, %vm1774
        %v1776 = vsel %vm1775, %v1767, %v1772
        %v1777 = vrsqrt.pop %v1751
        %v1778 = vmul.f32 %v1777, %v1751
        %v1779 = vmul.f32 %v1778, %v1777
        %v1780 = vmul.f32 0.5, %v1779
        %v1781 = vsub.f32 1.5, %v1780
        %v1782 = vmul.f32 %v1777, %v1781
        %vm1783 = vweird.f32 %v1751
        %vm1784 = vweird.f32 %v1777
        %vm1785 = vmor %vm1783, %vm1784
        %v1786 = vsel %vm1785, %v1777, %v1782
        %v1787 = vrsqrt.pop %v1752
        %v1788 = vmul.f32 %v1787, %v1752
        %v1789 = vmul.f32 %v1788, %v1787
        %v1790 = vmul.f32 0.5, %v1789
        %v1791 = vsub.f32 1.5, %v1790
        %v1792 = vmul.f32 %v1787, %v1791
        %vm1793 = vweird.f32 %v1752
        %vm1794 = vweird.f32 %v1787
        %vm1795 = vmor %vm1793, %vm1794
        %v1796 = vsel %vm1795, %v1787, %v1792
        %v1797 = vrsqrt.pop %v1753
        %v1798 = vmul.f32 %v1797, %v1753
        %v1799 = vmul.f32 %v1798, %v1797
        %v1800 = vmul.f32 0.5, %v1799
        %v1801 = vsub.f32 1.5, %v1800
        %v1802 = vmul.f32 %v1797, %v1801
        %vm1803 = vweird.f32 %v1753
        %vm1804 = vweird.f32 %v1797
        %vm1805 = vmor %vm1803, %vm1804
        %v1806 = vsel %vm1805, %v1797, %v1802
        %v1807 = vrsqrt.pop %v1754
        %v1808 = vmul.f32 %v1807, %v1754
        %v1809 = vmul.f32 %v1808, %v1807
        %v1810 = vmul.f32 0.5, %v1809
        %v1811 = vsub.f32 1.5, %v1810
        %v1812 = vmul.f32 %v1807, %v1811
        %vm1813 = vweird.f32 %v1754
        %vm1814 = vweird.f32 %v1807
        %vm1815 = vmor %vm1813, %vm1814
        %v1816 = vsel %vm1815, %v1807, %v1812
        %v1817 = vrsqrt.pop %v1755
        %v1818 = vmul.f32 %v1817, %v1755
        %v1819 = vmul.f32 %v1818, %v1817
        %v1820 = vmul.f32 0.5, %v1819
        %v1821 = vsub.f32 1.5, %v1820
        %v1822 = vmul.f32 %v1817, %v1821
        %vm1823 = vweird.f32 %v1755
        %vm1824 = vweird.f32 %v1817
        %vm1825 = vmor %vm1823, %vm1824
        %v1826 = vsel %vm1825, %v1817, %v1822
        %v1827 = vrsqrt.pop %v1756
        %v1828 = vmul.f32 %v1827, %v1756
        %v1829 = vmul.f32 %v1828, %v1827
        %v1830 = vmul.f32 0.5, %v1829
        %v1831 = vsub.f32 1.5, %v1830
        %v1832 = vmul.f32 %v1827, %v1831
        %vm1833 = vweird.f32 %v1756
        %vm1834 = vweird.f32 %v1827
        %vm1835 = vmor %vm1833, %vm1834
        %v1836 = vsel %vm1835, %v1827, %v1832
        %v1837 = vld [vmem:[#allocation7] ss:$2 sm:$0xff]
        %v1839 = vperm.slane %v1837, 0
        %v1840 = vperm.slane %v1837, 1
        %v1841 = vperm.slane %v1837, 2
        %v1842 = vperm.slane %v1837, 3
        %v1843 = vperm.slane %v1837, 4
        %v1844 = vperm.slane %v1837, 5
        %v1845 = vperm.slane %v1837, 6
        %v1846 = vperm.slane %v1837, 7
        %v1855 = vmul.f32 %v1766, %v1839
        %v1856 = vmul.f32 %v1776, %v1840
        %v1857 = vmul.f32 %v1786, %v1841
        %v1858 = vmul.f32 %v1796, %v1842
        %v1859 = vmul.f32 %v1806, %v1843
        %v1860 = vmul.f32 %v1816, %v1844
        %v1861 = vmul.f32 %v1826, %v1845
        %v1862 = vmul.f32 %v1836, %v1846
        %v1863 = vsub.f32 %v1389, %v1717
        %v1864 = vsub.f32 %v1417, %v1718
        %v1865 = vsub.f32 %v1445, %v1719
        %v1866 = vsub.f32 %v1473, %v1720
        %v1867 = vsub.f32 %v1501, %v1721
        %v1868 = vsub.f32 %v1529, %v1722
        %v1869 = vsub.f32 %v1557, %v1723
        %v1870 = vsub.f32 %v1585, %v1724
        %v1871 = vsub.f32 %v1391, %v1717
        %v1872 = vsub.f32 %v1419, %v1718
        %v1873 = vsub.f32 %v1447, %v1719
        %v1874 = vsub.f32 %v1475, %v1720
        %v1875 = vsub.f32 %v1503, %v1721
        %v1876 = vsub.f32 %v1531, %v1722
        %v1877 = vsub.f32 %v1559, %v1723
        %v1878 = vsub.f32 %v1587, %v1724
        %v1879 = vperm.slane %v1855, 0
        %v1880 = vperm.slane %v1856, 0
        %v1881 = vperm.slane %v1857, 0
        %v1882 = vperm.slane %v1858, 0
        %v1883 = vperm.slane %v1859, 0
        %v1884 = vperm.slane %v1860, 0
        %v1885 = vperm.slane %v1861, 0
        %v1886 = vperm.slane %v1862, 0
        %v1887 = vmul.f32 %v1863, %v1879
        %v1888 = vmul.f32 %v1864, %v1880
        %v1889 = vmul.f32 %v1865, %v1881
        %v1890 = vmul.f32 %v1866, %v1882
        %v1891 = vmul.f32 %v1867, %v1883
        %v1892 = vmul.f32 %v1868, %v1884
        %v1893 = vmul.f32 %v1869, %v1885
        %v1894 = vmul.f32 %v1870, %v1886
        %v1895 = vmul.f32 %v1871, %v1879
        %v1896 = vmul.f32 %v1872, %v1880
        %v1897 = vmul.f32 %v1873, %v1881
        %v1898 = vmul.f32 %v1874, %v1882
        %v1899 = vmul.f32 %v1875, %v1883
        %v1900 = vmul.f32 %v1876, %v1884
        %v1901 = vmul.f32 %v1877, %v1885
        %v1902 = vmul.f32 %v1878, %v1886
        %s1903 = scalar_lea.vmem [#allocation7], 1
        %v1904 = vld [vmem:[%s1903] ss:$2 sm:$0xff]
        %v1906 = vperm.slane %v1904, 0
        %v1907 = vperm.slane %v1904, 1
        %v1908 = vperm.slane %v1904, 2
        %v1909 = vperm.slane %v1904, 3
        %v1910 = vperm.slane %v1904, 4
        %v1911 = vperm.slane %v1904, 5
        %v1912 = vperm.slane %v1904, 6
        %v1913 = vperm.slane %v1904, 7
        %v1922 = vadd.f32 %v1887, %v1906
        %v1923 = vadd.f32 %v1888, %v1907
        %v1924 = vadd.f32 %v1889, %v1908
        %v1925 = vadd.f32 %v1890, %v1909
        %v1926 = vadd.f32 %v1891, %v1910
        %v1927 = vadd.f32 %v1892, %v1911
        %v1928 = vadd.f32 %v1893, %v1912
        %v1929 = vadd.f32 %v1894, %v1913
        %v1930 = vadd.f32 %v1895, %v1906
        %v1931 = vadd.f32 %v1896, %v1907
        %v1932 = vadd.f32 %v1897, %v1908
        %v1933 = vadd.f32 %v1898, %v1909
        %v1934 = vadd.f32 %v1899, %v1910
        %v1935 = vadd.f32 %v1900, %v1911
        %v1936 = vadd.f32 %v1901, %v1912
        %v1937 = vadd.f32 %v1902, %v1913
        %v1938 = vmax.f32 %v1922, 0.0
        %v1939 = vmax.f32 %v1923, 0.0
        %v1940 = vmax.f32 %v1924, 0.0
        %v1941 = vmax.f32 %v1925, 0.0
        %v1942 = vmax.f32 %v1926, 0.0
        %v1943 = vmax.f32 %v1927, 0.0
        %v1944 = vmax.f32 %v1928, 0.0
        %v1945 = vmax.f32 %v1929, 0.0
        %v1946 = vmax.f32 %v1930, 0.0
        %v1947 = vmax.f32 %v1931, 0.0
        %v1948 = vmax.f32 %v1932, 0.0
        %v1949 = vmax.f32 %v1933, 0.0
        %v1950 = vmax.f32 %v1934, 0.0
        %v1951 = vmax.f32 %v1935, 0.0
        %v1952 = vmax.f32 %v1936, 0.0
        %v1953 = vmax.f32 %v1937, 0.0
        %v1954 = vsel %vm589, %v1938, 0.0
        %v1955 = vsel %vm589, %v1939, 0.0
        %v1956 = vsel %vm589, %v1940, 0.0
        %v1957 = vsel %vm589, %v1941, 0.0
        %v1958 = vsel %vm589, %v1942, 0.0
        %v1959 = vsel %vm589, %v1943, 0.0
        %v1960 = vsel %vm589, %v1944, 0.0
        %v1961 = vsel %vm589, %v1945, 0.0
        %v1962 = vsel %vm590, %v1946, 0.0
        %v1963 = vsel %vm590, %v1947, 0.0
        %v1964 = vsel %vm590, %v1948, 0.0
        %v1965 = vsel %vm590, %v1949, 0.0
        %v1966 = vsel %vm590, %v1950, 0.0
        %v1967 = vsel %vm590, %v1951, 0.0
        %v1968 = vsel %vm590, %v1952, 0.0
        %v1969 = vsel %vm590, %v1953, 0.0
        %v1970 = vpack.c.bf16 %v1962, %v1954
        %v1971 = vpack.c.bf16 %v1963, %v1955
        %v1972 = vpack.c.bf16 %v1964, %v1956
        %v1973 = vpack.c.bf16 %v1965, %v1957
        %v1974 = vpack.c.bf16 %v1966, %v1958
        %v1975 = vpack.c.bf16 %v1967, %v1959
        %v1976 = vpack.c.bf16 %v1968, %v1960
        %v1977 = vpack.c.bf16 %v1969, %v1961
        %v1978 = vld [vmem:[%s346] sm:$0xff]
        %v1979 = vld [vmem:[%s346 + $0x8] sm:$0xff]
        %v1980 = vld [vmem:[%s346 + $0x10] sm:$0xff]
        %v1981 = vld [vmem:[%s346 + $0x18] sm:$0xf]
        %v1982 = vld [vmem:[%s346 + $0x1c] sm:$0xff]
        %v1983 = vld [vmem:[%s346 + $0x24] sm:$0xff]
        %v1984 = vld [vmem:[%s346 + $0x2c] sm:$0xff]
        %v1985 = vld [vmem:[%s346 + $0x34] sm:$0xf]
        %v1986 = vld [vmem:[%s346 + $0x38] sm:$0xff]
        %v1987 = vld [vmem:[%s346 + $0x40] sm:$0xff]
        %v1988 = vld [vmem:[%s346 + $0x48] sm:$0xff]
        %v1989 = vld [vmem:[%s346 + $0x50] sm:$0xf]
        %v1990 = vld [vmem:[%s346 + $0x54] sm:$0xff]
        %v1991 = vld [vmem:[%s346 + $0x5c] sm:$0xff]
        %v1992 = vld [vmem:[%s346 + $0x64] sm:$0xff]
        %v1993 = vld [vmem:[%s346 + $0x6c] sm:$0xf]
        %v1994 = vld [vmem:[%s346 + $0x70] sm:$0xff]
        %v1995 = vld [vmem:[%s346 + $0x78] sm:$0xff]
        %v1996 = vld [vmem:[%s346 + $0x80] sm:$0xff]
        %v1997 = vld [vmem:[%s346 + $0x88] sm:$0xf]
        %v1998 = vld [vmem:[%s346 + $0x8c] sm:$0xff]
        %v1999 = vld [vmem:[%s346 + $0x94] sm:$0xff]
        %v2000 = vld [vmem:[%s346 + $0x9c] sm:$0xff]
        %v2001 = vld [vmem:[%s346 + $0xa4] sm:$0xf]
        %v2002 = vld [vmem:[%s346 + $0xa8] sm:$0xff]
        %v2003 = vld [vmem:[%s346 + $0xb0] sm:$0xff]
        %v2004 = vld [vmem:[%s346 + $0xb8] sm:$0xff]
        %v2005 = vld [vmem:[%s346 + $0xc0] sm:$0xf]
        %v2006 = vld [vmem:[%s346 + $0xc4] sm:$0xff]
        %v2007 = vld [vmem:[%s346 + $0xcc] sm:$0xff]
        %v2008 = vld [vmem:[%s346 + $0xd4] sm:$0xff]
        %v2009 = vld [vmem:[%s346 + $0xdc] sm:$0xf]
        %v2010 = vld [vmem:[%s346 + $0xe0] sm:$0xff]
        %v2011 = vld [vmem:[%s346 + $0xe8] sm:$0xff]
        %v2012 = vld [vmem:[%s346 + $0xf0] sm:$0xff]
        %v2013 = vld [vmem:[%s346 + $0xf8] sm:$0xf]
        %v2014 = vld [vmem:[%s346 + $0xfc] sm:$0xff]
        %v2015 = vld [vmem:[%s346 + $0x104] sm:$0xff]
        %v2016 = vld [vmem:[%s346 + $0x10c] sm:$0xff]
        %v2017 = vld [vmem:[%s346 + $0x114] sm:$0xf]
        %v2018 = vld [vmem:[%s346 + $0x118] sm:$0xff]
        %v2019 = vld [vmem:[%s346 + $0x120] sm:$0xff]
        %v2020 = vld [vmem:[%s346 + $0x128] sm:$0xff]
        %v2021 = vld [vmem:[%s346 + $0x130] sm:$0xf]
        %v2022 = vld [vmem:[%s346 + $0x134] sm:$0xff]
        %v2023 = vld [vmem:[%s346 + $0x13c] sm:$0xff]
        %v2024 = vld [vmem:[%s346 + $0x144] sm:$0xff]
        %v2025 = vld [vmem:[%s346 + $0x14c] sm:$0xf]
        %v2026 = vld [vmem:[%s346 + $0x150] sm:$0xff]
        %v2027 = vld [vmem:[%s346 + $0x158] sm:$0xff]
        %v2028 = vld [vmem:[%s346 + $0x160] sm:$0xff]
        %v2029 = vld [vmem:[%s346 + $0x168] sm:$0xf]
        %v2030 = vld [vmem:[%s346 + $0x16c] sm:$0xff]
        %v2031 = vld [vmem:[%s346 + $0x174] sm:$0xff]
        %v2032 = vld [vmem:[%s346 + $0x17c] sm:$0xff]
        %v2033 = vld [vmem:[%s346 + $0x184] sm:$0xf]
        %v2034 = vld [vmem:[%s346 + $0x188] sm:$0xff]
        %v2035 = vld [vmem:[%s346 + $0x190] sm:$0xff]
        %v2036 = vld [vmem:[%s346 + $0x198] sm:$0xff]
        %v2037 = vld [vmem:[%s346 + $0x1a0] sm:$0xf]
        %v2038 = vld [vmem:[%s346 + $0x1a4] sm:$0xff]
        %v2039 = vld [vmem:[%s346 + $0x1ac] sm:$0xff]
        %v2040 = vld [vmem:[%s346 + $0x1b4] sm:$0xff]
        %v2041 = vld [vmem:[%s346 + $0x1bc] sm:$0xf]
        %v2042 = vld [vmem:[%s346 + $0x1c0] sm:$0xff]
        %v2043 = vld [vmem:[%s346 + $0x1c8] sm:$0xff]
        %v2044 = vld [vmem:[%s346 + $0x1d0] sm:$0xff]
        %v2045 = vld [vmem:[%s346 + $0x1d8] sm:$0xf]
        %v2046 = vld [vmem:[%s346 + $0x1dc] sm:$0xff]
        %v2047 = vld [vmem:[%s346 + $0x1e4] sm:$0xff]
        %v2048 = vld [vmem:[%s346 + $0x1ec] sm:$0xff]
        %v2049 = vld [vmem:[%s346 + $0x1f4] sm:$0xf]
        %v2050 = vld [vmem:[%s346 + $0x1f8] sm:$0xff]
        %v2051 = vld [vmem:[%s346 + $0x200] sm:$0xff]
        %v2052 = vld [vmem:[%s346 + $0x208] sm:$0xff]
        %v2053 = vld [vmem:[%s346 + $0x210] sm:$0xf]
        %v2054 = vld [vmem:[%s346 + $0x214] sm:$0xff]
        %v2055 = vld [vmem:[%s346 + $0x21c] sm:$0xff]
        %v2056 = vld [vmem:[%s346 + $0x224] sm:$0xff]
        %v2057 = vld [vmem:[%s346 + $0x22c] sm:$0xf]
        %v2058 = vld [vmem:[%s346 + $0x230] sm:$0xff]
        %v2059 = vld [vmem:[%s346 + $0x238] sm:$0xff]
        %v2060 = vld [vmem:[%s346 + $0x240] sm:$0xff]
        %v2061 = vld [vmem:[%s346 + $0x248] sm:$0xf]
        %v2062 = vld [vmem:[%s346 + $0x24c] sm:$0xff]
        %v2063 = vld [vmem:[%s346 + $0x254] sm:$0xff]
        %v2064 = vld [vmem:[%s346 + $0x25c] sm:$0xff]
        %v2065 = vld [vmem:[%s346 + $0x264] sm:$0xf]
        %v2066 = vld [vmem:[%s346 + $0x268] sm:$0xff]
        %v2067 = vld [vmem:[%s346 + $0x270] sm:$0xff]
        %v2068 = vld [vmem:[%s346 + $0x278] sm:$0xff]
        %v2069 = vld [vmem:[%s346 + $0x280] sm:$0xf]
        %v2070 = vld [vmem:[%s346 + $0x284] sm:$0xff]
        %v2071 = vld [vmem:[%s346 + $0x28c] sm:$0xff]
        %v2072 = vld [vmem:[%s346 + $0x294] sm:$0xff]
        %v2073 = vld [vmem:[%s346 + $0x29c] sm:$0xf]
        %v2074 = vld [vmem:[%s346 + $0x2a0] sm:$0xff]
        %v2075 = vld [vmem:[%s346 + $0x2a8] sm:$0xff]
        %v2076 = vld [vmem:[%s346 + $0x2b0] sm:$0xff]
        %v2077 = vld [vmem:[%s346 + $0x2b8] sm:$0xf]
        %v2078 = vld [vmem:[%s346 + $0x2bc] sm:$0xff]
        %v2079 = vld [vmem:[%s346 + $0x2c4] sm:$0xff]
        %v2080 = vld [vmem:[%s346 + $0x2cc] sm:$0xff]
        %v2081 = vld [vmem:[%s346 + $0x2d4] sm:$0xf]
        %v2082 = vld [vmem:[%s346 + $0x2d8] sm:$0xff]
        %v2083 = vld [vmem:[%s346 + $0x2e0] sm:$0xff]
        %v2084 = vld [vmem:[%s346 + $0x2e8] sm:$0xff]
        %v2085 = vld [vmem:[%s346 + $0x2f0] sm:$0xf]
        %v2086 = vld [vmem:[%s346 + $0x2f4] sm:$0xff]
        %v2087 = vld [vmem:[%s346 + $0x2fc] sm:$0xff]
        %v2088 = vld [vmem:[%s346 + $0x304] sm:$0xff]
        %v2089 = vld [vmem:[%s346 + $0x30c] sm:$0xf]
        %v2090 = vld [vmem:[%s346 + $0x310] sm:$0xff]
        %v2091 = vld [vmem:[%s346 + $0x318] sm:$0xff]
        %v2092 = vld [vmem:[%s346 + $0x320] sm:$0xff]
        %v2093 = vld [vmem:[%s346 + $0x328] sm:$0xf]
        %v2094 = vld [vmem:[%s346 + $0x32c] sm:$0xff]
        %v2095 = vld [vmem:[%s346 + $0x334] sm:$0xff]
        %v2096 = vld [vmem:[%s346 + $0x33c] sm:$0xff]
        %v2097 = vld [vmem:[%s346 + $0x344] sm:$0xf]
        %v2098 = vld [vmem:[%s346 + $0x348] sm:$0xff]
        %v2099 = vld [vmem:[%s346 + $0x350] sm:$0xff]
        %v2100 = vld [vmem:[%s346 + $0x358] sm:$0xff]
        %v2101 = vld [vmem:[%s346 + $0x360] sm:$0xf]
        %v2102 = vld [vmem:[%s346 + $0x364] sm:$0xff]
        %v2103 = vld [vmem:[%s346 + $0x36c] sm:$0xff]
        %v2104 = vld [vmem:[%s346 + $0x374] sm:$0xff]
        %v2105 = vld [vmem:[%s346 + $0x37c] sm:$0xf]
        %v2106 = vld [vmem:[%s346 + $0x380] sm:$0xff]
        %v2107 = vld [vmem:[%s346 + $0x388] sm:$0xff]
        %v2108 = vld [vmem:[%s346 + $0x390] sm:$0xff]
        %v2109 = vld [vmem:[%s346 + $0x398] sm:$0xf]
        %v2110 = vld [vmem:[%s346 + $0x39c] sm:$0xff]
        %v2111 = vld [vmem:[%s346 + $0x3a4] sm:$0xff]
        %v2112 = vld [vmem:[%s346 + $0x3ac] sm:$0xff]
        %v2113 = vld [vmem:[%s346 + $0x3b4] sm:$0xf]
        %v2114 = vld [vmem:[%s346 + $0x3b8] sm:$0xff]
        %v2115 = vld [vmem:[%s346 + $0x3c0] sm:$0xff]
        %v2116 = vld [vmem:[%s346 + $0x3c8] sm:$0xff]
        %v2117 = vld [vmem:[%s346 + $0x3d0] sm:$0xf]
        %v2118 = vld [vmem:[%s346 + $0x3d4] sm:$0xff]
        %v2119 = vld [vmem:[%s346 + $0x3dc] sm:$0xff]
        %v2120 = vld [vmem:[%s346 + $0x3e4] sm:$0xff]
        %v2121 = vld [vmem:[%s346 + $0x3ec] sm:$0xf]
        %v2122 = vld [vmem:[%s346 + $0x3f0] sm:$0xff]
        %v2123 = vld [vmem:[%s346 + $0x3f8] sm:$0xff]
        %v2124 = vld [vmem:[%s346 + $0x400] sm:$0xff]
        %v2125 = vld [vmem:[%s346 + $0x408] sm:$0xf]
        %v2126 = vld [vmem:[%s346 + $0x40c] sm:$0xff]
        %v2127 = vld [vmem:[%s346 + $0x414] sm:$0xff]
        %v2128 = vld [vmem:[%s346 + $0x41c] sm:$0xff]
        %v2129 = vld [vmem:[%s346 + $0x424] sm:$0xf]
        %v2130 = vld [vmem:[%s346 + $0x428] sm:$0xff]
        %v2131 = vld [vmem:[%s346 + $0x430] sm:$0xff]
        %v2132 = vld [vmem:[%s346 + $0x438] sm:$0xff]
        %v2133 = vld [vmem:[%s346 + $0x440] sm:$0xf]
        %v2134 = vld [vmem:[%s346 + $0x444] sm:$0xff]
        %v2135 = vld [vmem:[%s346 + $0x44c] sm:$0xff]
        %v2136 = vld [vmem:[%s346 + $0x454] sm:$0xff]
        %v2137 = vld [vmem:[%s346 + $0x45c] sm:$0xf]
        %v2138 = vld [vmem:[%s346 + $0x460] sm:$0xff]
        %v2139 = vld [vmem:[%s346 + $0x468] sm:$0xff]
        %v2140 = vld [vmem:[%s346 + $0x470] sm:$0xff]
        %v2141 = vld [vmem:[%s346 + $0x478] sm:$0xf]
        %v2142 = vld [vmem:[%s346 + $0x47c] sm:$0xff]
        %v2143 = vld [vmem:[%s346 + $0x484] sm:$0xff]
        %v2144 = vld [vmem:[%s346 + $0x48c] sm:$0xff]
        %v2145 = vld [vmem:[%s346 + $0x494] sm:$0xf]
        %v2146 = vld [vmem:[%s346 + $0x498] sm:$0xff]
        %v2147 = vld [vmem:[%s346 + $0x4a0] sm:$0xff]
        %v2148 = vld [vmem:[%s346 + $0x4a8] sm:$0xff]
        %v2149 = vld [vmem:[%s346 + $0x4b0] sm:$0xf]
        %v2150 = vld [vmem:[%s346 + $0x4b4] sm:$0xff]
        %v2151 = vld [vmem:[%s346 + $0x4bc] sm:$0xff]
        %v2152 = vld [vmem:[%s346 + $0x4c4] sm:$0xff]
        %v2153 = vld [vmem:[%s346 + $0x4cc] sm:$0xf]
        %v2154 = vld [vmem:[%s346 + $0x4d0] sm:$0xff]
        %v2155 = vld [vmem:[%s346 + $0x4d8] sm:$0xff]
        %v2156 = vld [vmem:[%s346 + $0x4e0] sm:$0xff]
        %v2157 = vld [vmem:[%s346 + $0x4e8] sm:$0xf]
        %v2158 = vld [vmem:[%s346 + $0x4ec] sm:$0xff]
        %v2159 = vld [vmem:[%s346 + $0x4f4] sm:$0xff]
        %v2160 = vld [vmem:[%s346 + $0x4fc] sm:$0xff]
        %v2161 = vld [vmem:[%s346 + $0x504] sm:$0xf]
        %v2162 = vld [vmem:[%s346 + $0x508] sm:$0xff]
        %v2163 = vld [vmem:[%s346 + $0x510] sm:$0xff]
        %v2164 = vld [vmem:[%s346 + $0x518] sm:$0xff]
        %v2165 = vld [vmem:[%s346 + $0x520] sm:$0xf]
        %v2166 = vld [vmem:[%s346 + $0x524] sm:$0xff]
        %v2167 = vld [vmem:[%s346 + $0x52c] sm:$0xff]
        %v2168 = vld [vmem:[%s346 + $0x534] sm:$0xff]
        %v2169 = vld [vmem:[%s346 + $0x53c] sm:$0xf]
        %v2170 = vld [vmem:[%s346 + $0x540] sm:$0xff]
        %v2171 = vld [vmem:[%s346 + $0x548] sm:$0xff]
        %v2172 = vld [vmem:[%s346 + $0x550] sm:$0xff]
        %v2173 = vld [vmem:[%s346 + $0x558] sm:$0xf]
        %v2174 = vld [vmem:[%s346 + $0x55c] sm:$0xff]
        %v2175 = vld [vmem:[%s346 + $0x564] sm:$0xff]
        %v2176 = vld [vmem:[%s346 + $0x56c] sm:$0xff]
        %v2177 = vld [vmem:[%s346 + $0x574] sm:$0xf]
        %v2178 = vld [vmem:[%s346 + $0x578] sm:$0xff]
        %v2179 = vld [vmem:[%s346 + $0x580] sm:$0xff]
        %v2180 = vld [vmem:[%s346 + $0x588] sm:$0xff]
        %v2181 = vld [vmem:[%s346 + $0x590] sm:$0xf]
        %v2182 = vld [vmem:[%s346 + $0x594] sm:$0xff]
        %v2183 = vld [vmem:[%s346 + $0x59c] sm:$0xff]
        %v2184 = vld [vmem:[%s346 + $0x5a4] sm:$0xff]
        %v2185 = vld [vmem:[%s346 + $0x5ac] sm:$0xf]
        %v2186 = vld [vmem:[%s346 + $0x5b0] sm:$0xff]
        %v2187 = vld [vmem:[%s346 + $0x5b8] sm:$0xff]
        %v2188 = vld [vmem:[%s346 + $0x5c0] sm:$0xff]
        %v2189 = vld [vmem:[%s346 + $0x5c8] sm:$0xf]
        %v2190 = vld [vmem:[%s346 + $0x5cc] sm:$0xff]
        %v2191 = vld [vmem:[%s346 + $0x5d4] sm:$0xff]
        %v2192 = vld [vmem:[%s346 + $0x5dc] sm:$0xff]
        %v2193 = vld [vmem:[%s346 + $0x5e4] sm:$0xf]
        %v2194 = vld [vmem:[%s346 + $0x5e8] sm:$0xff]
        %v2195 = vld [vmem:[%s346 + $0x5f0] sm:$0xff]
        %v2196 = vld [vmem:[%s346 + $0x5f8] sm:$0xff]
        %v2197 = vld [vmem:[%s346 + $0x600] sm:$0xf]
        %v2198 = vld [vmem:[%s346 + $0x604] sm:$0xff]
        %v2199 = vld [vmem:[%s346 + $0x60c] sm:$0xff]
        %v2200 = vld [vmem:[%s346 + $0x614] sm:$0xff]
        %v2201 = vld [vmem:[%s346 + $0x61c] sm:$0xf]
        %v2202 = vld [vmem:[%s346 + $0x620] sm:$0xff]
        %v2203 = vld [vmem:[%s346 + $0x628] sm:$0xff]
        %v2204 = vld [vmem:[%s346 + $0x630] sm:$0xff]
        %v2205 = vld [vmem:[%s346 + $0x638] sm:$0xf]
        %v2206 = vld [vmem:[%s346 + $0x63c] sm:$0xff]
        %v2207 = vld [vmem:[%s346 + $0x644] sm:$0xff]
        %v2208 = vld [vmem:[%s346 + $0x64c] sm:$0xff]
        %v2209 = vld [vmem:[%s346 + $0x654] sm:$0xf]
        %v2210 = vld [vmem:[%s346 + $0x658] sm:$0xff]
        %v2211 = vld [vmem:[%s346 + $0x660] sm:$0xff]
        %v2212 = vld [vmem:[%s346 + $0x668] sm:$0xff]
        %v2213 = vld [vmem:[%s346 + $0x670] sm:$0xf]
        %v2214 = vld [vmem:[%s346 + $0x674] sm:$0xff]
        %v2215 = vld [vmem:[%s346 + $0x67c] sm:$0xff]
        %v2216 = vld [vmem:[%s346 + $0x684] sm:$0xff]
        %v2217 = vld [vmem:[%s346 + $0x68c] sm:$0xf]
        %v2218 = vld [vmem:[%s346 + $0x690] sm:$0xff]
        %v2219 = vld [vmem:[%s346 + $0x698] sm:$0xff]
        %v2220 = vld [vmem:[%s346 + $0x6a0] sm:$0xff]
        %v2221 = vld [vmem:[%s346 + $0x6a8] sm:$0xf]
        %v2222 = vld [vmem:[%s346 + $0x6ac] sm:$0xff]
        %v2223 = vld [vmem:[%s346 + $0x6b4] sm:$0xff]
        %v2224 = vld [vmem:[%s346 + $0x6bc] sm:$0xff]
        %v2225 = vld [vmem:[%s346 + $0x6c4] sm:$0xf]
        %v2226 = vld [vmem:[%s346 + $0x6c8] sm:$0xff]
        %v2227 = vld [vmem:[%s346 + $0x6d0] sm:$0xff]
        %v2228 = vld [vmem:[%s346 + $0x6d8] sm:$0xff]
        %v2229 = vld [vmem:[%s346 + $0x6e0] sm:$0xf]
        %v2230 = vld [vmem:[%s346 + $0x6e4] sm:$0xff]
        %v2231 = vld [vmem:[%s346 + $0x6ec] sm:$0xff]
        %v2232 = vld [vmem:[%s346 + $0x6f4] sm:$0xff]
        %v2233 = vld [vmem:[%s346 + $0x6fc] sm:$0xf]
        %v2234 = vld [vmem:[%s346 + $0x700] sm:$0xff]
        %v2235 = vld [vmem:[%s346 + $0x708] sm:$0xff]
        %v2236 = vld [vmem:[%s346 + $0x710] sm:$0xff]
        %v2237 = vld [vmem:[%s346 + $0x718] sm:$0xf]
        %v2238 = vld [vmem:[%s346 + $0x71c] sm:$0xff]
        %v2239 = vld [vmem:[%s346 + $0x724] sm:$0xff]
        %v2240 = vld [vmem:[%s346 + $0x72c] sm:$0xff]
        %v2241 = vld [vmem:[%s346 + $0x734] sm:$0xf]
        %v2242 = vld [vmem:[%s346 + $0x738] sm:$0xff]
        %v2243 = vld [vmem:[%s346 + $0x740] sm:$0xff]
        %v2244 = vld [vmem:[%s346 + $0x748] sm:$0xff]
        %v2245 = vld [vmem:[%s346 + $0x750] sm:$0xf]
        %v2246 = vld [vmem:[%s346 + $0x754] sm:$0xff]
        %v2247 = vld [vmem:[%s346 + $0x75c] sm:$0xff]
        %v2248 = vld [vmem:[%s346 + $0x764] sm:$0xff]
        %v2249 = vld [vmem:[%s346 + $0x76c] sm:$0xf]
        %v2250 = vld [vmem:[%s346 + $0x770] sm:$0xff]
        %v2251 = vld [vmem:[%s346 + $0x778] sm:$0xff]
        %v2252 = vld [vmem:[%s346 + $0x780] sm:$0xff]
        %v2253 = vld [vmem:[%s346 + $0x788] sm:$0xf]
        %v2254 = vld [vmem:[%s346 + $0x78c] sm:$0xff]
        %v2255 = vld [vmem:[%s346 + $0x794] sm:$0xff]
        %v2256 = vld [vmem:[%s346 + $0x79c] sm:$0xff]
        %v2257 = vld [vmem:[%s346 + $0x7a4] sm:$0xf]
        %v2258 = vld [vmem:[%s346 + $0x7a8] sm:$0xff]
        %v2259 = vld [vmem:[%s346 + $0x7b0] sm:$0xff]
        %v2260 = vld [vmem:[%s346 + $0x7b8] sm:$0xff]
        %v2261 = vld [vmem:[%s346 + $0x7c0] sm:$0xf]
        %v2262 = vld [vmem:[%s346 + $0x7c4] sm:$0xff]
        %v2263 = vld [vmem:[%s346 + $0x7cc] sm:$0xff]
        %v2264 = vld [vmem:[%s346 + $0x7d4] sm:$0xff]
        %v2265 = vld [vmem:[%s346 + $0x7dc] sm:$0xf]
        %v2266 = vld [vmem:[%s346 + $0x7e0] sm:$0xff]
        %v2267 = vld [vmem:[%s346 + $0x7e8] sm:$0xff]
        %v2268 = vld [vmem:[%s346 + $0x7f0] sm:$0xff]
        %v2269 = vld [vmem:[%s346 + $0x7f8] sm:$0xf]
        %v2270 = vld [vmem:[%s346 + $0x7fc] sm:$0xff]
        %v2271 = vld [vmem:[%s346 + $0x804] sm:$0xff]
        %v2272 = vld [vmem:[%s346 + $0x80c] sm:$0xff]
        %v2273 = vld [vmem:[%s346 + $0x814] sm:$0xf]
        %v2274 = vld [vmem:[%s346 + $0x818] sm:$0xff]
        %v2275 = vld [vmem:[%s346 + $0x820] sm:$0xff]
        %v2276 = vld [vmem:[%s346 + $0x828] sm:$0xff]
        %v2277 = vld [vmem:[%s346 + $0x830] sm:$0xf]
        %v2278 = vld [vmem:[%s346 + $0x834] sm:$0xff]
        %v2279 = vld [vmem:[%s346 + $0x83c] sm:$0xff]
        %v2280 = vld [vmem:[%s346 + $0x844] sm:$0xff]
        %v2281 = vld [vmem:[%s346 + $0x84c] sm:$0xf]
        %v2282 = vld [vmem:[%s346 + $0x850] sm:$0xff]
        %v2283 = vld [vmem:[%s346 + $0x858] sm:$0xff]
        %v2284 = vld [vmem:[%s346 + $0x860] sm:$0xff]
        %v2285 = vld [vmem:[%s346 + $0x868] sm:$0xf]
        %v2286 = vld [vmem:[%s346 + $0x86c] sm:$0xff]
        %v2287 = vld [vmem:[%s346 + $0x874] sm:$0xff]
        %v2288 = vld [vmem:[%s346 + $0x87c] sm:$0xff]
        %v2289 = vld [vmem:[%s346 + $0x884] sm:$0xf]
        %v2290 = vld [vmem:[%s346 + $0x888] sm:$0xff]
        %v2291 = vld [vmem:[%s346 + $0x890] sm:$0xff]
        %v2292 = vld [vmem:[%s346 + $0x898] sm:$0xff]
        %v2293 = vld [vmem:[%s346 + $0x8a0] sm:$0xf]
        %v2294 = vld [vmem:[%s346 + $0x8a4] sm:$0xff]
        %v2295 = vld [vmem:[%s346 + $0x8ac] sm:$0xff]
        %v2296 = vld [vmem:[%s346 + $0x8b4] sm:$0xff]
        %v2297 = vld [vmem:[%s346 + $0x8bc] sm:$0xf]
        %v2298 = vld [vmem:[%s346 + $0x8c0] sm:$0xff]
        %v2299 = vld [vmem:[%s346 + $0x8c8] sm:$0xff]
        %v2300 = vld [vmem:[%s346 + $0x8d0] sm:$0xff]
        %v2301 = vld [vmem:[%s346 + $0x8d8] sm:$0xf]
        %v2302 = vld [vmem:[%s346 + $0x8dc] sm:$0xff]
        %v2303 = vld [vmem:[%s346 + $0x8e4] sm:$0xff]
        %v2304 = vld [vmem:[%s346 + $0x8ec] sm:$0xff]
        %v2305 = vld [vmem:[%s346 + $0x8f4] sm:$0xf]
        %v2306 = vld [vmem:[%s346 + $0x8f8] sm:$0xff]
        %v2307 = vld [vmem:[%s346 + $0x900] sm:$0xff]
        %v2308 = vld [vmem:[%s346 + $0x908] sm:$0xff]
        %v2309 = vld [vmem:[%s346 + $0x910] sm:$0xf]
        %v2310 = vld [vmem:[%s346 + $0x914] sm:$0xff]
        %v2311 = vld [vmem:[%s346 + $0x91c] sm:$0xff]
        %v2312 = vld [vmem:[%s346 + $0x924] sm:$0xff]
        %v2313 = vld [vmem:[%s346 + $0x92c] sm:$0xf]
        %v2314 = vld [vmem:[%s346 + $0x930] sm:$0xff]
        %v2315 = vld [vmem:[%s346 + $0x938] sm:$0xff]
        %v2316 = vld [vmem:[%s346 + $0x940] sm:$0xff]
        %v2317 = vld [vmem:[%s346 + $0x948] sm:$0xf]
        %v2318 = vld [vmem:[%s346 + $0x94c] sm:$0xff]
        %v2319 = vld [vmem:[%s346 + $0x954] sm:$0xff]
        %v2320 = vld [vmem:[%s346 + $0x95c] sm:$0xff]
        %v2321 = vld [vmem:[%s346 + $0x964] sm:$0xf]
        %v2322 = vld [vmem:[%s346 + $0x968] sm:$0xff]
        %v2323 = vld [vmem:[%s346 + $0x970] sm:$0xff]
        %v2324 = vld [vmem:[%s346 + $0x978] sm:$0xff]
        %v2325 = vld [vmem:[%s346 + $0x980] sm:$0xf]
        %v2326 = vld [vmem:[%s346 + $0x984] sm:$0xff]
        %v2327 = vld [vmem:[%s346 + $0x98c] sm:$0xff]
        %v2328 = vld [vmem:[%s346 + $0x994] sm:$0xff]
        %v2329 = vld [vmem:[%s346 + $0x99c] sm:$0xf]
        %v2330 = vld [vmem:[%s346 + $0x9a0] sm:$0xff]
        %v2331 = vld [vmem:[%s346 + $0x9a8] sm:$0xff]
        %v2332 = vld [vmem:[%s346 + $0x9b0] sm:$0xff]
        %v2333 = vld [vmem:[%s346 + $0x9b8] sm:$0xf]
        %v2334 = vld [vmem:[%s346 + $0x9bc] sm:$0xff]
        %v2335 = vld [vmem:[%s346 + $0x9c4] sm:$0xff]
        %v2336 = vld [vmem:[%s346 + $0x9cc] sm:$0xff]
        %v2337 = vld [vmem:[%s346 + $0x9d4] sm:$0xf]
        %v2338 = vld [vmem:[%s346 + $0x9d8] sm:$0xff]
        %v2339 = vld [vmem:[%s346 + $0x9e0] sm:$0xff]
        %v2340 = vld [vmem:[%s346 + $0x9e8] sm:$0xff]
        %v2341 = vld [vmem:[%s346 + $0x9f0] sm:$0xf]
        %v2342 = vld [vmem:[%s346 + $0x9f4] sm:$0xff]
        %v2343 = vld [vmem:[%s346 + $0x9fc] sm:$0xff]
        %v2344 = vld [vmem:[%s346 + $0xa04] sm:$0xff]
        %v2345 = vld [vmem:[%s346 + $0xa0c] sm:$0xf]
        %v2346 = vld [vmem:[%s346 + $0xa10] sm:$0xff]
        %v2347 = vld [vmem:[%s346 + $0xa18] sm:$0xff]
        %v2348 = vld [vmem:[%s346 + $0xa20] sm:$0xff]
        %v2349 = vld [vmem:[%s346 + $0xa28] sm:$0xf]
        %v2350 = vld [vmem:[%s346 + $0xa2c] sm:$0xff]
        %v2351 = vld [vmem:[%s346 + $0xa34] sm:$0xff]
        %v2352 = vld [vmem:[%s346 + $0xa3c] sm:$0xff]
        %v2353 = vld [vmem:[%s346 + $0xa44] sm:$0xf]
        %v2354 = vld [vmem:[%s346 + $0xa48] sm:$0xff]
        %v2355 = vld [vmem:[%s346 + $0xa50] sm:$0xff]
        %v2356 = vld [vmem:[%s346 + $0xa58] sm:$0xff]
        %v2357 = vld [vmem:[%s346 + $0xa60] sm:$0xf]
        %v2358 = vld [vmem:[%s346 + $0xa64] sm:$0xff]
        %v2359 = vld [vmem:[%s346 + $0xa6c] sm:$0xff]
        %v2360 = vld [vmem:[%s346 + $0xa74] sm:$0xff]
        %v2361 = vld [vmem:[%s346 + $0xa7c] sm:$0xf]
        %v2362 = vld [vmem:[%s346 + $0xa80] sm:$0xff]
        %v2363 = vld [vmem:[%s346 + $0xa88] sm:$0xff]
        %v2364 = vld [vmem:[%s346 + $0xa90] sm:$0xff]
        %v2365 = vld [vmem:[%s346 + $0xa98] sm:$0xf]
        %v2366 = vld [vmem:[%s346 + $0xa9c] sm:$0xff]
        %v2367 = vld [vmem:[%s346 + $0xaa4] sm:$0xff]
        %v2368 = vld [vmem:[%s346 + $0xaac] sm:$0xff]
        %v2369 = vld [vmem:[%s346 + $0xab4] sm:$0xf]
        %v2370 = vld [vmem:[%s346 + $0xab8] sm:$0xff]
        %v2371 = vld [vmem:[%s346 + $0xac0] sm:$0xff]
        %v2372 = vld [vmem:[%s346 + $0xac8] sm:$0xff]
        %v2373 = vld [vmem:[%s346 + $0xad0] sm:$0xf]
        %v2374 = vld [vmem:[%s346 + $0xad4] sm:$0xff]
        %v2375 = vld [vmem:[%s346 + $0xadc] sm:$0xff]
        %v2376 = vld [vmem:[%s346 + $0xae4] sm:$0xff]
        %v2377 = vld [vmem:[%s346 + $0xaec] sm:$0xf]
        %v2378 = vld [vmem:[%s346 + $0xaf0] sm:$0xff]
        %v2379 = vld [vmem:[%s346 + $0xaf8] sm:$0xff]
        %v2380 = vld [vmem:[%s346 + $0xb00] sm:$0xff]
        %v2381 = vld [vmem:[%s346 + $0xb08] sm:$0xf]
        %v2382 = vld [vmem:[%s346 + $0xb0c] sm:$0xff]
        %v2383 = vld [vmem:[%s346 + $0xb14] sm:$0xff]
        %v2384 = vld [vmem:[%s346 + $0xb1c] sm:$0xff]
        %v2385 = vld [vmem:[%s346 + $0xb24] sm:$0xf]
        %v2386 = vld [vmem:[%s346 + $0xb28] sm:$0xff]
        %v2387 = vld [vmem:[%s346 + $0xb30] sm:$0xff]
        %v2388 = vld [vmem:[%s346 + $0xb38] sm:$0xff]
        %v2389 = vld [vmem:[%s346 + $0xb40] sm:$0xf]
        %v2390 = vld [vmem:[%s346 + $0xb44] sm:$0xff]
        %v2391 = vld [vmem:[%s346 + $0xb4c] sm:$0xff]
        %v2392 = vld [vmem:[%s346 + $0xb54] sm:$0xff]
        %v2393 = vld [vmem:[%s346 + $0xb5c] sm:$0xf]
        %v2394 = vld [vmem:[%s346 + $0xb60] sm:$0xff]
        %v2395 = vld [vmem:[%s346 + $0xb68] sm:$0xff]
        %v2396 = vld [vmem:[%s346 + $0xb70] sm:$0xff]
        %v2397 = vld [vmem:[%s346 + $0xb78] sm:$0xf]
        %v2398 = vld [vmem:[%s346 + $0xb7c] sm:$0xff]
        %v2399 = vld [vmem:[%s346 + $0xb84] sm:$0xff]
        %v2400 = vld [vmem:[%s346 + $0xb8c] sm:$0xff]
        %v2401 = vld [vmem:[%s346 + $0xb94] sm:$0xf]
        %v2402 = vld [vmem:[%s346 + $0xb98] sm:$0xff]
        %v2403 = vld [vmem:[%s346 + $0xba0] sm:$0xff]
        %v2404 = vld [vmem:[%s346 + $0xba8] sm:$0xff]
        %v2405 = vld [vmem:[%s346 + $0xbb0] sm:$0xf]
        %v2406 = vld [vmem:[%s346 + $0xbb4] sm:$0xff]
        %v2407 = vld [vmem:[%s346 + $0xbbc] sm:$0xff]
        %v2408 = vld [vmem:[%s346 + $0xbc4] sm:$0xff]
        %v2409 = vld [vmem:[%s346 + $0xbcc] sm:$0xf]
        %v2410 = vld [vmem:[%s346 + $0xbd0] sm:$0xff]
        %v2411 = vld [vmem:[%s346 + $0xbd8] sm:$0xff]
        %v2412 = vld [vmem:[%s346 + $0xbe0] sm:$0xff]
        %v2413 = vld [vmem:[%s346 + $0xbe8] sm:$0xf]
        %v2414 = vld [vmem:[%s346 + $0xbec] sm:$0xff]
        %v2415 = vld [vmem:[%s346 + $0xbf4] sm:$0xff]
        %v2416 = vld [vmem:[%s346 + $0xbfc] sm:$0xff]
        %v2417 = vld [vmem:[%s346 + $0xc04] sm:$0xf]
        %v2418 = vld [vmem:[%s346 + $0xc08] sm:$0xff]
        %v2419 = vld [vmem:[%s346 + $0xc10] sm:$0xff]
        %v2420 = vld [vmem:[%s346 + $0xc18] sm:$0xff]
        %v2421 = vld [vmem:[%s346 + $0xc20] sm:$0xf]
        %v2422 = vld [vmem:[%s346 + $0xc24] sm:$0xff]
        %v2423 = vld [vmem:[%s346 + $0xc2c] sm:$0xff]
        %v2424 = vld [vmem:[%s346 + $0xc34] sm:$0xff]
        %v2425 = vld [vmem:[%s346 + $0xc3c] sm:$0xf]
        %v2426 = vld [vmem:[%s346 + $0xc40] sm:$0xff]
        %v2427 = vld [vmem:[%s346 + $0xc48] sm:$0xff]
        %v2428 = vld [vmem:[%s346 + $0xc50] sm:$0xff]
        %v2429 = vld [vmem:[%s346 + $0xc58] sm:$0xf]
        %v2430 = vld [vmem:[%s346 + $0xc5c] sm:$0xff]
        %v2431 = vld [vmem:[%s346 + $0xc64] sm:$0xff]
        %v2432 = vld [vmem:[%s346 + $0xc6c] sm:$0xff]
        %v2433 = vld [vmem:[%s346 + $0xc74] sm:$0xf]
        %v2434 = vld [vmem:[%s346 + $0xc78] sm:$0xff]
        %v2435 = vld [vmem:[%s346 + $0xc80] sm:$0xff]
        %v2436 = vld [vmem:[%s346 + $0xc88] sm:$0xff]
        %v2437 = vld [vmem:[%s346 + $0xc90] sm:$0xf]
        %v2438 = vld [vmem:[%s346 + $0xc94] sm:$0xff]
        %v2439 = vld [vmem:[%s346 + $0xc9c] sm:$0xff]
        %v2440 = vld [vmem:[%s346 + $0xca4] sm:$0xff]
        %v2441 = vld [vmem:[%s346 + $0xcac] sm:$0xf]
        %v2442 = vld [vmem:[%s346 + $0xcb0] sm:$0xff]
        %v2443 = vld [vmem:[%s346 + $0xcb8] sm:$0xff]
        %v2444 = vld [vmem:[%s346 + $0xcc0] sm:$0xff]
        %v2445 = vld [vmem:[%s346 + $0xcc8] sm:$0xf]
        %v2446 = vld [vmem:[%s346 + $0xccc] sm:$0xff]
        %v2447 = vld [vmem:[%s346 + $0xcd4] sm:$0xff]
        %v2448 = vld [vmem:[%s346 + $0xcdc] sm:$0xff]
        %v2449 = vld [vmem:[%s346 + $0xce4] sm:$0xf]
        %v2450 = vld [vmem:[%s346 + $0xce8] sm:$0xff]
        %v2451 = vld [vmem:[%s346 + $0xcf0] sm:$0xff]
        %v2452 = vld [vmem:[%s346 + $0xcf8] sm:$0xff]
        %v2453 = vld [vmem:[%s346 + $0xd00] sm:$0xf]
        %v2454 = vld [vmem:[%s346 + $0xd04] sm:$0xff]
        %v2455 = vld [vmem:[%s346 + $0xd0c] sm:$0xff]
        %v2456 = vld [vmem:[%s346 + $0xd14] sm:$0xff]
        %v2457 = vld [vmem:[%s346 + $0xd1c] sm:$0xf]
        %v2458 = vld [vmem:[%s346 + $0xd20] sm:$0xff]
        %v2459 = vld [vmem:[%s346 + $0xd28] sm:$0xff]
        %v2460 = vld [vmem:[%s346 + $0xd30] sm:$0xff]
        %v2461 = vld [vmem:[%s346 + $0xd38] sm:$0xf]
        %v2462 = vld [vmem:[%s346 + $0xd3c] sm:$0xff]
        %v2463 = vld [vmem:[%s346 + $0xd44] sm:$0xff]
        %v2464 = vld [vmem:[%s346 + $0xd4c] sm:$0xff]
        %v2465 = vld [vmem:[%s346 + $0xd54] sm:$0xf]
        %v2466 = vld [vmem:[%s346 + $0xd58] sm:$0xff]
        %v2467 = vld [vmem:[%s346 + $0xd60] sm:$0xff]
        %v2468 = vld [vmem:[%s346 + $0xd68] sm:$0xff]
        %v2469 = vld [vmem:[%s346 + $0xd70] sm:$0xf]
        %v2470 = vld [vmem:[%s346 + $0xd74] sm:$0xff]
        %v2471 = vld [vmem:[%s346 + $0xd7c] sm:$0xff]
        %v2472 = vld [vmem:[%s346 + $0xd84] sm:$0xff]
        %v2473 = vld [vmem:[%s346 + $0xd8c] sm:$0xf]
        %v2474 = vld [vmem:[%s346 + $0xd90] sm:$0xff]
        %v2475 = vld [vmem:[%s346 + $0xd98] sm:$0xff]
        %v2476 = vld [vmem:[%s346 + $0xda0] sm:$0xff]
        %v2477 = vld [vmem:[%s346 + $0xda8] sm:$0xf]
        %v2478 = vld [vmem:[%s346 + $0xdac] sm:$0xff]
        %v2479 = vld [vmem:[%s346 + $0xdb4] sm:$0xff]
        %v2480 = vld [vmem:[%s346 + $0xdbc] sm:$0xff]
        %v2481 = vld [vmem:[%s346 + $0xdc4] sm:$0xf]
        %v2482 = vld [vmem:[%s346 + $0xdc8] sm:$0xff]
        %v2483 = vld [vmem:[%s346 + $0xdd0] sm:$0xff]
        %v2484 = vld [vmem:[%s346 + $0xdd8] sm:$0xff]
        %v2485 = vld [vmem:[%s346 + $0xde0] sm:$0xf]
        %v2486 = vld [vmem:[%s346 + $0xde4] sm:$0xff]
        %v2487 = vld [vmem:[%s346 + $0xdec] sm:$0xff]
        %v2488 = vld [vmem:[%s346 + $0xdf4] sm:$0xff]
        %v2489 = vld [vmem:[%s346 + $0xdfc] sm:$0xf]
        %v3002 = vunpack.c.l.b16 %v1978
        %v3003 = vunpack.c.h.b16 %v1978
        %v3004 = vunpack.c.l.b16 %v1979
        %v3005 = vunpack.c.h.b16 %v1979
        %v3006 = vunpack.c.l.b16 %v1980
        %v3007 = vunpack.c.h.b16 %v1980
        %v3008 = vunpack.c.l.b16 %v1981
        %v3009 = vunpack.c.l.b16 %v1982
        %v3010 = vunpack.c.h.b16 %v1982
        %v3011 = vunpack.c.l.b16 %v1983
        %v3012 = vunpack.c.h.b16 %v1983
        %v3013 = vunpack.c.l.b16 %v1984
        %v3014 = vunpack.c.h.b16 %v1984
        %v3015 = vunpack.c.l.b16 %v1985
        %v3016 = vunpack.c.l.b16 %v1986
        %v3017 = vunpack.c.h.b16 %v1986
        %v3018 = vunpack.c.l.b16 %v1987
        %v3019 = vunpack.c.h.b16 %v1987
        %v3020 = vunpack.c.l.b16 %v1988
        %v3021 = vunpack.c.h.b16 %v1988
        %v3022 = vunpack.c.l.b16 %v1989
        %v3023 = vunpack.c.l.b16 %v1990
        %v3024 = vunpack.c.h.b16 %v1990
        %v3025 = vunpack.c.l.b16 %v1991
        %v3026 = vunpack.c.h.b16 %v1991
        %v3027 = vunpack.c.l.b16 %v1992
        %v3028 = vunpack.c.h.b16 %v1992
        %v3029 = vunpack.c.l.b16 %v1993
        %v3030 = vunpack.c.l.b16 %v1994
        %v3031 = vunpack.c.h.b16 %v1994
        %v3032 = vunpack.c.l.b16 %v1995
        %v3033 = vunpack.c.h.b16 %v1995
        %v3034 = vunpack.c.l.b16 %v1996
        %v3035 = vunpack.c.h.b16 %v1996
        %v3036 = vunpack.c.l.b16 %v1997
        %v3037 = vunpack.c.l.b16 %v1998
        %v3038 = vunpack.c.h.b16 %v1998
        %v3039 = vunpack.c.l.b16 %v1999
        %v3040 = vunpack.c.h.b16 %v1999
        %v3041 = vunpack.c.l.b16 %v2000
        %v3042 = vunpack.c.h.b16 %v2000
        %v3043 = vunpack.c.l.b16 %v2001
        %v3044 = vunpack.c.l.b16 %v2002
        %v3045 = vunpack.c.h.b16 %v2002
        %v3046 = vunpack.c.l.b16 %v2003
        %v3047 = vunpack.c.h.b16 %v2003
        %v3048 = vunpack.c.l.b16 %v2004
        %v3049 = vunpack.c.h.b16 %v2004
        %v3050 = vunpack.c.l.b16 %v2005
        %v3051 = vunpack.c.l.b16 %v2006
        %v3052 = vunpack.c.h.b16 %v2006
        %v3053 = vunpack.c.l.b16 %v2007
        %v3054 = vunpack.c.h.b16 %v2007
        %v3055 = vunpack.c.l.b16 %v2008
        %v3056 = vunpack.c.h.b16 %v2008
        %v3057 = vunpack.c.l.b16 %v2009
        %v3058 = vunpack.c.l.b16 %v2010
        %v3059 = vunpack.c.h.b16 %v2010
        %v3060 = vunpack.c.l.b16 %v2011
        %v3061 = vunpack.c.h.b16 %v2011
        %v3062 = vunpack.c.l.b16 %v2012
        %v3063 = vunpack.c.h.b16 %v2012
        %v3064 = vunpack.c.l.b16 %v2013
        %v3065 = vunpack.c.l.b16 %v2014
        %v3066 = vunpack.c.h.b16 %v2014
        %v3067 = vunpack.c.l.b16 %v2015
        %v3068 = vunpack.c.h.b16 %v2015
        %v3069 = vunpack.c.l.b16 %v2016
        %v3070 = vunpack.c.h.b16 %v2016
        %v3071 = vunpack.c.l.b16 %v2017
        %v3072 = vunpack.c.l.b16 %v2018
        %v3073 = vunpack.c.h.b16 %v2018
        %v3074 = vunpack.c.l.b16 %v2019
        %v3075 = vunpack.c.h.b16 %v2019
        %v3076 = vunpack.c.l.b16 %v2020
        %v3077 = vunpack.c.h.b16 %v2020
        %v3078 = vunpack.c.l.b16 %v2021
        %v3079 = vunpack.c.l.b16 %v2022
        %v3080 = vunpack.c.h.b16 %v2022
        %v3081 = vunpack.c.l.b16 %v2023
        %v3082 = vunpack.c.h.b16 %v2023
        %v3083 = vunpack.c.l.b16 %v2024
        %v3084 = vunpack.c.h.b16 %v2024
        %v3085 = vunpack.c.l.b16 %v2025
        %v3086 = vunpack.c.l.b16 %v2026
        %v3087 = vunpack.c.h.b16 %v2026
        %v3088 = vunpack.c.l.b16 %v2027
        %v3089 = vunpack.c.h.b16 %v2027
        %v3090 = vunpack.c.l.b16 %v2028
        %v3091 = vunpack.c.h.b16 %v2028
        %v3092 = vunpack.c.l.b16 %v2029
        %v3093 = vunpack.c.l.b16 %v2030
        %v3094 = vunpack.c.h.b16 %v2030
        %v3095 = vunpack.c.l.b16 %v2031
        %v3096 = vunpack.c.h.b16 %v2031
        %v3097 = vunpack.c.l.b16 %v2032
        %v3098 = vunpack.c.h.b16 %v2032
        %v3099 = vunpack.c.l.b16 %v2033
        %v3100 = vunpack.c.l.b16 %v2034
        %v3101 = vunpack.c.h.b16 %v2034
        %v3102 = vunpack.c.l.b16 %v2035
        %v3103 = vunpack.c.h.b16 %v2035
        %v3104 = vunpack.c.l.b16 %v2036
        %v3105 = vunpack.c.h.b16 %v2036
        %v3106 = vunpack.c.l.b16 %v2037
        %v3107 = vunpack.c.l.b16 %v2038
        %v3108 = vunpack.c.h.b16 %v2038
        %v3109 = vunpack.c.l.b16 %v2039
        %v3110 = vunpack.c.h.b16 %v2039
        %v3111 = vunpack.c.l.b16 %v2040
        %v3112 = vunpack.c.h.b16 %v2040
        %v3113 = vunpack.c.l.b16 %v2041
        %v3114 = vunpack.c.l.b16 %v2042
        %v3115 = vunpack.c.h.b16 %v2042
        %v3116 = vunpack.c.l.b16 %v2043
        %v3117 = vunpack.c.h.b16 %v2043
        %v3118 = vunpack.c.l.b16 %v2044
        %v3119 = vunpack.c.h.b16 %v2044
        %v3120 = vunpack.c.l.b16 %v2045
        %v3121 = vunpack.c.l.b16 %v2046
        %v3122 = vunpack.c.h.b16 %v2046
        %v3123 = vunpack.c.l.b16 %v2047
        %v3124 = vunpack.c.h.b16 %v2047
        %v3125 = vunpack.c.l.b16 %v2048
        %v3126 = vunpack.c.h.b16 %v2048
        %v3127 = vunpack.c.l.b16 %v2049
        %v3128 = vunpack.c.l.b16 %v2050
        %v3129 = vunpack.c.h.b16 %v2050
        %v3130 = vunpack.c.l.b16 %v2051
        %v3131 = vunpack.c.h.b16 %v2051
        %v3132 = vunpack.c.l.b16 %v2052
        %v3133 = vunpack.c.h.b16 %v2052
        %v3134 = vunpack.c.l.b16 %v2053
        %v3135 = vunpack.c.l.b16 %v2054
        %v3136 = vunpack.c.h.b16 %v2054
        %v3137 = vunpack.c.l.b16 %v2055
        %v3138 = vunpack.c.h.b16 %v2055
        %v3139 = vunpack.c.l.b16 %v2056
        %v3140 = vunpack.c.h.b16 %v2056
        %v3141 = vunpack.c.l.b16 %v2057
        %v3142 = vunpack.c.l.b16 %v2058
        %v3143 = vunpack.c.h.b16 %v2058
        %v3144 = vunpack.c.l.b16 %v2059
        %v3145 = vunpack.c.h.b16 %v2059
        %v3146 = vunpack.c.l.b16 %v2060
        %v3147 = vunpack.c.h.b16 %v2060
        %v3148 = vunpack.c.l.b16 %v2061
        %v3149 = vunpack.c.l.b16 %v2062
        %v3150 = vunpack.c.h.b16 %v2062
        %v3151 = vunpack.c.l.b16 %v2063
        %v3152 = vunpack.c.h.b16 %v2063
        %v3153 = vunpack.c.l.b16 %v2064
        %v3154 = vunpack.c.h.b16 %v2064
        %v3155 = vunpack.c.l.b16 %v2065
        %v3156 = vunpack.c.l.b16 %v2066
        %v3157 = vunpack.c.h.b16 %v2066
        %v3158 = vunpack.c.l.b16 %v2067
        %v3159 = vunpack.c.h.b16 %v2067
        %v3160 = vunpack.c.l.b16 %v2068
        %v3161 = vunpack.c.h.b16 %v2068
        %v3162 = vunpack.c.l.b16 %v2069
        %v3163 = vunpack.c.l.b16 %v2070
        %v3164 = vunpack.c.h.b16 %v2070
        %v3165 = vunpack.c.l.b16 %v2071
        %v3166 = vunpack.c.h.b16 %v2071
        %v3167 = vunpack.c.l.b16 %v2072
        %v3168 = vunpack.c.h.b16 %v2072
        %v3169 = vunpack.c.l.b16 %v2073
        %v3170 = vunpack.c.l.b16 %v2074
        %v3171 = vunpack.c.h.b16 %v2074
        %v3172 = vunpack.c.l.b16 %v2075
        %v3173 = vunpack.c.h.b16 %v2075
        %v3174 = vunpack.c.l.b16 %v2076
        %v3175 = vunpack.c.h.b16 %v2076
        %v3176 = vunpack.c.l.b16 %v2077
        %v3177 = vunpack.c.l.b16 %v2078
        %v3178 = vunpack.c.h.b16 %v2078
        %v3179 = vunpack.c.l.b16 %v2079
        %v3180 = vunpack.c.h.b16 %v2079
        %v3181 = vunpack.c.l.b16 %v2080
        %v3182 = vunpack.c.h.b16 %v2080
        %v3183 = vunpack.c.l.b16 %v2081
        %v3184 = vunpack.c.l.b16 %v2082
        %v3185 = vunpack.c.h.b16 %v2082
        %v3186 = vunpack.c.l.b16 %v2083
        %v3187 = vunpack.c.h.b16 %v2083
        %v3188 = vunpack.c.l.b16 %v2084
        %v3189 = vunpack.c.h.b16 %v2084
        %v3190 = vunpack.c.l.b16 %v2085
        %v3191 = vunpack.c.l.b16 %v2086
        %v3192 = vunpack.c.h.b16 %v2086
        %v3193 = vunpack.c.l.b16 %v2087
        %v3194 = vunpack.c.h.b16 %v2087
        %v3195 = vunpack.c.l.b16 %v2088
        %v3196 = vunpack.c.h.b16 %v2088
        %v3197 = vunpack.c.l.b16 %v2089
        %v3198 = vunpack.c.l.b16 %v2090
        %v3199 = vunpack.c.h.b16 %v2090
        %v3200 = vunpack.c.l.b16 %v2091
        %v3201 = vunpack.c.h.b16 %v2091
        %v3202 = vunpack.c.l.b16 %v2092
        %v3203 = vunpack.c.h.b16 %v2092
        %v3204 = vunpack.c.l.b16 %v2093
        %v3205 = vunpack.c.l.b16 %v2094
        %v3206 = vunpack.c.h.b16 %v2094
        %v3207 = vunpack.c.l.b16 %v2095
        %v3208 = vunpack.c.h.b16 %v2095
        %v3209 = vunpack.c.l.b16 %v2096
        %v3210 = vunpack.c.h.b16 %v2096
        %v3211 = vunpack.c.l.b16 %v2097
        %v3212 = vunpack.c.l.b16 %v2098
        %v3213 = vunpack.c.h.b16 %v2098
        %v3214 = vunpack.c.l.b16 %v2099
        %v3215 = vunpack.c.h.b16 %v2099
        %v3216 = vunpack.c.l.b16 %v2100
        %v3217 = vunpack.c.h.b16 %v2100
        %v3218 = vunpack.c.l.b16 %v2101
        %v3219 = vunpack.c.l.b16 %v2102
        %v3220 = vunpack.c.h.b16 %v2102
        %v3221 = vunpack.c.l.b16 %v2103
        %v3222 = vunpack.c.h.b16 %v2103
        %v3223 = vunpack.c.l.b16 %v2104
        %v3224 = vunpack.c.h.b16 %v2104
        %v3225 = vunpack.c.l.b16 %v2105
        %v3226 = vunpack.c.l.b16 %v2106
        %v3227 = vunpack.c.h.b16 %v2106
        %v3228 = vunpack.c.l.b16 %v2107
        %v3229 = vunpack.c.h.b16 %v2107
        %v3230 = vunpack.c.l.b16 %v2108
        %v3231 = vunpack.c.h.b16 %v2108
        %v3232 = vunpack.c.l.b16 %v2109
        %v3233 = vunpack.c.l.b16 %v2110
        %v3234 = vunpack.c.h.b16 %v2110
        %v3235 = vunpack.c.l.b16 %v2111
        %v3236 = vunpack.c.h.b16 %v2111
        %v3237 = vunpack.c.l.b16 %v2112
        %v3238 = vunpack.c.h.b16 %v2112
        %v3239 = vunpack.c.l.b16 %v2113
        %v3240 = vunpack.c.l.b16 %v2114
        %v3241 = vunpack.c.h.b16 %v2114
        %v3242 = vunpack.c.l.b16 %v2115
        %v3243 = vunpack.c.h.b16 %v2115
        %v3244 = vunpack.c.l.b16 %v2116
        %v3245 = vunpack.c.h.b16 %v2116
        %v3246 = vunpack.c.l.b16 %v2117
        %v3247 = vunpack.c.l.b16 %v2118
        %v3248 = vunpack.c.h.b16 %v2118
        %v3249 = vunpack.c.l.b16 %v2119
        %v3250 = vunpack.c.h.b16 %v2119
        %v3251 = vunpack.c.l.b16 %v2120
        %v3252 = vunpack.c.h.b16 %v2120
        %v3253 = vunpack.c.l.b16 %v2121
        %v3254 = vunpack.c.l.b16 %v2122
        %v3255 = vunpack.c.h.b16 %v2122
        %v3256 = vunpack.c.l.b16 %v2123
        %v3257 = vunpack.c.h.b16 %v2123
        %v3258 = vunpack.c.l.b16 %v2124
        %v3259 = vunpack.c.h.b16 %v2124
        %v3260 = vunpack.c.l.b16 %v2125
        %v3261 = vunpack.c.l.b16 %v2126
        %v3262 = vunpack.c.h.b16 %v2126
        %v3263 = vunpack.c.l.b16 %v2127
        %v3264 = vunpack.c.h.b16 %v2127
        %v3265 = vunpack.c.l.b16 %v2128
        %v3266 = vunpack.c.h.b16 %v2128
        %v3267 = vunpack.c.l.b16 %v2129
        %v3268 = vunpack.c.l.b16 %v2130
        %v3269 = vunpack.c.h.b16 %v2130
        %v3270 = vunpack.c.l.b16 %v2131
        %v3271 = vunpack.c.h.b16 %v2131
        %v3272 = vunpack.c.l.b16 %v2132
        %v3273 = vunpack.c.h.b16 %v2132
        %v3274 = vunpack.c.l.b16 %v2133
        %v3275 = vunpack.c.l.b16 %v2134
        %v3276 = vunpack.c.h.b16 %v2134
        %v3277 = vunpack.c.l.b16 %v2135
        %v3278 = vunpack.c.h.b16 %v2135
        %v3279 = vunpack.c.l.b16 %v2136
        %v3280 = vunpack.c.h.b16 %v2136
        %v3281 = vunpack.c.l.b16 %v2137
        %v3282 = vunpack.c.l.b16 %v2138
        %v3283 = vunpack.c.h.b16 %v2138
        %v3284 = vunpack.c.l.b16 %v2139
        %v3285 = vunpack.c.h.b16 %v2139
        %v3286 = vunpack.c.l.b16 %v2140
        %v3287 = vunpack.c.h.b16 %v2140
        %v3288 = vunpack.c.l.b16 %v2141
        %v3289 = vunpack.c.l.b16 %v2142
        %v3290 = vunpack.c.h.b16 %v2142
        %v3291 = vunpack.c.l.b16 %v2143
        %v3292 = vunpack.c.h.b16 %v2143
        %v3293 = vunpack.c.l.b16 %v2144
        %v3294 = vunpack.c.h.b16 %v2144
        %v3295 = vunpack.c.l.b16 %v2145
        %v3296 = vunpack.c.l.b16 %v2146
        %v3297 = vunpack.c.h.b16 %v2146
        %v3298 = vunpack.c.l.b16 %v2147
        %v3299 = vunpack.c.h.b16 %v2147
        %v3300 = vunpack.c.l.b16 %v2148
        %v3301 = vunpack.c.h.b16 %v2148
        %v3302 = vunpack.c.l.b16 %v2149
        %v3303 = vunpack.c.l.b16 %v2150
        %v3304 = vunpack.c.h.b16 %v2150
        %v3305 = vunpack.c.l.b16 %v2151
        %v3306 = vunpack.c.h.b16 %v2151
        %v3307 = vunpack.c.l.b16 %v2152
        %v3308 = vunpack.c.h.b16 %v2152
        %v3309 = vunpack.c.l.b16 %v2153
        %v3310 = vunpack.c.l.b16 %v2154
        %v3311 = vunpack.c.h.b16 %v2154
        %v3312 = vunpack.c.l.b16 %v2155
        %v3313 = vunpack.c.h.b16 %v2155
        %v3314 = vunpack.c.l.b16 %v2156
        %v3315 = vunpack.c.h.b16 %v2156
        %v3316 = vunpack.c.l.b16 %v2157
        %v3317 = vunpack.c.l.b16 %v2158
        %v3318 = vunpack.c.h.b16 %v2158
        %v3319 = vunpack.c.l.b16 %v2159
        %v3320 = vunpack.c.h.b16 %v2159
        %v3321 = vunpack.c.l.b16 %v2160
        %v3322 = vunpack.c.h.b16 %v2160
        %v3323 = vunpack.c.l.b16 %v2161
        %v3324 = vunpack.c.l.b16 %v2162
        %v3325 = vunpack.c.h.b16 %v2162
        %v3326 = vunpack.c.l.b16 %v2163
        %v3327 = vunpack.c.h.b16 %v2163
        %v3328 = vunpack.c.l.b16 %v2164
        %v3329 = vunpack.c.h.b16 %v2164
        %v3330 = vunpack.c.l.b16 %v2165
        %v3331 = vunpack.c.l.b16 %v2166
        %v3332 = vunpack.c.h.b16 %v2166
        %v3333 = vunpack.c.l.b16 %v2167
        %v3334 = vunpack.c.h.b16 %v2167
        %v3335 = vunpack.c.l.b16 %v2168
        %v3336 = vunpack.c.h.b16 %v2168
        %v3337 = vunpack.c.l.b16 %v2169
        %v3338 = vunpack.c.l.b16 %v2170
        %v3339 = vunpack.c.h.b16 %v2170
        %v3340 = vunpack.c.l.b16 %v2171
        %v3341 = vunpack.c.h.b16 %v2171
        %v3342 = vunpack.c.l.b16 %v2172
        %v3343 = vunpack.c.h.b16 %v2172
        %v3344 = vunpack.c.l.b16 %v2173
        %v3345 = vunpack.c.l.b16 %v2174
        %v3346 = vunpack.c.h.b16 %v2174
        %v3347 = vunpack.c.l.b16 %v2175
        %v3348 = vunpack.c.h.b16 %v2175
        %v3349 = vunpack.c.l.b16 %v2176
        %v3350 = vunpack.c.h.b16 %v2176
        %v3351 = vunpack.c.l.b16 %v2177
        %v3352 = vunpack.c.l.b16 %v2178
        %v3353 = vunpack.c.h.b16 %v2178
        %v3354 = vunpack.c.l.b16 %v2179
        %v3355 = vunpack.c.h.b16 %v2179
        %v3356 = vunpack.c.l.b16 %v2180
        %v3357 = vunpack.c.h.b16 %v2180
        %v3358 = vunpack.c.l.b16 %v2181
        %v3359 = vunpack.c.l.b16 %v2182
        %v3360 = vunpack.c.h.b16 %v2182
        %v3361 = vunpack.c.l.b16 %v2183
        %v3362 = vunpack.c.h.b16 %v2183
        %v3363 = vunpack.c.l.b16 %v2184
        %v3364 = vunpack.c.h.b16 %v2184
        %v3365 = vunpack.c.l.b16 %v2185
        %v3366 = vunpack.c.l.b16 %v2186
        %v3367 = vunpack.c.h.b16 %v2186
        %v3368 = vunpack.c.l.b16 %v2187
        %v3369 = vunpack.c.h.b16 %v2187
        %v3370 = vunpack.c.l.b16 %v2188
        %v3371 = vunpack.c.h.b16 %v2188
        %v3372 = vunpack.c.l.b16 %v2189
        %v3373 = vunpack.c.l.b16 %v2190
        %v3374 = vunpack.c.h.b16 %v2190
        %v3375 = vunpack.c.l.b16 %v2191
        %v3376 = vunpack.c.h.b16 %v2191
        %v3377 = vunpack.c.l.b16 %v2192
        %v3378 = vunpack.c.h.b16 %v2192
        %v3379 = vunpack.c.l.b16 %v2193
        %v3380 = vunpack.c.l.b16 %v2194
        %v3381 = vunpack.c.h.b16 %v2194
        %v3382 = vunpack.c.l.b16 %v2195
        %v3383 = vunpack.c.h.b16 %v2195
        %v3384 = vunpack.c.l.b16 %v2196
        %v3385 = vunpack.c.h.b16 %v2196
        %v3386 = vunpack.c.l.b16 %v2197
        %v3387 = vunpack.c.l.b16 %v2198
        %v3388 = vunpack.c.h.b16 %v2198
        %v3389 = vunpack.c.l.b16 %v2199
        %v3390 = vunpack.c.h.b16 %v2199
        %v3391 = vunpack.c.l.b16 %v2200
        %v3392 = vunpack.c.h.b16 %v2200
        %v3393 = vunpack.c.l.b16 %v2201
        %v3394 = vunpack.c.l.b16 %v2202
        %v3395 = vunpack.c.h.b16 %v2202
        %v3396 = vunpack.c.l.b16 %v2203
        %v3397 = vunpack.c.h.b16 %v2203
        %v3398 = vunpack.c.l.b16 %v2204
        %v3399 = vunpack.c.h.b16 %v2204
        %v3400 = vunpack.c.l.b16 %v2205
        %v3401 = vunpack.c.l.b16 %v2206
        %v3402 = vunpack.c.h.b16 %v2206
        %v3403 = vunpack.c.l.b16 %v2207
        %v3404 = vunpack.c.h.b16 %v2207
        %v3405 = vunpack.c.l.b16 %v2208
        %v3406 = vunpack.c.h.b16 %v2208
        %v3407 = vunpack.c.l.b16 %v2209
        %v3408 = vunpack.c.l.b16 %v2210
        %v3409 = vunpack.c.h.b16 %v2210
        %v3410 = vunpack.c.l.b16 %v2211
        %v3411 = vunpack.c.h.b16 %v2211
        %v3412 = vunpack.c.l.b16 %v2212
        %v3413 = vunpack.c.h.b16 %v2212
        %v3414 = vunpack.c.l.b16 %v2213
        %v3415 = vunpack.c.l.b16 %v2214
        %v3416 = vunpack.c.h.b16 %v2214
        %v3417 = vunpack.c.l.b16 %v2215
        %v3418 = vunpack.c.h.b16 %v2215
        %v3419 = vunpack.c.l.b16 %v2216
        %v3420 = vunpack.c.h.b16 %v2216
        %v3421 = vunpack.c.l.b16 %v2217
        %v3422 = vunpack.c.l.b16 %v2218
        %v3423 = vunpack.c.h.b16 %v2218
        %v3424 = vunpack.c.l.b16 %v2219
        %v3425 = vunpack.c.h.b16 %v2219
        %v3426 = vunpack.c.l.b16 %v2220
        %v3427 = vunpack.c.h.b16 %v2220
        %v3428 = vunpack.c.l.b16 %v2221
        %v3429 = vunpack.c.l.b16 %v2222
        %v3430 = vunpack.c.h.b16 %v2222
        %v3431 = vunpack.c.l.b16 %v2223
        %v3432 = vunpack.c.h.b16 %v2223
        %v3433 = vunpack.c.l.b16 %v2224
        %v3434 = vunpack.c.h.b16 %v2224
        %v3435 = vunpack.c.l.b16 %v2225
        %v3436 = vunpack.c.l.b16 %v2226
        %v3437 = vunpack.c.h.b16 %v2226
        %v3438 = vunpack.c.l.b16 %v2227
        %v3439 = vunpack.c.h.b16 %v2227
        %v3440 = vunpack.c.l.b16 %v2228
        %v3441 = vunpack.c.h.b16 %v2228
        %v3442 = vunpack.c.l.b16 %v2229
        %v3443 = vunpack.c.l.b16 %v2230
        %v3444 = vunpack.c.h.b16 %v2230
        %v3445 = vunpack.c.l.b16 %v2231
        %v3446 = vunpack.c.h.b16 %v2231
        %v3447 = vunpack.c.l.b16 %v2232
        %v3448 = vunpack.c.h.b16 %v2232
        %v3449 = vunpack.c.l.b16 %v2233
        %v3450 = vunpack.c.l.b16 %v2234
        %v3451 = vunpack.c.h.b16 %v2234
        %v3452 = vunpack.c.l.b16 %v2235
        %v3453 = vunpack.c.h.b16 %v2235
        %v3454 = vunpack.c.l.b16 %v2236
        %v3455 = vunpack.c.h.b16 %v2236
        %v3456 = vunpack.c.l.b16 %v2237
        %v3457 = vunpack.c.l.b16 %v2238
        %v3458 = vunpack.c.h.b16 %v2238
        %v3459 = vunpack.c.l.b16 %v2239
        %v3460 = vunpack.c.h.b16 %v2239
        %v3461 = vunpack.c.l.b16 %v2240
        %v3462 = vunpack.c.h.b16 %v2240
        %v3463 = vunpack.c.l.b16 %v2241
        %v3464 = vunpack.c.l.b16 %v2242
        %v3465 = vunpack.c.h.b16 %v2242
        %v3466 = vunpack.c.l.b16 %v2243
        %v3467 = vunpack.c.h.b16 %v2243
        %v3468 = vunpack.c.l.b16 %v2244
        %v3469 = vunpack.c.h.b16 %v2244
        %v3470 = vunpack.c.l.b16 %v2245
        %v3471 = vunpack.c.l.b16 %v2246
        %v3472 = vunpack.c.h.b16 %v2246
        %v3473 = vunpack.c.l.b16 %v2247
        %v3474 = vunpack.c.h.b16 %v2247
        %v3475 = vunpack.c.l.b16 %v2248
        %v3476 = vunpack.c.h.b16 %v2248
        %v3477 = vunpack.c.l.b16 %v2249
        %v3478 = vunpack.c.l.b16 %v2250
        %v3479 = vunpack.c.h.b16 %v2250
        %v3480 = vunpack.c.l.b16 %v2251
        %v3481 = vunpack.c.h.b16 %v2251
        %v3482 = vunpack.c.l.b16 %v2252
        %v3483 = vunpack.c.h.b16 %v2252
        %v3484 = vunpack.c.l.b16 %v2253
        %v3485 = vunpack.c.l.b16 %v2254
        %v3486 = vunpack.c.h.b16 %v2254
        %v3487 = vunpack.c.l.b16 %v2255
        %v3488 = vunpack.c.h.b16 %v2255
        %v3489 = vunpack.c.l.b16 %v2256
        %v3490 = vunpack.c.h.b16 %v2256
        %v3491 = vunpack.c.l.b16 %v2257
        %v3492 = vunpack.c.l.b16 %v2258
        %v3493 = vunpack.c.h.b16 %v2258
        %v3494 = vunpack.c.l.b16 %v2259
        %v3495 = vunpack.c.h.b16 %v2259
        %v3496 = vunpack.c.l.b16 %v2260
        %v3497 = vunpack.c.h.b16 %v2260
        %v3498 = vunpack.c.l.b16 %v2261
        %v3499 = vunpack.c.l.b16 %v2262
        %v3500 = vunpack.c.h.b16 %v2262
        %v3501 = vunpack.c.l.b16 %v2263
        %v3502 = vunpack.c.h.b16 %v2263
        %v3503 = vunpack.c.l.b16 %v2264
        %v3504 = vunpack.c.h.b16 %v2264
        %v3505 = vunpack.c.l.b16 %v2265
        %v3506 = vunpack.c.l.b16 %v2266
        %v3507 = vunpack.c.h.b16 %v2266
        %v3508 = vunpack.c.l.b16 %v2267
        %v3509 = vunpack.c.h.b16 %v2267
        %v3510 = vunpack.c.l.b16 %v2268
        %v3511 = vunpack.c.h.b16 %v2268
        %v3512 = vunpack.c.l.b16 %v2269
        %v3513 = vunpack.c.l.b16 %v2270
        %v3514 = vunpack.c.h.b16 %v2270
        %v3515 = vunpack.c.l.b16 %v2271
        %v3516 = vunpack.c.h.b16 %v2271
        %v3517 = vunpack.c.l.b16 %v2272
        %v3518 = vunpack.c.h.b16 %v2272
        %v3519 = vunpack.c.l.b16 %v2273
        %v3520 = vunpack.c.l.b16 %v2274
        %v3521 = vunpack.c.h.b16 %v2274
        %v3522 = vunpack.c.l.b16 %v2275
        %v3523 = vunpack.c.h.b16 %v2275
        %v3524 = vunpack.c.l.b16 %v2276
        %v3525 = vunpack.c.h.b16 %v2276
        %v3526 = vunpack.c.l.b16 %v2277
        %v3527 = vunpack.c.l.b16 %v2278
        %v3528 = vunpack.c.h.b16 %v2278
        %v3529 = vunpack.c.l.b16 %v2279
        %v3530 = vunpack.c.h.b16 %v2279
        %v3531 = vunpack.c.l.b16 %v2280
        %v3532 = vunpack.c.h.b16 %v2280
        %v3533 = vunpack.c.l.b16 %v2281
        %v3534 = vunpack.c.l.b16 %v2282
        %v3535 = vunpack.c.h.b16 %v2282
        %v3536 = vunpack.c.l.b16 %v2283
        %v3537 = vunpack.c.h.b16 %v2283
        %v3538 = vunpack.c.l.b16 %v2284
        %v3539 = vunpack.c.h.b16 %v2284
        %v3540 = vunpack.c.l.b16 %v2285
        %v3541 = vunpack.c.l.b16 %v2286
        %v3542 = vunpack.c.h.b16 %v2286
        %v3543 = vunpack.c.l.b16 %v2287
        %v3544 = vunpack.c.h.b16 %v2287
        %v3545 = vunpack.c.l.b16 %v2288
        %v3546 = vunpack.c.h.b16 %v2288
        %v3547 = vunpack.c.l.b16 %v2289
        %v3548 = vunpack.c.l.b16 %v2290
        %v3549 = vunpack.c.h.b16 %v2290
        %v3550 = vunpack.c.l.b16 %v2291
        %v3551 = vunpack.c.h.b16 %v2291
        %v3552 = vunpack.c.l.b16 %v2292
        %v3553 = vunpack.c.h.b16 %v2292
        %v3554 = vunpack.c.l.b16 %v2293
        %v3555 = vunpack.c.l.b16 %v2294
        %v3556 = vunpack.c.h.b16 %v2294
        %v3557 = vunpack.c.l.b16 %v2295
        %v3558 = vunpack.c.h.b16 %v2295
        %v3559 = vunpack.c.l.b16 %v2296
        %v3560 = vunpack.c.h.b16 %v2296
        %v3561 = vunpack.c.l.b16 %v2297
        %v3562 = vunpack.c.l.b16 %v2298
        %v3563 = vunpack.c.h.b16 %v2298
        %v3564 = vunpack.c.l.b16 %v2299
        %v3565 = vunpack.c.h.b16 %v2299
        %v3566 = vunpack.c.l.b16 %v2300
        %v3567 = vunpack.c.h.b16 %v2300
        %v3568 = vunpack.c.l.b16 %v2301
        %v3569 = vunpack.c.l.b16 %v2302
        %v3570 = vunpack.c.h.b16 %v2302
        %v3571 = vunpack.c.l.b16 %v2303
        %v3572 = vunpack.c.h.b16 %v2303
        %v3573 = vunpack.c.l.b16 %v2304
        %v3574 = vunpack.c.h.b16 %v2304
        %v3575 = vunpack.c.l.b16 %v2305
        %v3576 = vunpack.c.l.b16 %v2306
        %v3577 = vunpack.c.h.b16 %v2306
        %v3578 = vunpack.c.l.b16 %v2307
        %v3579 = vunpack.c.h.b16 %v2307
        %v3580 = vunpack.c.l.b16 %v2308
        %v3581 = vunpack.c.h.b16 %v2308
        %v3582 = vunpack.c.l.b16 %v2309
        %v3583 = vunpack.c.l.b16 %v2310
        %v3584 = vunpack.c.h.b16 %v2310
        %v3585 = vunpack.c.l.b16 %v2311
        %v3586 = vunpack.c.h.b16 %v2311
        %v3587 = vunpack.c.l.b16 %v2312
        %v3588 = vunpack.c.h.b16 %v2312
        %v3589 = vunpack.c.l.b16 %v2313
        %v3590 = vunpack.c.l.b16 %v2314
        %v3591 = vunpack.c.h.b16 %v2314
        %v3592 = vunpack.c.l.b16 %v2315
        %v3593 = vunpack.c.h.b16 %v2315
        %v3594 = vunpack.c.l.b16 %v2316
        %v3595 = vunpack.c.h.b16 %v2316
        %v3596 = vunpack.c.l.b16 %v2317
        %v3597 = vunpack.c.l.b16 %v2318
        %v3598 = vunpack.c.h.b16 %v2318
        %v3599 = vunpack.c.l.b16 %v2319
        %v3600 = vunpack.c.h.b16 %v2319
        %v3601 = vunpack.c.l.b16 %v2320
        %v3602 = vunpack.c.h.b16 %v2320
        %v3603 = vunpack.c.l.b16 %v2321
        %v3604 = vunpack.c.l.b16 %v2322
        %v3605 = vunpack.c.h.b16 %v2322
        %v3606 = vunpack.c.l.b16 %v2323
        %v3607 = vunpack.c.h.b16 %v2323
        %v3608 = vunpack.c.l.b16 %v2324
        %v3609 = vunpack.c.h.b16 %v2324
        %v3610 = vunpack.c.l.b16 %v2325
        %v3611 = vunpack.c.l.b16 %v2326
        %v3612 = vunpack.c.h.b16 %v2326
        %v3613 = vunpack.c.l.b16 %v2327
        %v3614 = vunpack.c.h.b16 %v2327
        %v3615 = vunpack.c.l.b16 %v2328
        %v3616 = vunpack.c.h.b16 %v2328
        %v3617 = vunpack.c.l.b16 %v2329
        %v3618 = vunpack.c.l.b16 %v2330
        %v3619 = vunpack.c.h.b16 %v2330
        %v3620 = vunpack.c.l.b16 %v2331
        %v3621 = vunpack.c.h.b16 %v2331
        %v3622 = vunpack.c.l.b16 %v2332
        %v3623 = vunpack.c.h.b16 %v2332
        %v3624 = vunpack.c.l.b16 %v2333
        %v3625 = vunpack.c.l.b16 %v2334
        %v3626 = vunpack.c.h.b16 %v2334
        %v3627 = vunpack.c.l.b16 %v2335
        %v3628 = vunpack.c.h.b16 %v2335
        %v3629 = vunpack.c.l.b16 %v2336
        %v3630 = vunpack.c.h.b16 %v2336
        %v3631 = vunpack.c.l.b16 %v2337
        %v3632 = vunpack.c.l.b16 %v2338
        %v3633 = vunpack.c.h.b16 %v2338
        %v3634 = vunpack.c.l.b16 %v2339
        %v3635 = vunpack.c.h.b16 %v2339
        %v3636 = vunpack.c.l.b16 %v2340
        %v3637 = vunpack.c.h.b16 %v2340
        %v3638 = vunpack.c.l.b16 %v2341
        %v3639 = vunpack.c.l.b16 %v2342
        %v3640 = vunpack.c.h.b16 %v2342
        %v3641 = vunpack.c.l.b16 %v2343
        %v3642 = vunpack.c.h.b16 %v2343
        %v3643 = vunpack.c.l.b16 %v2344
        %v3644 = vunpack.c.h.b16 %v2344
        %v3645 = vunpack.c.l.b16 %v2345
        %v3646 = vunpack.c.l.b16 %v2346
        %v3647 = vunpack.c.h.b16 %v2346
        %v3648 = vunpack.c.l.b16 %v2347
        %v3649 = vunpack.c.h.b16 %v2347
        %v3650 = vunpack.c.l.b16 %v2348
        %v3651 = vunpack.c.h.b16 %v2348
        %v3652 = vunpack.c.l.b16 %v2349
        %v3653 = vunpack.c.l.b16 %v2350
        %v3654 = vunpack.c.h.b16 %v2350
        %v3655 = vunpack.c.l.b16 %v2351
        %v3656 = vunpack.c.h.b16 %v2351
        %v3657 = vunpack.c.l.b16 %v2352
        %v3658 = vunpack.c.h.b16 %v2352
        %v3659 = vunpack.c.l.b16 %v2353
        %v3660 = vunpack.c.l.b16 %v2354
        %v3661 = vunpack.c.h.b16 %v2354
        %v3662 = vunpack.c.l.b16 %v2355
        %v3663 = vunpack.c.h.b16 %v2355
        %v3664 = vunpack.c.l.b16 %v2356
        %v3665 = vunpack.c.h.b16 %v2356
        %v3666 = vunpack.c.l.b16 %v2357
        %v3667 = vunpack.c.l.b16 %v2358
        %v3668 = vunpack.c.h.b16 %v2358
        %v3669 = vunpack.c.l.b16 %v2359
        %v3670 = vunpack.c.h.b16 %v2359
        %v3671 = vunpack.c.l.b16 %v2360
        %v3672 = vunpack.c.h.b16 %v2360
        %v3673 = vunpack.c.l.b16 %v2361
        %v3674 = vunpack.c.l.b16 %v2362
        %v3675 = vunpack.c.h.b16 %v2362
        %v3676 = vunpack.c.l.b16 %v2363
        %v3677 = vunpack.c.h.b16 %v2363
        %v3678 = vunpack.c.l.b16 %v2364
        %v3679 = vunpack.c.h.b16 %v2364
        %v3680 = vunpack.c.l.b16 %v2365
        %v3681 = vunpack.c.l.b16 %v2366
        %v3682 = vunpack.c.h.b16 %v2366
        %v3683 = vunpack.c.l.b16 %v2367
        %v3684 = vunpack.c.h.b16 %v2367
        %v3685 = vunpack.c.l.b16 %v2368
        %v3686 = vunpack.c.h.b16 %v2368
        %v3687 = vunpack.c.l.b16 %v2369
        %v3688 = vunpack.c.l.b16 %v2370
        %v3689 = vunpack.c.h.b16 %v2370
        %v3690 = vunpack.c.l.b16 %v2371
        %v3691 = vunpack.c.h.b16 %v2371
        %v3692 = vunpack.c.l.b16 %v2372
        %v3693 = vunpack.c.h.b16 %v2372
        %v3694 = vunpack.c.l.b16 %v2373
        %v3695 = vunpack.c.l.b16 %v2374
        %v3696 = vunpack.c.h.b16 %v2374
        %v3697 = vunpack.c.l.b16 %v2375
        %v3698 = vunpack.c.h.b16 %v2375
        %v3699 = vunpack.c.l.b16 %v2376
        %v3700 = vunpack.c.h.b16 %v2376
        %v3701 = vunpack.c.l.b16 %v2377
        %v3702 = vunpack.c.l.b16 %v2378
        %v3703 = vunpack.c.h.b16 %v2378
        %v3704 = vunpack.c.l.b16 %v2379
        %v3705 = vunpack.c.h.b16 %v2379
        %v3706 = vunpack.c.l.b16 %v2380
        %v3707 = vunpack.c.h.b16 %v2380
        %v3708 = vunpack.c.l.b16 %v2381
        %v3709 = vunpack.c.l.b16 %v2382
        %v3710 = vunpack.c.h.b16 %v2382
        %v3711 = vunpack.c.l.b16 %v2383
        %v3712 = vunpack.c.h.b16 %v2383
        %v3713 = vunpack.c.l.b16 %v2384
        %v3714 = vunpack.c.h.b16 %v2384
        %v3715 = vunpack.c.l.b16 %v2385
        %v3716 = vunpack.c.l.b16 %v2386
        %v3717 = vunpack.c.h.b16 %v2386
        %v3718 = vunpack.c.l.b16 %v2387
        %v3719 = vunpack.c.h.b16 %v2387
        %v3720 = vunpack.c.l.b16 %v2388
        %v3721 = vunpack.c.h.b16 %v2388
        %v3722 = vunpack.c.l.b16 %v2389
        %v3723 = vunpack.c.l.b16 %v2390
        %v3724 = vunpack.c.h.b16 %v2390
        %v3725 = vunpack.c.l.b16 %v2391
        %v3726 = vunpack.c.h.b16 %v2391
        %v3727 = vunpack.c.l.b16 %v2392
        %v3728 = vunpack.c.h.b16 %v2392
        %v3729 = vunpack.c.l.b16 %v2393
        %v3730 = vunpack.c.l.b16 %v2394
        %v3731 = vunpack.c.h.b16 %v2394
        %v3732 = vunpack.c.l.b16 %v2395
        %v3733 = vunpack.c.h.b16 %v2395
        %v3734 = vunpack.c.l.b16 %v2396
        %v3735 = vunpack.c.h.b16 %v2396
        %v3736 = vunpack.c.l.b16 %v2397
        %v3737 = vunpack.c.l.b16 %v2398
        %v3738 = vunpack.c.h.b16 %v2398
        %v3739 = vunpack.c.l.b16 %v2399
        %v3740 = vunpack.c.h.b16 %v2399
        %v3741 = vunpack.c.l.b16 %v2400
        %v3742 = vunpack.c.h.b16 %v2400
        %v3743 = vunpack.c.l.b16 %v2401
        %v3744 = vunpack.c.l.b16 %v2402
        %v3745 = vunpack.c.h.b16 %v2402
        %v3746 = vunpack.c.l.b16 %v2403
        %v3747 = vunpack.c.h.b16 %v2403
        %v3748 = vunpack.c.l.b16 %v2404
        %v3749 = vunpack.c.h.b16 %v2404
        %v3750 = vunpack.c.l.b16 %v2405
        %v3751 = vunpack.c.l.b16 %v2406
        %v3752 = vunpack.c.h.b16 %v2406
        %v3753 = vunpack.c.l.b16 %v2407
        %v3754 = vunpack.c.h.b16 %v2407
        %v3755 = vunpack.c.l.b16 %v2408
        %v3756 = vunpack.c.h.b16 %v2408
        %v3757 = vunpack.c.l.b16 %v2409
        %v3758 = vunpack.c.l.b16 %v2410
        %v3759 = vunpack.c.h.b16 %v2410
        %v3760 = vunpack.c.l.b16 %v2411
        %v3761 = vunpack.c.h.b16 %v2411
        %v3762 = vunpack.c.l.b16 %v2412
        %v3763 = vunpack.c.h.b16 %v2412
        %v3764 = vunpack.c.l.b16 %v2413
        %v3765 = vunpack.c.l.b16 %v2414
        %v3766 = vunpack.c.h.b16 %v2414
        %v3767 = vunpack.c.l.b16 %v2415
        %v3768 = vunpack.c.h.b16 %v2415
        %v3769 = vunpack.c.l.b16 %v2416
        %v3770 = vunpack.c.h.b16 %v2416
        %v3771 = vunpack.c.l.b16 %v2417
        %v3772 = vunpack.c.l.b16 %v2418
        %v3773 = vunpack.c.h.b16 %v2418
        %v3774 = vunpack.c.l.b16 %v2419
        %v3775 = vunpack.c.h.b16 %v2419
        %v3776 = vunpack.c.l.b16 %v2420
        %v3777 = vunpack.c.h.b16 %v2420
        %v3778 = vunpack.c.l.b16 %v2421
        %v3779 = vunpack.c.l.b16 %v2422
        %v3780 = vunpack.c.h.b16 %v2422
        %v3781 = vunpack.c.l.b16 %v2423
        %v3782 = vunpack.c.h.b16 %v2423
        %v3783 = vunpack.c.l.b16 %v2424
        %v3784 = vunpack.c.h.b16 %v2424
        %v3785 = vunpack.c.l.b16 %v2425
        %v3786 = vunpack.c.l.b16 %v2426
        %v3787 = vunpack.c.h.b16 %v2426
        %v3788 = vunpack.c.l.b16 %v2427
        %v3789 = vunpack.c.h.b16 %v2427
        %v3790 = vunpack.c.l.b16 %v2428
        %v3791 = vunpack.c.h.b16 %v2428
        %v3792 = vunpack.c.l.b16 %v2429
        %v3793 = vunpack.c.l.b16 %v2430
        %v3794 = vunpack.c.h.b16 %v2430
        %v3795 = vunpack.c.l.b16 %v2431
        %v3796 = vunpack.c.h.b16 %v2431
        %v3797 = vunpack.c.l.b16 %v2432
        %v3798 = vunpack.c.h.b16 %v2432
        %v3799 = vunpack.c.l.b16 %v2433
        %v3800 = vunpack.c.l.b16 %v2434
        %v3801 = vunpack.c.h.b16 %v2434
        %v3802 = vunpack.c.l.b16 %v2435
        %v3803 = vunpack.c.h.b16 %v2435
        %v3804 = vunpack.c.l.b16 %v2436
        %v3805 = vunpack.c.h.b16 %v2436
        %v3806 = vunpack.c.l.b16 %v2437
        %v3807 = vunpack.c.l.b16 %v2438
        %v3808 = vunpack.c.h.b16 %v2438
        %v3809 = vunpack.c.l.b16 %v2439
        %v3810 = vunpack.c.h.b16 %v2439
        %v3811 = vunpack.c.l.b16 %v2440
        %v3812 = vunpack.c.h.b16 %v2440
        %v3813 = vunpack.c.l.b16 %v2441
        %v3814 = vunpack.c.l.b16 %v2442
        %v3815 = vunpack.c.h.b16 %v2442
        %v3816 = vunpack.c.l.b16 %v2443
        %v3817 = vunpack.c.h.b16 %v2443
        %v3818 = vunpack.c.l.b16 %v2444
        %v3819 = vunpack.c.h.b16 %v2444
        %v3820 = vunpack.c.l.b16 %v2445
        %v3821 = vunpack.c.l.b16 %v2446
        %v3822 = vunpack.c.h.b16 %v2446
        %v3823 = vunpack.c.l.b16 %v2447
        %v3824 = vunpack.c.h.b16 %v2447
        %v3825 = vunpack.c.l.b16 %v2448
        %v3826 = vunpack.c.h.b16 %v2448
        %v3827 = vunpack.c.l.b16 %v2449
        %v3828 = vunpack.c.l.b16 %v2450
        %v3829 = vunpack.c.h.b16 %v2450
        %v3830 = vunpack.c.l.b16 %v2451
        %v3831 = vunpack.c.h.b16 %v2451
        %v3832 = vunpack.c.l.b16 %v2452
        %v3833 = vunpack.c.h.b16 %v2452
        %v3834 = vunpack.c.l.b16 %v2453
        %v3835 = vunpack.c.l.b16 %v2454
        %v3836 = vunpack.c.h.b16 %v2454
        %v3837 = vunpack.c.l.b16 %v2455
        %v3838 = vunpack.c.h.b16 %v2455
        %v3839 = vunpack.c.l.b16 %v2456
        %v3840 = vunpack.c.h.b16 %v2456
        %v3841 = vunpack.c.l.b16 %v2457
        %v3842 = vunpack.c.l.b16 %v2458
        %v3843 = vunpack.c.h.b16 %v2458
        %v3844 = vunpack.c.l.b16 %v2459
        %v3845 = vunpack.c.h.b16 %v2459
        %v3846 = vunpack.c.l.b16 %v2460
        %v3847 = vunpack.c.h.b16 %v2460
        %v3848 = vunpack.c.l.b16 %v2461
        %v3849 = vunpack.c.l.b16 %v2462
        %v3850 = vunpack.c.h.b16 %v2462
        %v3851 = vunpack.c.l.b16 %v2463
        %v3852 = vunpack.c.h.b16 %v2463
        %v3853 = vunpack.c.l.b16 %v2464
        %v3854 = vunpack.c.h.b16 %v2464
        %v3855 = vunpack.c.l.b16 %v2465
        %v3856 = vunpack.c.l.b16 %v2466
        %v3857 = vunpack.c.h.b16 %v2466
        %v3858 = vunpack.c.l.b16 %v2467
        %v3859 = vunpack.c.h.b16 %v2467
        %v3860 = vunpack.c.l.b16 %v2468
        %v3861 = vunpack.c.h.b16 %v2468
        %v3862 = vunpack.c.l.b16 %v2469
        %v3863 = vunpack.c.l.b16 %v2470
        %v3864 = vunpack.c.h.b16 %v2470
        %v3865 = vunpack.c.l.b16 %v2471
        %v3866 = vunpack.c.h.b16 %v2471
        %v3867 = vunpack.c.l.b16 %v2472
        %v3868 = vunpack.c.h.b16 %v2472
        %v3869 = vunpack.c.l.b16 %v2473
        %v3870 = vunpack.c.l.b16 %v2474
        %v3871 = vunpack.c.h.b16 %v2474
        %v3872 = vunpack.c.l.b16 %v2475
        %v3873 = vunpack.c.h.b16 %v2475
        %v3874 = vunpack.c.l.b16 %v2476
        %v3875 = vunpack.c.h.b16 %v2476
        %v3876 = vunpack.c.l.b16 %v2477
        %v3877 = vunpack.c.l.b16 %v2478
        %v3878 = vunpack.c.h.b16 %v2478
        %v3879 = vunpack.c.l.b16 %v2479
        %v3880 = vunpack.c.h.b16 %v2479
        %v3881 = vunpack.c.l.b16 %v2480
        %v3882 = vunpack.c.h.b16 %v2480
        %v3883 = vunpack.c.l.b16 %v2481
        %v3884 = vunpack.c.l.b16 %v2482
        %v3885 = vunpack.c.h.b16 %v2482
        %v3886 = vunpack.c.l.b16 %v2483
        %v3887 = vunpack.c.h.b16 %v2483
        %v3888 = vunpack.c.l.b16 %v2484
        %v3889 = vunpack.c.h.b16 %v2484
        %v3890 = vunpack.c.l.b16 %v2485
        %v3891 = vunpack.c.l.b16 %v2486
        %v3892 = vunpack.c.h.b16 %v2486
        %v3893 = vunpack.c.l.b16 %v2487
        %v3894 = vunpack.c.h.b16 %v2487
        %v3895 = vunpack.c.l.b16 %v2488
        %v3896 = vunpack.c.h.b16 %v2488
        %v3897 = vunpack.c.l.b16 %v2489
        %v3898 = vpack.c.b16 %v3009, %v3002
        %v3899 = vpack.c.b16 %v3010, %v3003
        %v3900 = vpack.c.b16 %v3011, %v3004
        %v3901 = vpack.c.b16 %v3012, %v3005
        %v3902 = vpack.c.b16 %v3013, %v3006
        %v3903 = vpack.c.b16 %v3014, %v3007
        %v3904 = vpack.c.b16 %v3015, %v3008
        %v3905 = vpack.c.b16 %v3023, %v3016
        %v3906 = vpack.c.b16 %v3024, %v3017
        %v3907 = vpack.c.b16 %v3025, %v3018
        %v3908 = vpack.c.b16 %v3026, %v3019
        %v3909 = vpack.c.b16 %v3027, %v3020
        %v3910 = vpack.c.b16 %v3028, %v3021
        %v3911 = vpack.c.b16 %v3029, %v3022
        %v3912 = vpack.c.b16 %v3037, %v3030
        %v3913 = vpack.c.b16 %v3038, %v3031
        %v3914 = vpack.c.b16 %v3039, %v3032
        %v3915 = vpack.c.b16 %v3040, %v3033
        %v3916 = vpack.c.b16 %v3041, %v3034
        %v3917 = vpack.c.b16 %v3042, %v3035
        %v3918 = vpack.c.b16 %v3043, %v3036
        %v3919 = vpack.c.b16 %v3051, %v3044
        %v3920 = vpack.c.b16 %v3052, %v3045
        %v3921 = vpack.c.b16 %v3053, %v3046
        %v3922 = vpack.c.b16 %v3054, %v3047
        %v3923 = vpack.c.b16 %v3055, %v3048
        %v3924 = vpack.c.b16 %v3056, %v3049
        %v3925 = vpack.c.b16 %v3057, %v3050
        %v3926 = vpack.c.b16 %v3065, %v3058
        %v3927 = vpack.c.b16 %v3066, %v3059
        %v3928 = vpack.c.b16 %v3067, %v3060
        %v3929 = vpack.c.b16 %v3068, %v3061
        %v3930 = vpack.c.b16 %v3069, %v3062
        %v3931 = vpack.c.b16 %v3070, %v3063
        %v3932 = vpack.c.b16 %v3071, %v3064
        %v3933 = vpack.c.b16 %v3079, %v3072
        %v3934 = vpack.c.b16 %v3080, %v3073
        %v3935 = vpack.c.b16 %v3081, %v3074
        %v3936 = vpack.c.b16 %v3082, %v3075
        %v3937 = vpack.c.b16 %v3083, %v3076
        %v3938 = vpack.c.b16 %v3084, %v3077
        %v3939 = vpack.c.b16 %v3085, %v3078
        %v3940 = vpack.c.b16 %v3093, %v3086
        %v3941 = vpack.c.b16 %v3094, %v3087
        %v3942 = vpack.c.b16 %v3095, %v3088
        %v3943 = vpack.c.b16 %v3096, %v3089
        %v3944 = vpack.c.b16 %v3097, %v3090
        %v3945 = vpack.c.b16 %v3098, %v3091
        %v3946 = vpack.c.b16 %v3099, %v3092
        %v3947 = vpack.c.b16 %v3107, %v3100
        %v3948 = vpack.c.b16 %v3108, %v3101
        %v3949 = vpack.c.b16 %v3109, %v3102
        %v3950 = vpack.c.b16 %v3110, %v3103
        %v3951 = vpack.c.b16 %v3111, %v3104
        %v3952 = vpack.c.b16 %v3112, %v3105
        %v3953 = vpack.c.b16 %v3113, %v3106
        %v3954 = vpack.c.b16 %v3121, %v3114
        %v3955 = vpack.c.b16 %v3122, %v3115
        %v3956 = vpack.c.b16 %v3123, %v3116
        %v3957 = vpack.c.b16 %v3124, %v3117
        %v3958 = vpack.c.b16 %v3125, %v3118
        %v3959 = vpack.c.b16 %v3126, %v3119
        %v3960 = vpack.c.b16 %v3127, %v3120
        %v3961 = vpack.c.b16 %v3135, %v3128
        %v3962 = vpack.c.b16 %v3136, %v3129
        %v3963 = vpack.c.b16 %v3137, %v3130
        %v3964 = vpack.c.b16 %v3138, %v3131
        %v3965 = vpack.c.b16 %v3139, %v3132
        %v3966 = vpack.c.b16 %v3140, %v3133
        %v3967 = vpack.c.b16 %v3141, %v3134
        %v3968 = vpack.c.b16 %v3149, %v3142
        %v3969 = vpack.c.b16 %v3150, %v3143
        %v3970 = vpack.c.b16 %v3151, %v3144
        %v3971 = vpack.c.b16 %v3152, %v3145
        %v3972 = vpack.c.b16 %v3153, %v3146
        %v3973 = vpack.c.b16 %v3154, %v3147
        %v3974 = vpack.c.b16 %v3155, %v3148
        %v3975 = vpack.c.b16 %v3163, %v3156
        %v3976 = vpack.c.b16 %v3164, %v3157
        %v3977 = vpack.c.b16 %v3165, %v3158
        %v3978 = vpack.c.b16 %v3166, %v3159
        %v3979 = vpack.c.b16 %v3167, %v3160
        %v3980 = vpack.c.b16 %v3168, %v3161
        %v3981 = vpack.c.b16 %v3169, %v3162
        %v3982 = vpack.c.b16 %v3177, %v3170
        %v3983 = vpack.c.b16 %v3178, %v3171
        %v3984 = vpack.c.b16 %v3179, %v3172
        %v3985 = vpack.c.b16 %v3180, %v3173
        %v3986 = vpack.c.b16 %v3181, %v3174
        %v3987 = vpack.c.b16 %v3182, %v3175
        %v3988 = vpack.c.b16 %v3183, %v3176
        %v3989 = vpack.c.b16 %v3191, %v3184
        %v3990 = vpack.c.b16 %v3192, %v3185
        %v3991 = vpack.c.b16 %v3193, %v3186
        %v3992 = vpack.c.b16 %v3194, %v3187
        %v3993 = vpack.c.b16 %v3195, %v3188
        %v3994 = vpack.c.b16 %v3196, %v3189
        %v3995 = vpack.c.b16 %v3197, %v3190
        %v3996 = vpack.c.b16 %v3205, %v3198
        %v3997 = vpack.c.b16 %v3206, %v3199
        %v3998 = vpack.c.b16 %v3207, %v3200
        %v3999 = vpack.c.b16 %v3208, %v3201
        %v4000 = vpack.c.b16 %v3209, %v3202
        %v4001 = vpack.c.b16 %v3210, %v3203
        %v4002 = vpack.c.b16 %v3211, %v3204
        %v4003 = vpack.c.b16 %v3219, %v3212
        %v4004 = vpack.c.b16 %v3220, %v3213
        %v4005 = vpack.c.b16 %v3221, %v3214
        %v4006 = vpack.c.b16 %v3222, %v3215
        %v4007 = vpack.c.b16 %v3223, %v3216
        %v4008 = vpack.c.b16 %v3224, %v3217
        %v4009 = vpack.c.b16 %v3225, %v3218
        %v4010 = vpack.c.b16 %v3233, %v3226
        %v4011 = vpack.c.b16 %v3234, %v3227
        %v4012 = vpack.c.b16 %v3235, %v3228
        %v4013 = vpack.c.b16 %v3236, %v3229
        %v4014 = vpack.c.b16 %v3237, %v3230
        %v4015 = vpack.c.b16 %v3238, %v3231
        %v4016 = vpack.c.b16 %v3239, %v3232
        %v4017 = vpack.c.b16 %v3247, %v3240
        %v4018 = vpack.c.b16 %v3248, %v3241
        %v4019 = vpack.c.b16 %v3249, %v3242
        %v4020 = vpack.c.b16 %v3250, %v3243
        %v4021 = vpack.c.b16 %v3251, %v3244
        %v4022 = vpack.c.b16 %v3252, %v3245
        %v4023 = vpack.c.b16 %v3253, %v3246
        %v4024 = vpack.c.b16 %v3261, %v3254
        %v4025 = vpack.c.b16 %v3262, %v3255
        %v4026 = vpack.c.b16 %v3263, %v3256
        %v4027 = vpack.c.b16 %v3264, %v3257
        %v4028 = vpack.c.b16 %v3265, %v3258
        %v4029 = vpack.c.b16 %v3266, %v3259
        %v4030 = vpack.c.b16 %v3267, %v3260
        %v4031 = vpack.c.b16 %v3275, %v3268
        %v4032 = vpack.c.b16 %v3276, %v3269
        %v4033 = vpack.c.b16 %v3277, %v3270
        %v4034 = vpack.c.b16 %v3278, %v3271
        %v4035 = vpack.c.b16 %v3279, %v3272
        %v4036 = vpack.c.b16 %v3280, %v3273
        %v4037 = vpack.c.b16 %v3281, %v3274
        %v4038 = vpack.c.b16 %v3289, %v3282
        %v4039 = vpack.c.b16 %v3290, %v3283
        %v4040 = vpack.c.b16 %v3291, %v3284
        %v4041 = vpack.c.b16 %v3292, %v3285
        %v4042 = vpack.c.b16 %v3293, %v3286
        %v4043 = vpack.c.b16 %v3294, %v3287
        %v4044 = vpack.c.b16 %v3295, %v3288
        %v4045 = vpack.c.b16 %v3303, %v3296
        %v4046 = vpack.c.b16 %v3304, %v3297
        %v4047 = vpack.c.b16 %v3305, %v3298
        %v4048 = vpack.c.b16 %v3306, %v3299
        %v4049 = vpack.c.b16 %v3307, %v3300
        %v4050 = vpack.c.b16 %v3308, %v3301
        %v4051 = vpack.c.b16 %v3309, %v3302
        %v4052 = vpack.c.b16 %v3317, %v3310
        %v4053 = vpack.c.b16 %v3318, %v3311
        %v4054 = vpack.c.b16 %v3319, %v3312
        %v4055 = vpack.c.b16 %v3320, %v3313
        %v4056 = vpack.c.b16 %v3321, %v3314
        %v4057 = vpack.c.b16 %v3322, %v3315
        %v4058 = vpack.c.b16 %v3323, %v3316
        %v4059 = vpack.c.b16 %v3331, %v3324
        %v4060 = vpack.c.b16 %v3332, %v3325
        %v4061 = vpack.c.b16 %v3333, %v3326
        %v4062 = vpack.c.b16 %v3334, %v3327
        %v4063 = vpack.c.b16 %v3335, %v3328
        %v4064 = vpack.c.b16 %v3336, %v3329
        %v4065 = vpack.c.b16 %v3337, %v3330
        %v4066 = vpack.c.b16 %v3345, %v3338
        %v4067 = vpack.c.b16 %v3346, %v3339
        %v4068 = vpack.c.b16 %v3347, %v3340
        %v4069 = vpack.c.b16 %v3348, %v3341
        %v4070 = vpack.c.b16 %v3349, %v3342
        %v4071 = vpack.c.b16 %v3350, %v3343
        %v4072 = vpack.c.b16 %v3351, %v3344
        %v4073 = vpack.c.b16 %v3359, %v3352
        %v4074 = vpack.c.b16 %v3360, %v3353
        %v4075 = vpack.c.b16 %v3361, %v3354
        %v4076 = vpack.c.b16 %v3362, %v3355
        %v4077 = vpack.c.b16 %v3363, %v3356
        %v4078 = vpack.c.b16 %v3364, %v3357
        %v4079 = vpack.c.b16 %v3365, %v3358
        %v4080 = vpack.c.b16 %v3373, %v3366
        %v4081 = vpack.c.b16 %v3374, %v3367
        %v4082 = vpack.c.b16 %v3375, %v3368
        %v4083 = vpack.c.b16 %v3376, %v3369
        %v4084 = vpack.c.b16 %v3377, %v3370
        %v4085 = vpack.c.b16 %v3378, %v3371
        %v4086 = vpack.c.b16 %v3379, %v3372
        %v4087 = vpack.c.b16 %v3387, %v3380
        %v4088 = vpack.c.b16 %v3388, %v3381
        %v4089 = vpack.c.b16 %v3389, %v3382
        %v4090 = vpack.c.b16 %v3390, %v3383
        %v4091 = vpack.c.b16 %v3391, %v3384
        %v4092 = vpack.c.b16 %v3392, %v3385
        %v4093 = vpack.c.b16 %v3393, %v3386
        %v4094 = vpack.c.b16 %v3401, %v3394
        %v4095 = vpack.c.b16 %v3402, %v3395
        %v4096 = vpack.c.b16 %v3403, %v3396
        %v4097 = vpack.c.b16 %v3404, %v3397
        %v4098 = vpack.c.b16 %v3405, %v3398
        %v4099 = vpack.c.b16 %v3406, %v3399
        %v4100 = vpack.c.b16 %v3407, %v3400
        %v4101 = vpack.c.b16 %v3415, %v3408
        %v4102 = vpack.c.b16 %v3416, %v3409
        %v4103 = vpack.c.b16 %v3417, %v3410
        %v4104 = vpack.c.b16 %v3418, %v3411
        %v4105 = vpack.c.b16 %v3419, %v3412
        %v4106 = vpack.c.b16 %v3420, %v3413
        %v4107 = vpack.c.b16 %v3421, %v3414
        %v4108 = vpack.c.b16 %v3429, %v3422
        %v4109 = vpack.c.b16 %v3430, %v3423
        %v4110 = vpack.c.b16 %v3431, %v3424
        %v4111 = vpack.c.b16 %v3432, %v3425
        %v4112 = vpack.c.b16 %v3433, %v3426
        %v4113 = vpack.c.b16 %v3434, %v3427
        %v4114 = vpack.c.b16 %v3435, %v3428
        %v4115 = vpack.c.b16 %v3443, %v3436
        %v4116 = vpack.c.b16 %v3444, %v3437
        %v4117 = vpack.c.b16 %v3445, %v3438
        %v4118 = vpack.c.b16 %v3446, %v3439
        %v4119 = vpack.c.b16 %v3447, %v3440
        %v4120 = vpack.c.b16 %v3448, %v3441
        %v4121 = vpack.c.b16 %v3449, %v3442
        %v4122 = vpack.c.b16 %v3457, %v3450
        %v4123 = vpack.c.b16 %v3458, %v3451
        %v4124 = vpack.c.b16 %v3459, %v3452
        %v4125 = vpack.c.b16 %v3460, %v3453
        %v4126 = vpack.c.b16 %v3461, %v3454
        %v4127 = vpack.c.b16 %v3462, %v3455
        %v4128 = vpack.c.b16 %v3463, %v3456
        %v4129 = vpack.c.b16 %v3471, %v3464
        %v4130 = vpack.c.b16 %v3472, %v3465
        %v4131 = vpack.c.b16 %v3473, %v3466
        %v4132 = vpack.c.b16 %v3474, %v3467
        %v4133 = vpack.c.b16 %v3475, %v3468
        %v4134 = vpack.c.b16 %v3476, %v3469
        %v4135 = vpack.c.b16 %v3477, %v3470
        %v4136 = vpack.c.b16 %v3485, %v3478
        %v4137 = vpack.c.b16 %v3486, %v3479
        %v4138 = vpack.c.b16 %v3487, %v3480
        %v4139 = vpack.c.b16 %v3488, %v3481
        %v4140 = vpack.c.b16 %v3489, %v3482
        %v4141 = vpack.c.b16 %v3490, %v3483
        %v4142 = vpack.c.b16 %v3491, %v3484
        %v4143 = vpack.c.b16 %v3499, %v3492
        %v4144 = vpack.c.b16 %v3500, %v3493
        %v4145 = vpack.c.b16 %v3501, %v3494
        %v4146 = vpack.c.b16 %v3502, %v3495
        %v4147 = vpack.c.b16 %v3503, %v3496
        %v4148 = vpack.c.b16 %v3504, %v3497
        %v4149 = vpack.c.b16 %v3505, %v3498
        %v4150 = vpack.c.b16 %v3513, %v3506
        %v4151 = vpack.c.b16 %v3514, %v3507
        %v4152 = vpack.c.b16 %v3515, %v3508
        %v4153 = vpack.c.b16 %v3516, %v3509
        %v4154 = vpack.c.b16 %v3517, %v3510
        %v4155 = vpack.c.b16 %v3518, %v3511
        %v4156 = vpack.c.b16 %v3519, %v3512
        %v4157 = vpack.c.b16 %v3527, %v3520
        %v4158 = vpack.c.b16 %v3528, %v3521
        %v4159 = vpack.c.b16 %v3529, %v3522
        %v4160 = vpack.c.b16 %v3530, %v3523
        %v4161 = vpack.c.b16 %v3531, %v3524
        %v4162 = vpack.c.b16 %v3532, %v3525
        %v4163 = vpack.c.b16 %v3533, %v3526
        %v4164 = vpack.c.b16 %v3541, %v3534
        %v4165 = vpack.c.b16 %v3542, %v3535
        %v4166 = vpack.c.b16 %v3543, %v3536
        %v4167 = vpack.c.b16 %v3544, %v3537
        %v4168 = vpack.c.b16 %v3545, %v3538
        %v4169 = vpack.c.b16 %v3546, %v3539
        %v4170 = vpack.c.b16 %v3547, %v3540
        %v4171 = vpack.c.b16 %v3555, %v3548
        %v4172 = vpack.c.b16 %v3556, %v3549
        %v4173 = vpack.c.b16 %v3557, %v3550
        %v4174 = vpack.c.b16 %v3558, %v3551
        %v4175 = vpack.c.b16 %v3559, %v3552
        %v4176 = vpack.c.b16 %v3560, %v3553
        %v4177 = vpack.c.b16 %v3561, %v3554
        %v4178 = vpack.c.b16 %v3569, %v3562
        %v4179 = vpack.c.b16 %v3570, %v3563
        %v4180 = vpack.c.b16 %v3571, %v3564
        %v4181 = vpack.c.b16 %v3572, %v3565
        %v4182 = vpack.c.b16 %v3573, %v3566
        %v4183 = vpack.c.b16 %v3574, %v3567
        %v4184 = vpack.c.b16 %v3575, %v3568
        %v4185 = vpack.c.b16 %v3583, %v3576
        %v4186 = vpack.c.b16 %v3584, %v3577
        %v4187 = vpack.c.b16 %v3585, %v3578
        %v4188 = vpack.c.b16 %v3586, %v3579
        %v4189 = vpack.c.b16 %v3587, %v3580
        %v4190 = vpack.c.b16 %v3588, %v3581
        %v4191 = vpack.c.b16 %v3589, %v3582
        %v4192 = vpack.c.b16 %v3597, %v3590
        %v4193 = vpack.c.b16 %v3598, %v3591
        %v4194 = vpack.c.b16 %v3599, %v3592
        %v4195 = vpack.c.b16 %v3600, %v3593
        %v4196 = vpack.c.b16 %v3601, %v3594
        %v4197 = vpack.c.b16 %v3602, %v3595
        %v4198 = vpack.c.b16 %v3603, %v3596
        %v4199 = vpack.c.b16 %v3611, %v3604
        %v4200 = vpack.c.b16 %v3612, %v3605
        %v4201 = vpack.c.b16 %v3613, %v3606
        %v4202 = vpack.c.b16 %v3614, %v3607
        %v4203 = vpack.c.b16 %v3615, %v3608
        %v4204 = vpack.c.b16 %v3616, %v3609
        %v4205 = vpack.c.b16 %v3617, %v3610
        %v4206 = vpack.c.b16 %v3625, %v3618
        %v4207 = vpack.c.b16 %v3626, %v3619
        %v4208 = vpack.c.b16 %v3627, %v3620
        %v4209 = vpack.c.b16 %v3628, %v3621
        %v4210 = vpack.c.b16 %v3629, %v3622
        %v4211 = vpack.c.b16 %v3630, %v3623
        %v4212 = vpack.c.b16 %v3631, %v3624
        %v4213 = vpack.c.b16 %v3639, %v3632
        %v4214 = vpack.c.b16 %v3640, %v3633
        %v4215 = vpack.c.b16 %v3641, %v3634
        %v4216 = vpack.c.b16 %v3642, %v3635
        %v4217 = vpack.c.b16 %v3643, %v3636
        %v4218 = vpack.c.b16 %v3644, %v3637
        %v4219 = vpack.c.b16 %v3645, %v3638
        %v4220 = vpack.c.b16 %v3653, %v3646
        %v4221 = vpack.c.b16 %v3654, %v3647
        %v4222 = vpack.c.b16 %v3655, %v3648
        %v4223 = vpack.c.b16 %v3656, %v3649
        %v4224 = vpack.c.b16 %v3657, %v3650
        %v4225 = vpack.c.b16 %v3658, %v3651
        %v4226 = vpack.c.b16 %v3659, %v3652
        %v4227 = vpack.c.b16 %v3667, %v3660
        %v4228 = vpack.c.b16 %v3668, %v3661
        %v4229 = vpack.c.b16 %v3669, %v3662
        %v4230 = vpack.c.b16 %v3670, %v3663
        %v4231 = vpack.c.b16 %v3671, %v3664
        %v4232 = vpack.c.b16 %v3672, %v3665
        %v4233 = vpack.c.b16 %v3673, %v3666
        %v4234 = vpack.c.b16 %v3681, %v3674
        %v4235 = vpack.c.b16 %v3682, %v3675
        %v4236 = vpack.c.b16 %v3683, %v3676
        %v4237 = vpack.c.b16 %v3684, %v3677
        %v4238 = vpack.c.b16 %v3685, %v3678
        %v4239 = vpack.c.b16 %v3686, %v3679
        %v4240 = vpack.c.b16 %v3687, %v3680
        %v4241 = vpack.c.b16 %v3695, %v3688
        %v4242 = vpack.c.b16 %v3696, %v3689
        %v4243 = vpack.c.b16 %v3697, %v3690
        %v4244 = vpack.c.b16 %v3698, %v3691
        %v4245 = vpack.c.b16 %v3699, %v3692
        %v4246 = vpack.c.b16 %v3700, %v3693
        %v4247 = vpack.c.b16 %v3701, %v3694
        %v4248 = vpack.c.b16 %v3709, %v3702
        %v4249 = vpack.c.b16 %v3710, %v3703
        %v4250 = vpack.c.b16 %v3711, %v3704
        %v4251 = vpack.c.b16 %v3712, %v3705
        %v4252 = vpack.c.b16 %v3713, %v3706
        %v4253 = vpack.c.b16 %v3714, %v3707
        %v4254 = vpack.c.b16 %v3715, %v3708
        %v4255 = vpack.c.b16 %v3723, %v3716
        %v4256 = vpack.c.b16 %v3724, %v3717
        %v4257 = vpack.c.b16 %v3725, %v3718
        %v4258 = vpack.c.b16 %v3726, %v3719
        %v4259 = vpack.c.b16 %v3727, %v3720
        %v4260 = vpack.c.b16 %v3728, %v3721
        %v4261 = vpack.c.b16 %v3729, %v3722
        %v4262 = vpack.c.b16 %v3737, %v3730
        %v4263 = vpack.c.b16 %v3738, %v3731
        %v4264 = vpack.c.b16 %v3739, %v3732
        %v4265 = vpack.c.b16 %v3740, %v3733
        %v4266 = vpack.c.b16 %v3741, %v3734
        %v4267 = vpack.c.b16 %v3742, %v3735
        %v4268 = vpack.c.b16 %v3743, %v3736
        %v4269 = vpack.c.b16 %v3751, %v3744
        %v4270 = vpack.c.b16 %v3752, %v3745
        %v4271 = vpack.c.b16 %v3753, %v3746
        %v4272 = vpack.c.b16 %v3754, %v3747
        %v4273 = vpack.c.b16 %v3755, %v3748
        %v4274 = vpack.c.b16 %v3756, %v3749
        %v4275 = vpack.c.b16 %v3757, %v3750
        %v4276 = vpack.c.b16 %v3765, %v3758
        %v4277 = vpack.c.b16 %v3766, %v3759
        %v4278 = vpack.c.b16 %v3767, %v3760
        %v4279 = vpack.c.b16 %v3768, %v3761
        %v4280 = vpack.c.b16 %v3769, %v3762
        %v4281 = vpack.c.b16 %v3770, %v3763
        %v4282 = vpack.c.b16 %v3771, %v3764
        %v4283 = vpack.c.b16 %v3779, %v3772
        %v4284 = vpack.c.b16 %v3780, %v3773
        %v4285 = vpack.c.b16 %v3781, %v3774
        %v4286 = vpack.c.b16 %v3782, %v3775
        %v4287 = vpack.c.b16 %v3783, %v3776
        %v4288 = vpack.c.b16 %v3784, %v3777
        %v4289 = vpack.c.b16 %v3785, %v3778
        %v4290 = vpack.c.b16 %v3793, %v3786
        %v4291 = vpack.c.b16 %v3794, %v3787
        %v4292 = vpack.c.b16 %v3795, %v3788
        %v4293 = vpack.c.b16 %v3796, %v3789
        %v4294 = vpack.c.b16 %v3797, %v3790
        %v4295 = vpack.c.b16 %v3798, %v3791
        %v4296 = vpack.c.b16 %v3799, %v3792
        %v4297 = vpack.c.b16 %v3807, %v3800
        %v4298 = vpack.c.b16 %v3808, %v3801
        %v4299 = vpack.c.b16 %v3809, %v3802
        %v4300 = vpack.c.b16 %v3810, %v3803
        %v4301 = vpack.c.b16 %v3811, %v3804
        %v4302 = vpack.c.b16 %v3812, %v3805
        %v4303 = vpack.c.b16 %v3813, %v3806
        %v4304 = vpack.c.b16 %v3821, %v3814
        %v4305 = vpack.c.b16 %v3822, %v3815
        %v4306 = vpack.c.b16 %v3823, %v3816
        %v4307 = vpack.c.b16 %v3824, %v3817
        %v4308 = vpack.c.b16 %v3825, %v3818
        %v4309 = vpack.c.b16 %v3826, %v3819
        %v4310 = vpack.c.b16 %v3827, %v3820
        %v4311 = vpack.c.b16 %v3835, %v3828
        %v4312 = vpack.c.b16 %v3836, %v3829
        %v4313 = vpack.c.b16 %v3837, %v3830
        %v4314 = vpack.c.b16 %v3838, %v3831
        %v4315 = vpack.c.b16 %v3839, %v3832
        %v4316 = vpack.c.b16 %v3840, %v3833
        %v4317 = vpack.c.b16 %v3841, %v3834
        %v4318 = vpack.c.b16 %v3849, %v3842
        %v4319 = vpack.c.b16 %v3850, %v3843
        %v4320 = vpack.c.b16 %v3851, %v3844
        %v4321 = vpack.c.b16 %v3852, %v3845
        %v4322 = vpack.c.b16 %v3853, %v3846
        %v4323 = vpack.c.b16 %v3854, %v3847
        %v4324 = vpack.c.b16 %v3855, %v3848
        %v4325 = vpack.c.b16 %v3863, %v3856
        %v4326 = vpack.c.b16 %v3864, %v3857
        %v4327 = vpack.c.b16 %v3865, %v3858
        %v4328 = vpack.c.b16 %v3866, %v3859
        %v4329 = vpack.c.b16 %v3867, %v3860
        %v4330 = vpack.c.b16 %v3868, %v3861
        %v4331 = vpack.c.b16 %v3869, %v3862
        %v4332 = vpack.c.b16 %v3877, %v3870
        %v4333 = vpack.c.b16 %v3878, %v3871
        %v4334 = vpack.c.b16 %v3879, %v3872
        %v4335 = vpack.c.b16 %v3880, %v3873
        %v4336 = vpack.c.b16 %v3881, %v3874
        %v4337 = vpack.c.b16 %v3882, %v3875
        %v4338 = vpack.c.b16 %v3883, %v3876
        %v4339 = vpack.c.b16 %v3891, %v3884
        %v4340 = vpack.c.b16 %v3892, %v3885
        %v4341 = vpack.c.b16 %v3893, %v3886
        %v4342 = vpack.c.b16 %v3894, %v3887
        %v4343 = vpack.c.b16 %v3895, %v3888
        %v4344 = vpack.c.b16 %v3896, %v3889
        %v4345 = vpack.c.b16 %v3897, %v3890
        %4794 = vmatpush.bf16.msra.mxu0 %v3947
        %4795 = vmatpush.bf16.msra.mxu0 %v3940
        %4796 = vmatpush.bf16.msra.mxu0 %v3933
        %4797 = vmatpush.bf16.msra.mxu0 %v3926
        %4798 = vmatpush.bf16.msra.mxu0 %v3919
        %4799 = vmatpush.bf16.msra.mxu0 %v3912
        %4800 = vmatpush.bf16.msra.mxu0 %v3905
        %4801 = vmatpush.bf16.msra.mxu0 %v3898
        %4802 = vmatmul.bf16.gmra.mxu0 %v1970
        %v4803 = vpop.f32.mrf.mxu0
        %v4804 = vadd.f32 0.0, %v4803
        %v4805 = vpop.f32.mrf.mxu0
        %v4806 = vadd.f32 0.0, %v4805
        %4807 = vdwg.mxu0
        %4808 = vmatpush.bf16.msra.mxu0 %v4003
        %4809 = vmatpush.bf16.msra.mxu0 %v3996
        %4810 = vmatpush.bf16.msra.mxu0 %v3989
        %4811 = vmatpush.bf16.msra.mxu0 %v3982
        %4812 = vmatpush.bf16.msra.mxu0 %v3975
        %4813 = vmatpush.bf16.msra.mxu0 %v3968
        %4814 = vmatpush.bf16.msra.mxu0 %v3961
        %4815 = vmatpush.bf16.msra.mxu0 %v3954
        %4816 = vmatmul.bf16.gmra.mxu0 %v1971
        %v4817 = vpop.f32.mrf.mxu0
        %v4818 = vadd.f32 %v4804, %v4817
        %v4819 = vpop.f32.mrf.mxu0
        %v4820 = vadd.f32 %v4806, %v4819
        %4821 = vdwg.mxu0
        %4822 = vmatpush.bf16.msra.mxu0 %v4059
        %4823 = vmatpush.bf16.msra.mxu0 %v4052
        %4824 = vmatpush.bf16.msra.mxu0 %v4045
        %4825 = vmatpush.bf16.msra.mxu0 %v4038
        %4826 = vmatpush.bf16.msra.mxu0 %v4031
        %4827 = vmatpush.bf16.msra.mxu0 %v4024
        %4828 = vmatpush.bf16.msra.mxu0 %v4017
        %4829 = vmatpush.bf16.msra.mxu0 %v4010
        %4830 = vmatmul.bf16.gmra.mxu0 %v1972
        %v4831 = vpop.f32.mrf.mxu0
        %v4832 = vadd.f32 %v4818, %v4831
        %v4833 = vpop.f32.mrf.mxu0
        %v4834 = vadd.f32 %v4820, %v4833
        %4835 = vdwg.mxu0
        %4836 = vmatpush.bf16.msra.mxu0 %v4115
        %4837 = vmatpush.bf16.msra.mxu0 %v4108
        %4838 = vmatpush.bf16.msra.mxu0 %v4101
        %4839 = vmatpush.bf16.msra.mxu0 %v4094
        %4840 = vmatpush.bf16.msra.mxu0 %v4087
        %4841 = vmatpush.bf16.msra.mxu0 %v4080
        %4842 = vmatpush.bf16.msra.mxu0 %v4073
        %4843 = vmatpush.bf16.msra.mxu0 %v4066
        %4844 = vmatmul.bf16.gmra.mxu0 %v1973
        %v4845 = vpop.f32.mrf.mxu0
        %v4846 = vadd.f32 %v4832, %v4845
        %v4847 = vpop.f32.mrf.mxu0
        %v4848 = vadd.f32 %v4834, %v4847
        %4849 = vdwg.mxu0
        %4850 = vmatpush.bf16.msra.mxu0 %v4171
        %4851 = vmatpush.bf16.msra.mxu0 %v4164
        %4852 = vmatpush.bf16.msra.mxu0 %v4157
        %4853 = vmatpush.bf16.msra.mxu0 %v4150
        %4854 = vmatpush.bf16.msra.mxu0 %v4143
        %4855 = vmatpush.bf16.msra.mxu0 %v4136
        %4856 = vmatpush.bf16.msra.mxu0 %v4129
        %4857 = vmatpush.bf16.msra.mxu0 %v4122
        %4858 = vmatmul.bf16.gmra.mxu0 %v1974
        %v4859 = vpop.f32.mrf.mxu0
        %v4860 = vadd.f32 %v4846, %v4859
        %v4861 = vpop.f32.mrf.mxu0
        %v4862 = vadd.f32 %v4848, %v4861
        %4863 = vdwg.mxu0
        %4864 = vmatpush.bf16.msra.mxu0 %v4227
        %4865 = vmatpush.bf16.msra.mxu0 %v4220
        %4866 = vmatpush.bf16.msra.mxu0 %v4213
        %4867 = vmatpush.bf16.msra.mxu0 %v4206
        %4868 = vmatpush.bf16.msra.mxu0 %v4199
        %4869 = vmatpush.bf16.msra.mxu0 %v4192
        %4870 = vmatpush.bf16.msra.mxu0 %v4185
        %4871 = vmatpush.bf16.msra.mxu0 %v4178
        %4872 = vmatmul.bf16.gmra.mxu0 %v1975
        %v4873 = vpop.f32.mrf.mxu0
        %v4874 = vadd.f32 %v4860, %v4873
        %v4875 = vpop.f32.mrf.mxu0
        %v4876 = vadd.f32 %v4862, %v4875
        %4877 = vdwg.mxu0
        %4878 = vmatpush.bf16.msra.mxu0 %v4283
        %4879 = vmatpush.bf16.msra.mxu0 %v4276
        %4880 = vmatpush.bf16.msra.mxu0 %v4269
        %4881 = vmatpush.bf16.msra.mxu0 %v4262
        %4882 = vmatpush.bf16.msra.mxu0 %v4255
        %4883 = vmatpush.bf16.msra.mxu0 %v4248
        %4884 = vmatpush.bf16.msra.mxu0 %v4241
        %4885 = vmatpush.bf16.msra.mxu0 %v4234
        %4886 = vmatmul.bf16.gmra.mxu0 %v1976
        %v4887 = vpop.f32.mrf.mxu0
        %v4888 = vadd.f32 %v4874, %v4887
        %v4889 = vpop.f32.mrf.mxu0
        %v4890 = vadd.f32 %v4876, %v4889
        %4891 = vdwg.mxu0
        %4892 = vmatpush.bf16.msra.mxu0 %v4339
        %4893 = vmatpush.bf16.msra.mxu0 %v4332
        %4894 = vmatpush.bf16.msra.mxu0 %v4325
        %4895 = vmatpush.bf16.msra.mxu0 %v4318
        %4896 = vmatpush.bf16.msra.mxu0 %v4311
        %4897 = vmatpush.bf16.msra.mxu0 %v4304
        %4898 = vmatpush.bf16.msra.mxu0 %v4297
        %4899 = vmatpush.bf16.msra.mxu0 %v4290
        %4900 = vmatmul.bf16.gmra.mxu0 %v1977
        %v4901 = vpop.f32.mrf.mxu0
        %v4902 = vadd.f32 %v4888, %v4901
        %v4903 = vpop.f32.mrf.mxu0
        %v4904 = vadd.f32 %v4890, %v4903
        %4905 = vdwg.mxu0
        %4906 = vmatpush.bf16.msra.mxu0 %v3948
        %4907 = vmatpush.bf16.msra.mxu0 %v3941
        %4908 = vmatpush.bf16.msra.mxu0 %v3934
        %4909 = vmatpush.bf16.msra.mxu0 %v3927
        %4910 = vmatpush.bf16.msra.mxu0 %v3920
        %4911 = vmatpush.bf16.msra.mxu0 %v3913
        %4912 = vmatpush.bf16.msra.mxu0 %v3906
        %4913 = vmatpush.bf16.msra.mxu0 %v3899
        %4914 = vmatmul.bf16.gmra.mxu0 %v1970
        %v4915 = vpop.f32.mrf.mxu0
        %v4916 = vadd.f32 0.0, %v4915
        %v4917 = vpop.f32.mrf.mxu0
        %v4918 = vadd.f32 0.0, %v4917
        %4919 = vdwg.mxu0
        %4920 = vmatpush.bf16.msra.mxu0 %v4004
        %4921 = vmatpush.bf16.msra.mxu0 %v3997
        %4922 = vmatpush.bf16.msra.mxu0 %v3990
        %4923 = vmatpush.bf16.msra.mxu0 %v3983
        %4924 = vmatpush.bf16.msra.mxu0 %v3976
        %4925 = vmatpush.bf16.msra.mxu0 %v3969
        %4926 = vmatpush.bf16.msra.mxu0 %v3962
        %4927 = vmatpush.bf16.msra.mxu0 %v3955
        %4928 = vmatmul.bf16.gmra.mxu0 %v1971
        %v4929 = vpop.f32.mrf.mxu0
        %v4930 = vadd.f32 %v4916, %v4929
        %v4931 = vpop.f32.mrf.mxu0
        %v4932 = vadd.f32 %v4918, %v4931
        %4933 = vdwg.mxu0
        %4934 = vmatpush.bf16.msra.mxu0 %v4060
        %4935 = vmatpush.bf16.msra.mxu0 %v4053
        %4936 = vmatpush.bf16.msra.mxu0 %v4046
        %4937 = vmatpush.bf16.msra.mxu0 %v4039
        %4938 = vmatpush.bf16.msra.mxu0 %v4032
        %4939 = vmatpush.bf16.msra.mxu0 %v4025
        %4940 = vmatpush.bf16.msra.mxu0 %v4018
        %4941 = vmatpush.bf16.msra.mxu0 %v4011
        %4942 = vmatmul.bf16.gmra.mxu0 %v1972
        %v4943 = vpop.f32.mrf.mxu0
        %v4944 = vadd.f32 %v4930, %v4943
        %v4945 = vpop.f32.mrf.mxu0
        %v4946 = vadd.f32 %v4932, %v4945
        %4947 = vdwg.mxu0
        %4948 = vmatpush.bf16.msra.mxu0 %v4116
        %4949 = vmatpush.bf16.msra.mxu0 %v4109
        %4950 = vmatpush.bf16.msra.mxu0 %v4102
        %4951 = vmatpush.bf16.msra.mxu0 %v4095
        %4952 = vmatpush.bf16.msra.mxu0 %v4088
        %4953 = vmatpush.bf16.msra.mxu0 %v4081
        %4954 = vmatpush.bf16.msra.mxu0 %v4074
        %4955 = vmatpush.bf16.msra.mxu0 %v4067
        %4956 = vmatmul.bf16.gmra.mxu0 %v1973
        %v4957 = vpop.f32.mrf.mxu0
        %v4958 = vadd.f32 %v4944, %v4957
        %v4959 = vpop.f32.mrf.mxu0
        %v4960 = vadd.f32 %v4946, %v4959
        %4961 = vdwg.mxu0
        %4962 = vmatpush.bf16.msra.mxu0 %v4172
        %4963 = vmatpush.bf16.msra.mxu0 %v4165
        %4964 = vmatpush.bf16.msra.mxu0 %v4158
        %4965 = vmatpush.bf16.msra.mxu0 %v4151
        %4966 = vmatpush.bf16.msra.mxu0 %v4144
        %4967 = vmatpush.bf16.msra.mxu0 %v4137
        %4968 = vmatpush.bf16.msra.mxu0 %v4130
        %4969 = vmatpush.bf16.msra.mxu0 %v4123
        %4970 = vmatmul.bf16.gmra.mxu0 %v1974
        %v4971 = vpop.f32.mrf.mxu0
        %v4972 = vadd.f32 %v4958, %v4971
        %v4973 = vpop.f32.mrf.mxu0
        %v4974 = vadd.f32 %v4960, %v4973
        %4975 = vdwg.mxu0
        %4976 = vmatpush.bf16.msra.mxu0 %v4228
        %4977 = vmatpush.bf16.msra.mxu0 %v4221
        %4978 = vmatpush.bf16.msra.mxu0 %v4214
        %4979 = vmatpush.bf16.msra.mxu0 %v4207
        %4980 = vmatpush.bf16.msra.mxu0 %v4200
        %4981 = vmatpush.bf16.msra.mxu0 %v4193
        %4982 = vmatpush.bf16.msra.mxu0 %v4186
        %4983 = vmatpush.bf16.msra.mxu0 %v4179
        %4984 = vmatmul.bf16.gmra.mxu0 %v1975
        %v4985 = vpop.f32.mrf.mxu0
        %v4986 = vadd.f32 %v4972, %v4985
        %v4987 = vpop.f32.mrf.mxu0
        %v4988 = vadd.f32 %v4974, %v4987
        %4989 = vdwg.mxu0
        %4990 = vmatpush.bf16.msra.mxu0 %v4284
        %4991 = vmatpush.bf16.msra.mxu0 %v4277
        %4992 = vmatpush.bf16.msra.mxu0 %v4270
        %4993 = vmatpush.bf16.msra.mxu0 %v4263
        %4994 = vmatpush.bf16.msra.mxu0 %v4256
        %4995 = vmatpush.bf16.msra.mxu0 %v4249
        %4996 = vmatpush.bf16.msra.mxu0 %v4242
        %4997 = vmatpush.bf16.msra.mxu0 %v4235
        %4998 = vmatmul.bf16.gmra.mxu0 %v1976
        %v4999 = vpop.f32.mrf.mxu0
        %v5000 = vadd.f32 %v4986, %v4999
        %v5001 = vpop.f32.mrf.mxu0
        %v5002 = vadd.f32 %v4988, %v5001
        %5003 = vdwg.mxu0
        %5004 = vmatpush.bf16.msra.mxu0 %v4340
        %5005 = vmatpush.bf16.msra.mxu0 %v4333
        %5006 = vmatpush.bf16.msra.mxu0 %v4326
        %5007 = vmatpush.bf16.msra.mxu0 %v4319
        %5008 = vmatpush.bf16.msra.mxu0 %v4312
        %5009 = vmatpush.bf16.msra.mxu0 %v4305
        %5010 = vmatpush.bf16.msra.mxu0 %v4298
        %5011 = vmatpush.bf16.msra.mxu0 %v4291
        %5012 = vmatmul.bf16.gmra.mxu0 %v1977
        %v5013 = vpop.f32.mrf.mxu0
        %v5014 = vadd.f32 %v5000, %v5013
        %v5015 = vpop.f32.mrf.mxu0
        %v5016 = vadd.f32 %v5002, %v5015
        %5017 = vdwg.mxu0
        %5018 = vmatpush.bf16.msra.mxu0 %v3949
        %5019 = vmatpush.bf16.msra.mxu0 %v3942
        %5020 = vmatpush.bf16.msra.mxu0 %v3935
        %5021 = vmatpush.bf16.msra.mxu0 %v3928
        %5022 = vmatpush.bf16.msra.mxu0 %v3921
        %5023 = vmatpush.bf16.msra.mxu0 %v3914
        %5024 = vmatpush.bf16.msra.mxu0 %v3907
        %5025 = vmatpush.bf16.msra.mxu0 %v3900
        %5026 = vmatmul.bf16.gmra.mxu0 %v1970
        %v5027 = vpop.f32.mrf.mxu0
        %v5028 = vadd.f32 0.0, %v5027
        %v5029 = vpop.f32.mrf.mxu0
        %v5030 = vadd.f32 0.0, %v5029
        %5031 = vdwg.mxu0
        %5032 = vmatpush.bf16.msra.mxu0 %v4005
        %5033 = vmatpush.bf16.msra.mxu0 %v3998
        %5034 = vmatpush.bf16.msra.mxu0 %v3991
        %5035 = vmatpush.bf16.msra.mxu0 %v3984
        %5036 = vmatpush.bf16.msra.mxu0 %v3977
        %5037 = vmatpush.bf16.msra.mxu0 %v3970
        %5038 = vmatpush.bf16.msra.mxu0 %v3963
        %5039 = vmatpush.bf16.msra.mxu0 %v3956
        %5040 = vmatmul.bf16.gmra.mxu0 %v1971
        %v5041 = vpop.f32.mrf.mxu0
        %v5042 = vadd.f32 %v5028, %v5041
        %v5043 = vpop.f32.mrf.mxu0
        %v5044 = vadd.f32 %v5030, %v5043
        %5045 = vdwg.mxu0
        %5046 = vmatpush.bf16.msra.mxu0 %v4061
        %5047 = vmatpush.bf16.msra.mxu0 %v4054
        %5048 = vmatpush.bf16.msra.mxu0 %v4047
        %5049 = vmatpush.bf16.msra.mxu0 %v4040
        %5050 = vmatpush.bf16.msra.mxu0 %v4033
        %5051 = vmatpush.bf16.msra.mxu0 %v4026
        %5052 = vmatpush.bf16.msra.mxu0 %v4019
        %5053 = vmatpush.bf16.msra.mxu0 %v4012
        %5054 = vmatmul.bf16.gmra.mxu0 %v1972
        %v5055 = vpop.f32.mrf.mxu0
        %v5056 = vadd.f32 %v5042, %v5055
        %v5057 = vpop.f32.mrf.mxu0
        %v5058 = vadd.f32 %v5044, %v5057
        %5059 = vdwg.mxu0
        %5060 = vmatpush.bf16.msra.mxu0 %v4117
        %5061 = vmatpush.bf16.msra.mxu0 %v4110
        %5062 = vmatpush.bf16.msra.mxu0 %v4103
        %5063 = vmatpush.bf16.msra.mxu0 %v4096
        %5064 = vmatpush.bf16.msra.mxu0 %v4089
        %5065 = vmatpush.bf16.msra.mxu0 %v4082
        %5066 = vmatpush.bf16.msra.mxu0 %v4075
        %5067 = vmatpush.bf16.msra.mxu0 %v4068
        %5068 = vmatmul.bf16.gmra.mxu0 %v1973
        %v5069 = vpop.f32.mrf.mxu0
        %v5070 = vadd.f32 %v5056, %v5069
        %v5071 = vpop.f32.mrf.mxu0
        %v5072 = vadd.f32 %v5058, %v5071
        %5073 = vdwg.mxu0
        %5074 = vmatpush.bf16.msra.mxu0 %v4173
        %5075 = vmatpush.bf16.msra.mxu0 %v4166
        %5076 = vmatpush.bf16.msra.mxu0 %v4159
        %5077 = vmatpush.bf16.msra.mxu0 %v4152
        %5078 = vmatpush.bf16.msra.mxu0 %v4145
        %5079 = vmatpush.bf16.msra.mxu0 %v4138
        %5080 = vmatpush.bf16.msra.mxu0 %v4131
        %5081 = vmatpush.bf16.msra.mxu0 %v4124
        %5082 = vmatmul.bf16.gmra.mxu0 %v1974
        %v5083 = vpop.f32.mrf.mxu0
        %v5084 = vadd.f32 %v5070, %v5083
        %v5085 = vpop.f32.mrf.mxu0
        %v5086 = vadd.f32 %v5072, %v5085
        %5087 = vdwg.mxu0
        %5088 = vmatpush.bf16.msra.mxu0 %v4229
        %5089 = vmatpush.bf16.msra.mxu0 %v4222
        %5090 = vmatpush.bf16.msra.mxu0 %v4215
        %5091 = vmatpush.bf16.msra.mxu0 %v4208
        %5092 = vmatpush.bf16.msra.mxu0 %v4201
        %5093 = vmatpush.bf16.msra.mxu0 %v4194
        %5094 = vmatpush.bf16.msra.mxu0 %v4187
        %5095 = vmatpush.bf16.msra.mxu0 %v4180
        %5096 = vmatmul.bf16.gmra.mxu0 %v1975
        %v5097 = vpop.f32.mrf.mxu0
        %v5098 = vadd.f32 %v5084, %v5097
        %v5099 = vpop.f32.mrf.mxu0
        %v5100 = vadd.f32 %v5086, %v5099
        %5101 = vdwg.mxu0
        %5102 = vmatpush.bf16.msra.mxu0 %v4285
        %5103 = vmatpush.bf16.msra.mxu0 %v4278
        %5104 = vmatpush.bf16.msra.mxu0 %v4271
        %5105 = vmatpush.bf16.msra.mxu0 %v4264
        %5106 = vmatpush.bf16.msra.mxu0 %v4257
        %5107 = vmatpush.bf16.msra.mxu0 %v4250
        %5108 = vmatpush.bf16.msra.mxu0 %v4243
        %5109 = vmatpush.bf16.msra.mxu0 %v4236
        %5110 = vmatmul.bf16.gmra.mxu0 %v1976
        %v5111 = vpop.f32.mrf.mxu0
        %v5112 = vadd.f32 %v5098, %v5111
        %v5113 = vpop.f32.mrf.mxu0
        %v5114 = vadd.f32 %v5100, %v5113
        %5115 = vdwg.mxu0
        %5116 = vmatpush.bf16.msra.mxu0 %v4341
        %5117 = vmatpush.bf16.msra.mxu0 %v4334
        %5118 = vmatpush.bf16.msra.mxu0 %v4327
        %5119 = vmatpush.bf16.msra.mxu0 %v4320
        %5120 = vmatpush.bf16.msra.mxu0 %v4313
        %5121 = vmatpush.bf16.msra.mxu0 %v4306
        %5122 = vmatpush.bf16.msra.mxu0 %v4299
        %5123 = vmatpush.bf16.msra.mxu0 %v4292
        %5124 = vmatmul.bf16.gmra.mxu0 %v1977
        %v5125 = vpop.f32.mrf.mxu0
        %v5126 = vadd.f32 %v5112, %v5125
        %v5127 = vpop.f32.mrf.mxu0
        %v5128 = vadd.f32 %v5114, %v5127
        %5129 = vdwg.mxu0
        %5130 = vmatpush.bf16.msra.mxu0 %v3950
        %5131 = vmatpush.bf16.msra.mxu0 %v3943
        %5132 = vmatpush.bf16.msra.mxu0 %v3936
        %5133 = vmatpush.bf16.msra.mxu0 %v3929
        %5134 = vmatpush.bf16.msra.mxu0 %v3922
        %5135 = vmatpush.bf16.msra.mxu0 %v3915
        %5136 = vmatpush.bf16.msra.mxu0 %v3908
        %5137 = vmatpush.bf16.msra.mxu0 %v3901
        %5138 = vmatmul.bf16.gmra.mxu0 %v1970
        %v5139 = vpop.f32.mrf.mxu0
        %v5140 = vadd.f32 0.0, %v5139
        %v5141 = vpop.f32.mrf.mxu0
        %v5142 = vadd.f32 0.0, %v5141
        %5143 = vdwg.mxu0
        %5144 = vmatpush.bf16.msra.mxu0 %v4006
        %5145 = vmatpush.bf16.msra.mxu0 %v3999
        %5146 = vmatpush.bf16.msra.mxu0 %v3992
        %5147 = vmatpush.bf16.msra.mxu0 %v3985
        %5148 = vmatpush.bf16.msra.mxu0 %v3978
        %5149 = vmatpush.bf16.msra.mxu0 %v3971
        %5150 = vmatpush.bf16.msra.mxu0 %v3964
        %5151 = vmatpush.bf16.msra.mxu0 %v3957
        %5152 = vmatmul.bf16.gmra.mxu0 %v1971
        %v5153 = vpop.f32.mrf.mxu0
        %v5154 = vadd.f32 %v5140, %v5153
        %v5155 = vpop.f32.mrf.mxu0
        %v5156 = vadd.f32 %v5142, %v5155
        %5157 = vdwg.mxu0
        %5158 = vmatpush.bf16.msra.mxu0 %v4062
        %5159 = vmatpush.bf16.msra.mxu0 %v4055
        %5160 = vmatpush.bf16.msra.mxu0 %v4048
        %5161 = vmatpush.bf16.msra.mxu0 %v4041
        %5162 = vmatpush.bf16.msra.mxu0 %v4034
        %5163 = vmatpush.bf16.msra.mxu0 %v4027
        %5164 = vmatpush.bf16.msra.mxu0 %v4020
        %5165 = vmatpush.bf16.msra.mxu0 %v4013
        %5166 = vmatmul.bf16.gmra.mxu0 %v1972
        %v5167 = vpop.f32.mrf.mxu0
        %v5168 = vadd.f32 %v5154, %v5167
        %v5169 = vpop.f32.mrf.mxu0
        %v5170 = vadd.f32 %v5156, %v5169
        %5171 = vdwg.mxu0
        %5172 = vmatpush.bf16.msra.mxu0 %v4118
        %5173 = vmatpush.bf16.msra.mxu0 %v4111
        %5174 = vmatpush.bf16.msra.mxu0 %v4104
        %5175 = vmatpush.bf16.msra.mxu0 %v4097
        %5176 = vmatpush.bf16.msra.mxu0 %v4090
        %5177 = vmatpush.bf16.msra.mxu0 %v4083
        %5178 = vmatpush.bf16.msra.mxu0 %v4076
        %5179 = vmatpush.bf16.msra.mxu0 %v4069
        %5180 = vmatmul.bf16.gmra.mxu0 %v1973
        %v5181 = vpop.f32.mrf.mxu0
        %v5182 = vadd.f32 %v5168, %v5181
        %v5183 = vpop.f32.mrf.mxu0
        %v5184 = vadd.f32 %v5170, %v5183
        %5185 = vdwg.mxu0
        %5186 = vmatpush.bf16.msra.mxu0 %v4174
        %5187 = vmatpush.bf16.msra.mxu0 %v4167
        %5188 = vmatpush.bf16.msra.mxu0 %v4160
        %5189 = vmatpush.bf16.msra.mxu0 %v4153
        %5190 = vmatpush.bf16.msra.mxu0 %v4146
        %5191 = vmatpush.bf16.msra.mxu0 %v4139
        %5192 = vmatpush.bf16.msra.mxu0 %v4132
        %5193 = vmatpush.bf16.msra.mxu0 %v4125
        %5194 = vmatmul.bf16.gmra.mxu0 %v1974
        %v5195 = vpop.f32.mrf.mxu0
        %v5196 = vadd.f32 %v5182, %v5195
        %v5197 = vpop.f32.mrf.mxu0
        %v5198 = vadd.f32 %v5184, %v5197
        %5199 = vdwg.mxu0
        %5200 = vmatpush.bf16.msra.mxu0 %v4230
        %5201 = vmatpush.bf16.msra.mxu0 %v4223
        %5202 = vmatpush.bf16.msra.mxu0 %v4216
        %5203 = vmatpush.bf16.msra.mxu0 %v4209
        %5204 = vmatpush.bf16.msra.mxu0 %v4202
        %5205 = vmatpush.bf16.msra.mxu0 %v4195
        %5206 = vmatpush.bf16.msra.mxu0 %v4188
        %5207 = vmatpush.bf16.msra.mxu0 %v4181
        %5208 = vmatmul.bf16.gmra.mxu0 %v1975
        %v5209 = vpop.f32.mrf.mxu0
        %v5210 = vadd.f32 %v5196, %v5209
        %v5211 = vpop.f32.mrf.mxu0
        %v5212 = vadd.f32 %v5198, %v5211
        %5213 = vdwg.mxu0
        %5214 = vmatpush.bf16.msra.mxu0 %v4286
        %5215 = vmatpush.bf16.msra.mxu0 %v4279
        %5216 = vmatpush.bf16.msra.mxu0 %v4272
        %5217 = vmatpush.bf16.msra.mxu0 %v4265
        %5218 = vmatpush.bf16.msra.mxu0 %v4258
        %5219 = vmatpush.bf16.msra.mxu0 %v4251
        %5220 = vmatpush.bf16.msra.mxu0 %v4244
        %5221 = vmatpush.bf16.msra.mxu0 %v4237
        %5222 = vmatmul.bf16.gmra.mxu0 %v1976
        %v5223 = vpop.f32.mrf.mxu0
        %v5224 = vadd.f32 %v5210, %v5223
        %v5225 = vpop.f32.mrf.mxu0
        %v5226 = vadd.f32 %v5212, %v5225
        %5227 = vdwg.mxu0
        %5228 = vmatpush.bf16.msra.mxu0 %v4342
        %5229 = vmatpush.bf16.msra.mxu0 %v4335
        %5230 = vmatpush.bf16.msra.mxu0 %v4328
        %5231 = vmatpush.bf16.msra.mxu0 %v4321
        %5232 = vmatpush.bf16.msra.mxu0 %v4314
        %5233 = vmatpush.bf16.msra.mxu0 %v4307
        %5234 = vmatpush.bf16.msra.mxu0 %v4300
        %5235 = vmatpush.bf16.msra.mxu0 %v4293
        %5236 = vmatmul.bf16.gmra.mxu0 %v1977
        %v5237 = vpop.f32.mrf.mxu0
        %v5238 = vadd.f32 %v5224, %v5237
        %v5239 = vpop.f32.mrf.mxu0
        %v5240 = vadd.f32 %v5226, %v5239
        %5241 = vdwg.mxu0
        %5242 = vmatpush.bf16.msra.mxu0 %v3951
        %5243 = vmatpush.bf16.msra.mxu0 %v3944
        %5244 = vmatpush.bf16.msra.mxu0 %v3937
        %5245 = vmatpush.bf16.msra.mxu0 %v3930
        %5246 = vmatpush.bf16.msra.mxu0 %v3923
        %5247 = vmatpush.bf16.msra.mxu0 %v3916
        %5248 = vmatpush.bf16.msra.mxu0 %v3909
        %5249 = vmatpush.bf16.msra.mxu0 %v3902
        %5250 = vmatmul.bf16.gmra.mxu0 %v1970
        %v5251 = vpop.f32.mrf.mxu0
        %v5252 = vadd.f32 0.0, %v5251
        %v5253 = vpop.f32.mrf.mxu0
        %v5254 = vadd.f32 0.0, %v5253
        %5255 = vdwg.mxu0
        %5256 = vmatpush.bf16.msra.mxu0 %v4007
        %5257 = vmatpush.bf16.msra.mxu0 %v4000
        %5258 = vmatpush.bf16.msra.mxu0 %v3993
        %5259 = vmatpush.bf16.msra.mxu0 %v3986
        %5260 = vmatpush.bf16.msra.mxu0 %v3979
        %5261 = vmatpush.bf16.msra.mxu0 %v3972
        %5262 = vmatpush.bf16.msra.mxu0 %v3965
        %5263 = vmatpush.bf16.msra.mxu0 %v3958
        %5264 = vmatmul.bf16.gmra.mxu0 %v1971
        %v5265 = vpop.f32.mrf.mxu0
        %v5266 = vadd.f32 %v5252, %v5265
        %v5267 = vpop.f32.mrf.mxu0
        %v5268 = vadd.f32 %v5254, %v5267
        %5269 = vdwg.mxu0
        %5270 = vmatpush.bf16.msra.mxu0 %v4063
        %5271 = vmatpush.bf16.msra.mxu0 %v4056
        %5272 = vmatpush.bf16.msra.mxu0 %v4049
        %5273 = vmatpush.bf16.msra.mxu0 %v4042
        %5274 = vmatpush.bf16.msra.mxu0 %v4035
        %5275 = vmatpush.bf16.msra.mxu0 %v4028
        %5276 = vmatpush.bf16.msra.mxu0 %v4021
        %5277 = vmatpush.bf16.msra.mxu0 %v4014
        %5278 = vmatmul.bf16.gmra.mxu0 %v1972
        %v5279 = vpop.f32.mrf.mxu0
        %v5280 = vadd.f32 %v5266, %v5279
        %v5281 = vpop.f32.mrf.mxu0
        %v5282 = vadd.f32 %v5268, %v5281
        %5283 = vdwg.mxu0
        %5284 = vmatpush.bf16.msra.mxu0 %v4119
        %5285 = vmatpush.bf16.msra.mxu0 %v4112
        %5286 = vmatpush.bf16.msra.mxu0 %v4105
        %5287 = vmatpush.bf16.msra.mxu0 %v4098
        %5288 = vmatpush.bf16.msra.mxu0 %v4091
        %5289 = vmatpush.bf16.msra.mxu0 %v4084
        %5290 = vmatpush.bf16.msra.mxu0 %v4077
        %5291 = vmatpush.bf16.msra.mxu0 %v4070
        %5292 = vmatmul.bf16.gmra.mxu0 %v1973
        %v5293 = vpop.f32.mrf.mxu0
        %v5294 = vadd.f32 %v5280, %v5293
        %v5295 = vpop.f32.mrf.mxu0
        %v5296 = vadd.f32 %v5282, %v5295
        %5297 = vdwg.mxu0
        %5298 = vmatpush.bf16.msra.mxu0 %v4175
        %5299 = vmatpush.bf16.msra.mxu0 %v4168
        %5300 = vmatpush.bf16.msra.mxu0 %v4161
        %5301 = vmatpush.bf16.msra.mxu0 %v4154
        %5302 = vmatpush.bf16.msra.mxu0 %v4147
        %5303 = vmatpush.bf16.msra.mxu0 %v4140
        %5304 = vmatpush.bf16.msra.mxu0 %v4133
        %5305 = vmatpush.bf16.msra.mxu0 %v4126
        %5306 = vmatmul.bf16.gmra.mxu0 %v1974
        %v5307 = vpop.f32.mrf.mxu0
        %v5308 = vadd.f32 %v5294, %v5307
        %v5309 = vpop.f32.mrf.mxu0
        %v5310 = vadd.f32 %v5296, %v5309
        %5311 = vdwg.mxu0
        %5312 = vmatpush.bf16.msra.mxu0 %v4231
        %5313 = vmatpush.bf16.msra.mxu0 %v4224
        %5314 = vmatpush.bf16.msra.mxu0 %v4217
        %5315 = vmatpush.bf16.msra.mxu0 %v4210
        %5316 = vmatpush.bf16.msra.mxu0 %v4203
        %5317 = vmatpush.bf16.msra.mxu0 %v4196
        %5318 = vmatpush.bf16.msra.mxu0 %v4189
        %5319 = vmatpush.bf16.msra.mxu0 %v4182
        %5320 = vmatmul.bf16.gmra.mxu0 %v1975
        %v5321 = vpop.f32.mrf.mxu0
        %v5322 = vadd.f32 %v5308, %v5321
        %v5323 = vpop.f32.mrf.mxu0
        %v5324 = vadd.f32 %v5310, %v5323
        %5325 = vdwg.mxu0
        %5326 = vmatpush.bf16.msra.mxu0 %v4287
        %5327 = vmatpush.bf16.msra.mxu0 %v4280
        %5328 = vmatpush.bf16.msra.mxu0 %v4273
        %5329 = vmatpush.bf16.msra.mxu0 %v4266
        %5330 = vmatpush.bf16.msra.mxu0 %v4259
        %5331 = vmatpush.bf16.msra.mxu0 %v4252
        %5332 = vmatpush.bf16.msra.mxu0 %v4245
        %5333 = vmatpush.bf16.msra.mxu0 %v4238
        %5334 = vmatmul.bf16.gmra.mxu0 %v1976
        %v5335 = vpop.f32.mrf.mxu0
        %v5336 = vadd.f32 %v5322, %v5335
        %v5337 = vpop.f32.mrf.mxu0
        %v5338 = vadd.f32 %v5324, %v5337
        %5339 = vdwg.mxu0
        %5340 = vmatpush.bf16.msra.mxu0 %v4343
        %5341 = vmatpush.bf16.msra.mxu0 %v4336
        %5342 = vmatpush.bf16.msra.mxu0 %v4329
        %5343 = vmatpush.bf16.msra.mxu0 %v4322
        %5344 = vmatpush.bf16.msra.mxu0 %v4315
        %5345 = vmatpush.bf16.msra.mxu0 %v4308
        %5346 = vmatpush.bf16.msra.mxu0 %v4301
        %5347 = vmatpush.bf16.msra.mxu0 %v4294
        %5348 = vmatmul.bf16.gmra.mxu0 %v1977
        %v5349 = vpop.f32.mrf.mxu0
        %v5350 = vadd.f32 %v5336, %v5349
        %v5351 = vpop.f32.mrf.mxu0
        %v5352 = vadd.f32 %v5338, %v5351
        %5353 = vdwg.mxu0
        %5354 = vmatpush.bf16.msra.mxu0 %v3952
        %5355 = vmatpush.bf16.msra.mxu0 %v3945
        %5356 = vmatpush.bf16.msra.mxu0 %v3938
        %5357 = vmatpush.bf16.msra.mxu0 %v3931
        %5358 = vmatpush.bf16.msra.mxu0 %v3924
        %5359 = vmatpush.bf16.msra.mxu0 %v3917
        %5360 = vmatpush.bf16.msra.mxu0 %v3910
        %5361 = vmatpush.bf16.msra.mxu0 %v3903
        %5362 = vmatmul.bf16.gmra.mxu0 %v1970
        %v5363 = vpop.f32.mrf.mxu0
        %v5364 = vadd.f32 0.0, %v5363
        %v5365 = vpop.f32.mrf.mxu0
        %v5366 = vadd.f32 0.0, %v5365
        %5367 = vdwg.mxu0
        %5368 = vmatpush.bf16.msra.mxu0 %v4008
        %5369 = vmatpush.bf16.msra.mxu0 %v4001
        %5370 = vmatpush.bf16.msra.mxu0 %v3994
        %5371 = vmatpush.bf16.msra.mxu0 %v3987
        %5372 = vmatpush.bf16.msra.mxu0 %v3980
        %5373 = vmatpush.bf16.msra.mxu0 %v3973
        %5374 = vmatpush.bf16.msra.mxu0 %v3966
        %5375 = vmatpush.bf16.msra.mxu0 %v3959
        %5376 = vmatmul.bf16.gmra.mxu0 %v1971
        %v5377 = vpop.f32.mrf.mxu0
        %v5378 = vadd.f32 %v5364, %v5377
        %v5379 = vpop.f32.mrf.mxu0
        %v5380 = vadd.f32 %v5366, %v5379
        %5381 = vdwg.mxu0
        %5382 = vmatpush.bf16.msra.mxu0 %v4064
        %5383 = vmatpush.bf16.msra.mxu0 %v4057
        %5384 = vmatpush.bf16.msra.mxu0 %v4050
        %5385 = vmatpush.bf16.msra.mxu0 %v4043
        %5386 = vmatpush.bf16.msra.mxu0 %v4036
        %5387 = vmatpush.bf16.msra.mxu0 %v4029
        %5388 = vmatpush.bf16.msra.mxu0 %v4022
        %5389 = vmatpush.bf16.msra.mxu0 %v4015
        %5390 = vmatmul.bf16.gmra.mxu0 %v1972
        %v5391 = vpop.f32.mrf.mxu0
        %v5392 = vadd.f32 %v5378, %v5391
        %v5393 = vpop.f32.mrf.mxu0
        %v5394 = vadd.f32 %v5380, %v5393
        %5395 = vdwg.mxu0
        %5396 = vmatpush.bf16.msra.mxu0 %v4120
        %5397 = vmatpush.bf16.msra.mxu0 %v4113
        %5398 = vmatpush.bf16.msra.mxu0 %v4106
        %5399 = vmatpush.bf16.msra.mxu0 %v4099
        %5400 = vmatpush.bf16.msra.mxu0 %v4092
        %5401 = vmatpush.bf16.msra.mxu0 %v4085
        %5402 = vmatpush.bf16.msra.mxu0 %v4078
        %5403 = vmatpush.bf16.msra.mxu0 %v4071
        %5404 = vmatmul.bf16.gmra.mxu0 %v1973
        %v5405 = vpop.f32.mrf.mxu0
        %v5406 = vadd.f32 %v5392, %v5405
        %v5407 = vpop.f32.mrf.mxu0
        %v5408 = vadd.f32 %v5394, %v5407
        %5409 = vdwg.mxu0
        %5410 = vmatpush.bf16.msra.mxu0 %v4176
        %5411 = vmatpush.bf16.msra.mxu0 %v4169
        %5412 = vmatpush.bf16.msra.mxu0 %v4162
        %5413 = vmatpush.bf16.msra.mxu0 %v4155
        %5414 = vmatpush.bf16.msra.mxu0 %v4148
        %5415 = vmatpush.bf16.msra.mxu0 %v4141
        %5416 = vmatpush.bf16.msra.mxu0 %v4134
        %5417 = vmatpush.bf16.msra.mxu0 %v4127
        %5418 = vmatmul.bf16.gmra.mxu0 %v1974
        %v5419 = vpop.f32.mrf.mxu0
        %v5420 = vadd.f32 %v5406, %v5419
        %v5421 = vpop.f32.mrf.mxu0
        %v5422 = vadd.f32 %v5408, %v5421
        %5423 = vdwg.mxu0
        %5424 = vmatpush.bf16.msra.mxu0 %v4232
        %5425 = vmatpush.bf16.msra.mxu0 %v4225
        %5426 = vmatpush.bf16.msra.mxu0 %v4218
        %5427 = vmatpush.bf16.msra.mxu0 %v4211
        %5428 = vmatpush.bf16.msra.mxu0 %v4204
        %5429 = vmatpush.bf16.msra.mxu0 %v4197
        %5430 = vmatpush.bf16.msra.mxu0 %v4190
        %5431 = vmatpush.bf16.msra.mxu0 %v4183
        %5432 = vmatmul.bf16.gmra.mxu0 %v1975
        %v5433 = vpop.f32.mrf.mxu0
        %v5434 = vadd.f32 %v5420, %v5433
        %v5435 = vpop.f32.mrf.mxu0
        %v5436 = vadd.f32 %v5422, %v5435
        %5437 = vdwg.mxu0
        %5438 = vmatpush.bf16.msra.mxu0 %v4288
        %5439 = vmatpush.bf16.msra.mxu0 %v4281
        %5440 = vmatpush.bf16.msra.mxu0 %v4274
        %5441 = vmatpush.bf16.msra.mxu0 %v4267
        %5442 = vmatpush.bf16.msra.mxu0 %v4260
        %5443 = vmatpush.bf16.msra.mxu0 %v4253
        %5444 = vmatpush.bf16.msra.mxu0 %v4246
        %5445 = vmatpush.bf16.msra.mxu0 %v4239
        %5446 = vmatmul.bf16.gmra.mxu0 %v1976
        %v5447 = vpop.f32.mrf.mxu0
        %v5448 = vadd.f32 %v5434, %v5447
        %v5449 = vpop.f32.mrf.mxu0
        %v5450 = vadd.f32 %v5436, %v5449
        %5451 = vdwg.mxu0
        %5452 = vmatpush.bf16.msra.mxu0 %v4344
        %5453 = vmatpush.bf16.msra.mxu0 %v4337
        %5454 = vmatpush.bf16.msra.mxu0 %v4330
        %5455 = vmatpush.bf16.msra.mxu0 %v4323
        %5456 = vmatpush.bf16.msra.mxu0 %v4316
        %5457 = vmatpush.bf16.msra.mxu0 %v4309
        %5458 = vmatpush.bf16.msra.mxu0 %v4302
        %5459 = vmatpush.bf16.msra.mxu0 %v4295
        %5460 = vmatmul.bf16.gmra.mxu0 %v1977
        %v5461 = vpop.f32.mrf.mxu0
        %v5462 = vadd.f32 %v5448, %v5461
        %v5463 = vpop.f32.mrf.mxu0
        %v5464 = vadd.f32 %v5450, %v5463
        %5465 = vdwg.mxu0
        %5466 = vmatpush.bf16.msra.mxu0 %v3953
        %5467 = vmatpush.bf16.msra.mxu0 %v3946
        %5468 = vmatpush.bf16.msra.mxu0 %v3939
        %5469 = vmatpush.bf16.msra.mxu0 %v3932
        %5470 = vmatpush.bf16.msra.mxu0 %v3925
        %5471 = vmatpush.bf16.msra.mxu0 %v3918
        %5472 = vmatpush.bf16.msra.mxu0 %v3911
        %5473 = vmatpush.bf16.msra.mxu0 %v3904
        %5474 = vmatmul.bf16.gmra.mxu0 %v1970
        %v5475 = vpop.f32.mrf.mxu0
        %v5476 = vadd.f32 0.0, %v5475
        %v5477 = vpop.f32.mrf.mxu0
        %v5478 = vadd.f32 0.0, %v5477
        %5479 = vdwg.mxu0
        %5480 = vmatpush.bf16.msra.mxu0 %v4009
        %5481 = vmatpush.bf16.msra.mxu0 %v4002
        %5482 = vmatpush.bf16.msra.mxu0 %v3995
        %5483 = vmatpush.bf16.msra.mxu0 %v3988
        %5484 = vmatpush.bf16.msra.mxu0 %v3981
        %5485 = vmatpush.bf16.msra.mxu0 %v3974
        %5486 = vmatpush.bf16.msra.mxu0 %v3967
        %5487 = vmatpush.bf16.msra.mxu0 %v3960
        %5488 = vmatmul.bf16.gmra.mxu0 %v1971
        %v5489 = vpop.f32.mrf.mxu0
        %v5490 = vadd.f32 %v5476, %v5489
        %v5491 = vpop.f32.mrf.mxu0
        %v5492 = vadd.f32 %v5478, %v5491
        %5493 = vdwg.mxu0
        %5494 = vmatpush.bf16.msra.mxu0 %v4065
        %5495 = vmatpush.bf16.msra.mxu0 %v4058
        %5496 = vmatpush.bf16.msra.mxu0 %v4051
        %5497 = vmatpush.bf16.msra.mxu0 %v4044
        %5498 = vmatpush.bf16.msra.mxu0 %v4037
        %5499 = vmatpush.bf16.msra.mxu0 %v4030
        %5500 = vmatpush.bf16.msra.mxu0 %v4023
        %5501 = vmatpush.bf16.msra.mxu0 %v4016
        %5502 = vmatmul.bf16.gmra.mxu0 %v1972
        %v5503 = vpop.f32.mrf.mxu0
        %v5504 = vadd.f32 %v5490, %v5503
        %v5505 = vpop.f32.mrf.mxu0
        %v5506 = vadd.f32 %v5492, %v5505
        %5507 = vdwg.mxu0
        %5508 = vmatpush.bf16.msra.mxu0 %v4121
        %5509 = vmatpush.bf16.msra.mxu0 %v4114
        %5510 = vmatpush.bf16.msra.mxu0 %v4107
        %5511 = vmatpush.bf16.msra.mxu0 %v4100
        %5512 = vmatpush.bf16.msra.mxu0 %v4093
        %5513 = vmatpush.bf16.msra.mxu0 %v4086
        %5514 = vmatpush.bf16.msra.mxu0 %v4079
        %5515 = vmatpush.bf16.msra.mxu0 %v4072
        %5516 = vmatmul.bf16.gmra.mxu0 %v1973
        %v5517 = vpop.f32.mrf.mxu0
        %v5518 = vadd.f32 %v5504, %v5517
        %v5519 = vpop.f32.mrf.mxu0
        %v5520 = vadd.f32 %v5506, %v5519
        %5521 = vdwg.mxu0
        %5522 = vmatpush.bf16.msra.mxu0 %v4177
        %5523 = vmatpush.bf16.msra.mxu0 %v4170
        %5524 = vmatpush.bf16.msra.mxu0 %v4163
        %5525 = vmatpush.bf16.msra.mxu0 %v4156
        %5526 = vmatpush.bf16.msra.mxu0 %v4149
        %5527 = vmatpush.bf16.msra.mxu0 %v4142
        %5528 = vmatpush.bf16.msra.mxu0 %v4135
        %5529 = vmatpush.bf16.msra.mxu0 %v4128
        %5530 = vmatmul.bf16.gmra.mxu0 %v1974
        %v5531 = vpop.f32.mrf.mxu0
        %v5532 = vadd.f32 %v5518, %v5531
        %v5533 = vpop.f32.mrf.mxu0
        %v5534 = vadd.f32 %v5520, %v5533
        %5535 = vdwg.mxu0
        %5536 = vmatpush.bf16.msra.mxu0 %v4233
        %5537 = vmatpush.bf16.msra.mxu0 %v4226
        %5538 = vmatpush.bf16.msra.mxu0 %v4219
        %5539 = vmatpush.bf16.msra.mxu0 %v4212
        %5540 = vmatpush.bf16.msra.mxu0 %v4205
        %5541 = vmatpush.bf16.msra.mxu0 %v4198
        %5542 = vmatpush.bf16.msra.mxu0 %v4191
        %5543 = vmatpush.bf16.msra.mxu0 %v4184
        %5544 = vmatmul.bf16.gmra.mxu0 %v1975
        %v5545 = vpop.f32.mrf.mxu0
        %v5546 = vadd.f32 %v5532, %v5545
        %v5547 = vpop.f32.mrf.mxu0
        %v5548 = vadd.f32 %v5534, %v5547
        %5549 = vdwg.mxu0
        %5550 = vmatpush.bf16.msra.mxu0 %v4289
        %5551 = vmatpush.bf16.msra.mxu0 %v4282
        %5552 = vmatpush.bf16.msra.mxu0 %v4275
        %5553 = vmatpush.bf16.msra.mxu0 %v4268
        %5554 = vmatpush.bf16.msra.mxu0 %v4261
        %5555 = vmatpush.bf16.msra.mxu0 %v4254
        %5556 = vmatpush.bf16.msra.mxu0 %v4247
        %5557 = vmatpush.bf16.msra.mxu0 %v4240
        %5558 = vmatmul.bf16.gmra.mxu0 %v1976
        %v5559 = vpop.f32.mrf.mxu0
        %v5560 = vadd.f32 %v5546, %v5559
        %v5561 = vpop.f32.mrf.mxu0
        %v5562 = vadd.f32 %v5548, %v5561
        %5563 = vdwg.mxu0
        %5564 = vmatpush.bf16.msra.mxu0 %v4345
        %5565 = vmatpush.bf16.msra.mxu0 %v4338
        %5566 = vmatpush.bf16.msra.mxu0 %v4331
        %5567 = vmatpush.bf16.msra.mxu0 %v4324
        %5568 = vmatpush.bf16.msra.mxu0 %v4317
        %5569 = vmatpush.bf16.msra.mxu0 %v4310
        %5570 = vmatpush.bf16.msra.mxu0 %v4303
        %5571 = vmatpush.bf16.msra.mxu0 %v4296
        %5572 = vmatmul.bf16.gmra.mxu0 %v1977
        %v5573 = vpop.f32.mrf.mxu0
        %v5574 = vadd.f32 %v5560, %v5573
        %v5575 = vpop.f32.mrf.mxu0
        %v5576 = vadd.f32 %v5562, %v5575
        %5577 = vdwg.mxu0
        %v5578 = vadd.f32 %v4902, %v4904
        %v5579 = vrot.slane %v5578, 4
        %v5580 = vadd.f32 %v5578, %v5579
        %v5581 = vrot.slane %v5580, 2
        %v5582 = vadd.f32 %v5580, %v5581
        %v5583 = vrot.slane %v5582, 1
        %v5584 = vadd.f32 %v5582, %v5583
        %v5585 = vadd.f32 %v5014, %v5016
        %v5586 = vrot.slane %v5585, 4
        %v5587 = vadd.f32 %v5585, %v5586
        %v5588 = vrot.slane %v5587, 2
        %v5589 = vadd.f32 %v5587, %v5588
        %v5590 = vrot.slane %v5589, 1
        %v5591 = vadd.f32 %v5589, %v5590
        %v5592 = vadd.f32 %v5126, %v5128
        %v5593 = vrot.slane %v5592, 4
        %v5594 = vadd.f32 %v5592, %v5593
        %v5595 = vrot.slane %v5594, 2
        %v5596 = vadd.f32 %v5594, %v5595
        %v5597 = vrot.slane %v5596, 1
        %v5598 = vadd.f32 %v5596, %v5597
        %v5599 = vadd.f32 %v5238, %v5240
        %v5600 = vrot.slane %v5599, 4
        %v5601 = vadd.f32 %v5599, %v5600
        %v5602 = vrot.slane %v5601, 2
        %v5603 = vadd.f32 %v5601, %v5602
        %v5604 = vrot.slane %v5603, 1
        %v5605 = vadd.f32 %v5603, %v5604
        %v5606 = vadd.f32 %v5350, %v5352
        %v5607 = vrot.slane %v5606, 4
        %v5608 = vadd.f32 %v5606, %v5607
        %v5609 = vrot.slane %v5608, 2
        %v5610 = vadd.f32 %v5608, %v5609
        %v5611 = vrot.slane %v5610, 1
        %v5612 = vadd.f32 %v5610, %v5611
        %v5613 = vadd.f32 %v5462, %v5464
        %v5614 = vrot.slane %v5613, 4
        %v5615 = vadd.f32 %v5613, %v5614
        %v5616 = vrot.slane %v5615, 2
        %v5617 = vadd.f32 %v5615, %v5616
        %v5618 = vrot.slane %v5617, 1
        %v5619 = vadd.f32 %v5617, %v5618
        %v5620 = vadd.f32 %v5574, %v5576
        %v5621 = vrot.slane %v5620, 4
        %v5622 = vadd.f32 %v5620, %v5621
        %v5623 = vrot.slane %v5622, 2
        %v5624 = vadd.f32 %v5622, %v5623
        %v5625 = vrot.slane %v5624, 1
        %v5626 = vadd.f32 %v5624, %v5625
        %v5627 = vmul.f32 %v4902, %v4902
        %v5628 = vmul.f32 %v5014, %v5014
        %v5629 = vmul.f32 %v5126, %v5126
        %v5630 = vmul.f32 %v5238, %v5238
        %v5631 = vmul.f32 %v5350, %v5350
        %v5632 = vmul.f32 %v5462, %v5462
        %v5633 = vmul.f32 %v5574, %v5574
        %v5634 = vmul.f32 %v4904, %v4904
        %v5635 = vmul.f32 %v5016, %v5016
        %v5636 = vmul.f32 %v5128, %v5128
        %v5637 = vmul.f32 %v5240, %v5240
        %v5638 = vmul.f32 %v5352, %v5352
        %v5639 = vmul.f32 %v5464, %v5464
        %v5640 = vmul.f32 %v5576, %v5576
        %v5641 = vadd.f32 %v5627, %v5634
        %v5642 = vrot.slane %v5641, 4
        %v5643 = vadd.f32 %v5641, %v5642
        %v5644 = vrot.slane %v5643, 2
        %v5645 = vadd.f32 %v5643, %v5644
        %v5646 = vrot.slane %v5645, 1
        %v5647 = vadd.f32 %v5645, %v5646
        %v5648 = vadd.f32 %v5628, %v5635
        %v5649 = vrot.slane %v5648, 4
        %v5650 = vadd.f32 %v5648, %v5649
        %v5651 = vrot.slane %v5650, 2
        %v5652 = vadd.f32 %v5650, %v5651
        %v5653 = vrot.slane %v5652, 1
        %v5654 = vadd.f32 %v5652, %v5653
        %v5655 = vadd.f32 %v5629, %v5636
        %v5656 = vrot.slane %v5655, 4
        %v5657 = vadd.f32 %v5655, %v5656
        %v5658 = vrot.slane %v5657, 2
        %v5659 = vadd.f32 %v5657, %v5658
        %v5660 = vrot.slane %v5659, 1
        %v5661 = vadd.f32 %v5659, %v5660
        %v5662 = vadd.f32 %v5630, %v5637
        %v5663 = vrot.slane %v5662, 4
        %v5664 = vadd.f32 %v5662, %v5663
        %v5665 = vrot.slane %v5664, 2
        %v5666 = vadd.f32 %v5664, %v5665
        %v5667 = vrot.slane %v5666, 1
        %v5668 = vadd.f32 %v5666, %v5667
        %v5669 = vadd.f32 %v5631, %v5638
        %v5670 = vrot.slane %v5669, 4
        %v5671 = vadd.f32 %v5669, %v5670
        %v5672 = vrot.slane %v5671, 2
        %v5673 = vadd.f32 %v5671, %v5672
        %v5674 = vrot.slane %v5673, 1
        %v5675 = vadd.f32 %v5673, %v5674
        %v5676 = vadd.f32 %v5632, %v5639
        %v5677 = vrot.slane %v5676, 4
        %v5678 = vadd.f32 %v5676, %v5677
        %v5679 = vrot.slane %v5678, 2
        %v5680 = vadd.f32 %v5678, %v5679
        %v5681 = vrot.slane %v5680, 1
        %v5682 = vadd.f32 %v5680, %v5681
        %v5683 = vadd.f32 %v5633, %v5640
        %v5684 = vrot.slane %v5683, 4
        %v5685 = vadd.f32 %v5683, %v5684
        %v5686 = vrot.slane %v5685, 2
        %v5687 = vadd.f32 %v5685, %v5686
        %v5688 = vrot.slane %v5687, 1
        %v5689 = vadd.f32 %v5687, %v5688
        %v5690 = vmul.f32 %v5584, 0.5
        %v5691 = vmul.f32 %v5591, 0.5
        %v5692 = vmul.f32 %v5598, 0.5
        %v5693 = vmul.f32 %v5605, 0.5
        %v5694 = vmul.f32 %v5612, 0.5
        %v5695 = vmul.f32 %v5619, 0.5
        %v5696 = vmul.f32 %v5626, 0.5
        %v5697 = vmul.f32 %v5647, 0.5
        %v5698 = vmul.f32 %v5654, 0.5
        %v5699 = vmul.f32 %v5661, 0.5
        %v5700 = vmul.f32 %v5668, 0.5
        %v5701 = vmul.f32 %v5675, 0.5
        %v5702 = vmul.f32 %v5682, 0.5
        %v5703 = vmul.f32 %v5689, 0.5
        %v5704 = vmul.f32 %v5690, %v5690
        %v5705 = vmul.f32 %v5691, %v5691
        %v5706 = vmul.f32 %v5692, %v5692
        %v5707 = vmul.f32 %v5693, %v5693
        %v5708 = vmul.f32 %v5694, %v5694
        %v5709 = vmul.f32 %v5695, %v5695
        %v5710 = vmul.f32 %v5696, %v5696
        %v5711 = vsub.f32 %v5697, %v5704
        %v5712 = vsub.f32 %v5698, %v5705
        %v5713 = vsub.f32 %v5699, %v5706
        %v5714 = vsub.f32 %v5700, %v5707
        %v5715 = vsub.f32 %v5701, %v5708
        %v5716 = vsub.f32 %v5702, %v5709
        %v5717 = vsub.f32 %v5703, %v5710
        %v5718 = vadd.f32 %v5711, 1e-05
        %v5719 = vadd.f32 %v5712, 1e-05
        %v5720 = vadd.f32 %v5713, 1e-05
        %v5721 = vadd.f32 %v5714, 1e-05
        %v5722 = vadd.f32 %v5715, 1e-05
        %v5723 = vadd.f32 %v5716, 1e-05
        %v5724 = vadd.f32 %v5717, 1e-05
        %v5725 = vrsqrt.pop %v5718
        %v5726 = vmul.f32 %v5725, %v5718
        %v5727 = vmul.f32 %v5726, %v5725
        %v5728 = vmul.f32 0.5, %v5727
        %v5729 = vsub.f32 1.5, %v5728
        %v5730 = vmul.f32 %v5725, %v5729
        %vm5731 = vweird.f32 %v5718
        %vm5732 = vweird.f32 %v5725
        %vm5733 = vmor %vm5731, %vm5732
        %v5734 = vsel %vm5733, %v5725, %v5730
        %v5735 = vrsqrt.pop %v5719
        %v5736 = vmul.f32 %v5735, %v5719
        %v5737 = vmul.f32 %v5736, %v5735
        %v5738 = vmul.f32 0.5, %v5737
        %v5739 = vsub.f32 1.5, %v5738
        %v5740 = vmul.f32 %v5735, %v5739
        %vm5741 = vweird.f32 %v5719
        %vm5742 = vweird.f32 %v5735
        %vm5743 = vmor %vm5741, %vm5742
        %v5744 = vsel %vm5743, %v5735, %v5740
        %v5745 = vrsqrt.pop %v5720
        %v5746 = vmul.f32 %v5745, %v5720
        %v5747 = vmul.f32 %v5746, %v5745
        %v5748 = vmul.f32 0.5, %v5747
        %v5749 = vsub.f32 1.5, %v5748
        %v5750 = vmul.f32 %v5745, %v5749
        %vm5751 = vweird.f32 %v5720
        %vm5752 = vweird.f32 %v5745
        %vm5753 = vmor %vm5751, %vm5752
        %v5754 = vsel %vm5753, %v5745, %v5750
        %v5755 = vrsqrt.pop %v5721
        %v5756 = vmul.f32 %v5755, %v5721
        %v5757 = vmul.f32 %v5756, %v5755
        %v5758 = vmul.f32 0.5, %v5757
        %v5759 = vsub.f32 1.5, %v5758
        %v5760 = vmul.f32 %v5755, %v5759
        %vm5761 = vweird.f32 %v5721
        %vm5762 = vweird.f32 %v5755
        %vm5763 = vmor %vm5761, %vm5762
        %v5764 = vsel %vm5763, %v5755, %v5760
        %v5765 = vrsqrt.pop %v5722
        %v5766 = vmul.f32 %v5765, %v5722
        %v5767 = vmul.f32 %v5766, %v5765
        %v5768 = vmul.f32 0.5, %v5767
        %v5769 = vsub.f32 1.5, %v5768
        %v5770 = vmul.f32 %v5765, %v5769
        %vm5771 = vweird.f32 %v5722
        %vm5772 = vweird.f32 %v5765
        %vm5773 = vmor %vm5771, %vm5772
        %v5774 = vsel %vm5773, %v5765, %v5770
        %v5775 = vrsqrt.pop %v5723
        %v5776 = vmul.f32 %v5775, %v5723
        %v5777 = vmul.f32 %v5776, %v5775
        %v5778 = vmul.f32 0.5, %v5777
        %v5779 = vsub.f32 1.5, %v5778
        %v5780 = vmul.f32 %v5775, %v5779
        %vm5781 = vweird.f32 %v5723
        %vm5782 = vweird.f32 %v5775
        %vm5783 = vmor %vm5781, %vm5782
        %v5784 = vsel %vm5783, %v5775, %v5780
        %v5785 = vrsqrt.pop %v5724
        %v5786 = vmul.f32 %v5785, %v5724
        %v5787 = vmul.f32 %v5786, %v5785
        %v5788 = vmul.f32 0.5, %v5787
        %v5789 = vsub.f32 1.5, %v5788
        %v5790 = vmul.f32 %v5785, %v5789
        %vm5791 = vweird.f32 %v5724
        %vm5792 = vweird.f32 %v5785
        %vm5793 = vmor %vm5791, %vm5792
        %v5794 = vsel %vm5793, %v5785, %v5790
        %v5795 = vld [vmem:[%s356] ss:$2 sm:$0xff]
        %v5797 = vperm.slane %v5795, 0
        %v5798 = vperm.slane %v5795, 1
        %v5799 = vperm.slane %v5795, 2
        %v5800 = vperm.slane %v5795, 3
        %v5801 = vperm.slane %v5795, 4
        %v5802 = vperm.slane %v5795, 5
        %v5803 = vperm.slane %v5795, 6
        %v5811 = vmul.f32 %v5734, %v5797
        %v5812 = vmul.f32 %v5744, %v5798
        %v5813 = vmul.f32 %v5754, %v5799
        %v5814 = vmul.f32 %v5764, %v5800
        %v5815 = vmul.f32 %v5774, %v5801
        %v5816 = vmul.f32 %v5784, %v5802
        %v5817 = vmul.f32 %v5794, %v5803
        %v5818 = vsub.f32 %v4902, %v5690
        %v5819 = vsub.f32 %v5014, %v5691
        %v5820 = vsub.f32 %v5126, %v5692
        %v5821 = vsub.f32 %v5238, %v5693
        %v5822 = vsub.f32 %v5350, %v5694
        %v5823 = vsub.f32 %v5462, %v5695
        %v5824 = vsub.f32 %v5574, %v5696
        %v5825 = vsub.f32 %v4904, %v5690
        %v5826 = vsub.f32 %v5016, %v5691
        %v5827 = vsub.f32 %v5128, %v5692
        %v5828 = vsub.f32 %v5240, %v5693
        %v5829 = vsub.f32 %v5352, %v5694
        %v5830 = vsub.f32 %v5464, %v5695
        %v5831 = vsub.f32 %v5576, %v5696
        %v5832 = vperm.slane %v5811, 0
        %v5833 = vperm.slane %v5812, 0
        %v5834 = vperm.slane %v5813, 0
        %v5835 = vperm.slane %v5814, 0
        %v5836 = vperm.slane %v5815, 0
        %v5837 = vperm.slane %v5816, 0
        %v5838 = vperm.slane %v5817, 0
        %v5839 = vmul.f32 %v5818, %v5832
        %v5840 = vmul.f32 %v5819, %v5833
        %v5841 = vmul.f32 %v5820, %v5834
        %v5842 = vmul.f32 %v5821, %v5835
        %v5843 = vmul.f32 %v5822, %v5836
        %v5844 = vmul.f32 %v5823, %v5837
        %v5845 = vmul.f32 %v5824, %v5838
        %v5846 = vmul.f32 %v5825, %v5832
        %v5847 = vmul.f32 %v5826, %v5833
        %v5848 = vmul.f32 %v5827, %v5834
        %v5849 = vmul.f32 %v5828, %v5835
        %v5850 = vmul.f32 %v5829, %v5836
        %v5851 = vmul.f32 %v5830, %v5837
        %v5852 = vmul.f32 %v5831, %v5838
        %s5853 = scalar_lea.vmem %s356, 1 [#allocation10]
        %v5854 = vld [vmem:[%s5853] ss:$2 sm:$0xff]
        %v5856 = vperm.slane %v5854, 0
        %v5857 = vperm.slane %v5854, 1
        %v5858 = vperm.slane %v5854, 2
        %v5859 = vperm.slane %v5854, 3
        %v5860 = vperm.slane %v5854, 4
        %v5861 = vperm.slane %v5854, 5
        %v5862 = vperm.slane %v5854, 6
        %v5870 = vadd.f32 %v5839, %v5856
        %v5871 = vadd.f32 %v5840, %v5857
        %v5872 = vadd.f32 %v5841, %v5858
        %v5873 = vadd.f32 %v5842, %v5859
        %v5874 = vadd.f32 %v5843, %v5860
        %v5875 = vadd.f32 %v5844, %v5861
        %v5876 = vadd.f32 %v5845, %v5862
        %v5877 = vadd.f32 %v5846, %v5856
        %v5878 = vadd.f32 %v5847, %v5857
        %v5879 = vadd.f32 %v5848, %v5858
        %v5880 = vadd.f32 %v5849, %v5859
        %v5881 = vadd.f32 %v5850, %v5860
        %v5882 = vadd.f32 %v5851, %v5861
        %v5883 = vadd.f32 %v5852, %v5862
        %v5884 = vmax.f32 %v5870, 0.0
        %v5885 = vmax.f32 %v5871, 0.0
        %v5886 = vmax.f32 %v5872, 0.0
        %v5887 = vmax.f32 %v5873, 0.0
        %v5888 = vmax.f32 %v5874, 0.0
        %v5889 = vmax.f32 %v5875, 0.0
        %v5890 = vmax.f32 %v5876, 0.0
        %v5891 = vmax.f32 %v5877, 0.0
        %v5892 = vmax.f32 %v5878, 0.0
        %v5893 = vmax.f32 %v5879, 0.0
        %v5894 = vmax.f32 %v5880, 0.0
        %v5895 = vmax.f32 %v5881, 0.0
        %v5896 = vmax.f32 %v5882, 0.0
        %v5897 = vmax.f32 %v5883, 0.0
        %v5898 = vpack.c.bf16 %v5885, %v5884
        %v5899 = vpack.c.bf16 %v5887, %v5886
        %v5900 = vpack.c.bf16 %v5889, %v5888
        %v5901 = vpack.c.bf16 %v5890, %v5890
        %v5902 = vpack.c.bf16 %v5892, %v5891
        %v5903 = vpack.c.bf16 %v5894, %v5893
        %v5904 = vpack.c.bf16 %v5896, %v5895
        %v5905 = vpack.c.bf16 %v5897, %v5897
        %5906 = vst [vmem:[%s391] sm:$0xff] %v5898
        %5907 = vst [vmem:[%s391 + $0x8] sm:$0xff] %v5899
        %5908 = vst [vmem:[%s391 + $0x10] sm:$0xff] %v5900
        %5909 = vst [vmem:[%s391 + $0x18] sm:$0xf] %v5901
        %5910 = vst [vmem:[%s391 + $0x1c] sm:$0xff] %v5902
        %5911 = vst [vmem:[%s391 + $0x24] sm:$0xff] %v5903
        %5912 = vst [vmem:[%s391 + $0x2c] sm:$0xff] %v5904
        %5913 = vst [vmem:[%s391 + $0x34] sm:$0xf] %v5905
        %s5914 = sand.u32 %s186, 1
        %s5915 = sand.u32 %s186, 1
        %s5916 = smul.addr %s5915, 56
        %s5917 = scalar_lea.vmem [#allocation11], %s5916
        // Predicated region
        $region73: #{_lambda_.3} parent=47 // pred_check
          %p5918 = pneg %p196
        $region74: #{_lambda_.3} parent=47 // pred_check_branch
          %5920 = sbr.rel (%p5918) target = $region76
        $region75: #{_lambda_.3} parent=47 // pred_region
          %s5921 = smul.u32 7, %s21
          %s5922 = smul.addr %s5921, 4
          %s5923 = scalar_lea.vmem %s7, %s5922
          // Predicated region
          $region77: #{_lambda_.3} parent=75 // pred_check
            _
          $region78: #{_lambda_.3} parent=75 // pred_check_branch
            %5925 = sbr.rel (0) target = $region80
          $region79: #{_lambda_.3} parent=75 // pred_region
            // Predicated region
            $region81: #{_lambda_.3} parent=79 // pred_check
              _
            $region82: #{_lambda_.3} parent=79 // pred_check_branch
              %5927 = sbr.rel (0) target = $region84
            $region83: #{_lambda_.3} parent=79 // pred_region
              %s5928 = scalar_lea.vmem %s5917, 24 [#allocation11]
              %s5929 = scalar_lea.vmem %s5923, 24
              loop: start=0, step=1, limit=1
              $region85: #{_lambda_.3} parent=83 // loop_pre_header
                _
              $region86: #{_lambda_.3} parent=83 // loop_header
                %s5931 = sphi 0, %s5935
                %p5932 = scmp.ge.s32.totalorder %s5931, 1
                %s5936 = sphi %s5917, %s5917
                %s5937 = sphi %s5923, %s5923
              $region87: #{_lambda_.3} parent=83 // loop_header_branch
                %5934 = sbr.rel (%p5932) target = $region91
              $region88: #{_lambda_.3} parent=83 // loop_body
                %v5938 = vld [vmem:[%s5936] sm:$0xff]
                %5939 = vst [vmem:[%s5937] sm:$0xff] %v5938
                %v5940 = vld [vmem:[%s5936 + $0x8] sm:$0xff]
                %5941 = vst [vmem:[%s5937 + $0x8] sm:$0xff] %v5940
                %v5942 = vld [vmem:[%s5936 + $0x10] sm:$0xff]
                %5943 = vst [vmem:[%s5937 + $0x10] sm:$0xff] %v5942
                %v5944 = vld [vmem:[%s5936 + $0x1c] sm:$0xff]
                %5945 = vst [vmem:[%s5937 + $0xc4] sm:$0xff] %v5944
                %v5946 = vld [vmem:[%s5936 + $0x24] sm:$0xff]
                %5947 = vst [vmem:[%s5937 + $0xcc] sm:$0xff] %v5946
                %v5948 = vld [vmem:[%s5936 + $0x2c] sm:$0xff]
                %5949 = vst [vmem:[%s5937 + $0xd4] sm:$0xff] %v5948
              $region89: #{_lambda_.3} parent=83 // loop_footer
                %s5935 = sadd.s32 1, %s5931
              $region90: #{_lambda_.3} parent=83 // loop_footer_branch
                %5930 = sbr.rel target = $region86
              $region91: #{_lambda_.3} parent=83 // loop_exit
                _
              %s5951 = ssub.s32 16, 1
              loop: start=0, step=1, limit=1
              $region92: #{_lambda_.3} parent=83 // loop_pre_header
                _
              $region93: #{_lambda_.3} parent=83 // loop_header
                %s5953 = sphi 0, %s5957
                %p5954 = scmp.ge.s32.totalorder %s5953, 1
                %s5958 = sphi %s5928, %s5928
                %s5959 = sphi %s5929, %s5929
              $region94: #{_lambda_.3} parent=83 // loop_header_branch
                %5956 = sbr.rel (%p5954) target = $region98
              $region95: #{_lambda_.3} parent=83 // loop_body
                %v5960 = vld [vmem:[%s5958] sm:%s5951]
                %5961 = vst [vmem:[%s5959] sm:%s5951] %v5960
                %v5962 = vld [vmem:[%s5958 + $0x1c] sm:%s5951]
                %5963 = vst [vmem:[%s5959 + $0xc4] sm:%s5951] %v5962
              $region96: #{_lambda_.3} parent=83 // loop_footer
                %s5957 = sadd.s32 1, %s5953
              $region97: #{_lambda_.3} parent=83 // loop_footer_branch
                %5952 = sbr.rel target = $region93
              $region98: #{_lambda_.3} parent=83 // loop_exit
                _
            $region84: #{_lambda_.3} parent=79 // pred_fallthru
              _
          $region80: #{_lambda_.3} parent=75 // pred_fallthru
            _
          %5964 = vnop
        $region76: #{_lambda_.3} parent=47 // pred_fallthru
          _
      $region48: #{_lambda_.3} parent=5 // pred_fallthru
        _
      %p5965 = scmp.le.s32.totalorder 2, %s16
      // Predicated region
      $region99: #{_lambda_.3} parent=5 // pred_check
        %p5966 = pneg %p5965
      $region100: #{_lambda_.3} parent=5 // pred_check_branch
        %5968 = sbr.rel (%p5966) target = $region102
      $region101: #{_lambda_.3} parent=5 // pred_region
        %s5969 = ssub.s32 %s16, 2
        // Predicated region
        $region103: #{_lambda_.3} parent=101 // pred_check
          %p5970 = pneg %p202
        $region104: #{_lambda_.3} parent=101 // pred_check_branch
          %5972 = sbr.rel (%p5970) target = $region106
        $region105: #{_lambda_.3} parent=101 // pred_region
          %s5973 = sand.u32 %s187, 1
          %s5974 = sand.u32 %s187, 1
          %s5975 = smul.addr %s5974, 56
          %s5976 = scalar_lea.vmem [#allocation11], %s5975
        $region106: #{_lambda_.3} parent=101 // pred_fallthru
          _
      $region102: #{_lambda_.3} parent=5 // pred_fallthru
        _
    $region6: #{_lambda_.3} parent=1 // loop_footer
      %s20 = sadd.s32 1, %s16
    $region7: #{_lambda_.3} parent=1 // loop_footer_branch
      %15 = sbr.rel target = $region3
    $region8: #{_lambda_.3} parent=1 // loop_exit
      _
    %5977 = vsyncpa [#allocation3], 1
    %s5978 = scalar_lea.sflag [#allocation3], 1
    %5979 = vsyncpa %s5978, 1
    %5980 = vsyncpa [#allocation5], 1
    %5981 = vsyncpa [#allocation8], 1

// kernel: _lambda_.5
$region0: #{_lambda_.5}
  #allocation0 [shape = 'u32[]', space=smem, size = 0x4, offset = 0x4, fixed_abs, tag = 'smem constant byte address 0x4 - core index']
  #allocation1 [shape = 'u32[72,128]{1,0:T(1,128)}', space=vmem, size = 0x9000, scoped, tag = 'internal scratch']
  %s0 = inlined_call_operand.vmem [shape: bf16[400,576], index: 0, kind: input, shape index: {}]
  %s1 = inlined_call_operand.hbm [shape: bf16[576,128], index: 1, kind: input, shape index: {}]
  %s2 = inlined_call_operand.hbm [shape: f32[1,128], index: 2, kind: input, shape index: {}]
  %s3 = inlined_call_operand.vmem [shape: f32[400,128], index: 3, kind: output, shape index: {}]
  %s4 = sld [smem:[#allocation0]]
  $region30: #{_lambda_.5} parent=0
    _
  %s6 = ssub.s32 1, %s4
  %s7 = scalar_select 0, %s6, %s4
  $region1: #{_lambda_.5} parent=0
    #allocation2 [shape = 'u8[147456]{0}', space=vmem, size = 0x24000, scoped, tag = 'input window, operand 1, single buffered']
    #allocation3 [shape = 's32[1]{0}', space=sflag, size = 0x4, scoped, tag = 'scoped memory for _lambda_.5']
    #allocation4 [shape = 'u8[512]{0}', space=vmem, size = 0x400, scoped, tag = 'input window, operand 2, single buffered']
    #allocation5 [shape = 's32[1]{0}', space=sflag, size = 0x4, scoped, tag = 'scoped memory for _lambda_.5']
    %8 = vsyncpa [#allocation3], 0
    %9 = vsyncpa [#allocation5], 0
    // Predicated region
    $region2: #{_lambda_.5} parent=1 // pred_check
      _
    $region3: #{_lambda_.5} parent=1 // pred_check_branch
      %11 = sbr.rel (0) target = $region5
    $region4: #{_lambda_.5} parent=1 // pred_region
      _
    $region5: #{_lambda_.5} parent=1 // pred_fallthru
      _
    // Predicated region
    $region6: #{_lambda_.5} parent=1 // pred_check
      _
    $region7: #{_lambda_.5} parent=1 // pred_check_branch
      %13 = sbr.rel (0) target = $region9
    $region8: #{_lambda_.5} parent=1 // pred_region
      %15 = vsyncadd [#allocation3], 0
      %s16 = sshll.u32 %s1, 4
      %s17 = int_to_ptr.hbm [resolvable:$true] %s16
      %s18 = sshll.u32 [#allocation2], 4
      %s19 = int_to_ptr.vmem [resolvable:$true] %s18
      %24 = dma.hbm_to_vmem [thread:$0]  %s17, 4608, %s19, [#allocation3], 64, 64, 4
    $region9: #{_lambda_.5} parent=1 // pred_fallthru
      _
    // Predicated region
    $region10: #{_lambda_.5} parent=1 // pred_check
      _
    $region11: #{_lambda_.5} parent=1 // pred_check_branch
      %26 = sbr.rel (0) target = $region13
    $region12: #{_lambda_.5} parent=1 // pred_region
      %28 = vsyncadd [#allocation5], 0
      %s30 = sshll.u32 %s2, 4
      %s31 = int_to_ptr.hbm [resolvable:$true] %s30
      %s32 = sshll.u32 [#allocation4], 4
      %s33 = int_to_ptr.vmem [resolvable:$true] %s32
      %35 = dma.hbm_to_vmem [thread:$0]  %s31, 16, %s33, [#allocation5]
    $region13: #{_lambda_.5} parent=1 // pred_fallthru
      _
    // Predicated region
    $region14: #{_lambda_.5} parent=1 // pred_check
      _
    $region15: #{_lambda_.5} parent=1 // pred_check_branch
      %37 = sbr.rel (0) target = $region17
    $region16: #{_lambda_.5} parent=1 // pred_region
      %39 = dma.done [#allocation3], 4608
    $region17: #{_lambda_.5} parent=1 // pred_fallthru
      _
    // Predicated region
    $region18: #{_lambda_.5} parent=1 // pred_check
      _
    $region19: #{_lambda_.5} parent=1 // pred_check_branch
      %41 = sbr.rel (0) target = $region21
    $region20: #{_lambda_.5} parent=1 // pred_region
      %43 = dma.done [#allocation5], 16
    $region21: #{_lambda_.5} parent=1 // pred_fallthru
      _
    %v45 = vld [vmem:[%s0] sm:$0xff]
    %v46 = vld [vmem:[%s0 + $0x8] sm:$0xff]
    %v47 = vld [vmem:[%s0 + $0x10] sm:$0xf]
    %v48 = vld [vmem:[%s0 + $0x14] sm:$0xff]
    %v49 = vld [vmem:[%s0 + $0x1c] sm:$0xff]
    %v50 = vld [vmem:[%s0 + $0x24] sm:$0xf]
    %v51 = vld [vmem:[%s0 + $0x28] sm:$0xff]
    %v52 = vld [vmem:[%s0 + $0x30] sm:$0xff]
    %v53 = vld [vmem:[%s0 + $0x38] sm:$0xf]
    %v54 = vld [vmem:[%s0 + $0x3c] sm:$0xff]
    %v55 = vld [vmem:[%s0 + $0x44] sm:$0xff]
    %v56 = vld [vmem:[%s0 + $0x4c] sm:$0xf]
    %v57 = vld [vmem:[%s0 + $0x50] sm:$0xff]
    %v58 = vld [vmem:[%s0 + $0x58] sm:$0xff]
    %v59 = vld [vmem:[%s0 + $0x60] sm:$0xf]
    %v60 = vld [vmem:[%s0 + $0x64] sm:$0xff]
    %v61 = vld [vmem:[%s0 + $0x6c] sm:$0xff]
    %v62 = vld [vmem:[%s0 + $0x74] sm:$0xf]
    %v63 = vld [vmem:[%s0 + $0x78] sm:$0xff]
    %v64 = vld [vmem:[%s0 + $0x80] sm:$0xff]
    %v65 = vld [vmem:[%s0 + $0x88] sm:$0xf]
    %v66 = vld [vmem:[%s0 + $0x8c] sm:$0xff]
    %v67 = vld [vmem:[%s0 + $0x94] sm:$0xff]
    %v68 = vld [vmem:[%s0 + $0x9c] sm:$0xf]
    %v69 = vld [vmem:[%s0 + $0xa0] sm:$0xff]
    %v70 = vld [vmem:[%s0 + $0xa8] sm:$0xff]
    %v71 = vld [vmem:[%s0 + $0xb0] sm:$0xf]
    %v72 = vld [vmem:[%s0 + $0xb4] sm:$0xff]
    %v73 = vld [vmem:[%s0 + $0xbc] sm:$0xff]
    %v74 = vld [vmem:[%s0 + $0xc4] sm:$0xf]
    %v75 = vld [vmem:[%s0 + $0xc8] sm:$0xff]
    %v76 = vld [vmem:[%s0 + $0xd0] sm:$0xff]
    %v77 = vld [vmem:[%s0 + $0xd8] sm:$0xf]
    %v78 = vld [vmem:[%s0 + $0xdc] sm:$0xff]
    %v79 = vld [vmem:[%s0 + $0xe4] sm:$0xff]
    %v80 = vld [vmem:[%s0 + $0xec] sm:$0xf]
    %v81 = vld [vmem:[%s0 + $0xf0] sm:$0xff]
    %v82 = vld [vmem:[%s0 + $0xf8] sm:$0xff]
    %v83 = vld [vmem:[%s0 + $0x100] sm:$0xf]
    %v84 = vld [vmem:[%s0 + $0x104] sm:$0xff]
    %v85 = vld [vmem:[%s0 + $0x10c] sm:$0xff]
    %v86 = vld [vmem:[%s0 + $0x114] sm:$0xf]
    %v87 = vld [vmem:[%s0 + $0x118] sm:$0xff]
    %v88 = vld [vmem:[%s0 + $0x120] sm:$0xff]
    %v89 = vld [vmem:[%s0 + $0x128] sm:$0xf]
    %v90 = vld [vmem:[%s0 + $0x12c] sm:$0xff]
    %v91 = vld [vmem:[%s0 + $0x134] sm:$0xff]
    %v92 = vld [vmem:[%s0 + $0x13c] sm:$0xf]
    %v93 = vld [vmem:[%s0 + $0x140] sm:$0xff]
    %v94 = vld [vmem:[%s0 + $0x148] sm:$0xff]
    %v95 = vld [vmem:[%s0 + $0x150] sm:$0xf]
    %v96 = vld [vmem:[%s0 + $0x154] sm:$0xff]
    %v97 = vld [vmem:[%s0 + $0x15c] sm:$0xff]
    %v98 = vld [vmem:[%s0 + $0x164] sm:$0xf]
    %v99 = vld [vmem:[%s0 + $0x168] sm:$0xff]
    %v100 = vld [vmem:[%s0 + $0x170] sm:$0xff]
    %v101 = vld [vmem:[%s0 + $0x178] sm:$0xf]
    %v102 = vld [vmem:[%s0 + $0x17c] sm:$0xff]
    %v103 = vld [vmem:[%s0 + $0x184] sm:$0xff]
    %v104 = vld [vmem:[%s0 + $0x18c] sm:$0xf]
    %v105 = vld [vmem:[%s0 + $0x190] sm:$0xff]
    %v106 = vld [vmem:[%s0 + $0x198] sm:$0xff]
    %v107 = vld [vmem:[%s0 + $0x1a0] sm:$0xf]
    %v108 = vld [vmem:[%s0 + $0x1a4] sm:$0xff]
    %v109 = vld [vmem:[%s0 + $0x1ac] sm:$0xff]
    %v110 = vld [vmem:[%s0 + $0x1b4] sm:$0xf]
    %v111 = vld [vmem:[%s0 + $0x1b8] sm:$0xff]
    %v112 = vld [vmem:[%s0 + $0x1c0] sm:$0xff]
    %v113 = vld [vmem:[%s0 + $0x1c8] sm:$0xf]
    %v114 = vld [vmem:[%s0 + $0x1cc] sm:$0xff]
    %v115 = vld [vmem:[%s0 + $0x1d4] sm:$0xff]
    %v116 = vld [vmem:[%s0 + $0x1dc] sm:$0xf]
    %v117 = vld [vmem:[%s0 + $0x1e0] sm:$0xff]
    %v118 = vld [vmem:[%s0 + $0x1e8] sm:$0xff]
    %v119 = vld [vmem:[%s0 + $0x1f0] sm:$0xf]
    %v120 = vld [vmem:[%s0 + $0x1f4] sm:$0xff]
    %v121 = vld [vmem:[%s0 + $0x1fc] sm:$0xff]
    %v122 = vld [vmem:[%s0 + $0x204] sm:$0xf]
    %v123 = vld [vmem:[%s0 + $0x208] sm:$0xff]
    %v124 = vld [vmem:[%s0 + $0x210] sm:$0xff]
    %v125 = vld [vmem:[%s0 + $0x218] sm:$0xf]
    %v126 = vld [vmem:[%s0 + $0x21c] sm:$0xff]
    %v127 = vld [vmem:[%s0 + $0x224] sm:$0xff]
    %v128 = vld [vmem:[%s0 + $0x22c] sm:$0xf]
    %v129 = vld [vmem:[%s0 + $0x230] sm:$0xff]
    %v130 = vld [vmem:[%s0 + $0x238] sm:$0xff]
    %v131 = vld [vmem:[%s0 + $0x240] sm:$0xf]
    %v132 = vld [vmem:[%s0 + $0x244] sm:$0xff]
    %v133 = vld [vmem:[%s0 + $0x24c] sm:$0xff]
    %v134 = vld [vmem:[%s0 + $0x254] sm:$0xf]
    %v135 = vld [vmem:[%s0 + $0x258] sm:$0xff]
    %v136 = vld [vmem:[%s0 + $0x260] sm:$0xff]
    %v137 = vld [vmem:[%s0 + $0x268] sm:$0xf]
    %v138 = vld [vmem:[%s0 + $0x26c] sm:$0xff]
    %v139 = vld [vmem:[%s0 + $0x274] sm:$0xff]
    %v140 = vld [vmem:[%s0 + $0x27c] sm:$0xf]
    %v141 = vld [vmem:[%s0 + $0x280] sm:$0xff]
    %v142 = vld [vmem:[%s0 + $0x288] sm:$0xff]
    %v143 = vld [vmem:[%s0 + $0x290] sm:$0xf]
    %v144 = vld [vmem:[%s0 + $0x294] sm:$0xff]
    %v145 = vld [vmem:[%s0 + $0x29c] sm:$0xff]
    %v146 = vld [vmem:[%s0 + $0x2a4] sm:$0xf]
    %v147 = vld [vmem:[%s0 + $0x2a8] sm:$0xff]
    %v148 = vld [vmem:[%s0 + $0x2b0] sm:$0xff]
    %v149 = vld [vmem:[%s0 + $0x2b8] sm:$0xf]
    %v150 = vld [vmem:[%s0 + $0x2bc] sm:$0xff]
    %v151 = vld [vmem:[%s0 + $0x2c4] sm:$0xff]
    %v152 = vld [vmem:[%s0 + $0x2cc] sm:$0xf]
    %v153 = vld [vmem:[%s0 + $0x2d0] sm:$0xff]
    %v154 = vld [vmem:[%s0 + $0x2d8] sm:$0xff]
    %v155 = vld [vmem:[%s0 + $0x2e0] sm:$0xf]
    %v156 = vld [vmem:[%s0 + $0x2e4] sm:$0xff]
    %v157 = vld [vmem:[%s0 + $0x2ec] sm:$0xff]
    %v158 = vld [vmem:[%s0 + $0x2f4] sm:$0xf]
    %v159 = vld [vmem:[%s0 + $0x2f8] sm:$0xff]
    %v160 = vld [vmem:[%s0 + $0x300] sm:$0xff]
    %v161 = vld [vmem:[%s0 + $0x308] sm:$0xf]
    %v162 = vld [vmem:[%s0 + $0x30c] sm:$0xff]
    %v163 = vld [vmem:[%s0 + $0x314] sm:$0xff]
    %v164 = vld [vmem:[%s0 + $0x31c] sm:$0xf]
    %v165 = vld [vmem:[%s0 + $0x320] sm:$0xff]
    %v166 = vld [vmem:[%s0 + $0x328] sm:$0xff]
    %v167 = vld [vmem:[%s0 + $0x330] sm:$0xf]
    %v168 = vld [vmem:[%s0 + $0x334] sm:$0xff]
    %v169 = vld [vmem:[%s0 + $0x33c] sm:$0xff]
    %v170 = vld [vmem:[%s0 + $0x344] sm:$0xf]
    %v171 = vld [vmem:[%s0 + $0x348] sm:$0xff]
    %v172 = vld [vmem:[%s0 + $0x350] sm:$0xff]
    %v173 = vld [vmem:[%s0 + $0x358] sm:$0xf]
    %v174 = vld [vmem:[%s0 + $0x35c] sm:$0xff]
    %v175 = vld [vmem:[%s0 + $0x364] sm:$0xff]
    %v176 = vld [vmem:[%s0 + $0x36c] sm:$0xf]
    %v177 = vld [vmem:[%s0 + $0x370] sm:$0xff]
    %v178 = vld [vmem:[%s0 + $0x378] sm:$0xff]
    %v179 = vld [vmem:[%s0 + $0x380] sm:$0xf]
    %v180 = vld [vmem:[%s0 + $0x384] sm:$0xff]
    %v181 = vld [vmem:[%s0 + $0x38c] sm:$0xff]
    %v182 = vld [vmem:[%s0 + $0x394] sm:$0xf]
    %v183 = vld [vmem:[%s0 + $0x398] sm:$0xff]
    %v184 = vld [vmem:[%s0 + $0x3a0] sm:$0xff]
    %v185 = vld [vmem:[%s0 + $0x3a8] sm:$0xf]
    %v186 = vld [vmem:[%s0 + $0x3ac] sm:$0xff]
    %v187 = vld [vmem:[%s0 + $0x3b4] sm:$0xff]
    %v188 = vld [vmem:[%s0 + $0x3bc] sm:$0xf]
    %v189 = vld [vmem:[%s0 + $0x3c0] sm:$0xff]
    %v190 = vld [vmem:[%s0 + $0x3c8] sm:$0xff]
    %v191 = vld [vmem:[%s0 + $0x3d0] sm:$0xf]
    %v192 = vld [vmem:[%s0 + $0x3d4] sm:$0xff]
    %v193 = vld [vmem:[%s0 + $0x3dc] sm:$0xff]
    %v194 = vld [vmem:[%s0 + $0x3e4] sm:$0xf]
    %v195 = vld [vmem:[#allocation2] sm:$0xf]
    %v196 = vld [vmem:[#allocation2 + $0x4] sm:$0xf]
    %v197 = vld [vmem:[#allocation2 + $0x8] sm:$0xf]
    %v198 = vld [vmem:[#allocation2 + $0xc] sm:$0xf]
    %v199 = vld [vmem:[#allocation2 + $0x10] sm:$0xf]
    %v200 = vld [vmem:[#allocation2 + $0x14] sm:$0xf]
    %v201 = vld [vmem:[#allocation2 + $0x18] sm:$0xf]
    %v202 = vld [vmem:[#allocation2 + $0x1c] sm:$0xf]
    %v203 = vld [vmem:[#allocation2 + $0x20] sm:$0xf]
    %v204 = vld [vmem:[#allocation2 + $0x24] sm:$0xf]
    %v205 = vld [vmem:[#allocation2 + $0x28] sm:$0xf]
    %v206 = vld [vmem:[#allocation2 + $0x2c] sm:$0xf]
    %v207 = vld [vmem:[#allocation2 + $0x30] sm:$0xf]
    %v208 = vld [vmem:[#allocation2 + $0x34] sm:$0xf]
    %v209 = vld [vmem:[#allocation2 + $0x38] sm:$0xf]
    %v210 = vld [vmem:[#allocation2 + $0x3c] sm:$0xf]
    %v211 = vld [vmem:[#allocation2 + $0x40] sm:$0xf]
    %v212 = vld [vmem:[#allocation2 + $0x44] sm:$0xf]
    %v213 = vld [vmem:[#allocation2 + $0x48] sm:$0xf]
    %v214 = vld [vmem:[#allocation2 + $0x4c] sm:$0xf]
    %v215 = vld [vmem:[#allocation2 + $0x50] sm:$0xf]
    %v216 = vld [vmem:[#allocation2 + $0x54] sm:$0xf]
    %v217 = vld [vmem:[#allocation2 + $0x58] sm:$0xf]
    %v218 = vld [vmem:[#allocation2 + $0x5c] sm:$0xf]
    %v219 = vld [vmem:[#allocation2 + $0x60] sm:$0xf]
    %v220 = vld [vmem:[#allocation2 + $0x64] sm:$0xf]
    %v221 = vld [vmem:[#allocation2 + $0x68] sm:$0xf]
    %v222 = vld [vmem:[#allocation2 + $0x6c] sm:$0xf]
    %v223 = vld [vmem:[#allocation2 + $0x70] sm:$0xf]
    %v224 = vld [vmem:[#allocation2 + $0x74] sm:$0xf]
    %v225 = vld [vmem:[#allocation2 + $0x78] sm:$0xf]
    %v226 = vld [vmem:[#allocation2 + $0x7c] sm:$0xf]
    %v227 = vld [vmem:[#allocation2 + $0x80] sm:$0xf]
    %v228 = vld [vmem:[#allocation2 + $0x84] sm:$0xf]
    %v229 = vld [vmem:[#allocation2 + $0x88] sm:$0xf]
    %v230 = vld [vmem:[#allocation2 + $0x8c] sm:$0xf]
    %v231 = vld [vmem:[#allocation2 + $0x90] sm:$0xf]
    %v232 = vld [vmem:[#allocation2 + $0x94] sm:$0xf]
    %v233 = vld [vmem:[#allocation2 + $0x98] sm:$0xf]
    %v234 = vld [vmem:[#allocation2 + $0x9c] sm:$0xf]
    %v235 = vld [vmem:[#allocation2 + $0xa0] sm:$0xf]
    %v236 = vld [vmem:[#allocation2 + $0xa4] sm:$0xf]
    %v237 = vld [vmem:[#allocation2 + $0xa8] sm:$0xf]
    %v238 = vld [vmem:[#allocation2 + $0xac] sm:$0xf]
    %v239 = vld [vmem:[#allocation2 + $0xb0] sm:$0xf]
    %v240 = vld [vmem:[#allocation2 + $0xb4] sm:$0xf]
    %v241 = vld [vmem:[#allocation2 + $0xb8] sm:$0xf]
    %v242 = vld [vmem:[#allocation2 + $0xbc] sm:$0xf]
    %v243 = vld [vmem:[#allocation2 + $0xc0] sm:$0xf]
    %v244 = vld [vmem:[#allocation2 + $0xc4] sm:$0xf]
    %v245 = vld [vmem:[#allocation2 + $0xc8] sm:$0xf]
    %v246 = vld [vmem:[#allocation2 + $0xcc] sm:$0xf]
    %v247 = vld [vmem:[#allocation2 + $0xd0] sm:$0xf]
    %v248 = vld [vmem:[#allocation2 + $0xd4] sm:$0xf]
    %v249 = vld [vmem:[#allocation2 + $0xd8] sm:$0xf]
    %v250 = vld [vmem:[#allocation2 + $0xdc] sm:$0xf]
    %v251 = vld [vmem:[#allocation2 + $0xe0] sm:$0xf]
    %v252 = vld [vmem:[#allocation2 + $0xe4] sm:$0xf]
    %v253 = vld [vmem:[#allocation2 + $0xe8] sm:$0xf]
    %v254 = vld [vmem:[#allocation2 + $0xec] sm:$0xf]
    %v255 = vld [vmem:[#allocation2 + $0xf0] sm:$0xf]
    %v256 = vld [vmem:[#allocation2 + $0xf4] sm:$0xf]
    %v257 = vld [vmem:[#allocation2 + $0xf8] sm:$0xf]
    %v258 = vld [vmem:[#allocation2 + $0xfc] sm:$0xf]
    %v259 = vld [vmem:[#allocation2 + $0x100] sm:$0xf]
    %v260 = vld [vmem:[#allocation2 + $0x104] sm:$0xf]
    %v261 = vld [vmem:[#allocation2 + $0x108] sm:$0xf]
    %v262 = vld [vmem:[#allocation2 + $0x10c] sm:$0xf]
    %v263 = vld [vmem:[#allocation2 + $0x110] sm:$0xf]
    %v264 = vld [vmem:[#allocation2 + $0x114] sm:$0xf]
    %v265 = vld [vmem:[#allocation2 + $0x118] sm:$0xf]
    %v266 = vld [vmem:[#allocation2 + $0x11c] sm:$0xf]
    %v267 = vld [vmem:[#allocation4] sm:$0x1]
    %v269 = vperm.slane %v267, 0
    %v421 = vunpack.c.l.b16 %v45
    %v422 = vunpack.c.h.b16 %v45
    %v423 = vunpack.c.l.b16 %v46
    %v424 = vunpack.c.h.b16 %v46
    %v425 = vunpack.c.l.b16 %v47
    %v426 = vunpack.c.l.b16 %v48
    %v427 = vunpack.c.h.b16 %v48
    %v428 = vunpack.c.l.b16 %v49
    %v429 = vunpack.c.h.b16 %v49
    %v430 = vunpack.c.l.b16 %v50
    %v431 = vunpack.c.l.b16 %v51
    %v432 = vunpack.c.h.b16 %v51
    %v433 = vunpack.c.l.b16 %v52
    %v434 = vunpack.c.h.b16 %v52
    %v435 = vunpack.c.l.b16 %v53
    %v436 = vunpack.c.l.b16 %v54
    %v437 = vunpack.c.h.b16 %v54
    %v438 = vunpack.c.l.b16 %v55
    %v439 = vunpack.c.h.b16 %v55
    %v440 = vunpack.c.l.b16 %v56
    %v441 = vunpack.c.l.b16 %v57
    %v442 = vunpack.c.h.b16 %v57
    %v443 = vunpack.c.l.b16 %v58
    %v444 = vunpack.c.h.b16 %v58
    %v445 = vunpack.c.l.b16 %v59
    %v446 = vunpack.c.l.b16 %v60
    %v447 = vunpack.c.h.b16 %v60
    %v448 = vunpack.c.l.b16 %v61
    %v449 = vunpack.c.h.b16 %v61
    %v450 = vunpack.c.l.b16 %v62
    %v451 = vunpack.c.l.b16 %v63
    %v452 = vunpack.c.h.b16 %v63
    %v453 = vunpack.c.l.b16 %v64
    %v454 = vunpack.c.h.b16 %v64
    %v455 = vunpack.c.l.b16 %v65
    %v456 = vunpack.c.l.b16 %v66
    %v457 = vunpack.c.h.b16 %v66
    %v458 = vunpack.c.l.b16 %v67
    %v459 = vunpack.c.h.b16 %v67
    %v460 = vunpack.c.l.b16 %v68
    %v461 = vunpack.c.l.b16 %v69
    %v462 = vunpack.c.h.b16 %v69
    %v463 = vunpack.c.l.b16 %v70
    %v464 = vunpack.c.h.b16 %v70
    %v465 = vunpack.c.l.b16 %v71
    %v466 = vunpack.c.l.b16 %v72
    %v467 = vunpack.c.h.b16 %v72
    %v468 = vunpack.c.l.b16 %v73
    %v469 = vunpack.c.h.b16 %v73
    %v470 = vunpack.c.l.b16 %v74
    %v471 = vunpack.c.l.b16 %v75
    %v472 = vunpack.c.h.b16 %v75
    %v473 = vunpack.c.l.b16 %v76
    %v474 = vunpack.c.h.b16 %v76
    %v475 = vunpack.c.l.b16 %v77
    %v476 = vunpack.c.l.b16 %v78
    %v477 = vunpack.c.h.b16 %v78
    %v478 = vunpack.c.l.b16 %v79
    %v479 = vunpack.c.h.b16 %v79
    %v480 = vunpack.c.l.b16 %v80
    %v481 = vunpack.c.l.b16 %v81
    %v482 = vunpack.c.h.b16 %v81
    %v483 = vunpack.c.l.b16 %v82
    %v484 = vunpack.c.h.b16 %v82
    %v485 = vunpack.c.l.b16 %v83
    %v486 = vunpack.c.l.b16 %v84
    %v487 = vunpack.c.h.b16 %v84
    %v488 = vunpack.c.l.b16 %v85
    %v489 = vunpack.c.h.b16 %v85
    %v490 = vunpack.c.l.b16 %v86
    %v491 = vunpack.c.l.b16 %v87
    %v492 = vunpack.c.h.b16 %v87
    %v493 = vunpack.c.l.b16 %v88
    %v494 = vunpack.c.h.b16 %v88
    %v495 = vunpack.c.l.b16 %v89
    %v496 = vunpack.c.l.b16 %v90
    %v497 = vunpack.c.h.b16 %v90
    %v498 = vunpack.c.l.b16 %v91
    %v499 = vunpack.c.h.b16 %v91
    %v500 = vunpack.c.l.b16 %v92
    %v501 = vunpack.c.l.b16 %v93
    %v502 = vunpack.c.h.b16 %v93
    %v503 = vunpack.c.l.b16 %v94
    %v504 = vunpack.c.h.b16 %v94
    %v505 = vunpack.c.l.b16 %v95
    %v506 = vunpack.c.l.b16 %v96
    %v507 = vunpack.c.h.b16 %v96
    %v508 = vunpack.c.l.b16 %v97
    %v509 = vunpack.c.h.b16 %v97
    %v510 = vunpack.c.l.b16 %v98
    %v511 = vunpack.c.l.b16 %v99
    %v512 = vunpack.c.h.b16 %v99
    %v513 = vunpack.c.l.b16 %v100
    %v514 = vunpack.c.h.b16 %v100
    %v515 = vunpack.c.l.b16 %v101
    %v516 = vunpack.c.l.b16 %v102
    %v517 = vunpack.c.h.b16 %v102
    %v518 = vunpack.c.l.b16 %v103
    %v519 = vunpack.c.h.b16 %v103
    %v520 = vunpack.c.l.b16 %v104
    %v521 = vunpack.c.l.b16 %v105
    %v522 = vunpack.c.h.b16 %v105
    %v523 = vunpack.c.l.b16 %v106
    %v524 = vunpack.c.h.b16 %v106
    %v525 = vunpack.c.l.b16 %v107
    %v526 = vunpack.c.l.b16 %v108
    %v527 = vunpack.c.h.b16 %v108
    %v528 = vunpack.c.l.b16 %v109
    %v529 = vunpack.c.h.b16 %v109
    %v530 = vunpack.c.l.b16 %v110
    %v531 = vunpack.c.l.b16 %v111
    %v532 = vunpack.c.h.b16 %v111
    %v533 = vunpack.c.l.b16 %v112
    %v534 = vunpack.c.h.b16 %v112
    %v535 = vunpack.c.l.b16 %v113
    %v536 = vunpack.c.l.b16 %v114
    %v537 = vunpack.c.h.b16 %v114
    %v538 = vunpack.c.l.b16 %v115
    %v539 = vunpack.c.h.b16 %v115
    %v540 = vunpack.c.l.b16 %v116
    %v541 = vunpack.c.l.b16 %v117
    %v542 = vunpack.c.h.b16 %v117
    %v543 = vunpack.c.l.b16 %v118
    %v544 = vunpack.c.h.b16 %v118
    %v545 = vunpack.c.l.b16 %v119
    %v546 = vunpack.c.l.b16 %v120
    %v547 = vunpack.c.h.b16 %v120
    %v548 = vunpack.c.l.b16 %v121
    %v549 = vunpack.c.h.b16 %v121
    %v550 = vunpack.c.l.b16 %v122
    %v551 = vunpack.c.l.b16 %v123
    %v552 = vunpack.c.h.b16 %v123
    %v553 = vunpack.c.l.b16 %v124
    %v554 = vunpack.c.h.b16 %v124
    %v555 = vunpack.c.l.b16 %v125
    %v556 = vunpack.c.l.b16 %v126
    %v557 = vunpack.c.h.b16 %v126
    %v558 = vunpack.c.l.b16 %v127
    %v559 = vunpack.c.h.b16 %v127
    %v560 = vunpack.c.l.b16 %v128
    %v561 = vunpack.c.l.b16 %v129
    %v562 = vunpack.c.h.b16 %v129
    %v563 = vunpack.c.l.b16 %v130
    %v564 = vunpack.c.h.b16 %v130
    %v565 = vunpack.c.l.b16 %v131
    %v566 = vunpack.c.l.b16 %v132
    %v567 = vunpack.c.h.b16 %v132
    %v568 = vunpack.c.l.b16 %v133
    %v569 = vunpack.c.h.b16 %v133
    %v570 = vunpack.c.l.b16 %v134
    %v571 = vunpack.c.l.b16 %v135
    %v572 = vunpack.c.h.b16 %v135
    %v573 = vunpack.c.l.b16 %v136
    %v574 = vunpack.c.h.b16 %v136
    %v575 = vunpack.c.l.b16 %v137
    %v576 = vunpack.c.l.b16 %v138
    %v577 = vunpack.c.h.b16 %v138
    %v578 = vunpack.c.l.b16 %v139
    %v579 = vunpack.c.h.b16 %v139
    %v580 = vunpack.c.l.b16 %v140
    %v581 = vunpack.c.l.b16 %v141
    %v582 = vunpack.c.h.b16 %v141
    %v583 = vunpack.c.l.b16 %v142
    %v584 = vunpack.c.h.b16 %v142
    %v585 = vunpack.c.l.b16 %v143
    %v586 = vunpack.c.l.b16 %v144
    %v587 = vunpack.c.h.b16 %v144
    %v588 = vunpack.c.l.b16 %v145
    %v589 = vunpack.c.h.b16 %v145
    %v590 = vunpack.c.l.b16 %v146
    %v591 = vunpack.c.l.b16 %v147
    %v592 = vunpack.c.h.b16 %v147
    %v593 = vunpack.c.l.b16 %v148
    %v594 = vunpack.c.h.b16 %v148
    %v595 = vunpack.c.l.b16 %v149
    %v596 = vunpack.c.l.b16 %v150
    %v597 = vunpack.c.h.b16 %v150
    %v598 = vunpack.c.l.b16 %v151
    %v599 = vunpack.c.h.b16 %v151
    %v600 = vunpack.c.l.b16 %v152
    %v601 = vunpack.c.l.b16 %v153
    %v602 = vunpack.c.h.b16 %v153
    %v603 = vunpack.c.l.b16 %v154
    %v604 = vunpack.c.h.b16 %v154
    %v605 = vunpack.c.l.b16 %v155
    %v606 = vunpack.c.l.b16 %v156
    %v607 = vunpack.c.h.b16 %v156
    %v608 = vunpack.c.l.b16 %v157
    %v609 = vunpack.c.h.b16 %v157
    %v610 = vunpack.c.l.b16 %v158
    %v611 = vunpack.c.l.b16 %v159
    %v612 = vunpack.c.h.b16 %v159
    %v613 = vunpack.c.l.b16 %v160
    %v614 = vunpack.c.h.b16 %v160
    %v615 = vunpack.c.l.b16 %v161
    %v616 = vunpack.c.l.b16 %v162
    %v617 = vunpack.c.h.b16 %v162
    %v618 = vunpack.c.l.b16 %v163
    %v619 = vunpack.c.h.b16 %v163
    %v620 = vunpack.c.l.b16 %v164
    %v621 = vunpack.c.l.b16 %v165
    %v622 = vunpack.c.h.b16 %v165
    %v623 = vunpack.c.l.b16 %v166
    %v624 = vunpack.c.h.b16 %v166
    %v625 = vunpack.c.l.b16 %v167
    %v626 = vunpack.c.l.b16 %v168
    %v627 = vunpack.c.h.b16 %v168
    %v628 = vunpack.c.l.b16 %v169
    %v629 = vunpack.c.h.b16 %v169
    %v630 = vunpack.c.l.b16 %v170
    %v631 = vunpack.c.l.b16 %v171
    %v632 = vunpack.c.h.b16 %v171
    %v633 = vunpack.c.l.b16 %v172
    %v634 = vunpack.c.h.b16 %v172
    %v635 = vunpack.c.l.b16 %v173
    %v636 = vunpack.c.l.b16 %v174
    %v637 = vunpack.c.h.b16 %v174
    %v638 = vunpack.c.l.b16 %v175
    %v639 = vunpack.c.h.b16 %v175
    %v640 = vunpack.c.l.b16 %v176
    %v641 = vunpack.c.l.b16 %v177
    %v642 = vunpack.c.h.b16 %v177
    %v643 = vunpack.c.l.b16 %v178
    %v644 = vunpack.c.h.b16 %v178
    %v645 = vunpack.c.l.b16 %v179
    %v646 = vunpack.c.l.b16 %v180
    %v647 = vunpack.c.h.b16 %v180
    %v648 = vunpack.c.l.b16 %v181
    %v649 = vunpack.c.h.b16 %v181
    %v650 = vunpack.c.l.b16 %v182
    %v651 = vunpack.c.l.b16 %v183
    %v652 = vunpack.c.h.b16 %v183
    %v653 = vunpack.c.l.b16 %v184
    %v654 = vunpack.c.h.b16 %v184
    %v655 = vunpack.c.l.b16 %v185
    %v656 = vunpack.c.l.b16 %v186
    %v657 = vunpack.c.h.b16 %v186
    %v658 = vunpack.c.l.b16 %v187
    %v659 = vunpack.c.h.b16 %v187
    %v660 = vunpack.c.l.b16 %v188
    %v661 = vunpack.c.l.b16 %v189
    %v662 = vunpack.c.h.b16 %v189
    %v663 = vunpack.c.l.b16 %v190
    %v664 = vunpack.c.h.b16 %v190
    %v665 = vunpack.c.l.b16 %v191
    %v666 = vunpack.c.l.b16 %v192
    %v667 = vunpack.c.h.b16 %v192
    %v668 = vunpack.c.l.b16 %v193
    %v669 = vunpack.c.h.b16 %v193
    %v670 = vunpack.c.l.b16 %v194
    %v671 = vpack.c.b16 %v426, %v421
    %v672 = vpack.c.b16 %v427, %v422
    %v673 = vpack.c.b16 %v428, %v423
    %v674 = vpack.c.b16 %v429, %v424
    %v675 = vpack.c.b16 %v430, %v425
    %v676 = vpack.c.b16 %v436, %v431
    %v677 = vpack.c.b16 %v437, %v432
    %v678 = vpack.c.b16 %v438, %v433
    %v679 = vpack.c.b16 %v439, %v434
    %v680 = vpack.c.b16 %v440, %v435
    %v681 = vpack.c.b16 %v446, %v441
    %v682 = vpack.c.b16 %v447, %v442
    %v683 = vpack.c.b16 %v448, %v443
    %v684 = vpack.c.b16 %v449, %v444
    %v685 = vpack.c.b16 %v450, %v445
    %v686 = vpack.c.b16 %v456, %v451
    %v687 = vpack.c.b16 %v457, %v452
    %v688 = vpack.c.b16 %v458, %v453
    %v689 = vpack.c.b16 %v459, %v454
    %v690 = vpack.c.b16 %v460, %v455
    %v691 = vpack.c.b16 %v466, %v461
    %v692 = vpack.c.b16 %v467, %v462
    %v693 = vpack.c.b16 %v468, %v463
    %v694 = vpack.c.b16 %v469, %v464
    %v695 = vpack.c.b16 %v470, %v465
    %v696 = vpack.c.b16 %v476, %v471
    %v697 = vpack.c.b16 %v477, %v472
    %v698 = vpack.c.b16 %v478, %v473
    %v699 = vpack.c.b16 %v479, %v474
    %v700 = vpack.c.b16 %v480, %v475
    %v701 = vpack.c.b16 %v486, %v481
    %v702 = vpack.c.b16 %v487, %v482
    %v703 = vpack.c.b16 %v488, %v483
    %v704 = vpack.c.b16 %v489, %v484
    %v705 = vpack.c.b16 %v490, %v485
    %v706 = vpack.c.b16 %v496, %v491
    %v707 = vpack.c.b16 %v497, %v492
    %v708 = vpack.c.b16 %v498, %v493
    %v709 = vpack.c.b16 %v499, %v494
    %v710 = vpack.c.b16 %v500, %v495
    %v711 = vpack.c.b16 %v506, %v501
    %v712 = vpack.c.b16 %v507, %v502
    %v713 = vpack.c.b16 %v508, %v503
    %v714 = vpack.c.b16 %v509, %v504
    %v715 = vpack.c.b16 %v510, %v505
    %v716 = vpack.c.b16 %v516, %v511
    %v717 = vpack.c.b16 %v517, %v512
    %v718 = vpack.c.b16 %v518, %v513
    %v719 = vpack.c.b16 %v519, %v514
    %v720 = vpack.c.b16 %v520, %v515
    %v721 = vpack.c.b16 %v526, %v521
    %v722 = vpack.c.b16 %v527, %v522
    %v723 = vpack.c.b16 %v528, %v523
    %v724 = vpack.c.b16 %v529, %v524
    %v725 = vpack.c.b16 %v530, %v525
    %v726 = vpack.c.b16 %v536, %v531
    %v727 = vpack.c.b16 %v537, %v532
    %v728 = vpack.c.b16 %v538, %v533
    %v729 = vpack.c.b16 %v539, %v534
    %v730 = vpack.c.b16 %v540, %v535
    %v731 = vpack.c.b16 %v546, %v541
    %v732 = vpack.c.b16 %v547, %v542
    %v733 = vpack.c.b16 %v548, %v543
    %v734 = vpack.c.b16 %v549, %v544
    %v735 = vpack.c.b16 %v550, %v545
    %v736 = vpack.c.b16 %v556, %v551
    %v737 = vpack.c.b16 %v557, %v552
    %v738 = vpack.c.b16 %v558, %v553
    %v739 = vpack.c.b16 %v559, %v554
    %v740 = vpack.c.b16 %v560, %v555
    %v741 = vpack.c.b16 %v566, %v561
    %v742 = vpack.c.b16 %v567, %v562
    %v743 = vpack.c.b16 %v568, %v563
    %v744 = vpack.c.b16 %v569, %v564
    %v745 = vpack.c.b16 %v570, %v565
    %v746 = vpack.c.b16 %v576, %v571
    %v747 = vpack.c.b16 %v577, %v572
    %v748 = vpack.c.b16 %v578, %v573
    %v749 = vpack.c.b16 %v579, %v574
    %v750 = vpack.c.b16 %v580, %v575
    %v751 = vpack.c.b16 %v586, %v581
    %v752 = vpack.c.b16 %v587, %v582
    %v753 = vpack.c.b16 %v588, %v583
    %v754 = vpack.c.b16 %v589, %v584
    %v755 = vpack.c.b16 %v590, %v585
    %v756 = vpack.c.b16 %v596, %v591
    %v757 = vpack.c.b16 %v597, %v592
    %v758 = vpack.c.b16 %v598, %v593
    %v759 = vpack.c.b16 %v599, %v594
    %v760 = vpack.c.b16 %v600, %v595
    %v761 = vpack.c.b16 %v606, %v601
    %v762 = vpack.c.b16 %v607, %v602
    %v763 = vpack.c.b16 %v608, %v603
    %v764 = vpack.c.b16 %v609, %v604
    %v765 = vpack.c.b16 %v610, %v605
    %v766 = vpack.c.b16 %v616, %v611
    %v767 = vpack.c.b16 %v617, %v612
    %v768 = vpack.c.b16 %v618, %v613
    %v769 = vpack.c.b16 %v619, %v614
    %v770 = vpack.c.b16 %v620, %v615
    %v771 = vpack.c.b16 %v626, %v621
    %v772 = vpack.c.b16 %v627, %v622
    %v773 = vpack.c.b16 %v628, %v623
    %v774 = vpack.c.b16 %v629, %v624
    %v775 = vpack.c.b16 %v630, %v625
    %v776 = vpack.c.b16 %v636, %v631
    %v777 = vpack.c.b16 %v637, %v632
    %v778 = vpack.c.b16 %v638, %v633
    %v779 = vpack.c.b16 %v639, %v634
    %v780 = vpack.c.b16 %v640, %v635
    %v781 = vpack.c.b16 %v646, %v641
    %v782 = vpack.c.b16 %v647, %v642
    %v783 = vpack.c.b16 %v648, %v643
    %v784 = vpack.c.b16 %v649, %v644
    %v785 = vpack.c.b16 %v650, %v645
    %v786 = vpack.c.b16 %v656, %v651
    %v787 = vpack.c.b16 %v657, %v652
    %v788 = vpack.c.b16 %v658, %v653
    %v789 = vpack.c.b16 %v659, %v654
    %v790 = vpack.c.b16 %v660, %v655
    %v791 = vpack.c.b16 %v666, %v661
    %v792 = vpack.c.b16 %v667, %v662
    %v793 = vpack.c.b16 %v668, %v663
    %v794 = vpack.c.b16 %v669, %v664
    %v795 = vpack.c.b16 %v670, %v665
    %v968 = vunpack.c.l.b16 %v195
    %v969 = vunpack.c.l.b16 %v196
    %v970 = vunpack.c.l.b16 %v197
    %v971 = vunpack.c.l.b16 %v198
    %v972 = vunpack.c.l.b16 %v199
    %v973 = vunpack.c.l.b16 %v200
    %v974 = vunpack.c.l.b16 %v201
    %v975 = vunpack.c.l.b16 %v202
    %v976 = vunpack.c.l.b16 %v203
    %v977 = vunpack.c.l.b16 %v204
    %v978 = vunpack.c.l.b16 %v205
    %v979 = vunpack.c.l.b16 %v206
    %v980 = vunpack.c.l.b16 %v207
    %v981 = vunpack.c.l.b16 %v208
    %v982 = vunpack.c.l.b16 %v209
    %v983 = vunpack.c.l.b16 %v210
    %v984 = vunpack.c.l.b16 %v211
    %v985 = vunpack.c.l.b16 %v212
    %v986 = vunpack.c.l.b16 %v213
    %v987 = vunpack.c.l.b16 %v214
    %v988 = vunpack.c.l.b16 %v215
    %v989 = vunpack.c.l.b16 %v216
    %v990 = vunpack.c.l.b16 %v217
    %v991 = vunpack.c.l.b16 %v218
    %v992 = vunpack.c.l.b16 %v219
    %v993 = vunpack.c.l.b16 %v220
    %v994 = vunpack.c.l.b16 %v221
    %v995 = vunpack.c.l.b16 %v222
    %v996 = vunpack.c.l.b16 %v223
    %v997 = vunpack.c.l.b16 %v224
    %v998 = vunpack.c.l.b16 %v225
    %v999 = vunpack.c.l.b16 %v226
    %v1000 = vunpack.c.l.b16 %v227
    %v1001 = vunpack.c.l.b16 %v228
    %v1002 = vunpack.c.l.b16 %v229
    %v1003 = vunpack.c.l.b16 %v230
    %v1004 = vunpack.c.l.b16 %v231
    %v1005 = vunpack.c.l.b16 %v232
    %v1006 = vunpack.c.l.b16 %v233
    %v1007 = vunpack.c.l.b16 %v234
    %v1008 = vunpack.c.l.b16 %v235
    %v1009 = vunpack.c.l.b16 %v236
    %v1010 = vunpack.c.l.b16 %v237
    %v1011 = vunpack.c.l.b16 %v238
    %v1012 = vunpack.c.l.b16 %v239
    %v1013 = vunpack.c.l.b16 %v240
    %v1014 = vunpack.c.l.b16 %v241
    %v1015 = vunpack.c.l.b16 %v242
    %v1016 = vunpack.c.l.b16 %v243
    %v1017 = vunpack.c.l.b16 %v244
    %v1018 = vunpack.c.l.b16 %v245
    %v1019 = vunpack.c.l.b16 %v246
    %v1020 = vunpack.c.l.b16 %v247
    %v1021 = vunpack.c.l.b16 %v248
    %v1022 = vunpack.c.l.b16 %v249
    %v1023 = vunpack.c.l.b16 %v250
    %v1024 = vunpack.c.l.b16 %v251
    %v1025 = vunpack.c.l.b16 %v252
    %v1026 = vunpack.c.l.b16 %v253
    %v1027 = vunpack.c.l.b16 %v254
    %v1028 = vunpack.c.l.b16 %v255
    %v1029 = vunpack.c.l.b16 %v256
    %v1030 = vunpack.c.l.b16 %v257
    %v1031 = vunpack.c.l.b16 %v258
    %v1032 = vunpack.c.l.b16 %v259
    %v1033 = vunpack.c.l.b16 %v260
    %v1034 = vunpack.c.l.b16 %v261
    %v1035 = vunpack.c.l.b16 %v262
    %v1036 = vunpack.c.l.b16 %v263
    %v1037 = vunpack.c.l.b16 %v264
    %v1038 = vunpack.c.l.b16 %v265
    %v1039 = vunpack.c.l.b16 %v266
    %v1040 = vpack.c.b16 %v969, %v968
    %v1041 = vpack.c.b16 %v971, %v970
    %v1042 = vpack.c.b16 %v973, %v972
    %v1043 = vpack.c.b16 %v975, %v974
    %v1044 = vpack.c.b16 %v977, %v976
    %v1045 = vpack.c.b16 %v979, %v978
    %v1046 = vpack.c.b16 %v981, %v980
    %v1047 = vpack.c.b16 %v983, %v982
    %v1048 = vpack.c.b16 %v985, %v984
    %v1049 = vpack.c.b16 %v987, %v986
    %v1050 = vpack.c.b16 %v989, %v988
    %v1051 = vpack.c.b16 %v991, %v990
    %v1052 = vpack.c.b16 %v993, %v992
    %v1053 = vpack.c.b16 %v995, %v994
    %v1054 = vpack.c.b16 %v997, %v996
    %v1055 = vpack.c.b16 %v999, %v998
    %v1056 = vpack.c.b16 %v1001, %v1000
    %v1057 = vpack.c.b16 %v1003, %v1002
    %v1058 = vpack.c.b16 %v1005, %v1004
    %v1059 = vpack.c.b16 %v1007, %v1006
    %v1060 = vpack.c.b16 %v1009, %v1008
    %v1061 = vpack.c.b16 %v1011, %v1010
    %v1062 = vpack.c.b16 %v1013, %v1012
    %v1063 = vpack.c.b16 %v1015, %v1014
    %v1064 = vpack.c.b16 %v1017, %v1016
    %v1065 = vpack.c.b16 %v1019, %v1018
    %v1066 = vpack.c.b16 %v1021, %v1020
    %v1067 = vpack.c.b16 %v1023, %v1022
    %v1068 = vpack.c.b16 %v1025, %v1024
    %v1069 = vpack.c.b16 %v1027, %v1026
    %v1070 = vpack.c.b16 %v1029, %v1028
    %v1071 = vpack.c.b16 %v1031, %v1030
    %v1072 = vpack.c.b16 %v1033, %v1032
    %v1073 = vpack.c.b16 %v1035, %v1034
    %v1074 = vpack.c.b16 %v1037, %v1036
    %v1075 = vpack.c.b16 %v1039, %v1038
    %vm1112 = vcmask 523264
    %v1114 = vsel %vm1112, %v675, 0
    %v1117 = vsel %vm1112, %v680, 0
    %v1120 = vsel %vm1112, %v685, 0
    %v1123 = vsel %vm1112, %v690, 0
    %v1126 = vsel %vm1112, %v695, 0
    %v1129 = vsel %vm1112, %v700, 0
    %v1132 = vsel %vm1112, %v705, 0
    %v1135 = vsel %vm1112, %v710, 0
    %v1138 = vsel %vm1112, %v715, 0
    %v1141 = vsel %vm1112, %v720, 0
    %v1144 = vsel %vm1112, %v725, 0
    %v1147 = vsel %vm1112, %v730, 0
    %v1150 = vsel %vm1112, %v735, 0
    %v1153 = vsel %vm1112, %v740, 0
    %v1156 = vsel %vm1112, %v745, 0
    %v1159 = vsel %vm1112, %v750, 0
    %v1162 = vsel %vm1112, %v755, 0
    %v1165 = vsel %vm1112, %v760, 0
    %v1168 = vsel %vm1112, %v765, 0
    %v1171 = vsel %vm1112, %v770, 0
    %v1174 = vsel %vm1112, %v775, 0
    %v1177 = vsel %vm1112, %v780, 0
    %v1180 = vsel %vm1112, %v785, 0
    %v1183 = vsel %vm1112, %v790, 0
    %v1186 = vsel %vm1112, %v795, 0
    %1188 = vmatpush.bf16.msra.mxu0 %v1047
    %1189 = vmatpush.bf16.msra.mxu0 %v1046
    %1190 = vmatpush.bf16.msra.mxu0 %v1045
    %1191 = vmatpush.bf16.msra.mxu0 %v1044
    %1192 = vmatpush.bf16.msra.mxu0 %v1043
    %1193 = vmatpush.bf16.msra.mxu0 %v1042
    %1194 = vmatpush.bf16.msra.mxu0 %v1041
    %1195 = vmatpush.bf16.msra.mxu0 %v1040
    %1196 = vmatmul.bf16.gmra.mxu0 %v671
    %v1197 = vpop.f32.mrf.mxu0
    %v1198 = vadd.f32 %v269, %v1197
    %v1199 = vpop.f32.mrf.mxu0
    %v1200 = vadd.f32 %v269, %v1199
    %1201 = vmatmul.bf16.gmra.mxu0 %v676
    %v1202 = vpop.f32.mrf.mxu0
    %v1203 = vadd.f32 %v269, %v1202
    %v1204 = vpop.f32.mrf.mxu0
    %v1205 = vadd.f32 %v269, %v1204
    %1206 = vmatmul.bf16.gmra.mxu0 %v681
    %v1207 = vpop.f32.mrf.mxu0
    %v1208 = vadd.f32 %v269, %v1207
    %v1209 = vpop.f32.mrf.mxu0
    %v1210 = vadd.f32 %v269, %v1209
    %1211 = vmatmul.bf16.gmra.mxu0 %v686
    %v1212 = vpop.f32.mrf.mxu0
    %v1213 = vadd.f32 %v269, %v1212
    %v1214 = vpop.f32.mrf.mxu0
    %v1215 = vadd.f32 %v269, %v1214
    %1216 = vmatmul.bf16.gmra.mxu0 %v691
    %v1217 = vpop.f32.mrf.mxu0
    %v1218 = vadd.f32 %v269, %v1217
    %v1219 = vpop.f32.mrf.mxu0
    %v1220 = vadd.f32 %v269, %v1219
    %1221 = vmatmul.bf16.gmra.mxu0 %v696
    %v1222 = vpop.f32.mrf.mxu0
    %v1223 = vadd.f32 %v269, %v1222
    %v1224 = vpop.f32.mrf.mxu0
    %v1225 = vadd.f32 %v269, %v1224
    %1226 = vmatmul.bf16.gmra.mxu0 %v701
    %v1227 = vpop.f32.mrf.mxu0
    %v1228 = vadd.f32 %v269, %v1227
    %v1229 = vpop.f32.mrf.mxu0
    %v1230 = vadd.f32 %v269, %v1229
    %1231 = vmatmul.bf16.gmra.mxu0 %v706
    %v1232 = vpop.f32.mrf.mxu0
    %v1233 = vadd.f32 %v269, %v1232
    %v1234 = vpop.f32.mrf.mxu0
    %v1235 = vadd.f32 %v269, %v1234
    %1236 = vmatmul.bf16.gmra.mxu0 %v711
    %v1237 = vpop.f32.mrf.mxu0
    %v1238 = vadd.f32 %v269, %v1237
    %v1239 = vpop.f32.mrf.mxu0
    %v1240 = vadd.f32 %v269, %v1239
    %1241 = vmatmul.bf16.gmra.mxu0 %v716
    %v1242 = vpop.f32.mrf.mxu0
    %v1243 = vadd.f32 %v269, %v1242
    %v1244 = vpop.f32.mrf.mxu0
    %v1245 = vadd.f32 %v269, %v1244
    %1246 = vmatmul.bf16.gmra.mxu0 %v721
    %v1247 = vpop.f32.mrf.mxu0
    %v1248 = vadd.f32 %v269, %v1247
    %v1249 = vpop.f32.mrf.mxu0
    %v1250 = vadd.f32 %v269, %v1249
    %1251 = vmatmul.bf16.gmra.mxu0 %v726
    %v1252 = vpop.f32.mrf.mxu0
    %v1253 = vadd.f32 %v269, %v1252
    %v1254 = vpop.f32.mrf.mxu0
    %v1255 = vadd.f32 %v269, %v1254
    %1256 = vmatmul.bf16.gmra.mxu0 %v731
    %v1257 = vpop.f32.mrf.mxu0
    %v1258 = vadd.f32 %v269, %v1257
    %v1259 = vpop.f32.mrf.mxu0
    %v1260 = vadd.f32 %v269, %v1259
    %1261 = vmatmul.bf16.gmra.mxu0 %v736
    %v1262 = vpop.f32.mrf.mxu0
    %v1263 = vadd.f32 %v269, %v1262
    %v1264 = vpop.f32.mrf.mxu0
    %v1265 = vadd.f32 %v269, %v1264
    %1266 = vmatmul.bf16.gmra.mxu0 %v741
    %v1267 = vpop.f32.mrf.mxu0
    %v1268 = vadd.f32 %v269, %v1267
    %v1269 = vpop.f32.mrf.mxu0
    %v1270 = vadd.f32 %v269, %v1269
    %1271 = vmatmul.bf16.gmra.mxu0 %v746
    %v1272 = vpop.f32.mrf.mxu0
    %v1273 = vadd.f32 %v269, %v1272
    %v1274 = vpop.f32.mrf.mxu0
    %v1275 = vadd.f32 %v269, %v1274
    %1276 = vmatmul.bf16.gmra.mxu0 %v751
    %v1277 = vpop.f32.mrf.mxu0
    %v1278 = vadd.f32 %v269, %v1277
    %v1279 = vpop.f32.mrf.mxu0
    %v1280 = vadd.f32 %v269, %v1279
    %1281 = vmatmul.bf16.gmra.mxu0 %v756
    %v1282 = vpop.f32.mrf.mxu0
    %v1283 = vadd.f32 %v269, %v1282
    %v1284 = vpop.f32.mrf.mxu0
    %v1285 = vadd.f32 %v269, %v1284
    %1286 = vmatmul.bf16.gmra.mxu0 %v761
    %v1287 = vpop.f32.mrf.mxu0
    %v1288 = vadd.f32 %v269, %v1287
    %v1289 = vpop.f32.mrf.mxu0
    %v1290 = vadd.f32 %v269, %v1289
    %1291 = vmatmul.bf16.gmra.mxu0 %v766
    %v1292 = vpop.f32.mrf.mxu0
    %v1293 = vadd.f32 %v269, %v1292
    %v1294 = vpop.f32.mrf.mxu0
    %v1295 = vadd.f32 %v269, %v1294
    %1296 = vmatmul.bf16.gmra.mxu0 %v771
    %v1297 = vpop.f32.mrf.mxu0
    %v1298 = vadd.f32 %v269, %v1297
    %v1299 = vpop.f32.mrf.mxu0
    %v1300 = vadd.f32 %v269, %v1299
    %1301 = vmatmul.bf16.gmra.mxu0 %v776
    %v1302 = vpop.f32.mrf.mxu0
    %v1303 = vadd.f32 %v269, %v1302
    %v1304 = vpop.f32.mrf.mxu0
    %v1305 = vadd.f32 %v269, %v1304
    %1306 = vmatmul.bf16.gmra.mxu0 %v781
    %v1307 = vpop.f32.mrf.mxu0
    %v1308 = vadd.f32 %v269, %v1307
    %v1309 = vpop.f32.mrf.mxu0
    %v1310 = vadd.f32 %v269, %v1309
    %1311 = vmatmul.bf16.gmra.mxu0 %v786
    %v1312 = vpop.f32.mrf.mxu0
    %v1313 = vadd.f32 %v269, %v1312
    %v1314 = vpop.f32.mrf.mxu0
    %v1315 = vadd.f32 %v269, %v1314
    %1316 = vmatmul.bf16.gmra.mxu0 %v791
    %v1317 = vpop.f32.mrf.mxu0
    %v1318 = vadd.f32 %v269, %v1317
    %v1319 = vpop.f32.mrf.mxu0
    %v1320 = vadd.f32 %v269, %v1319
    %1321 = vdwg.mxu0
    %1322 = vmatpush.bf16.msra.mxu0 %v1055
    %1323 = vmatpush.bf16.msra.mxu0 %v1054
    %1324 = vmatpush.bf16.msra.mxu0 %v1053
    %1325 = vmatpush.bf16.msra.mxu0 %v1052
    %1326 = vmatpush.bf16.msra.mxu0 %v1051
    %1327 = vmatpush.bf16.msra.mxu0 %v1050
    %1328 = vmatpush.bf16.msra.mxu0 %v1049
    %1329 = vmatpush.bf16.msra.mxu0 %v1048
    %1330 = vmatmul.bf16.gmra.mxu0 %v672
    %v1331 = vpop.f32.mrf.mxu0
    %v1332 = vadd.f32 %v1198, %v1331
    %v1333 = vpop.f32.mrf.mxu0
    %v1334 = vadd.f32 %v1200, %v1333
    %1335 = vmatmul.bf16.gmra.mxu0 %v677
    %v1336 = vpop.f32.mrf.mxu0
    %v1337 = vadd.f32 %v1203, %v1336
    %v1338 = vpop.f32.mrf.mxu0
    %v1339 = vadd.f32 %v1205, %v1338
    %1340 = vmatmul.bf16.gmra.mxu0 %v682
    %v1341 = vpop.f32.mrf.mxu0
    %v1342 = vadd.f32 %v1208, %v1341
    %v1343 = vpop.f32.mrf.mxu0
    %v1344 = vadd.f32 %v1210, %v1343
    %1345 = vmatmul.bf16.gmra.mxu0 %v687
    %v1346 = vpop.f32.mrf.mxu0
    %v1347 = vadd.f32 %v1213, %v1346
    %v1348 = vpop.f32.mrf.mxu0
    %v1349 = vadd.f32 %v1215, %v1348
    %1350 = vmatmul.bf16.gmra.mxu0 %v692
    %v1351 = vpop.f32.mrf.mxu0
    %v1352 = vadd.f32 %v1218, %v1351
    %v1353 = vpop.f32.mrf.mxu0
    %v1354 = vadd.f32 %v1220, %v1353
    %1355 = vmatmul.bf16.gmra.mxu0 %v697
    %v1356 = vpop.f32.mrf.mxu0
    %v1357 = vadd.f32 %v1223, %v1356
    %v1358 = vpop.f32.mrf.mxu0
    %v1359 = vadd.f32 %v1225, %v1358
    %1360 = vmatmul.bf16.gmra.mxu0 %v702
    %v1361 = vpop.f32.mrf.mxu0
    %v1362 = vadd.f32 %v1228, %v1361
    %v1363 = vpop.f32.mrf.mxu0
    %v1364 = vadd.f32 %v1230, %v1363
    %1365 = vmatmul.bf16.gmra.mxu0 %v707
    %v1366 = vpop.f32.mrf.mxu0
    %v1367 = vadd.f32 %v1233, %v1366
    %v1368 = vpop.f32.mrf.mxu0
    %v1369 = vadd.f32 %v1235, %v1368
    %1370 = vmatmul.bf16.gmra.mxu0 %v712
    %v1371 = vpop.f32.mrf.mxu0
    %v1372 = vadd.f32 %v1238, %v1371
    %v1373 = vpop.f32.mrf.mxu0
    %v1374 = vadd.f32 %v1240, %v1373
    %1375 = vmatmul.bf16.gmra.mxu0 %v717
    %v1376 = vpop.f32.mrf.mxu0
    %v1377 = vadd.f32 %v1243, %v1376
    %v1378 = vpop.f32.mrf.mxu0
    %v1379 = vadd.f32 %v1245, %v1378
    %1380 = vmatmul.bf16.gmra.mxu0 %v722
    %v1381 = vpop.f32.mrf.mxu0
    %v1382 = vadd.f32 %v1248, %v1381
    %v1383 = vpop.f32.mrf.mxu0
    %v1384 = vadd.f32 %v1250, %v1383
    %1385 = vmatmul.bf16.gmra.mxu0 %v727
    %v1386 = vpop.f32.mrf.mxu0
    %v1387 = vadd.f32 %v1253, %v1386
    %v1388 = vpop.f32.mrf.mxu0
    %v1389 = vadd.f32 %v1255, %v1388
    %1390 = vmatmul.bf16.gmra.mxu0 %v732
    %v1391 = vpop.f32.mrf.mxu0
    %v1392 = vadd.f32 %v1258, %v1391
    %v1393 = vpop.f32.mrf.mxu0
    %v1394 = vadd.f32 %v1260, %v1393
    %1395 = vmatmul.bf16.gmra.mxu0 %v737
    %v1396 = vpop.f32.mrf.mxu0
    %v1397 = vadd.f32 %v1263, %v1396
    %v1398 = vpop.f32.mrf.mxu0
    %v1399 = vadd.f32 %v1265, %v1398
    %1400 = vmatmul.bf16.gmra.mxu0 %v742
    %v1401 = vpop.f32.mrf.mxu0
    %v1402 = vadd.f32 %v1268, %v1401
    %v1403 = vpop.f32.mrf.mxu0
    %v1404 = vadd.f32 %v1270, %v1403
    %1405 = vmatmul.bf16.gmra.mxu0 %v747
    %v1406 = vpop.f32.mrf.mxu0
    %v1407 = vadd.f32 %v1273, %v1406
    %v1408 = vpop.f32.mrf.mxu0
    %v1409 = vadd.f32 %v1275, %v1408
    %1410 = vmatmul.bf16.gmra.mxu0 %v752
    %v1411 = vpop.f32.mrf.mxu0
    %v1412 = vadd.f32 %v1278, %v1411
    %v1413 = vpop.f32.mrf.mxu0
    %v1414 = vadd.f32 %v1280, %v1413
    %1415 = vmatmul.bf16.gmra.mxu0 %v757
    %v1416 = vpop.f32.mrf.mxu0
    %v1417 = vadd.f32 %v1283, %v1416
    %v1418 = vpop.f32.mrf.mxu0
    %v1419 = vadd.f32 %v1285, %v1418
    %1420 = vmatmul.bf16.gmra.mxu0 %v762
    %v1421 = vpop.f32.mrf.mxu0
    %v1422 = vadd.f32 %v1288, %v1421
    %v1423 = vpop.f32.mrf.mxu0
    %v1424 = vadd.f32 %v1290, %v1423
    %1425 = vmatmul.bf16.gmra.mxu0 %v767
    %v1426 = vpop.f32.mrf.mxu0
    %v1427 = vadd.f32 %v1293, %v1426
    %v1428 = vpop.f32.mrf.mxu0
    %v1429 = vadd.f32 %v1295, %v1428
    %1430 = vmatmul.bf16.gmra.mxu0 %v772
    %v1431 = vpop.f32.mrf.mxu0
    %v1432 = vadd.f32 %v1298, %v1431
    %v1433 = vpop.f32.mrf.mxu0
    %v1434 = vadd.f32 %v1300, %v1433
    %1435 = vmatmul.bf16.gmra.mxu0 %v777
    %v1436 = vpop.f32.mrf.mxu0
    %v1437 = vadd.f32 %v1303, %v1436
    %v1438 = vpop.f32.mrf.mxu0
    %v1439 = vadd.f32 %v1305, %v1438
    %1440 = vmatmul.bf16.gmra.mxu0 %v782
    %v1441 = vpop.f32.mrf.mxu0
    %v1442 = vadd.f32 %v1308, %v1441
    %v1443 = vpop.f32.mrf.mxu0
    %v1444 = vadd.f32 %v1310, %v1443
    %1445 = vmatmul.bf16.gmra.mxu0 %v787
    %v1446 = vpop.f32.mrf.mxu0
    %v1447 = vadd.f32 %v1313, %v1446
    %v1448 = vpop.f32.mrf.mxu0
    %v1449 = vadd.f32 %v1315, %v1448
    %1450 = vmatmul.bf16.gmra.mxu0 %v792
    %v1451 = vpop.f32.mrf.mxu0
    %v1452 = vadd.f32 %v1318, %v1451
    %v1453 = vpop.f32.mrf.mxu0
    %v1454 = vadd.f32 %v1320, %v1453
    %1455 = vdwg.mxu0
    %1456 = vmatpush.bf16.msra.mxu0 %v1063
    %1457 = vmatpush.bf16.msra.mxu0 %v1062
    %1458 = vmatpush.bf16.msra.mxu0 %v1061
    %1459 = vmatpush.bf16.msra.mxu0 %v1060
    %1460 = vmatpush.bf16.msra.mxu0 %v1059
    %1461 = vmatpush.bf16.msra.mxu0 %v1058
    %1462 = vmatpush.bf16.msra.mxu0 %v1057
    %1463 = vmatpush.bf16.msra.mxu0 %v1056
    %1464 = vmatmul.bf16.gmra.mxu0 %v673
    %v1465 = vpop.f32.mrf.mxu0
    %v1466 = vadd.f32 %v1332, %v1465
    %v1467 = vpop.f32.mrf.mxu0
    %v1468 = vadd.f32 %v1334, %v1467
    %1469 = vmatmul.bf16.gmra.mxu0 %v678
    %v1470 = vpop.f32.mrf.mxu0
    %v1471 = vadd.f32 %v1337, %v1470
    %v1472 = vpop.f32.mrf.mxu0
    %v1473 = vadd.f32 %v1339, %v1472
    %1474 = vmatmul.bf16.gmra.mxu0 %v683
    %v1475 = vpop.f32.mrf.mxu0
    %v1476 = vadd.f32 %v1342, %v1475
    %v1477 = vpop.f32.mrf.mxu0
    %v1478 = vadd.f32 %v1344, %v1477
    %1479 = vmatmul.bf16.gmra.mxu0 %v688
    %v1480 = vpop.f32.mrf.mxu0
    %v1481 = vadd.f32 %v1347, %v1480
    %v1482 = vpop.f32.mrf.mxu0
    %v1483 = vadd.f32 %v1349, %v1482
    %1484 = vmatmul.bf16.gmra.mxu0 %v693
    %v1485 = vpop.f32.mrf.mxu0
    %v1486 = vadd.f32 %v1352, %v1485
    %v1487 = vpop.f32.mrf.mxu0
    %v1488 = vadd.f32 %v1354, %v1487
    %1489 = vmatmul.bf16.gmra.mxu0 %v698
    %v1490 = vpop.f32.mrf.mxu0
    %v1491 = vadd.f32 %v1357, %v1490
    %v1492 = vpop.f32.mrf.mxu0
    %v1493 = vadd.f32 %v1359, %v1492
    %1494 = vmatmul.bf16.gmra.mxu0 %v703
    %v1495 = vpop.f32.mrf.mxu0
    %v1496 = vadd.f32 %v1362, %v1495
    %v1497 = vpop.f32.mrf.mxu0
    %v1498 = vadd.f32 %v1364, %v1497
    %1499 = vmatmul.bf16.gmra.mxu0 %v708
    %v1500 = vpop.f32.mrf.mxu0
    %v1501 = vadd.f32 %v1367, %v1500
    %v1502 = vpop.f32.mrf.mxu0
    %v1503 = vadd.f32 %v1369, %v1502
    %1504 = vmatmul.bf16.gmra.mxu0 %v713
    %v1505 = vpop.f32.mrf.mxu0
    %v1506 = vadd.f32 %v1372, %v1505
    %v1507 = vpop.f32.mrf.mxu0
    %v1508 = vadd.f32 %v1374, %v1507
    %1509 = vmatmul.bf16.gmra.mxu0 %v718
    %v1510 = vpop.f32.mrf.mxu0
    %v1511 = vadd.f32 %v1377, %v1510
    %v1512 = vpop.f32.mrf.mxu0
    %v1513 = vadd.f32 %v1379, %v1512
    %1514 = vmatmul.bf16.gmra.mxu0 %v723
    %v1515 = vpop.f32.mrf.mxu0
    %v1516 = vadd.f32 %v1382, %v1515
    %v1517 = vpop.f32.mrf.mxu0
    %v1518 = vadd.f32 %v1384, %v1517
    %1519 = vmatmul.bf16.gmra.mxu0 %v728
    %v1520 = vpop.f32.mrf.mxu0
    %v1521 = vadd.f32 %v1387, %v1520
    %v1522 = vpop.f32.mrf.mxu0
    %v1523 = vadd.f32 %v1389, %v1522
    %1524 = vmatmul.bf16.gmra.mxu0 %v733
    %v1525 = vpop.f32.mrf.mxu0
    %v1526 = vadd.f32 %v1392, %v1525
    %v1527 = vpop.f32.mrf.mxu0
    %v1528 = vadd.f32 %v1394, %v1527
    %1529 = vmatmul.bf16.gmra.mxu0 %v738
    %v1530 = vpop.f32.mrf.mxu0
    %v1531 = vadd.f32 %v1397, %v1530
    %v1532 = vpop.f32.mrf.mxu0
    %v1533 = vadd.f32 %v1399, %v1532
    %1534 = vmatmul.bf16.gmra.mxu0 %v743
    %v1535 = vpop.f32.mrf.mxu0
    %v1536 = vadd.f32 %v1402, %v1535
    %v1537 = vpop.f32.mrf.mxu0
    %v1538 = vadd.f32 %v1404, %v1537
    %1539 = vmatmul.bf16.gmra.mxu0 %v748
    %v1540 = vpop.f32.mrf.mxu0
    %v1541 = vadd.f32 %v1407, %v1540
    %v1542 = vpop.f32.mrf.mxu0
    %v1543 = vadd.f32 %v1409, %v1542
    %1544 = vmatmul.bf16.gmra.mxu0 %v753
    %v1545 = vpop.f32.mrf.mxu0
    %v1546 = vadd.f32 %v1412, %v1545
    %v1547 = vpop.f32.mrf.mxu0
    %v1548 = vadd.f32 %v1414, %v1547
    %1549 = vmatmul.bf16.gmra.mxu0 %v758
    %v1550 = vpop.f32.mrf.mxu0
    %v1551 = vadd.f32 %v1417, %v1550
    %v1552 = vpop.f32.mrf.mxu0
    %v1553 = vadd.f32 %v1419, %v1552
    %1554 = vmatmul.bf16.gmra.mxu0 %v763
    %v1555 = vpop.f32.mrf.mxu0
    %v1556 = vadd.f32 %v1422, %v1555
    %v1557 = vpop.f32.mrf.mxu0
    %v1558 = vadd.f32 %v1424, %v1557
    %1559 = vmatmul.bf16.gmra.mxu0 %v768
    %v1560 = vpop.f32.mrf.mxu0
    %v1561 = vadd.f32 %v1427, %v1560
    %v1562 = vpop.f32.mrf.mxu0
    %v1563 = vadd.f32 %v1429, %v1562
    %1564 = vmatmul.bf16.gmra.mxu0 %v773
    %v1565 = vpop.f32.mrf.mxu0
    %v1566 = vadd.f32 %v1432, %v1565
    %v1567 = vpop.f32.mrf.mxu0
    %v1568 = vadd.f32 %v1434, %v1567
    %1569 = vmatmul.bf16.gmra.mxu0 %v778
    %v1570 = vpop.f32.mrf.mxu0
    %v1571 = vadd.f32 %v1437, %v1570
    %v1572 = vpop.f32.mrf.mxu0
    %v1573 = vadd.f32 %v1439, %v1572
    %1574 = vmatmul.bf16.gmra.mxu0 %v783
    %v1575 = vpop.f32.mrf.mxu0
    %v1576 = vadd.f32 %v1442, %v1575
    %v1577 = vpop.f32.mrf.mxu0
    %v1578 = vadd.f32 %v1444, %v1577
    %1579 = vmatmul.bf16.gmra.mxu0 %v788
    %v1580 = vpop.f32.mrf.mxu0
    %v1581 = vadd.f32 %v1447, %v1580
    %v1582 = vpop.f32.mrf.mxu0
    %v1583 = vadd.f32 %v1449, %v1582
    %1584 = vmatmul.bf16.gmra.mxu0 %v793
    %v1585 = vpop.f32.mrf.mxu0
    %v1586 = vadd.f32 %v1452, %v1585
    %v1587 = vpop.f32.mrf.mxu0
    %v1588 = vadd.f32 %v1454, %v1587
    %1589 = vdwg.mxu0
    %1590 = vmatpush.bf16.msra.mxu0 %v1071
    %1591 = vmatpush.bf16.msra.mxu0 %v1070
    %1592 = vmatpush.bf16.msra.mxu0 %v1069
    %1593 = vmatpush.bf16.msra.mxu0 %v1068
    %1594 = vmatpush.bf16.msra.mxu0 %v1067
    %1595 = vmatpush.bf16.msra.mxu0 %v1066
    %1596 = vmatpush.bf16.msra.mxu0 %v1065
    %1597 = vmatpush.bf16.msra.mxu0 %v1064
    %1598 = vmatmul.bf16.gmra.mxu0 %v674
    %v1599 = vpop.f32.mrf.mxu0
    %v1600 = vadd.f32 %v1466, %v1599
    %v1601 = vpop.f32.mrf.mxu0
    %v1602 = vadd.f32 %v1468, %v1601
    %1603 = vmatmul.bf16.gmra.mxu0 %v679
    %v1604 = vpop.f32.mrf.mxu0
    %v1605 = vadd.f32 %v1471, %v1604
    %v1606 = vpop.f32.mrf.mxu0
    %v1607 = vadd.f32 %v1473, %v1606
    %1608 = vmatmul.bf16.gmra.mxu0 %v684
    %v1609 = vpop.f32.mrf.mxu0
    %v1610 = vadd.f32 %v1476, %v1609
    %v1611 = vpop.f32.mrf.mxu0
    %v1612 = vadd.f32 %v1478, %v1611
    %1613 = vmatmul.bf16.gmra.mxu0 %v689
    %v1614 = vpop.f32.mrf.mxu0
    %v1615 = vadd.f32 %v1481, %v1614
    %v1616 = vpop.f32.mrf.mxu0
    %v1617 = vadd.f32 %v1483, %v1616
    %1618 = vmatmul.bf16.gmra.mxu0 %v694
    %v1619 = vpop.f32.mrf.mxu0
    %v1620 = vadd.f32 %v1486, %v1619
    %v1621 = vpop.f32.mrf.mxu0
    %v1622 = vadd.f32 %v1488, %v1621
    %1623 = vmatmul.bf16.gmra.mxu0 %v699
    %v1624 = vpop.f32.mrf.mxu0
    %v1625 = vadd.f32 %v1491, %v1624
    %v1626 = vpop.f32.mrf.mxu0
    %v1627 = vadd.f32 %v1493, %v1626
    %1628 = vmatmul.bf16.gmra.mxu0 %v704
    %v1629 = vpop.f32.mrf.mxu0
    %v1630 = vadd.f32 %v1496, %v1629
    %v1631 = vpop.f32.mrf.mxu0
    %v1632 = vadd.f32 %v1498, %v1631
    %1633 = vmatmul.bf16.gmra.mxu0 %v709
    %v1634 = vpop.f32.mrf.mxu0
    %v1635 = vadd.f32 %v1501, %v1634
    %v1636 = vpop.f32.mrf.mxu0
    %v1637 = vadd.f32 %v1503, %v1636
    %1638 = vmatmul.bf16.gmra.mxu0 %v714
    %v1639 = vpop.f32.mrf.mxu0
    %v1640 = vadd.f32 %v1506, %v1639
    %v1641 = vpop.f32.mrf.mxu0
    %v1642 = vadd.f32 %v1508, %v1641
    %1643 = vmatmul.bf16.gmra.mxu0 %v719
    %v1644 = vpop.f32.mrf.mxu0
    %v1645 = vadd.f32 %v1511, %v1644
    %v1646 = vpop.f32.mrf.mxu0
    %v1647 = vadd.f32 %v1513, %v1646
    %1648 = vmatmul.bf16.gmra.mxu0 %v724
    %v1649 = vpop.f32.mrf.mxu0
    %v1650 = vadd.f32 %v1516, %v1649
    %v1651 = vpop.f32.mrf.mxu0
    %v1652 = vadd.f32 %v1518, %v1651
    %1653 = vmatmul.bf16.gmra.mxu0 %v729
    %v1654 = vpop.f32.mrf.mxu0
    %v1655 = vadd.f32 %v1521, %v1654
    %v1656 = vpop.f32.mrf.mxu0
    %v1657 = vadd.f32 %v1523, %v1656
    %1658 = vmatmul.bf16.gmra.mxu0 %v734
    %v1659 = vpop.f32.mrf.mxu0
    %v1660 = vadd.f32 %v1526, %v1659
    %v1661 = vpop.f32.mrf.mxu0
    %v1662 = vadd.f32 %v1528, %v1661
    %1663 = vmatmul.bf16.gmra.mxu0 %v739
    %v1664 = vpop.f32.mrf.mxu0
    %v1665 = vadd.f32 %v1531, %v1664
    %v1666 = vpop.f32.mrf.mxu0
    %v1667 = vadd.f32 %v1533, %v1666
    %1668 = vmatmul.bf16.gmra.mxu0 %v744
    %v1669 = vpop.f32.mrf.mxu0
    %v1670 = vadd.f32 %v1536, %v1669
    %v1671 = vpop.f32.mrf.mxu0
    %v1672 = vadd.f32 %v1538, %v1671
    %1673 = vmatmul.bf16.gmra.mxu0 %v749
    %v1674 = vpop.f32.mrf.mxu0
    %v1675 = vadd.f32 %v1541, %v1674
    %v1676 = vpop.f32.mrf.mxu0
    %v1677 = vadd.f32 %v1543, %v1676
    %1678 = vmatmul.bf16.gmra.mxu0 %v754
    %v1679 = vpop.f32.mrf.mxu0
    %v1680 = vadd.f32 %v1546, %v1679
    %v1681 = vpop.f32.mrf.mxu0
    %v1682 = vadd.f32 %v1548, %v1681
    %1683 = vmatmul.bf16.gmra.mxu0 %v759
    %v1684 = vpop.f32.mrf.mxu0
    %v1685 = vadd.f32 %v1551, %v1684
    %v1686 = vpop.f32.mrf.mxu0
    %v1687 = vadd.f32 %v1553, %v1686
    %1688 = vmatmul.bf16.gmra.mxu0 %v764
    %v1689 = vpop.f32.mrf.mxu0
    %v1690 = vadd.f32 %v1556, %v1689
    %v1691 = vpop.f32.mrf.mxu0
    %v1692 = vadd.f32 %v1558, %v1691
    %1693 = vmatmul.bf16.gmra.mxu0 %v769
    %v1694 = vpop.f32.mrf.mxu0
    %v1695 = vadd.f32 %v1561, %v1694
    %v1696 = vpop.f32.mrf.mxu0
    %v1697 = vadd.f32 %v1563, %v1696
    %1698 = vmatmul.bf16.gmra.mxu0 %v774
    %v1699 = vpop.f32.mrf.mxu0
    %v1700 = vadd.f32 %v1566, %v1699
    %v1701 = vpop.f32.mrf.mxu0
    %v1702 = vadd.f32 %v1568, %v1701
    %1703 = vmatmul.bf16.gmra.mxu0 %v779
    %v1704 = vpop.f32.mrf.mxu0
    %v1705 = vadd.f32 %v1571, %v1704
    %v1706 = vpop.f32.mrf.mxu0
    %v1707 = vadd.f32 %v1573, %v1706
    %1708 = vmatmul.bf16.gmra.mxu0 %v784
    %v1709 = vpop.f32.mrf.mxu0
    %v1710 = vadd.f32 %v1576, %v1709
    %v1711 = vpop.f32.mrf.mxu0
    %v1712 = vadd.f32 %v1578, %v1711
    %1713 = vmatmul.bf16.gmra.mxu0 %v789
    %v1714 = vpop.f32.mrf.mxu0
    %v1715 = vadd.f32 %v1581, %v1714
    %v1716 = vpop.f32.mrf.mxu0
    %v1717 = vadd.f32 %v1583, %v1716
    %1718 = vmatmul.bf16.gmra.mxu0 %v794
    %v1719 = vpop.f32.mrf.mxu0
    %v1720 = vadd.f32 %v1586, %v1719
    %v1721 = vpop.f32.mrf.mxu0
    %v1722 = vadd.f32 %v1588, %v1721
    %1723 = vdwg.mxu0
    %1724 = vmatpush.bf16.msra.mxu0 0
    %1725 = vmatpush.bf16.msra.mxu0 0
    %1726 = vmatpush.bf16.msra.mxu0 0
    %1727 = vmatpush.bf16.msra.mxu0 0
    %1728 = vmatpush.bf16.msra.mxu0 %v1075
    %1729 = vmatpush.bf16.msra.mxu0 %v1074
    %1730 = vmatpush.bf16.msra.mxu0 %v1073
    %1731 = vmatpush.bf16.msra.mxu0 %v1072
    %1732 = vmatmul.bf16.gmra.mxu0 %v1114
    %v1733 = vpop.f32.mrf.mxu0
    %v1734 = vadd.f32 %v1600, %v1733
    %v1735 = vpop.f32.mrf.mxu0
    %v1736 = vadd.f32 %v1602, %v1735
    %1737 = vmatmul.bf16.gmra.mxu0 %v1117
    %v1738 = vpop.f32.mrf.mxu0
    %v1739 = vadd.f32 %v1605, %v1738
    %v1740 = vpop.f32.mrf.mxu0
    %v1741 = vadd.f32 %v1607, %v1740
    %1742 = vmatmul.bf16.gmra.mxu0 %v1120
    %v1743 = vpop.f32.mrf.mxu0
    %v1744 = vadd.f32 %v1610, %v1743
    %v1745 = vpop.f32.mrf.mxu0
    %v1746 = vadd.f32 %v1612, %v1745
    %1747 = vmatmul.bf16.gmra.mxu0 %v1123
    %v1748 = vpop.f32.mrf.mxu0
    %v1749 = vadd.f32 %v1615, %v1748
    %v1750 = vpop.f32.mrf.mxu0
    %v1751 = vadd.f32 %v1617, %v1750
    %1752 = vmatmul.bf16.gmra.mxu0 %v1126
    %v1753 = vpop.f32.mrf.mxu0
    %v1754 = vadd.f32 %v1620, %v1753
    %v1755 = vpop.f32.mrf.mxu0
    %v1756 = vadd.f32 %v1622, %v1755
    %1757 = vmatmul.bf16.gmra.mxu0 %v1129
    %v1758 = vpop.f32.mrf.mxu0
    %v1759 = vadd.f32 %v1625, %v1758
    %v1760 = vpop.f32.mrf.mxu0
    %v1761 = vadd.f32 %v1627, %v1760
    %1762 = vmatmul.bf16.gmra.mxu0 %v1132
    %v1763 = vpop.f32.mrf.mxu0
    %v1764 = vadd.f32 %v1630, %v1763
    %v1765 = vpop.f32.mrf.mxu0
    %v1766 = vadd.f32 %v1632, %v1765
    %1767 = vmatmul.bf16.gmra.mxu0 %v1135
    %v1768 = vpop.f32.mrf.mxu0
    %v1769 = vadd.f32 %v1635, %v1768
    %v1770 = vpop.f32.mrf.mxu0
    %v1771 = vadd.f32 %v1637, %v1770
    %1772 = vmatmul.bf16.gmra.mxu0 %v1138
    %v1773 = vpop.f32.mrf.mxu0
    %v1774 = vadd.f32 %v1640, %v1773
    %v1775 = vpop.f32.mrf.mxu0
    %v1776 = vadd.f32 %v1642, %v1775
    %1777 = vmatmul.bf16.gmra.mxu0 %v1141
    %v1778 = vpop.f32.mrf.mxu0
    %v1779 = vadd.f32 %v1645, %v1778
    %v1780 = vpop.f32.mrf.mxu0
    %v1781 = vadd.f32 %v1647, %v1780
    %1782 = vmatmul.bf16.gmra.mxu0 %v1144
    %v1783 = vpop.f32.mrf.mxu0
    %v1784 = vadd.f32 %v1650, %v1783
    %v1785 = vpop.f32.mrf.mxu0
    %v1786 = vadd.f32 %v1652, %v1785
    %1787 = vmatmul.bf16.gmra.mxu0 %v1147
    %v1788 = vpop.f32.mrf.mxu0
    %v1789 = vadd.f32 %v1655, %v1788
    %v1790 = vpop.f32.mrf.mxu0
    %v1791 = vadd.f32 %v1657, %v1790
    %1792 = vmatmul.bf16.gmra.mxu0 %v1150
    %v1793 = vpop.f32.mrf.mxu0
    %v1794 = vadd.f32 %v1660, %v1793
    %v1795 = vpop.f32.mrf.mxu0
    %v1796 = vadd.f32 %v1662, %v1795
    %1797 = vmatmul.bf16.gmra.mxu0 %v1153
    %v1798 = vpop.f32.mrf.mxu0
    %v1799 = vadd.f32 %v1665, %v1798
    %v1800 = vpop.f32.mrf.mxu0
    %v1801 = vadd.f32 %v1667, %v1800
    %1802 = vmatmul.bf16.gmra.mxu0 %v1156
    %v1803 = vpop.f32.mrf.mxu0
    %v1804 = vadd.f32 %v1670, %v1803
    %v1805 = vpop.f32.mrf.mxu0
    %v1806 = vadd.f32 %v1672, %v1805
    %1807 = vmatmul.bf16.gmra.mxu0 %v1159
    %v1808 = vpop.f32.mrf.mxu0
    %v1809 = vadd.f32 %v1675, %v1808
    %v1810 = vpop.f32.mrf.mxu0
    %v1811 = vadd.f32 %v1677, %v1810
    %1812 = vmatmul.bf16.gmra.mxu0 %v1162
    %v1813 = vpop.f32.mrf.mxu0
    %v1814 = vadd.f32 %v1680, %v1813
    %v1815 = vpop.f32.mrf.mxu0
    %v1816 = vadd.f32 %v1682, %v1815
    %1817 = vmatmul.bf16.gmra.mxu0 %v1165
    %v1818 = vpop.f32.mrf.mxu0
    %v1819 = vadd.f32 %v1685, %v1818
    %v1820 = vpop.f32.mrf.mxu0
    %v1821 = vadd.f32 %v1687, %v1820
    %1822 = vmatmul.bf16.gmra.mxu0 %v1168
    %v1823 = vpop.f32.mrf.mxu0
    %v1824 = vadd.f32 %v1690, %v1823
    %v1825 = vpop.f32.mrf.mxu0
    %v1826 = vadd.f32 %v1692, %v1825
    %1827 = vmatmul.bf16.gmra.mxu0 %v1171
    %v1828 = vpop.f32.mrf.mxu0
    %v1829 = vadd.f32 %v1695, %v1828
    %v1830 = vpop.f32.mrf.mxu0
    %v1831 = vadd.f32 %v1697, %v1830
    %1832 = vmatmul.bf16.gmra.mxu0 %v1174
    %v1833 = vpop.f32.mrf.mxu0
    %v1834 = vadd.f32 %v1700, %v1833
    %v1835 = vpop.f32.mrf.mxu0
    %v1836 = vadd.f32 %v1702, %v1835
    %1837 = vmatmul.bf16.gmra.mxu0 %v1177
    %v1838 = vpop.f32.mrf.mxu0
    %v1839 = vadd.f32 %v1705, %v1838
    %v1840 = vpop.f32.mrf.mxu0
    %v1841 = vadd.f32 %v1707, %v1840
    %1842 = vmatmul.bf16.gmra.mxu0 %v1180
    %v1843 = vpop.f32.mrf.mxu0
    %v1844 = vadd.f32 %v1710, %v1843
    %v1845 = vpop.f32.mrf.mxu0
    %v1846 = vadd.f32 %v1712, %v1845
    %1847 = vmatmul.bf16.gmra.mxu0 %v1183
    %v1848 = vpop.f32.mrf.mxu0
    %v1849 = vadd.f32 %v1715, %v1848
    %v1850 = vpop.f32.mrf.mxu0
    %v1851 = vadd.f32 %v1717, %v1850
    %1852 = vmatmul.bf16.gmra.mxu0 %v1186
    %v1853 = vpop.f32.mrf.mxu0
    %v1854 = vadd.f32 %v1720, %v1853
    %v1855 = vpop.f32.mrf.mxu0
    %v1856 = vadd.f32 %v1722, %v1855
    %1857 = vdwg.mxu0
    %v1858 = vxor.u32 %v1734, 2147483648
    %v1859 = vxor.u32 %v1736, 2147483648
    %v1860 = vxor.u32 %v1739, 2147483648
    %v1861 = vxor.u32 %v1741, 2147483648
    %v1862 = vxor.u32 %v1744, 2147483648
    %v1863 = vxor.u32 %v1746, 2147483648
    %v1864 = vxor.u32 %v1749, 2147483648
    %v1865 = vxor.u32 %v1751, 2147483648
    %v1866 = vxor.u32 %v1754, 2147483648
    %v1867 = vxor.u32 %v1756, 2147483648
    %v1868 = vxor.u32 %v1759, 2147483648
    %v1869 = vxor.u32 %v1761, 2147483648
    %v1870 = vxor.u32 %v1764, 2147483648
    %v1871 = vxor.u32 %v1766, 2147483648
    %v1872 = vxor.u32 %v1769, 2147483648
    %v1873 = vxor.u32 %v1771, 2147483648
    %v1874 = vxor.u32 %v1774, 2147483648
    %v1875 = vxor.u32 %v1776, 2147483648
    %v1876 = vxor.u32 %v1779, 2147483648
    %v1877 = vxor.u32 %v1781, 2147483648
    %v1878 = vxor.u32 %v1784, 2147483648
    %v1879 = vxor.u32 %v1786, 2147483648
    %v1880 = vxor.u32 %v1789, 2147483648
    %v1881 = vxor.u32 %v1791, 2147483648
    %v1882 = vxor.u32 %v1794, 2147483648
    %v1883 = vxor.u32 %v1796, 2147483648
    %v1884 = vxor.u32 %v1799, 2147483648
    %v1885 = vxor.u32 %v1801, 2147483648
    %v1886 = vxor.u32 %v1804, 2147483648
    %v1887 = vxor.u32 %v1806, 2147483648
    %v1888 = vxor.u32 %v1809, 2147483648
    %v1889 = vxor.u32 %v1811, 2147483648
    %v1890 = vxor.u32 %v1814, 2147483648
    %v1891 = vxor.u32 %v1816, 2147483648
    %v1892 = vxor.u32 %v1819, 2147483648
    %v1893 = vxor.u32 %v1821, 2147483648
    %v1894 = vxor.u32 %v1824, 2147483648
    %v1895 = vxor.u32 %v1826, 2147483648
    %v1896 = vxor.u32 %v1829, 2147483648
    %v1897 = vxor.u32 %v1831, 2147483648
    %v1898 = vxor.u32 %v1834, 2147483648
    %v1899 = vxor.u32 %v1836, 2147483648
    %v1900 = vxor.u32 %v1839, 2147483648
    %v1901 = vxor.u32 %v1841, 2147483648
    %v1902 = vxor.u32 %v1844, 2147483648
    %v1903 = vxor.u32 %v1846, 2147483648
    %v1904 = vxor.u32 %v1849, 2147483648
    %v1905 = vxor.u32 %v1851, 2147483648
    %v1906 = vxor.u32 %v1854, 2147483648
    %v1907 = vxor.u32 %v1856, 2147483648
    %v1908 = vmul.f32 %v1858, 1.442695
    %v1909 = vpow.pop %v1908
    %v1910 = vmul.f32 %v1859, 1.442695
    %v1911 = vpow.pop %v1910
    %v1912 = vmul.f32 %v1860, 1.442695
    %v1913 = vpow.pop %v1912
    %v1914 = vmul.f32 %v1861, 1.442695
    %v1915 = vpow.pop %v1914
    %v1916 = vmul.f32 %v1862, 1.442695
    %v1917 = vpow.pop %v1916
    %v1918 = vmul.f32 %v1863, 1.442695
    %v1919 = vpow.pop %v1918
    %v1920 = vmul.f32 %v1864, 1.442695
    %v1921 = vpow.pop %v1920
    %v1922 = vmul.f32 %v1865, 1.442695
    %v1923 = vpow.pop %v1922
    %v1924 = vmul.f32 %v1866, 1.442695
    %v1925 = vpow.pop %v1924
    %v1926 = vmul.f32 %v1867, 1.442695
    %v1927 = vpow.pop %v1926
    %v1928 = vmul.f32 %v1868, 1.442695
    %v1929 = vpow.pop %v1928
    %v1930 = vmul.f32 %v1869, 1.442695
    %v1931 = vpow.pop %v1930
    %v1932 = vmul.f32 %v1870, 1.442695
    %v1933 = vpow.pop %v1932
    %v1934 = vmul.f32 %v1871, 1.442695
    %v1935 = vpow.pop %v1934
    %v1936 = vmul.f32 %v1872, 1.442695
    %v1937 = vpow.pop %v1936
    %v1938 = vmul.f32 %v1873, 1.442695
    %v1939 = vpow.pop %v1938
    %v1940 = vmul.f32 %v1874, 1.442695
    %v1941 = vpow.pop %v1940
    %v1942 = vmul.f32 %v1875, 1.442695
    %v1943 = vpow.pop %v1942
    %v1944 = vmul.f32 %v1876, 1.442695
    %v1945 = vpow.pop %v1944
    %v1946 = vmul.f32 %v1877, 1.442695
    %v1947 = vpow.pop %v1946
    %v1948 = vmul.f32 %v1878, 1.442695
    %v1949 = vpow.pop %v1948
    %v1950 = vmul.f32 %v1879, 1.442695
    %v1951 = vpow.pop %v1950
    %v1952 = vmul.f32 %v1880, 1.442695
    %v1953 = vpow.pop %v1952
    %v1954 = vmul.f32 %v1881, 1.442695
    %v1955 = vpow.pop %v1954
    %v1956 = vmul.f32 %v1882, 1.442695
    %v1957 = vpow.pop %v1956
    %v1958 = vmul.f32 %v1883, 1.442695
    %v1959 = vpow.pop %v1958
    %v1960 = vmul.f32 %v1884, 1.442695
    %v1961 = vpow.pop %v1960
    %v1962 = vmul.f32 %v1885, 1.442695
    %v1963 = vpow.pop %v1962
    %v1964 = vmul.f32 %v1886, 1.442695
    %v1965 = vpow.pop %v1964
    %v1966 = vmul.f32 %v1887, 1.442695
    %v1967 = vpow.pop %v1966
    %v1968 = vmul.f32 %v1888, 1.442695
    %v1969 = vpow.pop %v1968
    %v1970 = vmul.f32 %v1889, 1.442695
    %v1971 = vpow.pop %v1970
    %v1972 = vmul.f32 %v1890, 1.442695
    %v1973 = vpow.pop %v1972
    %v1974 = vmul.f32 %v1891, 1.442695
    %v1975 = vpow.pop %v1974
    %v1976 = vmul.f32 %v1892, 1.442695
    %v1977 = vpow.pop %v1976
    %v1978 = vmul.f32 %v1893, 1.442695
    %v1979 = vpow.pop %v1978
    %v1980 = vmul.f32 %v1894, 1.442695
    %v1981 = vpow.pop %v1980
    %v1982 = vmul.f32 %v1895, 1.442695
    %v1983 = vpow.pop %v1982
    %v1984 = vmul.f32 %v1896, 1.442695
    %v1985 = vpow.pop %v1984
    %v1986 = vmul.f32 %v1897, 1.442695
    %v1987 = vpow.pop %v1986
    %v1988 = vmul.f32 %v1898, 1.442695
    %v1989 = vpow.pop %v1988
    %v1990 = vmul.f32 %v1899, 1.442695
    %v1991 = vpow.pop %v1990
    %v1992 = vmul.f32 %v1900, 1.442695
    %v1993 = vpow.pop %v1992
    %v1994 = vmul.f32 %v1901, 1.442695
    %v1995 = vpow.pop %v1994
    %v1996 = vmul.f32 %v1902, 1.442695
    %v1997 = vpow.pop %v1996
    %v1998 = vmul.f32 %v1903, 1.442695
    %v1999 = vpow.pop %v1998
    %v2000 = vmul.f32 %v1904, 1.442695
    %v2001 = vpow.pop %v2000
    %v2002 = vmul.f32 %v1905, 1.442695
    %v2003 = vpow.pop %v2002
    %v2004 = vmul.f32 %v1906, 1.442695
    %v2005 = vpow.pop %v2004
    %v2006 = vmul.f32 %v1907, 1.442695
    %v2007 = vpow.pop %v2006
    %v2008 = vadd.f32 %v1909, 1.0
    %v2009 = vadd.f32 %v1911, 1.0
    %v2010 = vadd.f32 %v1913, 1.0
    %v2011 = vadd.f32 %v1915, 1.0
    %v2012 = vadd.f32 %v1917, 1.0
    %v2013 = vadd.f32 %v1919, 1.0
    %v2014 = vadd.f32 %v1921, 1.0
    %v2015 = vadd.f32 %v1923, 1.0
    %v2016 = vadd.f32 %v1925, 1.0
    %v2017 = vadd.f32 %v1927, 1.0
    %v2018 = vadd.f32 %v1929, 1.0
    %v2019 = vadd.f32 %v1931, 1.0
    %v2020 = vadd.f32 %v1933, 1.0
    %v2021 = vadd.f32 %v1935, 1.0
    %v2022 = vadd.f32 %v1937, 1.0
    %v2023 = vadd.f32 %v1939, 1.0
    %v2024 = vadd.f32 %v1941, 1.0
    %v2025 = vadd.f32 %v1943, 1.0
    %v2026 = vadd.f32 %v1945, 1.0
    %v2027 = vadd.f32 %v1947, 1.0
    %v2028 = vadd.f32 %v1949, 1.0
    %v2029 = vadd.f32 %v1951, 1.0
    %v2030 = vadd.f32 %v1953, 1.0
    %v2031 = vadd.f32 %v1955, 1.0
    %v2032 = vadd.f32 %v1957, 1.0
    %v2033 = vadd.f32 %v1959, 1.0
    %v2034 = vadd.f32 %v1961, 1.0
    %v2035 = vadd.f32 %v1963, 1.0
    %v2036 = vadd.f32 %v1965, 1.0
    %v2037 = vadd.f32 %v1967, 1.0
    %v2038 = vadd.f32 %v1969, 1.0
    %v2039 = vadd.f32 %v1971, 1.0
    %v2040 = vadd.f32 %v1973, 1.0
    %v2041 = vadd.f32 %v1975, 1.0
    %v2042 = vadd.f32 %v1977, 1.0
    %v2043 = vadd.f32 %v1979, 1.0
    %v2044 = vadd.f32 %v1981, 1.0
    %v2045 = vadd.f32 %v1983, 1.0
    %v2046 = vadd.f32 %v1985, 1.0
    %v2047 = vadd.f32 %v1987, 1.0
    %v2048 = vadd.f32 %v1989, 1.0
    %v2049 = vadd.f32 %v1991, 1.0
    %v2050 = vadd.f32 %v1993, 1.0
    %v2051 = vadd.f32 %v1995, 1.0
    %v2052 = vadd.f32 %v1997, 1.0
    %v2053 = vadd.f32 %v1999, 1.0
    %v2054 = vadd.f32 %v2001, 1.0
    %v2055 = vadd.f32 %v2003, 1.0
    %v2056 = vadd.f32 %v2005, 1.0
    %v2057 = vadd.f32 %v2007, 1.0
    %v2058 = vrcp.pop %v2008
    %v2059 = vmul.f32 %v2008, %v2058
    %v2060 = vsub.f32 1.0, %v2059
    %v2061 = vmul.f32 %v2058, %v2060
    %v2062 = vadd.f32 %v2058, %v2061
    %vm2063 = vweird.f32 %v2008
    %vm2064 = vweird.f32 %v2058
    %vm2065 = vmor %vm2063, %vm2064
    %v2066 = vsel %vm2065, %v2058, %v2062
    %v2067 = vand.u32 2147483647, %v2008
    %vm2068 = vcmp.eq.f32.partialorder %v2067, 8.507059e+37
    %v2069 = vand.u32 %v2008, 2147483648
    %v2070 = vor.u32 1.1754944e-38, %v2069
    %v2071 = vsel %vm2068, %v2070, %v2066
    %v2072 = vmul.f32 1.0, %v2071
    %v2073 = vrcp.pop %v2009
    %v2074 = vmul.f32 %v2009, %v2073
    %v2075 = vsub.f32 1.0, %v2074
    %v2076 = vmul.f32 %v2073, %v2075
    %v2077 = vadd.f32 %v2073, %v2076
    %vm2078 = vweird.f32 %v2009
    %vm2079 = vweird.f32 %v2073
    %vm2080 = vmor %vm2078, %vm2079
    %v2081 = vsel %vm2080, %v2073, %v2077
    %v2082 = vand.u32 2147483647, %v2009
    %vm2083 = vcmp.eq.f32.partialorder %v2082, 8.507059e+37
    %v2084 = vand.u32 %v2009, 2147483648
    %v2085 = vor.u32 1.1754944e-38, %v2084
    %v2086 = vsel %vm2083, %v2085, %v2081
    %v2087 = vmul.f32 1.0, %v2086
    %v2088 = vrcp.pop %v2010
    %v2089 = vmul.f32 %v2010, %v2088
    %v2090 = vsub.f32 1.0, %v2089
    %v2091 = vmul.f32 %v2088, %v2090
    %v2092 = vadd.f32 %v2088, %v2091
    %vm2093 = vweird.f32 %v2010
    %vm2094 = vweird.f32 %v2088
    %vm2095 = vmor %vm2093, %vm2094
    %v2096 = vsel %vm2095, %v2088, %v2092
    %v2097 = vand.u32 2147483647, %v2010
    %vm2098 = vcmp.eq.f32.partialorder %v2097, 8.507059e+37
    %v2099 = vand.u32 %v2010, 2147483648
    %v2100 = vor.u32 1.1754944e-38, %v2099
    %v2101 = vsel %vm2098, %v2100, %v2096
    %v2102 = vmul.f32 1.0, %v2101
    %v2103 = vrcp.pop %v2011
    %v2104 = vmul.f32 %v2011, %v2103
    %v2105 = vsub.f32 1.0, %v2104
    %v2106 = vmul.f32 %v2103, %v2105
    %v2107 = vadd.f32 %v2103, %v2106
    %vm2108 = vweird.f32 %v2011
    %vm2109 = vweird.f32 %v2103
    %vm2110 = vmor %vm2108, %vm2109
    %v2111 = vsel %vm2110, %v2103, %v2107
    %v2112 = vand.u32 2147483647, %v2011
    %vm2113 = vcmp.eq.f32.partialorder %v2112, 8.507059e+37
    %v2114 = vand.u32 %v2011, 2147483648
    %v2115 = vor.u32 1.1754944e-38, %v2114
    %v2116 = vsel %vm2113, %v2115, %v2111
    %v2117 = vmul.f32 1.0, %v2116
    %v2118 = vrcp.pop %v2012
    %v2119 = vmul.f32 %v2012, %v2118
    %v2120 = vsub.f32 1.0, %v2119
    %v2121 = vmul.f32 %v2118, %v2120
    %v2122 = vadd.f32 %v2118, %v2121
    %vm2123 = vweird.f32 %v2012
    %vm2124 = vweird.f32 %v2118
    %vm2125 = vmor %vm2123, %vm2124
    %v2126 = vsel %vm2125, %v2118, %v2122
    %v2127 = vand.u32 2147483647, %v2012
    %vm2128 = vcmp.eq.f32.partialorder %v2127, 8.507059e+37
    %v2129 = vand.u32 %v2012, 2147483648
    %v2130 = vor.u32 1.1754944e-38, %v2129
    %v2131 = vsel %vm2128, %v2130, %v2126
    %v2132 = vmul.f32 1.0, %v2131
    %v2133 = vrcp.pop %v2013
    %v2134 = vmul.f32 %v2013, %v2133
    %v2135 = vsub.f32 1.0, %v2134
    %v2136 = vmul.f32 %v2133, %v2135
    %v2137 = vadd.f32 %v2133, %v2136
    %vm2138 = vweird.f32 %v2013
    %vm2139 = vweird.f32 %v2133
    %vm2140 = vmor %vm2138, %vm2139
    %v2141 = vsel %vm2140, %v2133, %v2137
    %v2142 = vand.u32 2147483647, %v2013
    %vm2143 = vcmp.eq.f32.partialorder %v2142, 8.507059e+37
    %v2144 = vand.u32 %v2013, 2147483648
    %v2145 = vor.u32 1.1754944e-38, %v2144
    %v2146 = vsel %vm2143, %v2145, %v2141
    %v2147 = vmul.f32 1.0, %v2146
    %v2148 = vrcp.pop %v2014
    %v2149 = vmul.f32 %v2014, %v2148
    %v2150 = vsub.f32 1.0, %v2149
    %v2151 = vmul.f32 %v2148, %v2150
    %v2152 = vadd.f32 %v2148, %v2151
    %vm2153 = vweird.f32 %v2014
    %vm2154 = vweird.f32 %v2148
    %vm2155 = vmor %vm2153, %vm2154
    %v2156 = vsel %vm2155, %v2148, %v2152
    %v2157 = vand.u32 2147483647, %v2014
    %vm2158 = vcmp.eq.f32.partialorder %v2157, 8.507059e+37
    %v2159 = vand.u32 %v2014, 2147483648
    %v2160 = vor.u32 1.1754944e-38, %v2159
    %v2161 = vsel %vm2158, %v2160, %v2156
    %v2162 = vmul.f32 1.0, %v2161
    %v2163 = vrcp.pop %v2015
    %v2164 = vmul.f32 %v2015, %v2163
    %v2165 = vsub.f32 1.0, %v2164
    %v2166 = vmul.f32 %v2163, %v2165
    %v2167 = vadd.f32 %v2163, %v2166
    %vm2168 = vweird.f32 %v2015
    %vm2169 = vweird.f32 %v2163
    %vm2170 = vmor %vm2168, %vm2169
    %v2171 = vsel %vm2170, %v2163, %v2167
    %v2172 = vand.u32 2147483647, %v2015
    %vm2173 = vcmp.eq.f32.partialorder %v2172, 8.507059e+37
    %v2174 = vand.u32 %v2015, 2147483648
    %v2175 = vor.u32 1.1754944e-38, %v2174
    %v2176 = vsel %vm2173, %v2175, %v2171
    %v2177 = vmul.f32 1.0, %v2176
    %v2178 = vrcp.pop %v2016
    %v2179 = vmul.f32 %v2016, %v2178
    %v2180 = vsub.f32 1.0, %v2179
    %v2181 = vmul.f32 %v2178, %v2180
    %v2182 = vadd.f32 %v2178, %v2181
    %vm2183 = vweird.f32 %v2016
    %vm2184 = vweird.f32 %v2178
    %vm2185 = vmor %vm2183, %vm2184
    %v2186 = vsel %vm2185, %v2178, %v2182
    %v2187 = vand.u32 2147483647, %v2016
    %vm2188 = vcmp.eq.f32.partialorder %v2187, 8.507059e+37
    %v2189 = vand.u32 %v2016, 2147483648
    %v2190 = vor.u32 1.1754944e-38, %v2189
    %v2191 = vsel %vm2188, %v2190, %v2186
    %v2192 = vmul.f32 1.0, %v2191
    %v2193 = vrcp.pop %v2017
    %v2194 = vmul.f32 %v2017, %v2193
    %v2195 = vsub.f32 1.0, %v2194
    %v2196 = vmul.f32 %v2193, %v2195
    %v2197 = vadd.f32 %v2193, %v2196
    %vm2198 = vweird.f32 %v2017
    %vm2199 = vweird.f32 %v2193
    %vm2200 = vmor %vm2198, %vm2199
    %v2201 = vsel %vm2200, %v2193, %v2197
    %v2202 = vand.u32 2147483647, %v2017
    %vm2203 = vcmp.eq.f32.partialorder %v2202, 8.507059e+37
    %v2204 = vand.u32 %v2017, 2147483648
    %v2205 = vor.u32 1.1754944e-38, %v2204
    %v2206 = vsel %vm2203, %v2205, %v2201
    %v2207 = vmul.f32 1.0, %v2206
    %v2208 = vrcp.pop %v2018
    %v2209 = vmul.f32 %v2018, %v2208
    %v2210 = vsub.f32 1.0, %v2209
    %v2211 = vmul.f32 %v2208, %v2210
    %v2212 = vadd.f32 %v2208, %v2211
    %vm2213 = vweird.f32 %v2018
    %vm2214 = vweird.f32 %v2208
    %vm2215 = vmor %vm2213, %vm2214
    %v2216 = vsel %vm2215, %v2208, %v2212
    %v2217 = vand.u32 2147483647, %v2018
    %vm2218 = vcmp.eq.f32.partialorder %v2217, 8.507059e+37
    %v2219 = vand.u32 %v2018, 2147483648
    %v2220 = vor.u32 1.1754944e-38, %v2219
    %v2221 = vsel %vm2218, %v2220, %v2216
    %v2222 = vmul.f32 1.0, %v2221
    %v2223 = vrcp.pop %v2019
    %v2224 = vmul.f32 %v2019, %v2223
    %v2225 = vsub.f32 1.0, %v2224
    %v2226 = vmul.f32 %v2223, %v2225
    %v2227 = vadd.f32 %v2223, %v2226
    %vm2228 = vweird.f32 %v2019
    %vm2229 = vweird.f32 %v2223
    %vm2230 = vmor %vm2228, %vm2229
    %v2231 = vsel %vm2230, %v2223, %v2227
    %v2232 = vand.u32 2147483647, %v2019
    %vm2233 = vcmp.eq.f32.partialorder %v2232, 8.507059e+37
    %v2234 = vand.u32 %v2019, 2147483648
    %v2235 = vor.u32 1.1754944e-38, %v2234
    %v2236 = vsel %vm2233, %v2235, %v2231
    %v2237 = vmul.f32 1.0, %v2236
    %v2238 = vrcp.pop %v2020
    %v2239 = vmul.f32 %v2020, %v2238
    %v2240 = vsub.f32 1.0, %v2239
    %v2241 = vmul.f32 %v2238, %v2240
    %v2242 = vadd.f32 %v2238, %v2241
    %vm2243 = vweird.f32 %v2020
    %vm2244 = vweird.f32 %v2238
    %vm2245 = vmor %vm2243, %vm2244
    %v2246 = vsel %vm2245, %v2238, %v2242
    %v2247 = vand.u32 2147483647, %v2020
    %vm2248 = vcmp.eq.f32.partialorder %v2247, 8.507059e+37
    %v2249 = vand.u32 %v2020, 2147483648
    %v2250 = vor.u32 1.1754944e-38, %v2249
    %v2251 = vsel %vm2248, %v2250, %v2246
    %v2252 = vmul.f32 1.0, %v2251
    %v2253 = vrcp.pop %v2021
    %v2254 = vmul.f32 %v2021, %v2253
    %v2255 = vsub.f32 1.0, %v2254
    %v2256 = vmul.f32 %v2253, %v2255
    %v2257 = vadd.f32 %v2253, %v2256
    %vm2258 = vweird.f32 %v2021
    %vm2259 = vweird.f32 %v2253
    %vm2260 = vmor %vm2258, %vm2259
    %v2261 = vsel %vm2260, %v2253, %v2257
    %v2262 = vand.u32 2147483647, %v2021
    %vm2263 = vcmp.eq.f32.partialorder %v2262, 8.507059e+37
    %v2264 = vand.u32 %v2021, 2147483648
    %v2265 = vor.u32 1.1754944e-38, %v2264
    %v2266 = vsel %vm2263, %v2265, %v2261
    %v2267 = vmul.f32 1.0, %v2266
    %v2268 = vrcp.pop %v2022
    %v2269 = vmul.f32 %v2022, %v2268
    %v2270 = vsub.f32 1.0, %v2269
    %v2271 = vmul.f32 %v2268, %v2270
    %v2272 = vadd.f32 %v2268, %v2271
    %vm2273 = vweird.f32 %v2022
    %vm2274 = vweird.f32 %v2268
    %vm2275 = vmor %vm2273, %vm2274
    %v2276 = vsel %vm2275, %v2268, %v2272
    %v2277 = vand.u32 2147483647, %v2022
    %vm2278 = vcmp.eq.f32.partialorder %v2277, 8.507059e+37
    %v2279 = vand.u32 %v2022, 2147483648
    %v2280 = vor.u32 1.1754944e-38, %v2279
    %v2281 = vsel %vm2278, %v2280, %v2276
    %v2282 = vmul.f32 1.0, %v2281
    %v2283 = vrcp.pop %v2023
    %v2284 = vmul.f32 %v2023, %v2283
    %v2285 = vsub.f32 1.0, %v2284
    %v2286 = vmul.f32 %v2283, %v2285
    %v2287 = vadd.f32 %v2283, %v2286
    %vm2288 = vweird.f32 %v2023
    %vm2289 = vweird.f32 %v2283
    %vm2290 = vmor %vm2288, %vm2289
    %v2291 = vsel %vm2290, %v2283, %v2287
    %v2292 = vand.u32 2147483647, %v2023
    %vm2293 = vcmp.eq.f32.partialorder %v2292, 8.507059e+37
    %v2294 = vand.u32 %v2023, 2147483648
    %v2295 = vor.u32 1.1754944e-38, %v2294
    %v2296 = vsel %vm2293, %v2295, %v2291
    %v2297 = vmul.f32 1.0, %v2296
    %v2298 = vrcp.pop %v2024
    %v2299 = vmul.f32 %v2024, %v2298
    %v2300 = vsub.f32 1.0, %v2299
    %v2301 = vmul.f32 %v2298, %v2300
    %v2302 = vadd.f32 %v2298, %v2301
    %vm2303 = vweird.f32 %v2024
    %vm2304 = vweird.f32 %v2298
    %vm2305 = vmor %vm2303, %vm2304
    %v2306 = vsel %vm2305, %v2298, %v2302
    %v2307 = vand.u32 2147483647, %v2024
    %vm2308 = vcmp.eq.f32.partialorder %v2307, 8.507059e+37
    %v2309 = vand.u32 %v2024, 2147483648
    %v2310 = vor.u32 1.1754944e-38, %v2309
    %v2311 = vsel %vm2308, %v2310, %v2306
    %v2312 = vmul.f32 1.0, %v2311
    %v2313 = vrcp.pop %v2025
    %v2314 = vmul.f32 %v2025, %v2313
    %v2315 = vsub.f32 1.0, %v2314
    %v2316 = vmul.f32 %v2313, %v2315
    %v2317 = vadd.f32 %v2313, %v2316
    %vm2318 = vweird.f32 %v2025
    %vm2319 = vweird.f32 %v2313
    %vm2320 = vmor %vm2318, %vm2319
    %v2321 = vsel %vm2320, %v2313, %v2317
    %v2322 = vand.u32 2147483647, %v2025
    %vm2323 = vcmp.eq.f32.partialorder %v2322, 8.507059e+37
    %v2324 = vand.u32 %v2025, 2147483648
    %v2325 = vor.u32 1.1754944e-38, %v2324
    %v2326 = vsel %vm2323, %v2325, %v2321
    %v2327 = vmul.f32 1.0, %v2326
    %v2328 = vrcp.pop %v2026
    %v2329 = vmul.f32 %v2026, %v2328
    %v2330 = vsub.f32 1.0, %v2329
    %v2331 = vmul.f32 %v2328, %v2330
    %v2332 = vadd.f32 %v2328, %v2331
    %vm2333 = vweird.f32 %v2026
    %vm2334 = vweird.f32 %v2328
    %vm2335 = vmor %vm2333, %vm2334
    %v2336 = vsel %vm2335, %v2328, %v2332
    %v2337 = vand.u32 2147483647, %v2026
    %vm2338 = vcmp.eq.f32.partialorder %v2337, 8.507059e+37
    %v2339 = vand.u32 %v2026, 2147483648
    %v2340 = vor.u32 1.1754944e-38, %v2339
    %v2341 = vsel %vm2338, %v2340, %v2336
    %v2342 = vmul.f32 1.0, %v2341
    %v2343 = vrcp.pop %v2027
    %v2344 = vmul.f32 %v2027, %v2343
    %v2345 = vsub.f32 1.0, %v2344
    %v2346 = vmul.f32 %v2343, %v2345
    %v2347 = vadd.f32 %v2343, %v2346
    %vm2348 = vweird.f32 %v2027
    %vm2349 = vweird.f32 %v2343
    %vm2350 = vmor %vm2348, %vm2349
    %v2351 = vsel %vm2350, %v2343, %v2347
    %v2352 = vand.u32 2147483647, %v2027
    %vm2353 = vcmp.eq.f32.partialorder %v2352, 8.507059e+37
    %v2354 = vand.u32 %v2027, 2147483648
    %v2355 = vor.u32 1.1754944e-38, %v2354
    %v2356 = vsel %vm2353, %v2355, %v2351
    %v2357 = vmul.f32 1.0, %v2356
    %v2358 = vrcp.pop %v2028
    %v2359 = vmul.f32 %v2028, %v2358
    %v2360 = vsub.f32 1.0, %v2359
    %v2361 = vmul.f32 %v2358, %v2360
    %v2362 = vadd.f32 %v2358, %v2361
    %vm2363 = vweird.f32 %v2028
    %vm2364 = vweird.f32 %v2358
    %vm2365 = vmor %vm2363, %vm2364
    %v2366 = vsel %vm2365, %v2358, %v2362
    %v2367 = vand.u32 2147483647, %v2028
    %vm2368 = vcmp.eq.f32.partialorder %v2367, 8.507059e+37
    %v2369 = vand.u32 %v2028, 2147483648
    %v2370 = vor.u32 1.1754944e-38, %v2369
    %v2371 = vsel %vm2368, %v2370, %v2366
    %v2372 = vmul.f32 1.0, %v2371
    %v2373 = vrcp.pop %v2029
    %v2374 = vmul.f32 %v2029, %v2373
    %v2375 = vsub.f32 1.0, %v2374
    %v2376 = vmul.f32 %v2373, %v2375
    %v2377 = vadd.f32 %v2373, %v2376
    %vm2378 = vweird.f32 %v2029
    %vm2379 = vweird.f32 %v2373
    %vm2380 = vmor %vm2378, %vm2379
    %v2381 = vsel %vm2380, %v2373, %v2377
    %v2382 = vand.u32 2147483647, %v2029
    %vm2383 = vcmp.eq.f32.partialorder %v2382, 8.507059e+37
    %v2384 = vand.u32 %v2029, 2147483648
    %v2385 = vor.u32 1.1754944e-38, %v2384
    %v2386 = vsel %vm2383, %v2385, %v2381
    %v2387 = vmul.f32 1.0, %v2386
    %v2388 = vrcp.pop %v2030
    %v2389 = vmul.f32 %v2030, %v2388
    %v2390 = vsub.f32 1.0, %v2389
    %v2391 = vmul.f32 %v2388, %v2390
    %v2392 = vadd.f32 %v2388, %v2391
    %vm2393 = vweird.f32 %v2030
    %vm2394 = vweird.f32 %v2388
    %vm2395 = vmor %vm2393, %vm2394
    %v2396 = vsel %vm2395, %v2388, %v2392
    %v2397 = vand.u32 2147483647, %v2030
    %vm2398 = vcmp.eq.f32.partialorder %v2397, 8.507059e+37
    %v2399 = vand.u32 %v2030, 2147483648
    %v2400 = vor.u32 1.1754944e-38, %v2399
    %v2401 = vsel %vm2398, %v2400, %v2396
    %v2402 = vmul.f32 1.0, %v2401
    %v2403 = vrcp.pop %v2031
    %v2404 = vmul.f32 %v2031, %v2403
    %v2405 = vsub.f32 1.0, %v2404
    %v2406 = vmul.f32 %v2403, %v2405
    %v2407 = vadd.f32 %v2403, %v2406
    %vm2408 = vweird.f32 %v2031
    %vm2409 = vweird.f32 %v2403
    %vm2410 = vmor %vm2408, %vm2409
    %v2411 = vsel %vm2410, %v2403, %v2407
    %v2412 = vand.u32 2147483647, %v2031
    %vm2413 = vcmp.eq.f32.partialorder %v2412, 8.507059e+37
    %v2414 = vand.u32 %v2031, 2147483648
    %v2415 = vor.u32 1.1754944e-38, %v2414
    %v2416 = vsel %vm2413, %v2415, %v2411
    %v2417 = vmul.f32 1.0, %v2416
    %v2418 = vrcp.pop %v2032
    %v2419 = vmul.f32 %v2032, %v2418
    %v2420 = vsub.f32 1.0, %v2419
    %v2421 = vmul.f32 %v2418, %v2420
    %v2422 = vadd.f32 %v2418, %v2421
    %vm2423 = vweird.f32 %v2032
    %vm2424 = vweird.f32 %v2418
    %vm2425 = vmor %vm2423, %vm2424
    %v2426 = vsel %vm2425, %v2418, %v2422
    %v2427 = vand.u32 2147483647, %v2032
    %vm2428 = vcmp.eq.f32.partialorder %v2427, 8.507059e+37
    %v2429 = vand.u32 %v2032, 2147483648
    %v2430 = vor.u32 1.1754944e-38, %v2429
    %v2431 = vsel %vm2428, %v2430, %v2426
    %v2432 = vmul.f32 1.0, %v2431
    %v2433 = vrcp.pop %v2033
    %v2434 = vmul.f32 %v2033, %v2433
    %v2435 = vsub.f32 1.0, %v2434
    %v2436 = vmul.f32 %v2433, %v2435
    %v2437 = vadd.f32 %v2433, %v2436
    %vm2438 = vweird.f32 %v2033
    %vm2439 = vweird.f32 %v2433
    %vm2440 = vmor %vm2438, %vm2439
    %v2441 = vsel %vm2440, %v2433, %v2437
    %v2442 = vand.u32 2147483647, %v2033
    %vm2443 = vcmp.eq.f32.partialorder %v2442, 8.507059e+37
    %v2444 = vand.u32 %v2033, 2147483648
    %v2445 = vor.u32 1.1754944e-38, %v2444
    %v2446 = vsel %vm2443, %v2445, %v2441
    %v2447 = vmul.f32 1.0, %v2446
    %v2448 = vrcp.pop %v2034
    %v2449 = vmul.f32 %v2034, %v2448
    %v2450 = vsub.f32 1.0, %v2449
    %v2451 = vmul.f32 %v2448, %v2450
    %v2452 = vadd.f32 %v2448, %v2451
    %vm2453 = vweird.f32 %v2034
    %vm2454 = vweird.f32 %v2448
    %vm2455 = vmor %vm2453, %vm2454
    %v2456 = vsel %vm2455, %v2448, %v2452
    %v2457 = vand.u32 2147483647, %v2034
    %vm2458 = vcmp.eq.f32.partialorder %v2457, 8.507059e+37
    %v2459 = vand.u32 %v2034, 2147483648
    %v2460 = vor.u32 1.1754944e-38, %v2459
    %v2461 = vsel %vm2458, %v2460, %v2456
    %v2462 = vmul.f32 1.0, %v2461
    %v2463 = vrcp.pop %v2035
    %v2464 = vmul.f32 %v2035, %v2463
    %v2465 = vsub.f32 1.0, %v2464
    %v2466 = vmul.f32 %v2463, %v2465
    %v2467 = vadd.f32 %v2463, %v2466
    %vm2468 = vweird.f32 %v2035
    %vm2469 = vweird.f32 %v2463
    %vm2470 = vmor %vm2468, %vm2469
    %v2471 = vsel %vm2470, %v2463, %v2467
    %v2472 = vand.u32 2147483647, %v2035
    %vm2473 = vcmp.eq.f32.partialorder %v2472, 8.507059e+37
    %v2474 = vand.u32 %v2035, 2147483648
    %v2475 = vor.u32 1.1754944e-38, %v2474
    %v2476 = vsel %vm2473, %v2475, %v2471
    %v2477 = vmul.f32 1.0, %v2476
    %v2478 = vrcp.pop %v2036
    %v2479 = vmul.f32 %v2036, %v2478
    %v2480 = vsub.f32 1.0, %v2479
    %v2481 = vmul.f32 %v2478, %v2480
    %v2482 = vadd.f32 %v2478, %v2481
    %vm2483 = vweird.f32 %v2036
    %vm2484 = vweird.f32 %v2478
    %vm2485 = vmor %vm2483, %vm2484
    %v2486 = vsel %vm2485, %v2478, %v2482
    %v2487 = vand.u32 2147483647, %v2036
    %vm2488 = vcmp.eq.f32.partialorder %v2487, 8.507059e+37
    %v2489 = vand.u32 %v2036, 2147483648
    %v2490 = vor.u32 1.1754944e-38, %v2489
    %v2491 = vsel %vm2488, %v2490, %v2486
    %v2492 = vmul.f32 1.0, %v2491
    %v2493 = vrcp.pop %v2037
    %v2494 = vmul.f32 %v2037, %v2493
    %v2495 = vsub.f32 1.0, %v2494
    %v2496 = vmul.f32 %v2493, %v2495
    %v2497 = vadd.f32 %v2493, %v2496
    %vm2498 = vweird.f32 %v2037
    %vm2499 = vweird.f32 %v2493
    %vm2500 = vmor %vm2498, %vm2499
    %v2501 = vsel %vm2500, %v2493, %v2497
    %v2502 = vand.u32 2147483647, %v2037
    %vm2503 = vcmp.eq.f32.partialorder %v2502, 8.507059e+37
    %v2504 = vand.u32 %v2037, 2147483648
    %v2505 = vor.u32 1.1754944e-38, %v2504
    %v2506 = vsel %vm2503, %v2505, %v2501
    %v2507 = vmul.f32 1.0, %v2506
    %v2508 = vrcp.pop %v2038
    %v2509 = vmul.f32 %v2038, %v2508
    %v2510 = vsub.f32 1.0, %v2509
    %v2511 = vmul.f32 %v2508, %v2510
    %v2512 = vadd.f32 %v2508, %v2511
    %vm2513 = vweird.f32 %v2038
    %vm2514 = vweird.f32 %v2508
    %vm2515 = vmor %vm2513, %vm2514
    %v2516 = vsel %vm2515, %v2508, %v2512
    %v2517 = vand.u32 2147483647, %v2038
    %vm2518 = vcmp.eq.f32.partialorder %v2517, 8.507059e+37
    %v2519 = vand.u32 %v2038, 2147483648
    %v2520 = vor.u32 1.1754944e-38, %v2519
    %v2521 = vsel %vm2518, %v2520, %v2516
    %v2522 = vmul.f32 1.0, %v2521
    %v2523 = vrcp.pop %v2039
    %v2524 = vmul.f32 %v2039, %v2523
    %v2525 = vsub.f32 1.0, %v2524
    %v2526 = vmul.f32 %v2523, %v2525
    %v2527 = vadd.f32 %v2523, %v2526
    %vm2528 = vweird.f32 %v2039
    %vm2529 = vweird.f32 %v2523
    %vm2530 = vmor %vm2528, %vm2529
    %v2531 = vsel %vm2530, %v2523, %v2527
    %v2532 = vand.u32 2147483647, %v2039
    %vm2533 = vcmp.eq.f32.partialorder %v2532, 8.507059e+37
    %v2534 = vand.u32 %v2039, 2147483648
    %v2535 = vor.u32 1.1754944e-38, %v2534
    %v2536 = vsel %vm2533, %v2535, %v2531
    %v2537 = vmul.f32 1.0, %v2536
    %v2538 = vrcp.pop %v2040
    %v2539 = vmul.f32 %v2040, %v2538
    %v2540 = vsub.f32 1.0, %v2539
    %v2541 = vmul.f32 %v2538, %v2540
    %v2542 = vadd.f32 %v2538, %v2541
    %vm2543 = vweird.f32 %v2040
    %vm2544 = vweird.f32 %v2538
    %vm2545 = vmor %vm2543, %vm2544
    %v2546 = vsel %vm2545, %v2538, %v2542
    %v2547 = vand.u32 2147483647, %v2040
    %vm2548 = vcmp.eq.f32.partialorder %v2547, 8.507059e+37
    %v2549 = vand.u32 %v2040, 2147483648
    %v2550 = vor.u32 1.1754944e-38, %v2549
    %v2551 = vsel %vm2548, %v2550, %v2546
    %v2552 = vmul.f32 1.0, %v2551
    %v2553 = vrcp.pop %v2041
    %v2554 = vmul.f32 %v2041, %v2553
    %v2555 = vsub.f32 1.0, %v2554
    %v2556 = vmul.f32 %v2553, %v2555
    %v2557 = vadd.f32 %v2553, %v2556
    %vm2558 = vweird.f32 %v2041
    %vm2559 = vweird.f32 %v2553
    %vm2560 = vmor %vm2558, %vm2559
    %v2561 = vsel %vm2560, %v2553, %v2557
    %v2562 = vand.u32 2147483647, %v2041
    %vm2563 = vcmp.eq.f32.partialorder %v2562, 8.507059e+37
    %v2564 = vand.u32 %v2041, 2147483648
    %v2565 = vor.u32 1.1754944e-38, %v2564
    %v2566 = vsel %vm2563, %v2565, %v2561
    %v2567 = vmul.f32 1.0, %v2566
    %v2568 = vrcp.pop %v2042
    %v2569 = vmul.f32 %v2042, %v2568
    %v2570 = vsub.f32 1.0, %v2569
    %v2571 = vmul.f32 %v2568, %v2570
    %v2572 = vadd.f32 %v2568, %v2571
    %vm2573 = vweird.f32 %v2042
    %vm2574 = vweird.f32 %v2568
    %vm2575 = vmor %vm2573, %vm2574
    %v2576 = vsel %vm2575, %v2568, %v2572
    %v2577 = vand.u32 2147483647, %v2042
    %vm2578 = vcmp.eq.f32.partialorder %v2577, 8.507059e+37
    %v2579 = vand.u32 %v2042, 2147483648
    %v2580 = vor.u32 1.1754944e-38, %v2579
    %v2581 = vsel %vm2578, %v2580, %v2576
    %v2582 = vmul.f32 1.0, %v2581
    %v2583 = vrcp.pop %v2043
    %v2584 = vmul.f32 %v2043, %v2583
    %v2585 = vsub.f32 1.0, %v2584
    %v2586 = vmul.f32 %v2583, %v2585
    %v2587 = vadd.f32 %v2583, %v2586
    %vm2588 = vweird.f32 %v2043
    %vm2589 = vweird.f32 %v2583
    %vm2590 = vmor %vm2588, %vm2589
    %v2591 = vsel %vm2590, %v2583, %v2587
    %v2592 = vand.u32 2147483647, %v2043
    %vm2593 = vcmp.eq.f32.partialorder %v2592, 8.507059e+37
    %v2594 = vand.u32 %v2043, 2147483648
    %v2595 = vor.u32 1.1754944e-38, %v2594
    %v2596 = vsel %vm2593, %v2595, %v2591
    %v2597 = vmul.f32 1.0, %v2596
    %v2598 = vrcp.pop %v2044
    %v2599 = vmul.f32 %v2044, %v2598
    %v2600 = vsub.f32 1.0, %v2599
    %v2601 = vmul.f32 %v2598, %v2600
    %v2602 = vadd.f32 %v2598, %v2601
    %vm2603 = vweird.f32 %v2044
    %vm2604 = vweird.f32 %v2598
    %vm2605 = vmor %vm2603, %vm2604
    %v2606 = vsel %vm2605, %v2598, %v2602
    %v2607 = vand.u32 2147483647, %v2044
    %vm2608 = vcmp.eq.f32.partialorder %v2607, 8.507059e+37
    %v2609 = vand.u32 %v2044, 2147483648
    %v2610 = vor.u32 1.1754944e-38, %v2609
    %v2611 = vsel %vm2608, %v2610, %v2606
    %v2612 = vmul.f32 1.0, %v2611
    %v2613 = vrcp.pop %v2045
    %v2614 = vmul.f32 %v2045, %v2613
    %v2615 = vsub.f32 1.0, %v2614
    %v2616 = vmul.f32 %v2613, %v2615
    %v2617 = vadd.f32 %v2613, %v2616
    %vm2618 = vweird.f32 %v2045
    %vm2619 = vweird.f32 %v2613
    %vm2620 = vmor %vm2618, %vm2619
    %v2621 = vsel %vm2620, %v2613, %v2617
    %v2622 = vand.u32 2147483647, %v2045
    %vm2623 = vcmp.eq.f32.partialorder %v2622, 8.507059e+37
    %v2624 = vand.u32 %v2045, 2147483648
    %v2625 = vor.u32 1.1754944e-38, %v2624
    %v2626 = vsel %vm2623, %v2625, %v2621
    %v2627 = vmul.f32 1.0, %v2626
    %v2628 = vrcp.pop %v2046
    %v2629 = vmul.f32 %v2046, %v2628
    %v2630 = vsub.f32 1.0, %v2629
    %v2631 = vmul.f32 %v2628, %v2630
    %v2632 = vadd.f32 %v2628, %v2631
    %vm2633 = vweird.f32 %v2046
    %vm2634 = vweird.f32 %v2628
    %vm2635 = vmor %vm2633, %vm2634
    %v2636 = vsel %vm2635, %v2628, %v2632
    %v2637 = vand.u32 2147483647, %v2046
    %vm2638 = vcmp.eq.f32.partialorder %v2637, 8.507059e+37
    %v2639 = vand.u32 %v2046, 2147483648
    %v2640 = vor.u32 1.1754944e-38, %v2639
    %v2641 = vsel %vm2638, %v2640, %v2636
    %v2642 = vmul.f32 1.0, %v2641
    %v2643 = vrcp.pop %v2047
    %v2644 = vmul.f32 %v2047, %v2643
    %v2645 = vsub.f32 1.0, %v2644
    %v2646 = vmul.f32 %v2643, %v2645
    %v2647 = vadd.f32 %v2643, %v2646
    %vm2648 = vweird.f32 %v2047
    %vm2649 = vweird.f32 %v2643
    %vm2650 = vmor %vm2648, %vm2649
    %v2651 = vsel %vm2650, %v2643, %v2647
    %v2652 = vand.u32 2147483647, %v2047
    %vm2653 = vcmp.eq.f32.partialorder %v2652, 8.507059e+37
    %v2654 = vand.u32 %v2047, 2147483648
    %v2655 = vor.u32 1.1754944e-38, %v2654
    %v2656 = vsel %vm2653, %v2655, %v2651
    %v2657 = vmul.f32 1.0, %v2656
    %v2658 = vrcp.pop %v2048
    %v2659 = vmul.f32 %v2048, %v2658
    %v2660 = vsub.f32 1.0, %v2659
    %v2661 = vmul.f32 %v2658, %v2660
    %v2662 = vadd.f32 %v2658, %v2661
    %vm2663 = vweird.f32 %v2048
    %vm2664 = vweird.f32 %v2658
    %vm2665 = vmor %vm2663, %vm2664
    %v2666 = vsel %vm2665, %v2658, %v2662
    %v2667 = vand.u32 2147483647, %v2048
    %vm2668 = vcmp.eq.f32.partialorder %v2667, 8.507059e+37
    %v2669 = vand.u32 %v2048, 2147483648
    %v2670 = vor.u32 1.1754944e-38, %v2669
    %v2671 = vsel %vm2668, %v2670, %v2666
    %v2672 = vmul.f32 1.0, %v2671
    %v2673 = vrcp.pop %v2049
    %v2674 = vmul.f32 %v2049, %v2673
    %v2675 = vsub.f32 1.0, %v2674
    %v2676 = vmul.f32 %v2673, %v2675
    %v2677 = vadd.f32 %v2673, %v2676
    %vm2678 = vweird.f32 %v2049
    %vm2679 = vweird.f32 %v2673
    %vm2680 = vmor %vm2678, %vm2679
    %v2681 = vsel %vm2680, %v2673, %v2677
    %v2682 = vand.u32 2147483647, %v2049
    %vm2683 = vcmp.eq.f32.partialorder %v2682, 8.507059e+37
    %v2684 = vand.u32 %v2049, 2147483648
    %v2685 = vor.u32 1.1754944e-38, %v2684
    %v2686 = vsel %vm2683, %v2685, %v2681
    %v2687 = vmul.f32 1.0, %v2686
    %v2688 = vrcp.pop %v2050
    %v2689 = vmul.f32 %v2050, %v2688
    %v2690 = vsub.f32 1.0, %v2689
    %v2691 = vmul.f32 %v2688, %v2690
    %v2692 = vadd.f32 %v2688, %v2691
    %vm2693 = vweird.f32 %v2050
    %vm2694 = vweird.f32 %v2688
    %vm2695 = vmor %vm2693, %vm2694
    %v2696 = vsel %vm2695, %v2688, %v2692
    %v2697 = vand.u32 2147483647, %v2050
    %vm2698 = vcmp.eq.f32.partialorder %v2697, 8.507059e+37
    %v2699 = vand.u32 %v2050, 2147483648
    %v2700 = vor.u32 1.1754944e-38, %v2699
    %v2701 = vsel %vm2698, %v2700, %v2696
    %v2702 = vmul.f32 1.0, %v2701
    %v2703 = vrcp.pop %v2051
    %v2704 = vmul.f32 %v2051, %v2703
    %v2705 = vsub.f32 1.0, %v2704
    %v2706 = vmul.f32 %v2703, %v2705
    %v2707 = vadd.f32 %v2703, %v2706
    %vm2708 = vweird.f32 %v2051
    %vm2709 = vweird.f32 %v2703
    %vm2710 = vmor %vm2708, %vm2709
    %v2711 = vsel %vm2710, %v2703, %v2707
    %v2712 = vand.u32 2147483647, %v2051
    %vm2713 = vcmp.eq.f32.partialorder %v2712, 8.507059e+37
    %v2714 = vand.u32 %v2051, 2147483648
    %v2715 = vor.u32 1.1754944e-38, %v2714
    %v2716 = vsel %vm2713, %v2715, %v2711
    %v2717 = vmul.f32 1.0, %v2716
    %v2718 = vrcp.pop %v2052
    %v2719 = vmul.f32 %v2052, %v2718
    %v2720 = vsub.f32 1.0, %v2719
    %v2721 = vmul.f32 %v2718, %v2720
    %v2722 = vadd.f32 %v2718, %v2721
    %vm2723 = vweird.f32 %v2052
    %vm2724 = vweird.f32 %v2718
    %vm2725 = vmor %vm2723, %vm2724
    %v2726 = vsel %vm2725, %v2718, %v2722
    %v2727 = vand.u32 2147483647, %v2052
    %vm2728 = vcmp.eq.f32.partialorder %v2727, 8.507059e+37
    %v2729 = vand.u32 %v2052, 2147483648
    %v2730 = vor.u32 1.1754944e-38, %v2729
    %v2731 = vsel %vm2728, %v2730, %v2726
    %v2732 = vmul.f32 1.0, %v2731
    %v2733 = vrcp.pop %v2053
    %v2734 = vmul.f32 %v2053, %v2733
    %v2735 = vsub.f32 1.0, %v2734
    %v2736 = vmul.f32 %v2733, %v2735
    %v2737 = vadd.f32 %v2733, %v2736
    %vm2738 = vweird.f32 %v2053
    %vm2739 = vweird.f32 %v2733
    %vm2740 = vmor %vm2738, %vm2739
    %v2741 = vsel %vm2740, %v2733, %v2737
    %v2742 = vand.u32 2147483647, %v2053
    %vm2743 = vcmp.eq.f32.partialorder %v2742, 8.507059e+37
    %v2744 = vand.u32 %v2053, 2147483648
    %v2745 = vor.u32 1.1754944e-38, %v2744
    %v2746 = vsel %vm2743, %v2745, %v2741
    %v2747 = vmul.f32 1.0, %v2746
    %v2748 = vrcp.pop %v2054
    %v2749 = vmul.f32 %v2054, %v2748
    %v2750 = vsub.f32 1.0, %v2749
    %v2751 = vmul.f32 %v2748, %v2750
    %v2752 = vadd.f32 %v2748, %v2751
    %vm2753 = vweird.f32 %v2054
    %vm2754 = vweird.f32 %v2748
    %vm2755 = vmor %vm2753, %vm2754
    %v2756 = vsel %vm2755, %v2748, %v2752
    %v2757 = vand.u32 2147483647, %v2054
    %vm2758 = vcmp.eq.f32.partialorder %v2757, 8.507059e+37
    %v2759 = vand.u32 %v2054, 2147483648
    %v2760 = vor.u32 1.1754944e-38, %v2759
    %v2761 = vsel %vm2758, %v2760, %v2756
    %v2762 = vmul.f32 1.0, %v2761
    %v2763 = vrcp.pop %v2055
    %v2764 = vmul.f32 %v2055, %v2763
    %v2765 = vsub.f32 1.0, %v2764
    %v2766 = vmul.f32 %v2763, %v2765
    %v2767 = vadd.f32 %v2763, %v2766
    %vm2768 = vweird.f32 %v2055
    %vm2769 = vweird.f32 %v2763
    %vm2770 = vmor %vm2768, %vm2769
    %v2771 = vsel %vm2770, %v2763, %v2767
    %v2772 = vand.u32 2147483647, %v2055
    %vm2773 = vcmp.eq.f32.partialorder %v2772, 8.507059e+37
    %v2774 = vand.u32 %v2055, 2147483648
    %v2775 = vor.u32 1.1754944e-38, %v2774
    %v2776 = vsel %vm2773, %v2775, %v2771
    %v2777 = vmul.f32 1.0, %v2776
    %v2778 = vrcp.pop %v2056
    %v2779 = vmul.f32 %v2056, %v2778
    %v2780 = vsub.f32 1.0, %v2779
    %v2781 = vmul.f32 %v2778, %v2780
    %v2782 = vadd.f32 %v2778, %v2781
    %vm2783 = vweird.f32 %v2056
    %vm2784 = vweird.f32 %v2778
    %vm2785 = vmor %vm2783, %vm2784
    %v2786 = vsel %vm2785, %v2778, %v2782
    %v2787 = vand.u32 2147483647, %v2056
    %vm2788 = vcmp.eq.f32.partialorder %v2787, 8.507059e+37
    %v2789 = vand.u32 %v2056, 2147483648
    %v2790 = vor.u32 1.1754944e-38, %v2789
    %v2791 = vsel %vm2788, %v2790, %v2786
    %v2792 = vmul.f32 1.0, %v2791
    %v2793 = vrcp.pop %v2057
    %v2794 = vmul.f32 %v2057, %v2793
    %v2795 = vsub.f32 1.0, %v2794
    %v2796 = vmul.f32 %v2793, %v2795
    %v2797 = vadd.f32 %v2793, %v2796
    %vm2798 = vweird.f32 %v2057
    %vm2799 = vweird.f32 %v2793
    %vm2800 = vmor %vm2798, %vm2799
    %v2801 = vsel %vm2800, %v2793, %v2797
    %v2802 = vand.u32 2147483647, %v2057
    %vm2803 = vcmp.eq.f32.partialorder %v2802, 8.507059e+37
    %v2804 = vand.u32 %v2057, 2147483648
    %v2805 = vor.u32 1.1754944e-38, %v2804
    %v2806 = vsel %vm2803, %v2805, %v2801
    %v2807 = vmul.f32 1.0, %v2806
    %2808 = vst [vmem:[%s3] sm:$0xff] %v2072
    %2809 = vst [vmem:[%s3 + $0x8] sm:$0xff] %v2087
    %2810 = vst [vmem:[%s3 + $0x10] sm:$0xff] %v2102
    %2811 = vst [vmem:[%s3 + $0x18] sm:$0xff] %v2117
    %2812 = vst [vmem:[%s3 + $0x20] sm:$0xff] %v2132
    %2813 = vst [vmem:[%s3 + $0x28] sm:$0xff] %v2147
    %2814 = vst [vmem:[%s3 + $0x30] sm:$0xff] %v2162
    %2815 = vst [vmem:[%s3 + $0x38] sm:$0xff] %v2177
    %2816 = vst [vmem:[%s3 + $0x40] sm:$0xff] %v2192
    %2817 = vst [vmem:[%s3 + $0x48] sm:$0xff] %v2207
    %2818 = vst [vmem:[%s3 + $0x50] sm:$0xff] %v2222
    %2819 = vst [vmem:[%s3 + $0x58] sm:$0xff] %v2237
    %2820 = vst [vmem:[%s3 + $0x60] sm:$0xff] %v2252
    %2821 = vst [vmem:[%s3 + $0x68] sm:$0xff] %v2267
    %2822 = vst [vmem:[%s3 + $0x70] sm:$0xff] %v2282
    %2823 = vst [vmem:[%s3 + $0x78] sm:$0xff] %v2297
    %2824 = vst [vmem:[%s3 + $0x80] sm:$0xff] %v2312
    %2825 = vst [vmem:[%s3 + $0x88] sm:$0xff] %v2327
    %2826 = vst [vmem:[%s3 + $0x90] sm:$0xff] %v2342
    %2827 = vst [vmem:[%s3 + $0x98] sm:$0xff] %v2357
    %2828 = vst [vmem:[%s3 + $0xa0] sm:$0xff] %v2372
    %2829 = vst [vmem:[%s3 + $0xa8] sm:$0xff] %v2387
    %2830 = vst [vmem:[%s3 + $0xb0] sm:$0xff] %v2402
    %2831 = vst [vmem:[%s3 + $0xb8] sm:$0xff] %v2417
    %2832 = vst [vmem:[%s3 + $0xc0] sm:$0xff] %v2432
    %2833 = vst [vmem:[%s3 + $0xc8] sm:$0xff] %v2447
    %2834 = vst [vmem:[%s3 + $0xd0] sm:$0xff] %v2462
    %2835 = vst [vmem:[%s3 + $0xd8] sm:$0xff] %v2477
    %2836 = vst [vmem:[%s3 + $0xe0] sm:$0xff] %v2492
    %2837 = vst [vmem:[%s3 + $0xe8] sm:$0xff] %v2507
    %2838 = vst [vmem:[%s3 + $0xf0] sm:$0xff] %v2522
    %2839 = vst [vmem:[%s3 + $0xf8] sm:$0xff] %v2537
    %2840 = vst [vmem:[%s3 + $0x100] sm:$0xff] %v2552
    %2841 = vst [vmem:[%s3 + $0x108] sm:$0xff] %v2567
    %2842 = vst [vmem:[%s3 + $0x110] sm:$0xff] %v2582
    %2843 = vst [vmem:[%s3 + $0x118] sm:$0xff] %v2597
    %2844 = vst [vmem:[%s3 + $0x120] sm:$0xff] %v2612
    %2845 = vst [vmem:[%s3 + $0x128] sm:$0xff] %v2627
    %2846 = vst [vmem:[%s3 + $0x130] sm:$0xff] %v2642
    %2847 = vst [vmem:[%s3 + $0x138] sm:$0xff] %v2657
    %2848 = vst [vmem:[%s3 + $0x140] sm:$0xff] %v2672
    %2849 = vst [vmem:[%s3 + $0x148] sm:$0xff] %v2687
    %2850 = vst [vmem:[%s3 + $0x150] sm:$0xff] %v2702
    %2851 = vst [vmem:[%s3 + $0x158] sm:$0xff] %v2717
    %2852 = vst [vmem:[%s3 + $0x160] sm:$0xff] %v2732
    %2853 = vst [vmem:[%s3 + $0x168] sm:$0xff] %v2747
    %2854 = vst [vmem:[%s3 + $0x170] sm:$0xff] %v2762
    %2855 = vst [vmem:[%s3 + $0x178] sm:$0xff] %v2777
    %2856 = vst [vmem:[%s3 + $0x180] sm:$0xff] %v2792
    %2857 = vst [vmem:[%s3 + $0x188] sm:$0xff] %v2807
    // Predicated region
    $region22: #{_lambda_.5} parent=1 // pred_check
      _
    $region23: #{_lambda_.5} parent=1 // pred_check_branch
      %2859 = sbr.rel (0) target = $region25
    $region24: #{_lambda_.5} parent=1 // pred_region
      _
    $region25: #{_lambda_.5} parent=1 // pred_fallthru
      _
    // Predicated region
    $region26: #{_lambda_.5} parent=1 // pred_check
      _
    $region27: #{_lambda_.5} parent=1 // pred_check_branch
      %2861 = sbr.rel (0) target = $region29
    $region28: #{_lambda_.5} parent=1 // pred_region
      _
    $region29: #{_lambda_.5} parent=1 // pred_fallthru
      _
    %2862 = vsyncpa [#allocation3], 1
    %2863 = vsyncpa [#allocation5], 1

</llo_original>
